<compile_context>
chip_gen: v7x
topology: tpu7x:2x2x1
jax: 0.10.0
libtpu: 0.0.40
codegen_flags: <defaults>
</compile_context>

<pallas_src>
import numpy as np
import jax
import jax.numpy as jnp
from jax.experimental import pallas as pl
from jax.experimental.pallas import tpu as pltpu


# --------------------- deterministic parameter construction ---------------------

def _rotate_bilinear_nearest(img, angle_deg):
    """Rotate a 2D array about its centre (reshape=False, 'nearest' edges,
    bilinear interpolation).  Deterministic numpy stand-in for ndimage.rotate."""
    h, w = img.shape
    cy, cx = (h - 1) / 2.0, (w - 1) / 2.0
    th = np.deg2rad(angle_deg)
    c, s = np.cos(th), np.sin(th)
    out = np.zeros((h, w), dtype=np.float64)
    for i in range(h):
        for j in range(w):
            y, x = i - cy, j - cx
            ys = c * y + s * x + cy
            xs = -s * y + c * x + cx
            ys = min(max(ys, 0.0), h - 1.0)
            xs = min(max(xs, 0.0), w - 1.0)
            y0, x0 = int(np.floor(ys)), int(np.floor(xs))
            y1, x1 = min(y0 + 1, h - 1), min(x0 + 1, w - 1)
            dy, dx = ys - y0, xs - x0
            out[i, j] = (img[y0, x0] * (1 - dy) * (1 - dx) + img[y0, x1] * (1 - dy) * dx
                         + img[y1, x0] * dy * (1 - dx) + img[y1, x1] * dy * dx)
    return out


def generate_masks(mask_size=3, angle_res=45, normalize=False):
    # TODO(synk): scipy.ndimage.rotate (cubic-spline) is replaced by a deterministic
    # numpy bilinear rotation for parameter init; shapes/semantics are identical.
    if mask_size < 3:
        mask_size = 3
    elif mask_size % 2 == 0:
        mask_size += 1
    Gy = np.outer(np.array([1, 0, -1]).T, np.array([1, 2, 1])).astype(np.float64)
    angles = np.arange(0, 360, angle_res)
    masks = np.zeros((len(angles), mask_size, mask_size), dtype=np.float64)
    for a_i, ang in enumerate(angles):
        masks[a_i] = _rotate_bilinear_nearest(Gy, ang)
    # Snap fp-noise (cos(90 deg) ~ 6e-17) to exact zeros so the trace-time
    # zero-tap skip actually triggers for the axis-aligned orientations.
    masks[np.abs(masks) < 1e-10] = 0.0
    if normalize:
        masks = masks / 8.0
    return masks.astype(np.float32)


def _pool_matrix(in_len, win, stride):
    out_len = (in_len - win) // stride + 1
    P = np.zeros((out_len, in_len), dtype=np.float32)
    for p in range(out_len):
        P[p, p * stride:p * stride + win] = 1.0
    return P


def _round_up(x, m):
    return ((x + m - 1) // m) * m


def _prefers_multi_step():
    """True on chips with >1 TensorCore per chip (v4/v5p megacore, v7x)."""
    try:
        kind = jax.devices()[0].device_kind.lower()
    except Exception:
        return True
    return any(t in kind for t in ("v7", "7x", "v4", "v5p"))


# ------------------------------- Pallas forward ----------------------------------

def make_ehd_forward(in_channels, masks, dilation, threshold, window_size, stride,
                     normalize_count, aggregation_type, B, H, W, dtype=jnp.float32,
                     max_batch_block=8):
    C = in_channels
    O, kh, kw = masks.shape                       # num_orientations, 3, 3
    d = dilation
    Hc, Wc = H - d * (kh - 1), W - d * (kw - 1)   # conv output (no padding, stride 1)
    wh, ww = window_size
    Hp, Wp = (Hc - wh) // stride + 1, (Wc - ww) // stride + 1
    window_scale = float(np.prod(np.asarray(window_size)))
    # avg-pool then (optionally) multiply by window_scale, exactly as the module does
    scale = (1.0 / (wh * ww)) if normalize_count else (window_scale / (wh * ww))
    nbins = O + 1

    # Lane-aligned geometry: each bin owns a 128-aligned Wc_pad-wide lane segment
    # of the one-hot slab; the output width is padded to a lane-dense multiple of 128.
    Wc_pad = _round_up(Wc, 128)
    NWc = nbins * Wc_pad
    Npad = _round_up(nbins * Wp, 128)

    # Mask taps as trace-time constants, exact zeros skipped (feedback #1).
    masks_flat = masks.reshape(O, kh * kw).astype(np.float64)
    taps_per_o = [[(t, float(masks_flat[o, t]))
                   for t in range(kh * kw) if masks_flat[o, t] != 0.0]
                  for o in range(O)]
    needed_taps = sorted({t for terms in taps_per_o for (t, _) in terms})

    # 0/1 pooling matrices (exact in bf16).  Column pool is block-diagonal over
    # the 128-aligned bin segments with zero rows in the lane padding and zero
    # tail columns up to Npad.
    ph = _pool_matrix(Hc, wh, stride)                          # (Hp, Hc)
    pw_t = np.ascontiguousarray(_pool_matrix(Wc, ww, stride).T)  # (Wc, Wp)
    pwd = np.zeros((NWc, Npad), np.float32)
    for k in range(nbins):
        pwd[k * Wc_pad:k * Wc_pad + Wc, k * Wp:(k + 1) * Wp] = pw_t

    # ---- device-aware batch blocking (feedback #5/#6/#7).
    prefer_multi = _prefers_multi_step()
    budget_bytes = (12 << 20) if prefer_multi else (24 << 20)
    pwd_bytes = pwd.size * 2
    per_image = (2 * C * H * W * 4           # double-buffered input
                 + 2 * Hp * Npad * 4         # double-buffered output
                 + Hc * NWc * 2              # bf16 bin slab rows
                 + 12 * Hc * Wc * 4)         # conv temporaries (taps + val/idx/acc)
    Bblk = 1
    for bb in range(1, min(B, max_batch_block) + 1):
        if B % bb:
            continue
        if 2 * pwd_bytes + bb * per_image > budget_bytes:
            continue
        if prefer_multi and B >= 2 and (B // bb) < 2:
            continue
        Bblk = bb
    grid_b = B // Bblk

    # Bblk-block-diagonal row-pool matrix so the row pool is ONE dot per grid step.
    phblk = np.zeros((Bblk * Hp, Bblk * Hc), np.float32)
    for b in range(Bblk):
        phblk[b * Hp:(b + 1) * Hp, b * Hc:(b + 1) * Hc] = ph

    vmem_est = (2 * (Bblk * C * H * W * 4)            # input block (double buffered)
                + 2 * (Bblk * Hp * Npad * 4)          # output block
                + 2 * (phblk.size * 2 + pwd_bytes)    # pooling operands
                + Bblk * Hc * NWc * 2                 # bf16 slab scratch
                + (12 * Hc * Wc + 2 * Bblk * Hp * NWc) * 4)
    vmem_limit = int(min(max(2 * vmem_est + (4 << 20), 16 << 20), 40 << 20))

    rows_in_bf16 = (wh <= 256)   # row-pool counts are exact in bf16 only up to 256

    def kernel(x_ref, phblk_ref, pwd_ref, out_ref, slab_ref):
        # x_ref:     (Bblk, C, H, W)            VMEM f32
        # phblk_ref: (Bblk*Hp, Bblk*Hc)         VMEM bf16 (block-diag 0/1 row pool)
        # pwd_ref:   (nbins*Wc_pad, Npad)       VMEM bf16 (block-diag 0/1 col pool)
        # out_ref:   (1, Bblk*Hp, Npad)
        # slab_ref:  (Bblk*Hc, nbins*Wc_pad)    VMEM bf16 scratch (one-hot slab)
        for b in range(Bblk):
            val = jnp.full((Hc, Wc), -jnp.inf, jnp.float32)
            idx = jnp.zeros((Hc, Wc), jnp.int32)
            for c in range(C):
                xc = x_ref[b, c, :, :].astype(jnp.float32)          # (H, W)
                # Shifted input windows materialized once per channel and reused
                # for every orientation (center tap is always zero -> skipped).
                taps = {}
                for t in needed_taps:
                    u, v = divmod(t, kw)
                    taps[t] = xc[u * d:u * d + Hc, v * d:v * d + Wc]
                for o in range(O):
                    acc = None
                    for t, wgt in taps_per_o[o]:
                        if wgt == 1.0:
                            term = taps[t]
                        elif wgt == -1.0:
                            term = -taps[t]
                        else:
                            term = wgt * taps[t]
                        acc = term if acc is None else acc + term
                    ch = c * O + o
                    better = acc > val          # strict '>' == first-occurrence argmax
                    val = jnp.where(better, acc, val)
                    idx = jnp.where(better, ch, idx)
            # below-threshold pixels -> "no edge" bin (== num_orientations, as in PyTorch)
            idx = jnp.where(val < threshold, O, idx)
            if Wc_pad > Wc:
                idx = jnp.concatenate(
                    [idx, jnp.full((Hc, Wc_pad - Wc), -1, jnp.int32)], axis=1)
            # bf16 one-hot bin maps, written at 128-aligned lane offsets into the
            # shared slab (no lane-offset concats, bounded live ranges per image).
            for k in range(nbins):
                slab_ref[b * Hc:(b + 1) * Hc, k * Wc_pad:(k + 1) * Wc_pad] = (
                    (idx == k).astype(jnp.bfloat16))

        # ONE pair of pooling matmuls per grid step; 0/1 operands + integer
        # partial counts are exact in bf16 with f32 MXU accumulation.
        slab = slab_ref[...]
        rows = jnp.dot(phblk_ref[...], slab, preferred_element_type=jnp.float32)
        if rows_in_bf16:
            rows = rows.astype(jnp.bfloat16)
        pooled = jnp.dot(rows, pwd_ref[...], preferred_element_type=jnp.float32)
        if scale != 1.0:
            pooled = pooled * scale
        out_ref[0, :, :] = pooled.astype(out_ref.dtype)   # single lane-dense store

    fwd = pl.pallas_call(
        kernel,
        out_shape=jax.ShapeDtypeStruct((grid_b, Bblk * Hp, Npad), dtype),
        grid=(grid_b,),
        in_specs=[
            pl.BlockSpec((Bblk, C, H, W), lambda b: (b, 0, 0, 0)),
            pl.BlockSpec((Bblk * Hp, Bblk * Hc), lambda b: (0, 0)),
            pl.BlockSpec((NWc, Npad), lambda b: (0, 0)),
        ],
        out_specs=pl.BlockSpec((1, Bblk * Hp, Npad), lambda b: (b, 0, 0)),
        scratch_shapes=[pltpu.VMEM((Bblk * Hc, NWc), jnp.bfloat16)],
        compiler_params=pltpu.CompilerParams(
            dimension_semantics=("parallel",),
            vmem_limit_bytes=vmem_limit),
    )

    phblk_j = jnp.asarray(phblk, dtype=jnp.bfloat16)
    pwd_j = jnp.asarray(pwd, dtype=jnp.bfloat16)
    # Channel replication: C copies of each orientation map, then C no-edge copies.
    chan_index = jnp.asarray(
        np.array([e for _c in range(C) for e in range(O)] + [O] * C, dtype=np.int32))

    @jax.jit
    def forward(x):
        raw = fwd(x.astype(dtype), phblk_j, pwd_j)        # (grid_b, Bblk*Hp, Npad)
        raw = raw.reshape(B, Hp, Npad)[:, :, :nbins * Wp]
        distinct = raw.reshape(B, Hp, nbins, Wp).transpose(0, 2, 1, 3)  # (B, nbins, Hp, Wp)
        if aggregation_type == 'GAP':
            # adaptive_avg_pool2d(., 1) == spatial mean; replicate AFTER the mean
            distinct = jnp.mean(distinct, axis=(2, 3), keepdims=True)
        return distinct[:, chan_index]                    # (B, C*O + C, ., .)

    return forward


# ------------------------------- numpy reference ---------------------------------

def ehd_reference(x, masks, dilation, threshold, window_size, stride, normalize_count):
    x = np.asarray(x, np.float32)
    B, C, H, W = x.shape
    O, kh, kw = masks.shape
    d = dilation
    Hc, Wc = H - d * (kh - 1), W - d * (kw - 1)
    conv = np.zeros((B, C * O, Hc, Wc), np.float32)
    for b in range(B):
        for c in range(C):
            for o in range(O):
                acc = np.zeros((Hc, Wc), np.float32)
                for u in range(kh):
                    for v in range(kw):
                        acc += masks[o, u, v] * x[b, c, u * d:u * d + Hc, v * d:v * d + Wc]
                conv[b, c * O + o] = acc
    value = conv.max(axis=1)
    index = conv.argmax(axis=1)
    index[value < threshold] = O
    wh, ww = window_size
    Hp, Wp = (Hc - wh) // stride + 1, (Wc - ww) // stride + 1
    window_scale = float(np.prod(np.asarray(window_size)))

    def pool(m):
        out = np.zeros((B, Hp, Wp), np.float32)
        for pi in range(Hp):
            for pj in range(Wp):
                out[:, pi, pj] = m[:, pi * stride:pi * stride + wh,
                                   pj * stride:pj * stride + ww].mean(axis=(1, 2))
        return out

    feat = [pool((index == e).astype(np.float32)) for _c in range(C) for e in range(O)]
    noe = [pool((index == O).astype(np.float32)) for _c in range(C)]
    feat = np.stack(feat, axis=1)
    noe = np.stack(noe, axis=1)
    if not normalize_count:
        feat = feat * window_scale
        noe = noe * window_scale
    return np.concatenate([feat, noe], axis=1)


# ------------------------------------ main ----------------------------------------

if __name__ == "__main__":
    B, C, H, W = 2, 4, 16, 16
    angle_res = 45                    # -> 8 orientations
    dilation = 1
    threshold = 0.25
    window_size = (4, 4)
    stride = 2
    normalize_count = False
    normalize_kernel = True
    aggregation_type = 'Local'        # not 'GAP' -> keep spatial maps

    masks = generate_masks(3, angle_res, normalize_kernel)

    key = jax.random.PRNGKey(0)
    x = jax.random.normal(key, (B, C, H, W), dtype=jnp.float32)

    forward = make_ehd_forward(C, masks, dilation, threshold, window_size, stride,
                               normalize_count, aggregation_type, B, H, W)

    out = jax.block_until_ready(forward(x))

    ref = ehd_reference(np.asarray(x), masks, dilation, threshold, window_size,
                        stride, normalize_count)
    assert out.shape == ref.shape, (out.shape, ref.shape)
    np.testing.assert_allclose(np.asarray(out), ref, atol=1e-4, rtol=1e-4)

    print("KERNEL_OK")
</pallas_src>

<mosaic_0001>
module attributes {stable_mosaic.version = 11 : i64} {
  func.func @kernel(%arg0: i32, %arg1: memref<2x4x16x16xf32, #tpu.memory_space<vmem>>, %arg2: memref<12x28xbf16, #tpu.memory_space<vmem>>, %arg3: memref<1152x128xbf16, #tpu.memory_space<vmem>>, %arg4: memref<1x12x128xf32, #tpu.memory_space<vmem>>, %arg5: memref<28x1152xbf16, #tpu.memory_space<vmem>>) attributes {dimension_semantics = [#tpu.dimension_semantics<parallel>], iteration_bounds = array<i64: 1>, scalar_prefetch = 0 : i64, scratch_operands = 1 : i64, tpu.core_type = #tpu.core_type<tc>, window_params = [{transform_indices = @transform_0, window_bounds = array<i64: 2, 4, 16, 16>}, {pipeline_mode = #tpu.pipeline_mode<synchronous>, transform_indices = @transform_1, window_bounds = array<i64: 12, 28>}, {pipeline_mode = #tpu.pipeline_mode<synchronous>, transform_indices = @transform_2, window_bounds = array<i64: 1152, 128>}, {transform_indices = @transform_3, window_bounds = array<i64: 1, 12, 128>}]} {
    %cst = arith.constant 0xFF800000 : f32
    %0 = vector.broadcast %cst : f32 to vector<14x14xf32>
    %c0_i32 = arith.constant 0 : i32
    %1 = vector.broadcast %c0_i32 : i32 to vector<14x14xi32>
    %c0 = arith.constant 0 : index
    %c0_0 = arith.constant 0 : index
    %c0_1 = arith.constant 0 : index
    %c0_2 = arith.constant 0 : index
    %2 = vector.load %arg1[%c0, %c0_0, %c0_1, %c0_2] : memref<2x4x16x16xf32, #tpu.memory_space<vmem>>, vector<1x1x16x16xf32>
    %3 = vector.shape_cast %2 : vector<1x1x16x16xf32> to vector<16x16xf32>
    %4 = vector.extract_strided_slice %3 {offsets = [0, 0], sizes = [14, 14], strides = [1, 1]} : vector<16x16xf32> to vector<14x14xf32>
    %5 = vector.extract_strided_slice %3 {offsets = [0, 1], sizes = [14, 14], strides = [1, 1]} : vector<16x16xf32> to vector<14x14xf32>
    %6 = vector.extract_strided_slice %3 {offsets = [0, 2], sizes = [14, 14], strides = [1, 1]} : vector<16x16xf32> to vector<14x14xf32>
    %7 = vector.extract_strided_slice %3 {offsets = [1, 0], sizes = [14, 14], strides = [1, 1]} : vector<16x16xf32> to vector<14x14xf32>
    %8 = vector.extract_strided_slice %3 {offsets = [1, 2], sizes = [14, 14], strides = [1, 1]} : vector<16x16xf32> to vector<14x14xf32>
    %9 = vector.extract_strided_slice %3 {offsets = [2, 0], sizes = [14, 14], strides = [1, 1]} : vector<16x16xf32> to vector<14x14xf32>
    %10 = vector.extract_strided_slice %3 {offsets = [2, 1], sizes = [14, 14], strides = [1, 1]} : vector<16x16xf32> to vector<14x14xf32>
    %11 = vector.extract_strided_slice %3 {offsets = [2, 2], sizes = [14, 14], strides = [1, 1]} : vector<16x16xf32> to vector<14x14xf32>
    %cst_3 = arith.constant 1.250000e-01 : f32
    %12 = vector.broadcast %cst_3 : f32 to vector<14x14xf32>
    %13 = arith.mulf %12, %4 : vector<14x14xf32>
    %cst_4 = arith.constant 2.500000e-01 : f32
    %14 = vector.broadcast %cst_4 : f32 to vector<14x14xf32>
    %15 = arith.mulf %14, %5 : vector<14x14xf32>
    %16 = arith.addf %13, %15 : vector<14x14xf32>
    %cst_5 = arith.constant 1.250000e-01 : f32
    %17 = vector.broadcast %cst_5 : f32 to vector<14x14xf32>
    %18 = arith.mulf %17, %6 : vector<14x14xf32>
    %19 = arith.addf %16, %18 : vector<14x14xf32>
    %cst_6 = arith.constant -1.250000e-01 : f32
    %20 = vector.broadcast %cst_6 : f32 to vector<14x14xf32>
    %21 = arith.mulf %20, %9 : vector<14x14xf32>
    %22 = arith.addf %19, %21 : vector<14x14xf32>
    %cst_7 = arith.constant -2.500000e-01 : f32
    %23 = vector.broadcast %cst_7 : f32 to vector<14x14xf32>
    %24 = arith.mulf %23, %10 : vector<14x14xf32>
    %25 = arith.addf %22, %24 : vector<14x14xf32>
    %cst_8 = arith.constant -1.250000e-01 : f32
    %26 = vector.broadcast %cst_8 : f32 to vector<14x14xf32>
    %27 = arith.mulf %26, %11 : vector<14x14xf32>
    %28 = arith.addf %25, %27 : vector<14x14xf32>
    %29 = arith.cmpf ogt, %28, %0 : vector<14x14xf32>
    %30 = arith.select %29, %28, %0 : vector<14x14xi1>, vector<14x14xf32>
    %c0_i32_9 = arith.constant 0 : i32
    %31 = vector.broadcast %c0_i32_9 : i32 to vector<14x14xi32>
    %32 = arith.select %29, %31, %1 : vector<14x14xi1>, vector<14x14xi32>
    %cst_10 = arith.constant 2.500000e-01 : f32
    %33 = vector.broadcast %cst_10 : f32 to vector<14x14xf32>
    %34 = arith.mulf %33, %4 : vector<14x14xf32>
    %cst_11 = arith.constant 0.114276692 : f32
    %35 = vector.broadcast %cst_11 : f32 to vector<14x14xf32>
    %36 = arith.mulf %35, %5 : vector<14x14xf32>
    %37 = arith.addf %34, %36 : vector<14x14xf32>
    %cst_12 = arith.constant 0.114276692 : f32
    %38 = vector.broadcast %cst_12 : f32 to vector<14x14xf32>
    %39 = arith.mulf %38, %7 : vector<14x14xf32>
    %40 = arith.addf %37, %39 : vector<14x14xf32>
    %cst_13 = arith.constant -0.114276692 : f32
    %41 = vector.broadcast %cst_13 : f32 to vector<14x14xf32>
    %42 = arith.mulf %41, %8 : vector<14x14xf32>
    %43 = arith.addf %40, %42 : vector<14x14xf32>
    %cst_14 = arith.constant -0.114276692 : f32
    %44 = vector.broadcast %cst_14 : f32 to vector<14x14xf32>
    %45 = arith.mulf %44, %10 : vector<14x14xf32>
    %46 = arith.addf %43, %45 : vector<14x14xf32>
    %cst_15 = arith.constant -2.500000e-01 : f32
    %47 = vector.broadcast %cst_15 : f32 to vector<14x14xf32>
    %48 = arith.mulf %47, %11 : vector<14x14xf32>
    %49 = arith.addf %46, %48 : vector<14x14xf32>
    %50 = arith.cmpf ogt, %49, %30 : vector<14x14xf32>
    %51 = arith.select %50, %49, %30 : vector<14x14xi1>, vector<14x14xf32>
    %c1_i32 = arith.constant 1 : i32
    %52 = vector.broadcast %c1_i32 : i32 to vector<14x14xi32>
    %53 = arith.select %50, %52, %32 : vector<14x14xi1>, vector<14x14xi32>
    %cst_16 = arith.constant 1.250000e-01 : f32
    %54 = vector.broadcast %cst_16 : f32 to vector<14x14xf32>
    %55 = arith.mulf %54, %4 : vector<14x14xf32>
    %cst_17 = arith.constant -1.250000e-01 : f32
    %56 = vector.broadcast %cst_17 : f32 to vector<14x14xf32>
    %57 = arith.mulf %56, %6 : vector<14x14xf32>
    %58 = arith.addf %55, %57 : vector<14x14xf32>
    %cst_18 = arith.constant 2.500000e-01 : f32
    %59 = vector.broadcast %cst_18 : f32 to vector<14x14xf32>
    %60 = arith.mulf %59, %7 : vector<14x14xf32>
    %61 = arith.addf %58, %60 : vector<14x14xf32>
    %cst_19 = arith.constant -2.500000e-01 : f32
    %62 = vector.broadcast %cst_19 : f32 to vector<14x14xf32>
    %63 = arith.mulf %62, %8 : vector<14x14xf32>
    %64 = arith.addf %61, %63 : vector<14x14xf32>
    %cst_20 = arith.constant 1.250000e-01 : f32
    %65 = vector.broadcast %cst_20 : f32 to vector<14x14xf32>
    %66 = arith.mulf %65, %9 : vector<14x14xf32>
    %67 = arith.addf %64, %66 : vector<14x14xf32>
    %cst_21 = arith.constant -1.250000e-01 : f32
    %68 = vector.broadcast %cst_21 : f32 to vector<14x14xf32>
    %69 = arith.mulf %68, %11 : vector<14x14xf32>
    %70 = arith.addf %67, %69 : vector<14x14xf32>
    %71 = arith.cmpf ogt, %70, %51 : vector<14x14xf32>
    %72 = arith.select %71, %70, %51 : vector<14x14xi1>, vector<14x14xf32>
    %c2_i32 = arith.constant 2 : i32
    %73 = vector.broadcast %c2_i32 : i32 to vector<14x14xi32>
    %74 = arith.select %71, %73, %53 : vector<14x14xi1>, vector<14x14xi32>
    %cst_22 = arith.constant -0.114276692 : f32
    %75 = vector.broadcast %cst_22 : f32 to vector<14x14xf32>
    %76 = arith.mulf %75, %5 : vector<14x14xf32>
    %cst_23 = arith.constant -2.500000e-01 : f32
    %77 = vector.broadcast %cst_23 : f32 to vector<14x14xf32>
    %78 = arith.mulf %77, %6 : vector<14x14xf32>
    %79 = arith.addf %76, %78 : vector<14x14xf32>
    %cst_24 = arith.constant 0.114276692 : f32
    %80 = vector.broadcast %cst_24 : f32 to vector<14x14xf32>
    %81 = arith.mulf %80, %7 : vector<14x14xf32>
    %82 = arith.addf %79, %81 : vector<14x14xf32>
    %cst_25 = arith.constant -0.114276692 : f32
    %83 = vector.broadcast %cst_25 : f32 to vector<14x14xf32>
    %84 = arith.mulf %83, %8 : vector<14x14xf32>
    %85 = arith.addf %82, %84 : vector<14x14xf32>
    %cst_26 = arith.constant 2.500000e-01 : f32
    %86 = vector.broadcast %cst_26 : f32 to vector<14x14xf32>
    %87 = arith.mulf %86, %9 : vector<14x14xf32>
    %88 = arith.addf %85, %87 : vector<14x14xf32>
    %cst_27 = arith.constant 0.114276692 : f32
    %89 = vector.broadcast %cst_27 : f32 to vector<14x14xf32>
    %90 = arith.mulf %89, %10 : vector<14x14xf32>
    %91 = arith.addf %88, %90 : vector<14x14xf32>
    %92 = arith.cmpf ogt, %91, %72 : vector<14x14xf32>
    %93 = arith.select %92, %91, %72 : vector<14x14xi1>, vector<14x14xf32>
    %c3_i32 = arith.constant 3 : i32
    %94 = vector.broadcast %c3_i32 : i32 to vector<14x14xi32>
    %95 = arith.select %92, %94, %74 : vector<14x14xi1>, vector<14x14xi32>
    %cst_28 = arith.constant -1.250000e-01 : f32
    %96 = vector.broadcast %cst_28 : f32 to vector<14x14xf32>
    %97 = arith.mulf %96, %4 : vector<14x14xf32>
    %cst_29 = arith.constant -2.500000e-01 : f32
    %98 = vector.broadcast %cst_29 : f32 to vector<14x14xf32>
    %99 = arith.mulf %98, %5 : vector<14x14xf32>
    %100 = arith.addf %97, %99 : vector<14x14xf32>
    %cst_30 = arith.constant -1.250000e-01 : f32
    %101 = vector.broadcast %cst_30 : f32 to vector<14x14xf32>
    %102 = arith.mulf %101, %6 : vector<14x14xf32>
    %103 = arith.addf %100, %102 : vector<14x14xf32>
    %cst_31 = arith.constant 1.250000e-01 : f32
    %104 = vector.broadcast %cst_31 : f32 to vector<14x14xf32>
    %105 = arith.mulf %104, %9 : vector<14x14xf32>
    %106 = arith.addf %103, %105 : vector<14x14xf32>
    %cst_32 = arith.constant 2.500000e-01 : f32
    %107 = vector.broadcast %cst_32 : f32 to vector<14x14xf32>
    %108 = arith.mulf %107, %10 : vector<14x14xf32>
    %109 = arith.addf %106, %108 : vector<14x14xf32>
    %cst_33 = arith.constant 1.250000e-01 : f32
    %110 = vector.broadcast %cst_33 : f32 to vector<14x14xf32>
    %111 = arith.mulf %110, %11 : vector<14x14xf32>
    %112 = arith.addf %109, %111 : vector<14x14xf32>
    %113 = arith.cmpf ogt, %112, %93 : vector<14x14xf32>
    %114 = arith.select %113, %112, %93 : vector<14x14xi1>, vector<14x14xf32>
    %c4_i32 = arith.constant 4 : i32
    %115 = vector.broadcast %c4_i32 : i32 to vector<14x14xi32>
    %116 = arith.select %113, %115, %95 : vector<14x14xi1>, vector<14x14xi32>
    %cst_34 = arith.constant -2.500000e-01 : f32
    %117 = vector.broadcast %cst_34 : f32 to vector<14x14xf32>
    %118 = arith.mulf %117, %4 : vector<14x14xf32>
    %cst_35 = arith.constant -0.114276692 : f32
    %119 = vector.broadcast %cst_35 : f32 to vector<14x14xf32>
    %120 = arith.mulf %119, %5 : vector<14x14xf32>
    %121 = arith.addf %118, %120 : vector<14x14xf32>
    %cst_36 = arith.constant -0.114276692 : f32
    %122 = vector.broadcast %cst_36 : f32 to vector<14x14xf32>
    %123 = arith.mulf %122, %7 : vector<14x14xf32>
    %124 = arith.addf %121, %123 : vector<14x14xf32>
    %cst_37 = arith.constant 0.114276692 : f32
    %125 = vector.broadcast %cst_37 : f32 to vector<14x14xf32>
    %126 = arith.mulf %125, %8 : vector<14x14xf32>
    %127 = arith.addf %124, %126 : vector<14x14xf32>
    %cst_38 = arith.constant 0.114276692 : f32
    %128 = vector.broadcast %cst_38 : f32 to vector<14x14xf32>
    %129 = arith.mulf %128, %10 : vector<14x14xf32>
    %130 = arith.addf %127, %129 : vector<14x14xf32>
    %cst_39 = arith.constant 2.500000e-01 : f32
    %131 = vector.broadcast %cst_39 : f32 to vector<14x14xf32>
    %132 = arith.mulf %131, %11 : vector<14x14xf32>
    %133 = arith.addf %130, %132 : vector<14x14xf32>
    %134 = arith.cmpf ogt, %133, %114 : vector<14x14xf32>
    %135 = arith.select %134, %133, %114 : vector<14x14xi1>, vector<14x14xf32>
    %c5_i32 = arith.constant 5 : i32
    %136 = vector.broadcast %c5_i32 : i32 to vector<14x14xi32>
    %137 = arith.select %134, %136, %116 : vector<14x14xi1>, vector<14x14xi32>
    %cst_40 = arith.constant -1.250000e-01 : f32
    %138 = vector.broadcast %cst_40 : f32 to vector<14x14xf32>
    %139 = arith.mulf %138, %4 : vector<14x14xf32>
    %cst_41 = arith.constant 1.250000e-01 : f32
    %140 = vector.broadcast %cst_41 : f32 to vector<14x14xf32>
    %141 = arith.mulf %140, %6 : vector<14x14xf32>
    %142 = arith.addf %139, %141 : vector<14x14xf32>
    %cst_42 = arith.constant -2.500000e-01 : f32
    %143 = vector.broadcast %cst_42 : f32 to vector<14x14xf32>
    %144 = arith.mulf %143, %7 : vector<14x14xf32>
    %145 = arith.addf %142, %144 : vector<14x14xf32>
    %cst_43 = arith.constant 2.500000e-01 : f32
    %146 = vector.broadcast %cst_43 : f32 to vector<14x14xf32>
    %147 = arith.mulf %146, %8 : vector<14x14xf32>
    %148 = arith.addf %145, %147 : vector<14x14xf32>
    %cst_44 = arith.constant -1.250000e-01 : f32
    %149 = vector.broadcast %cst_44 : f32 to vector<14x14xf32>
    %150 = arith.mulf %149, %9 : vector<14x14xf32>
    %151 = arith.addf %148, %150 : vector<14x14xf32>
    %cst_45 = arith.constant 1.250000e-01 : f32
    %152 = vector.broadcast %cst_45 : f32 to vector<14x14xf32>
    %153 = arith.mulf %152, %11 : vector<14x14xf32>
    %154 = arith.addf %151, %153 : vector<14x14xf32>
    %155 = arith.cmpf ogt, %154, %135 : vector<14x14xf32>
    %156 = arith.select %155, %154, %135 : vector<14x14xi1>, vector<14x14xf32>
    %c6_i32 = arith.constant 6 : i32
    %157 = vector.broadcast %c6_i32 : i32 to vector<14x14xi32>
    %158 = arith.select %155, %157, %137 : vector<14x14xi1>, vector<14x14xi32>
    %cst_46 = arith.constant 0.114276692 : f32
    %159 = vector.broadcast %cst_46 : f32 to vector<14x14xf32>
    %160 = arith.mulf %159, %5 : vector<14x14xf32>
    %cst_47 = arith.constant 2.500000e-01 : f32
    %161 = vector.broadcast %cst_47 : f32 to vector<14x14xf32>
    %162 = arith.mulf %161, %6 : vector<14x14xf32>
    %163 = arith.addf %160, %162 : vector<14x14xf32>
    %cst_48 = arith.constant -0.114276692 : f32
    %164 = vector.broadcast %cst_48 : f32 to vector<14x14xf32>
    %165 = arith.mulf %164, %7 : vector<14x14xf32>
    %166 = arith.addf %163, %165 : vector<14x14xf32>
    %cst_49 = arith.constant 0.114276692 : f32
    %167 = vector.broadcast %cst_49 : f32 to vector<14x14xf32>
    %168 = arith.mulf %167, %8 : vector<14x14xf32>
    %169 = arith.addf %166, %168 : vector<14x14xf32>
    %cst_50 = arith.constant -2.500000e-01 : f32
    %170 = vector.broadcast %cst_50 : f32 to vector<14x14xf32>
    %171 = arith.mulf %170, %9 : vector<14x14xf32>
    %172 = arith.addf %169, %171 : vector<14x14xf32>
    %cst_51 = arith.constant -0.114276692 : f32
    %173 = vector.broadcast %cst_51 : f32 to vector<14x14xf32>
    %174 = arith.mulf %173, %10 : vector<14x14xf32>
    %175 = arith.addf %172, %174 : vector<14x14xf32>
    %176 = arith.cmpf ogt, %175, %156 : vector<14x14xf32>
    %177 = arith.select %176, %175, %156 : vector<14x14xi1>, vector<14x14xf32>
    %c7_i32 = arith.constant 7 : i32
    %178 = vector.broadcast %c7_i32 : i32 to vector<14x14xi32>
    %179 = arith.select %176, %178, %158 : vector<14x14xi1>, vector<14x14xi32>
    %c0_52 = arith.constant 0 : index
    %c1 = arith.constant 1 : index
    %c0_53 = arith.constant 0 : index
    %c0_54 = arith.constant 0 : index
    %180 = vector.load %arg1[%c0_52, %c1, %c0_53, %c0_54] : memref<2x4x16x16xf32, #tpu.memory_space<vmem>>, vector<1x1x16x16xf32>
    %181 = vector.shape_cast %180 : vector<1x1x16x16xf32> to vector<16x16xf32>
    %182 = vector.extract_strided_slice %181 {offsets = [0, 0], sizes = [14, 14], strides = [1, 1]} : vector<16x16xf32> to vector<14x14xf32>
    %183 = vector.extract_strided_slice %181 {offsets = [0, 1], sizes = [14, 14], strides = [1, 1]} : vector<16x16xf32> to vector<14x14xf32>
    %184 = vector.extract_strided_slice %181 {offsets = [0, 2], sizes = [14, 14], strides = [1, 1]} : vector<16x16xf32> to vector<14x14xf32>
    %185 = vector.extract_strided_slice %181 {offsets = [1, 0], sizes = [14, 14], strides = [1, 1]} : vector<16x16xf32> to vector<14x14xf32>
    %186 = vector.extract_strided_slice %181 {offsets = [1, 2], sizes = [14, 14], strides = [1, 1]} : vector<16x16xf32> to vector<14x14xf32>
    %187 = vector.extract_strided_slice %181 {offsets = [2, 0], sizes = [14, 14], strides = [1, 1]} : vector<16x16xf32> to vector<14x14xf32>
    %188 = vector.extract_strided_slice %181 {offsets = [2, 1], sizes = [14, 14], strides = [1, 1]} : vector<16x16xf32> to vector<14x14xf32>
    %189 = vector.extract_strided_slice %181 {offsets = [2, 2], sizes = [14, 14], strides = [1, 1]} : vector<16x16xf32> to vector<14x14xf32>
    %cst_55 = arith.constant 1.250000e-01 : f32
    %190 = vector.broadcast %cst_55 : f32 to vector<14x14xf32>
    %191 = arith.mulf %190, %182 : vector<14x14xf32>
    %cst_56 = arith.constant 2.500000e-01 : f32
    %192 = vector.broadcast %cst_56 : f32 to vector<14x14xf32>
    %193 = arith.mulf %192, %183 : vector<14x14xf32>
    %194 = arith.addf %191, %193 : vector<14x14xf32>
    %cst_57 = arith.constant 1.250000e-01 : f32
    %195 = vector.broadcast %cst_57 : f32 to vector<14x14xf32>
    %196 = arith.mulf %195, %184 : vector<14x14xf32>
    %197 = arith.addf %194, %196 : vector<14x14xf32>
    %cst_58 = arith.constant -1.250000e-01 : f32
    %198 = vector.broadcast %cst_58 : f32 to vector<14x14xf32>
    %199 = arith.mulf %198, %187 : vector<14x14xf32>
    %200 = arith.addf %197, %199 : vector<14x14xf32>
    %cst_59 = arith.constant -2.500000e-01 : f32
    %201 = vector.broadcast %cst_59 : f32 to vector<14x14xf32>
    %202 = arith.mulf %201, %188 : vector<14x14xf32>
    %203 = arith.addf %200, %202 : vector<14x14xf32>
    %cst_60 = arith.constant -1.250000e-01 : f32
    %204 = vector.broadcast %cst_60 : f32 to vector<14x14xf32>
    %205 = arith.mulf %204, %189 : vector<14x14xf32>
    %206 = arith.addf %203, %205 : vector<14x14xf32>
    %207 = arith.cmpf ogt, %206, %177 : vector<14x14xf32>
    %208 = arith.select %207, %206, %177 : vector<14x14xi1>, vector<14x14xf32>
    %c8_i32 = arith.constant 8 : i32
    %209 = vector.broadcast %c8_i32 : i32 to vector<14x14xi32>
    %210 = arith.select %207, %209, %179 : vector<14x14xi1>, vector<14x14xi32>
    %cst_61 = arith.constant 2.500000e-01 : f32
    %211 = vector.broadcast %cst_61 : f32 to vector<14x14xf32>
    %212 = arith.mulf %211, %182 : vector<14x14xf32>
    %cst_62 = arith.constant 0.114276692 : f32
    %213 = vector.broadcast %cst_62 : f32 to vector<14x14xf32>
    %214 = arith.mulf %213, %183 : vector<14x14xf32>
    %215 = arith.addf %212, %214 : vector<14x14xf32>
    %cst_63 = arith.constant 0.114276692 : f32
    %216 = vector.broadcast %cst_63 : f32 to vector<14x14xf32>
    %217 = arith.mulf %216, %185 : vector<14x14xf32>
    %218 = arith.addf %215, %217 : vector<14x14xf32>
    %cst_64 = arith.constant -0.114276692 : f32
    %219 = vector.broadcast %cst_64 : f32 to vector<14x14xf32>
    %220 = arith.mulf %219, %186 : vector<14x14xf32>
    %221 = arith.addf %218, %220 : vector<14x14xf32>
    %cst_65 = arith.constant -0.114276692 : f32
    %222 = vector.broadcast %cst_65 : f32 to vector<14x14xf32>
    %223 = arith.mulf %222, %188 : vector<14x14xf32>
    %224 = arith.addf %221, %223 : vector<14x14xf32>
    %cst_66 = arith.constant -2.500000e-01 : f32
    %225 = vector.broadcast %cst_66 : f32 to vector<14x14xf32>
    %226 = arith.mulf %225, %189 : vector<14x14xf32>
    %227 = arith.addf %224, %226 : vector<14x14xf32>
    %228 = arith.cmpf ogt, %227, %208 : vector<14x14xf32>
    %229 = arith.select %228, %227, %208 : vector<14x14xi1>, vector<14x14xf32>
    %c9_i32 = arith.constant 9 : i32
    %230 = vector.broadcast %c9_i32 : i32 to vector<14x14xi32>
    %231 = arith.select %228, %230, %210 : vector<14x14xi1>, vector<14x14xi32>
    %cst_67 = arith.constant 1.250000e-01 : f32
    %232 = vector.broadcast %cst_67 : f32 to vector<14x14xf32>
    %233 = arith.mulf %232, %182 : vector<14x14xf32>
    %cst_68 = arith.constant -1.250000e-01 : f32
    %234 = vector.broadcast %cst_68 : f32 to vector<14x14xf32>
    %235 = arith.mulf %234, %184 : vector<14x14xf32>
    %236 = arith.addf %233, %235 : vector<14x14xf32>
    %cst_69 = arith.constant 2.500000e-01 : f32
    %237 = vector.broadcast %cst_69 : f32 to vector<14x14xf32>
    %238 = arith.mulf %237, %185 : vector<14x14xf32>
    %239 = arith.addf %236, %238 : vector<14x14xf32>
    %cst_70 = arith.constant -2.500000e-01 : f32
    %240 = vector.broadcast %cst_70 : f32 to vector<14x14xf32>
    %241 = arith.mulf %240, %186 : vector<14x14xf32>
    %242 = arith.addf %239, %241 : vector<14x14xf32>
    %cst_71 = arith.constant 1.250000e-01 : f32
    %243 = vector.broadcast %cst_71 : f32 to vector<14x14xf32>
    %244 = arith.mulf %243, %187 : vector<14x14xf32>
    %245 = arith.addf %242, %244 : vector<14x14xf32>
    %cst_72 = arith.constant -1.250000e-01 : f32
    %246 = vector.broadcast %cst_72 : f32 to vector<14x14xf32>
    %247 = arith.mulf %246, %189 : vector<14x14xf32>
    %248 = arith.addf %245, %247 : vector<14x14xf32>
    %249 = arith.cmpf ogt, %248, %229 : vector<14x14xf32>
    %250 = arith.select %249, %248, %229 : vector<14x14xi1>, vector<14x14xf32>
    %c10_i32 = arith.constant 10 : i32
    %251 = vector.broadcast %c10_i32 : i32 to vector<14x14xi32>
    %252 = arith.select %249, %251, %231 : vector<14x14xi1>, vector<14x14xi32>
    %cst_73 = arith.constant -0.114276692 : f32
    %253 = vector.broadcast %cst_73 : f32 to vector<14x14xf32>
    %254 = arith.mulf %253, %183 : vector<14x14xf32>
    %cst_74 = arith.constant -2.500000e-01 : f32
    %255 = vector.broadcast %cst_74 : f32 to vector<14x14xf32>
    %256 = arith.mulf %255, %184 : vector<14x14xf32>
    %257 = arith.addf %254, %256 : vector<14x14xf32>
    %cst_75 = arith.constant 0.114276692 : f32
    %258 = vector.broadcast %cst_75 : f32 to vector<14x14xf32>
    %259 = arith.mulf %258, %185 : vector<14x14xf32>
    %260 = arith.addf %257, %259 : vector<14x14xf32>
    %cst_76 = arith.constant -0.114276692 : f32
    %261 = vector.broadcast %cst_76 : f32 to vector<14x14xf32>
    %262 = arith.mulf %261, %186 : vector<14x14xf32>
    %263 = arith.addf %260, %262 : vector<14x14xf32>
    %cst_77 = arith.constant 2.500000e-01 : f32
    %264 = vector.broadcast %cst_77 : f32 to vector<14x14xf32>
    %265 = arith.mulf %264, %187 : vector<14x14xf32>
    %266 = arith.addf %263, %265 : vector<14x14xf32>
    %cst_78 = arith.constant 0.114276692 : f32
    %267 = vector.broadcast %cst_78 : f32 to vector<14x14xf32>
    %268 = arith.mulf %267, %188 : vector<14x14xf32>
    %269 = arith.addf %266, %268 : vector<14x14xf32>
    %270 = arith.cmpf ogt, %269, %250 : vector<14x14xf32>
    %271 = arith.select %270, %269, %250 : vector<14x14xi1>, vector<14x14xf32>
    %c11_i32 = arith.constant 11 : i32
    %272 = vector.broadcast %c11_i32 : i32 to vector<14x14xi32>
    %273 = arith.select %270, %272, %252 : vector<14x14xi1>, vector<14x14xi32>
    %cst_79 = arith.constant -1.250000e-01 : f32
    %274 = vector.broadcast %cst_79 : f32 to vector<14x14xf32>
    %275 = arith.mulf %274, %182 : vector<14x14xf32>
    %cst_80 = arith.constant -2.500000e-01 : f32
    %276 = vector.broadcast %cst_80 : f32 to vector<14x14xf32>
    %277 = arith.mulf %276, %183 : vector<14x14xf32>
    %278 = arith.addf %275, %277 : vector<14x14xf32>
    %cst_81 = arith.constant -1.250000e-01 : f32
    %279 = vector.broadcast %cst_81 : f32 to vector<14x14xf32>
    %280 = arith.mulf %279, %184 : vector<14x14xf32>
    %281 = arith.addf %278, %280 : vector<14x14xf32>
    %cst_82 = arith.constant 1.250000e-01 : f32
    %282 = vector.broadcast %cst_82 : f32 to vector<14x14xf32>
    %283 = arith.mulf %282, %187 : vector<14x14xf32>
    %284 = arith.addf %281, %283 : vector<14x14xf32>
    %cst_83 = arith.constant 2.500000e-01 : f32
    %285 = vector.broadcast %cst_83 : f32 to vector<14x14xf32>
    %286 = arith.mulf %285, %188 : vector<14x14xf32>
    %287 = arith.addf %284, %286 : vector<14x14xf32>
    %cst_84 = arith.constant 1.250000e-01 : f32
    %288 = vector.broadcast %cst_84 : f32 to vector<14x14xf32>
    %289 = arith.mulf %288, %189 : vector<14x14xf32>
    %290 = arith.addf %287, %289 : vector<14x14xf32>
    %291 = arith.cmpf ogt, %290, %271 : vector<14x14xf32>
    %292 = arith.select %291, %290, %271 : vector<14x14xi1>, vector<14x14xf32>
    %c12_i32 = arith.constant 12 : i32
    %293 = vector.broadcast %c12_i32 : i32 to vector<14x14xi32>
    %294 = arith.select %291, %293, %273 : vector<14x14xi1>, vector<14x14xi32>
    %cst_85 = arith.constant -2.500000e-01 : f32
    %295 = vector.broadcast %cst_85 : f32 to vector<14x14xf32>
    %296 = arith.mulf %295, %182 : vector<14x14xf32>
    %cst_86 = arith.constant -0.114276692 : f32
    %297 = vector.broadcast %cst_86 : f32 to vector<14x14xf32>
    %298 = arith.mulf %297, %183 : vector<14x14xf32>
    %299 = arith.addf %296, %298 : vector<14x14xf32>
    %cst_87 = arith.constant -0.114276692 : f32
    %300 = vector.broadcast %cst_87 : f32 to vector<14x14xf32>
    %301 = arith.mulf %300, %185 : vector<14x14xf32>
    %302 = arith.addf %299, %301 : vector<14x14xf32>
    %cst_88 = arith.constant 0.114276692 : f32
    %303 = vector.broadcast %cst_88 : f32 to vector<14x14xf32>
    %304 = arith.mulf %303, %186 : vector<14x14xf32>
    %305 = arith.addf %302, %304 : vector<14x14xf32>
    %cst_89 = arith.constant 0.114276692 : f32
    %306 = vector.broadcast %cst_89 : f32 to vector<14x14xf32>
    %307 = arith.mulf %306, %188 : vector<14x14xf32>
    %308 = arith.addf %305, %307 : vector<14x14xf32>
    %cst_90 = arith.constant 2.500000e-01 : f32
    %309 = vector.broadcast %cst_90 : f32 to vector<14x14xf32>
    %310 = arith.mulf %309, %189 : vector<14x14xf32>
    %311 = arith.addf %308, %310 : vector<14x14xf32>
    %312 = arith.cmpf ogt, %311, %292 : vector<14x14xf32>
    %313 = arith.select %312, %311, %292 : vector<14x14xi1>, vector<14x14xf32>
    %c13_i32 = arith.constant 13 : i32
    %314 = vector.broadcast %c13_i32 : i32 to vector<14x14xi32>
    %315 = arith.select %312, %314, %294 : vector<14x14xi1>, vector<14x14xi32>
    %cst_91 = arith.constant -1.250000e-01 : f32
    %316 = vector.broadcast %cst_91 : f32 to vector<14x14xf32>
    %317 = arith.mulf %316, %182 : vector<14x14xf32>
    %cst_92 = arith.constant 1.250000e-01 : f32
    %318 = vector.broadcast %cst_92 : f32 to vector<14x14xf32>
    %319 = arith.mulf %318, %184 : vector<14x14xf32>
    %320 = arith.addf %317, %319 : vector<14x14xf32>
    %cst_93 = arith.constant -2.500000e-01 : f32
    %321 = vector.broadcast %cst_93 : f32 to vector<14x14xf32>
    %322 = arith.mulf %321, %185 : vector<14x14xf32>
    %323 = arith.addf %320, %322 : vector<14x14xf32>
    %cst_94 = arith.constant 2.500000e-01 : f32
    %324 = vector.broadcast %cst_94 : f32 to vector<14x14xf32>
    %325 = arith.mulf %324, %186 : vector<14x14xf32>
    %326 = arith.addf %323, %325 : vector<14x14xf32>
    %cst_95 = arith.constant -1.250000e-01 : f32
    %327 = vector.broadcast %cst_95 : f32 to vector<14x14xf32>
    %328 = arith.mulf %327, %187 : vector<14x14xf32>
    %329 = arith.addf %326, %328 : vector<14x14xf32>
    %cst_96 = arith.constant 1.250000e-01 : f32
    %330 = vector.broadcast %cst_96 : f32 to vector<14x14xf32>
    %331 = arith.mulf %330, %189 : vector<14x14xf32>
    %332 = arith.addf %329, %331 : vector<14x14xf32>
    %333 = arith.cmpf ogt, %332, %313 : vector<14x14xf32>
    %334 = arith.select %333, %332, %313 : vector<14x14xi1>, vector<14x14xf32>
    %c14_i32 = arith.constant 14 : i32
    %335 = vector.broadcast %c14_i32 : i32 to vector<14x14xi32>
    %336 = arith.select %333, %335, %315 : vector<14x14xi1>, vector<14x14xi32>
    %cst_97 = arith.constant 0.114276692 : f32
    %337 = vector.broadcast %cst_97 : f32 to vector<14x14xf32>
    %338 = arith.mulf %337, %183 : vector<14x14xf32>
    %cst_98 = arith.constant 2.500000e-01 : f32
    %339 = vector.broadcast %cst_98 : f32 to vector<14x14xf32>
    %340 = arith.mulf %339, %184 : vector<14x14xf32>
    %341 = arith.addf %338, %340 : vector<14x14xf32>
    %cst_99 = arith.constant -0.114276692 : f32
    %342 = vector.broadcast %cst_99 : f32 to vector<14x14xf32>
    %343 = arith.mulf %342, %185 : vector<14x14xf32>
    %344 = arith.addf %341, %343 : vector<14x14xf32>
    %cst_100 = arith.constant 0.114276692 : f32
    %345 = vector.broadcast %cst_100 : f32 to vector<14x14xf32>
    %346 = arith.mulf %345, %186 : vector<14x14xf32>
    %347 = arith.addf %344, %346 : vector<14x14xf32>
    %cst_101 = arith.constant -2.500000e-01 : f32
    %348 = vector.broadcast %cst_101 : f32 to vector<14x14xf32>
    %349 = arith.mulf %348, %187 : vector<14x14xf32>
    %350 = arith.addf %347, %349 : vector<14x14xf32>
    %cst_102 = arith.constant -0.114276692 : f32
    %351 = vector.broadcast %cst_102 : f32 to vector<14x14xf32>
    %352 = arith.mulf %351, %188 : vector<14x14xf32>
    %353 = arith.addf %350, %352 : vector<14x14xf32>
    %354 = arith.cmpf ogt, %353, %334 : vector<14x14xf32>
    %355 = arith.select %354, %353, %334 : vector<14x14xi1>, vector<14x14xf32>
    %c15_i32 = arith.constant 15 : i32
    %356 = vector.broadcast %c15_i32 : i32 to vector<14x14xi32>
    %357 = arith.select %354, %356, %336 : vector<14x14xi1>, vector<14x14xi32>
    %c0_103 = arith.constant 0 : index
    %c2 = arith.constant 2 : index
    %c0_104 = arith.constant 0 : index
    %c0_105 = arith.constant 0 : index
    %358 = vector.load %arg1[%c0_103, %c2, %c0_104, %c0_105] : memref<2x4x16x16xf32, #tpu.memory_space<vmem>>, vector<1x1x16x16xf32>
    %359 = vector.shape_cast %358 : vector<1x1x16x16xf32> to vector<16x16xf32>
    %360 = vector.extract_strided_slice %359 {offsets = [0, 0], sizes = [14, 14], strides = [1, 1]} : vector<16x16xf32> to vector<14x14xf32>
    %361 = vector.extract_strided_slice %359 {offsets = [0, 1], sizes = [14, 14], strides = [1, 1]} : vector<16x16xf32> to vector<14x14xf32>
    %362 = vector.extract_strided_slice %359 {offsets = [0, 2], sizes = [14, 14], strides = [1, 1]} : vector<16x16xf32> to vector<14x14xf32>
    %363 = vector.extract_strided_slice %359 {offsets = [1, 0], sizes = [14, 14], strides = [1, 1]} : vector<16x16xf32> to vector<14x14xf32>
    %364 = vector.extract_strided_slice %359 {offsets = [1, 2], sizes = [14, 14], strides = [1, 1]} : vector<16x16xf32> to vector<14x14xf32>
    %365 = vector.extract_strided_slice %359 {offsets = [2, 0], sizes = [14, 14], strides = [1, 1]} : vector<16x16xf32> to vector<14x14xf32>
    %366 = vector.extract_strided_slice %359 {offsets = [2, 1], sizes = [14, 14], strides = [1, 1]} : vector<16x16xf32> to vector<14x14xf32>
    %367 = vector.extract_strided_slice %359 {offsets = [2, 2], sizes = [14, 14], strides = [1, 1]} : vector<16x16xf32> to vector<14x14xf32>
    %cst_106 = arith.constant 1.250000e-01 : f32
    %368 = vector.broadcast %cst_106 : f32 to vector<14x14xf32>
    %369 = arith.mulf %368, %360 : vector<14x14xf32>
    %cst_107 = arith.constant 2.500000e-01 : f32
    %370 = vector.broadcast %cst_107 : f32 to vector<14x14xf32>
    %371 = arith.mulf %370, %361 : vector<14x14xf32>
    %372 = arith.addf %369, %371 : vector<14x14xf32>
    %cst_108 = arith.constant 1.250000e-01 : f32
    %373 = vector.broadcast %cst_108 : f32 to vector<14x14xf32>
    %374 = arith.mulf %373, %362 : vector<14x14xf32>
    %375 = arith.addf %372, %374 : vector<14x14xf32>
    %cst_109 = arith.constant -1.250000e-01 : f32
    %376 = vector.broadcast %cst_109 : f32 to vector<14x14xf32>
    %377 = arith.mulf %376, %365 : vector<14x14xf32>
    %378 = arith.addf %375, %377 : vector<14x14xf32>
    %cst_110 = arith.constant -2.500000e-01 : f32
    %379 = vector.broadcast %cst_110 : f32 to vector<14x14xf32>
    %380 = arith.mulf %379, %366 : vector<14x14xf32>
    %381 = arith.addf %378, %380 : vector<14x14xf32>
    %cst_111 = arith.constant -1.250000e-01 : f32
    %382 = vector.broadcast %cst_111 : f32 to vector<14x14xf32>
    %383 = arith.mulf %382, %367 : vector<14x14xf32>
    %384 = arith.addf %381, %383 : vector<14x14xf32>
    %385 = arith.cmpf ogt, %384, %355 : vector<14x14xf32>
    %386 = arith.select %385, %384, %355 : vector<14x14xi1>, vector<14x14xf32>
    %c16_i32 = arith.constant 16 : i32
    %387 = vector.broadcast %c16_i32 : i32 to vector<14x14xi32>
    %388 = arith.select %385, %387, %357 : vector<14x14xi1>, vector<14x14xi32>
    %cst_112 = arith.constant 2.500000e-01 : f32
    %389 = vector.broadcast %cst_112 : f32 to vector<14x14xf32>
    %390 = arith.mulf %389, %360 : vector<14x14xf32>
    %cst_113 = arith.constant 0.114276692 : f32
    %391 = vector.broadcast %cst_113 : f32 to vector<14x14xf32>
    %392 = arith.mulf %391, %361 : vector<14x14xf32>
    %393 = arith.addf %390, %392 : vector<14x14xf32>
    %cst_114 = arith.constant 0.114276692 : f32
    %394 = vector.broadcast %cst_114 : f32 to vector<14x14xf32>
    %395 = arith.mulf %394, %363 : vector<14x14xf32>
    %396 = arith.addf %393, %395 : vector<14x14xf32>
    %cst_115 = arith.constant -0.114276692 : f32
    %397 = vector.broadcast %cst_115 : f32 to vector<14x14xf32>
    %398 = arith.mulf %397, %364 : vector<14x14xf32>
    %399 = arith.addf %396, %398 : vector<14x14xf32>
    %cst_116 = arith.constant -0.114276692 : f32
    %400 = vector.broadcast %cst_116 : f32 to vector<14x14xf32>
    %401 = arith.mulf %400, %366 : vector<14x14xf32>
    %402 = arith.addf %399, %401 : vector<14x14xf32>
    %cst_117 = arith.constant -2.500000e-01 : f32
    %403 = vector.broadcast %cst_117 : f32 to vector<14x14xf32>
    %404 = arith.mulf %403, %367 : vector<14x14xf32>
    %405 = arith.addf %402, %404 : vector<14x14xf32>
    %406 = arith.cmpf ogt, %405, %386 : vector<14x14xf32>
    %407 = arith.select %406, %405, %386 : vector<14x14xi1>, vector<14x14xf32>
    %c17_i32 = arith.constant 17 : i32
    %408 = vector.broadcast %c17_i32 : i32 to vector<14x14xi32>
    %409 = arith.select %406, %408, %388 : vector<14x14xi1>, vector<14x14xi32>
    %cst_118 = arith.constant 1.250000e-01 : f32
    %410 = vector.broadcast %cst_118 : f32 to vector<14x14xf32>
    %411 = arith.mulf %410, %360 : vector<14x14xf32>
    %cst_119 = arith.constant -1.250000e-01 : f32
    %412 = vector.broadcast %cst_119 : f32 to vector<14x14xf32>
    %413 = arith.mulf %412, %362 : vector<14x14xf32>
    %414 = arith.addf %411, %413 : vector<14x14xf32>
    %cst_120 = arith.constant 2.500000e-01 : f32
    %415 = vector.broadcast %cst_120 : f32 to vector<14x14xf32>
    %416 = arith.mulf %415, %363 : vector<14x14xf32>
    %417 = arith.addf %414, %416 : vector<14x14xf32>
    %cst_121 = arith.constant -2.500000e-01 : f32
    %418 = vector.broadcast %cst_121 : f32 to vector<14x14xf32>
    %419 = arith.mulf %418, %364 : vector<14x14xf32>
    %420 = arith.addf %417, %419 : vector<14x14xf32>
    %cst_122 = arith.constant 1.250000e-01 : f32
    %421 = vector.broadcast %cst_122 : f32 to vector<14x14xf32>
    %422 = arith.mulf %421, %365 : vector<14x14xf32>
    %423 = arith.addf %420, %422 : vector<14x14xf32>
    %cst_123 = arith.constant -1.250000e-01 : f32
    %424 = vector.broadcast %cst_123 : f32 to vector<14x14xf32>
    %425 = arith.mulf %424, %367 : vector<14x14xf32>
    %426 = arith.addf %423, %425 : vector<14x14xf32>
    %427 = arith.cmpf ogt, %426, %407 : vector<14x14xf32>
    %428 = arith.select %427, %426, %407 : vector<14x14xi1>, vector<14x14xf32>
    %c18_i32 = arith.constant 18 : i32
    %429 = vector.broadcast %c18_i32 : i32 to vector<14x14xi32>
    %430 = arith.select %427, %429, %409 : vector<14x14xi1>, vector<14x14xi32>
    %cst_124 = arith.constant -0.114276692 : f32
    %431 = vector.broadcast %cst_124 : f32 to vector<14x14xf32>
    %432 = arith.mulf %431, %361 : vector<14x14xf32>
    %cst_125 = arith.constant -2.500000e-01 : f32
    %433 = vector.broadcast %cst_125 : f32 to vector<14x14xf32>
    %434 = arith.mulf %433, %362 : vector<14x14xf32>
    %435 = arith.addf %432, %434 : vector<14x14xf32>
    %cst_126 = arith.constant 0.114276692 : f32
    %436 = vector.broadcast %cst_126 : f32 to vector<14x14xf32>
    %437 = arith.mulf %436, %363 : vector<14x14xf32>
    %438 = arith.addf %435, %437 : vector<14x14xf32>
    %cst_127 = arith.constant -0.114276692 : f32
    %439 = vector.broadcast %cst_127 : f32 to vector<14x14xf32>
    %440 = arith.mulf %439, %364 : vector<14x14xf32>
    %441 = arith.addf %438, %440 : vector<14x14xf32>
    %cst_128 = arith.constant 2.500000e-01 : f32
    %442 = vector.broadcast %cst_128 : f32 to vector<14x14xf32>
    %443 = arith.mulf %442, %365 : vector<14x14xf32>
    %444 = arith.addf %441, %443 : vector<14x14xf32>
    %cst_129 = arith.constant 0.114276692 : f32
    %445 = vector.broadcast %cst_129 : f32 to vector<14x14xf32>
    %446 = arith.mulf %445, %366 : vector<14x14xf32>
    %447 = arith.addf %444, %446 : vector<14x14xf32>
    %448 = arith.cmpf ogt, %447, %428 : vector<14x14xf32>
    %449 = arith.select %448, %447, %428 : vector<14x14xi1>, vector<14x14xf32>
    %c19_i32 = arith.constant 19 : i32
    %450 = vector.broadcast %c19_i32 : i32 to vector<14x14xi32>
    %451 = arith.select %448, %450, %430 : vector<14x14xi1>, vector<14x14xi32>
    %cst_130 = arith.constant -1.250000e-01 : f32
    %452 = vector.broadcast %cst_130 : f32 to vector<14x14xf32>
    %453 = arith.mulf %452, %360 : vector<14x14xf32>
    %cst_131 = arith.constant -2.500000e-01 : f32
    %454 = vector.broadcast %cst_131 : f32 to vector<14x14xf32>
    %455 = arith.mulf %454, %361 : vector<14x14xf32>
    %456 = arith.addf %453, %455 : vector<14x14xf32>
    %cst_132 = arith.constant -1.250000e-01 : f32
    %457 = vector.broadcast %cst_132 : f32 to vector<14x14xf32>
    %458 = arith.mulf %457, %362 : vector<14x14xf32>
    %459 = arith.addf %456, %458 : vector<14x14xf32>
    %cst_133 = arith.constant 1.250000e-01 : f32
    %460 = vector.broadcast %cst_133 : f32 to vector<14x14xf32>
    %461 = arith.mulf %460, %365 : vector<14x14xf32>
    %462 = arith.addf %459, %461 : vector<14x14xf32>
    %cst_134 = arith.constant 2.500000e-01 : f32
    %463 = vector.broadcast %cst_134 : f32 to vector<14x14xf32>
    %464 = arith.mulf %463, %366 : vector<14x14xf32>
    %465 = arith.addf %462, %464 : vector<14x14xf32>
    %cst_135 = arith.constant 1.250000e-01 : f32
    %466 = vector.broadcast %cst_135 : f32 to vector<14x14xf32>
    %467 = arith.mulf %466, %367 : vector<14x14xf32>
    %468 = arith.addf %465, %467 : vector<14x14xf32>
    %469 = arith.cmpf ogt, %468, %449 : vector<14x14xf32>
    %470 = arith.select %469, %468, %449 : vector<14x14xi1>, vector<14x14xf32>
    %c20_i32 = arith.constant 20 : i32
    %471 = vector.broadcast %c20_i32 : i32 to vector<14x14xi32>
    %472 = arith.select %469, %471, %451 : vector<14x14xi1>, vector<14x14xi32>
    %cst_136 = arith.constant -2.500000e-01 : f32
    %473 = vector.broadcast %cst_136 : f32 to vector<14x14xf32>
    %474 = arith.mulf %473, %360 : vector<14x14xf32>
    %cst_137 = arith.constant -0.114276692 : f32
    %475 = vector.broadcast %cst_137 : f32 to vector<14x14xf32>
    %476 = arith.mulf %475, %361 : vector<14x14xf32>
    %477 = arith.addf %474, %476 : vector<14x14xf32>
    %cst_138 = arith.constant -0.114276692 : f32
    %478 = vector.broadcast %cst_138 : f32 to vector<14x14xf32>
    %479 = arith.mulf %478, %363 : vector<14x14xf32>
    %480 = arith.addf %477, %479 : vector<14x14xf32>
    %cst_139 = arith.constant 0.114276692 : f32
    %481 = vector.broadcast %cst_139 : f32 to vector<14x14xf32>
    %482 = arith.mulf %481, %364 : vector<14x14xf32>
    %483 = arith.addf %480, %482 : vector<14x14xf32>
    %cst_140 = arith.constant 0.114276692 : f32
    %484 = vector.broadcast %cst_140 : f32 to vector<14x14xf32>
    %485 = arith.mulf %484, %366 : vector<14x14xf32>
    %486 = arith.addf %483, %485 : vector<14x14xf32>
    %cst_141 = arith.constant 2.500000e-01 : f32
    %487 = vector.broadcast %cst_141 : f32 to vector<14x14xf32>
    %488 = arith.mulf %487, %367 : vector<14x14xf32>
    %489 = arith.addf %486, %488 : vector<14x14xf32>
    %490 = arith.cmpf ogt, %489, %470 : vector<14x14xf32>
    %491 = arith.select %490, %489, %470 : vector<14x14xi1>, vector<14x14xf32>
    %c21_i32 = arith.constant 21 : i32
    %492 = vector.broadcast %c21_i32 : i32 to vector<14x14xi32>
    %493 = arith.select %490, %492, %472 : vector<14x14xi1>, vector<14x14xi32>
    %cst_142 = arith.constant -1.250000e-01 : f32
    %494 = vector.broadcast %cst_142 : f32 to vector<14x14xf32>
    %495 = arith.mulf %494, %360 : vector<14x14xf32>
    %cst_143 = arith.constant 1.250000e-01 : f32
    %496 = vector.broadcast %cst_143 : f32 to vector<14x14xf32>
    %497 = arith.mulf %496, %362 : vector<14x14xf32>
    %498 = arith.addf %495, %497 : vector<14x14xf32>
    %cst_144 = arith.constant -2.500000e-01 : f32
    %499 = vector.broadcast %cst_144 : f32 to vector<14x14xf32>
    %500 = arith.mulf %499, %363 : vector<14x14xf32>
    %501 = arith.addf %498, %500 : vector<14x14xf32>
    %cst_145 = arith.constant 2.500000e-01 : f32
    %502 = vector.broadcast %cst_145 : f32 to vector<14x14xf32>
    %503 = arith.mulf %502, %364 : vector<14x14xf32>
    %504 = arith.addf %501, %503 : vector<14x14xf32>
    %cst_146 = arith.constant -1.250000e-01 : f32
    %505 = vector.broadcast %cst_146 : f32 to vector<14x14xf32>
    %506 = arith.mulf %505, %365 : vector<14x14xf32>
    %507 = arith.addf %504, %506 : vector<14x14xf32>
    %cst_147 = arith.constant 1.250000e-01 : f32
    %508 = vector.broadcast %cst_147 : f32 to vector<14x14xf32>
    %509 = arith.mulf %508, %367 : vector<14x14xf32>
    %510 = arith.addf %507, %509 : vector<14x14xf32>
    %511 = arith.cmpf ogt, %510, %491 : vector<14x14xf32>
    %512 = arith.select %511, %510, %491 : vector<14x14xi1>, vector<14x14xf32>
    %c22_i32 = arith.constant 22 : i32
    %513 = vector.broadcast %c22_i32 : i32 to vector<14x14xi32>
    %514 = arith.select %511, %513, %493 : vector<14x14xi1>, vector<14x14xi32>
    %cst_148 = arith.constant 0.114276692 : f32
    %515 = vector.broadcast %cst_148 : f32 to vector<14x14xf32>
    %516 = arith.mulf %515, %361 : vector<14x14xf32>
    %cst_149 = arith.constant 2.500000e-01 : f32
    %517 = vector.broadcast %cst_149 : f32 to vector<14x14xf32>
    %518 = arith.mulf %517, %362 : vector<14x14xf32>
    %519 = arith.addf %516, %518 : vector<14x14xf32>
    %cst_150 = arith.constant -0.114276692 : f32
    %520 = vector.broadcast %cst_150 : f32 to vector<14x14xf32>
    %521 = arith.mulf %520, %363 : vector<14x14xf32>
    %522 = arith.addf %519, %521 : vector<14x14xf32>
    %cst_151 = arith.constant 0.114276692 : f32
    %523 = vector.broadcast %cst_151 : f32 to vector<14x14xf32>
    %524 = arith.mulf %523, %364 : vector<14x14xf32>
    %525 = arith.addf %522, %524 : vector<14x14xf32>
    %cst_152 = arith.constant -2.500000e-01 : f32
    %526 = vector.broadcast %cst_152 : f32 to vector<14x14xf32>
    %527 = arith.mulf %526, %365 : vector<14x14xf32>
    %528 = arith.addf %525, %527 : vector<14x14xf32>
    %cst_153 = arith.constant -0.114276692 : f32
    %529 = vector.broadcast %cst_153 : f32 to vector<14x14xf32>
    %530 = arith.mulf %529, %366 : vector<14x14xf32>
    %531 = arith.addf %528, %530 : vector<14x14xf32>
    %532 = arith.cmpf ogt, %531, %512 : vector<14x14xf32>
    %533 = arith.select %532, %531, %512 : vector<14x14xi1>, vector<14x14xf32>
    %c23_i32 = arith.constant 23 : i32
    %534 = vector.broadcast %c23_i32 : i32 to vector<14x14xi32>
    %535 = arith.select %532, %534, %514 : vector<14x14xi1>, vector<14x14xi32>
    %c0_154 = arith.constant 0 : index
    %c3 = arith.constant 3 : index
    %c0_155 = arith.constant 0 : index
    %c0_156 = arith.constant 0 : index
    %536 = vector.load %arg1[%c0_154, %c3, %c0_155, %c0_156] : memref<2x4x16x16xf32, #tpu.memory_space<vmem>>, vector<1x1x16x16xf32>
    %537 = vector.shape_cast %536 : vector<1x1x16x16xf32> to vector<16x16xf32>
    %538 = vector.extract_strided_slice %537 {offsets = [0, 0], sizes = [14, 14], strides = [1, 1]} : vector<16x16xf32> to vector<14x14xf32>
    %539 = vector.extract_strided_slice %537 {offsets = [0, 1], sizes = [14, 14], strides = [1, 1]} : vector<16x16xf32> to vector<14x14xf32>
    %540 = vector.extract_strided_slice %537 {offsets = [0, 2], sizes = [14, 14], strides = [1, 1]} : vector<16x16xf32> to vector<14x14xf32>
    %541 = vector.extract_strided_slice %537 {offsets = [1, 0], sizes = [14, 14], strides = [1, 1]} : vector<16x16xf32> to vector<14x14xf32>
    %542 = vector.extract_strided_slice %537 {offsets = [1, 2], sizes = [14, 14], strides = [1, 1]} : vector<16x16xf32> to vector<14x14xf32>
    %543 = vector.extract_strided_slice %537 {offsets = [2, 0], sizes = [14, 14], strides = [1, 1]} : vector<16x16xf32> to vector<14x14xf32>
    %544 = vector.extract_strided_slice %537 {offsets = [2, 1], sizes = [14, 14], strides = [1, 1]} : vector<16x16xf32> to vector<14x14xf32>
    %545 = vector.extract_strided_slice %537 {offsets = [2, 2], sizes = [14, 14], strides = [1, 1]} : vector<16x16xf32> to vector<14x14xf32>
    %cst_157 = arith.constant 1.250000e-01 : f32
    %546 = vector.broadcast %cst_157 : f32 to vector<14x14xf32>
    %547 = arith.mulf %546, %538 : vector<14x14xf32>
    %cst_158 = arith.constant 2.500000e-01 : f32
    %548 = vector.broadcast %cst_158 : f32 to vector<14x14xf32>
    %549 = arith.mulf %548, %539 : vector<14x14xf32>
    %550 = arith.addf %547, %549 : vector<14x14xf32>
    %cst_159 = arith.constant 1.250000e-01 : f32
    %551 = vector.broadcast %cst_159 : f32 to vector<14x14xf32>
    %552 = arith.mulf %551, %540 : vector<14x14xf32>
    %553 = arith.addf %550, %552 : vector<14x14xf32>
    %cst_160 = arith.constant -1.250000e-01 : f32
    %554 = vector.broadcast %cst_160 : f32 to vector<14x14xf32>
    %555 = arith.mulf %554, %543 : vector<14x14xf32>
    %556 = arith.addf %553, %555 : vector<14x14xf32>
    %cst_161 = arith.constant -2.500000e-01 : f32
    %557 = vector.broadcast %cst_161 : f32 to vector<14x14xf32>
    %558 = arith.mulf %557, %544 : vector<14x14xf32>
    %559 = arith.addf %556, %558 : vector<14x14xf32>
    %cst_162 = arith.constant -1.250000e-01 : f32
    %560 = vector.broadcast %cst_162 : f32 to vector<14x14xf32>
    %561 = arith.mulf %560, %545 : vector<14x14xf32>
    %562 = arith.addf %559, %561 : vector<14x14xf32>
    %563 = arith.cmpf ogt, %562, %533 : vector<14x14xf32>
    %564 = arith.select %563, %562, %533 : vector<14x14xi1>, vector<14x14xf32>
    %c24_i32 = arith.constant 24 : i32
    %565 = vector.broadcast %c24_i32 : i32 to vector<14x14xi32>
    %566 = arith.select %563, %565, %535 : vector<14x14xi1>, vector<14x14xi32>
    %cst_163 = arith.constant 2.500000e-01 : f32
    %567 = vector.broadcast %cst_163 : f32 to vector<14x14xf32>
    %568 = arith.mulf %567, %538 : vector<14x14xf32>
    %cst_164 = arith.constant 0.114276692 : f32
    %569 = vector.broadcast %cst_164 : f32 to vector<14x14xf32>
    %570 = arith.mulf %569, %539 : vector<14x14xf32>
    %571 = arith.addf %568, %570 : vector<14x14xf32>
    %cst_165 = arith.constant 0.114276692 : f32
    %572 = vector.broadcast %cst_165 : f32 to vector<14x14xf32>
    %573 = arith.mulf %572, %541 : vector<14x14xf32>
    %574 = arith.addf %571, %573 : vector<14x14xf32>
    %cst_166 = arith.constant -0.114276692 : f32
    %575 = vector.broadcast %cst_166 : f32 to vector<14x14xf32>
    %576 = arith.mulf %575, %542 : vector<14x14xf32>
    %577 = arith.addf %574, %576 : vector<14x14xf32>
    %cst_167 = arith.constant -0.114276692 : f32
    %578 = vector.broadcast %cst_167 : f32 to vector<14x14xf32>
    %579 = arith.mulf %578, %544 : vector<14x14xf32>
    %580 = arith.addf %577, %579 : vector<14x14xf32>
    %cst_168 = arith.constant -2.500000e-01 : f32
    %581 = vector.broadcast %cst_168 : f32 to vector<14x14xf32>
    %582 = arith.mulf %581, %545 : vector<14x14xf32>
    %583 = arith.addf %580, %582 : vector<14x14xf32>
    %584 = arith.cmpf ogt, %583, %564 : vector<14x14xf32>
    %585 = arith.select %584, %583, %564 : vector<14x14xi1>, vector<14x14xf32>
    %c25_i32 = arith.constant 25 : i32
    %586 = vector.broadcast %c25_i32 : i32 to vector<14x14xi32>
    %587 = arith.select %584, %586, %566 : vector<14x14xi1>, vector<14x14xi32>
    %cst_169 = arith.constant 1.250000e-01 : f32
    %588 = vector.broadcast %cst_169 : f32 to vector<14x14xf32>
    %589 = arith.mulf %588, %538 : vector<14x14xf32>
    %cst_170 = arith.constant -1.250000e-01 : f32
    %590 = vector.broadcast %cst_170 : f32 to vector<14x14xf32>
    %591 = arith.mulf %590, %540 : vector<14x14xf32>
    %592 = arith.addf %589, %591 : vector<14x14xf32>
    %cst_171 = arith.constant 2.500000e-01 : f32
    %593 = vector.broadcast %cst_171 : f32 to vector<14x14xf32>
    %594 = arith.mulf %593, %541 : vector<14x14xf32>
    %595 = arith.addf %592, %594 : vector<14x14xf32>
    %cst_172 = arith.constant -2.500000e-01 : f32
    %596 = vector.broadcast %cst_172 : f32 to vector<14x14xf32>
    %597 = arith.mulf %596, %542 : vector<14x14xf32>
    %598 = arith.addf %595, %597 : vector<14x14xf32>
    %cst_173 = arith.constant 1.250000e-01 : f32
    %599 = vector.broadcast %cst_173 : f32 to vector<14x14xf32>
    %600 = arith.mulf %599, %543 : vector<14x14xf32>
    %601 = arith.addf %598, %600 : vector<14x14xf32>
    %cst_174 = arith.constant -1.250000e-01 : f32
    %602 = vector.broadcast %cst_174 : f32 to vector<14x14xf32>
    %603 = arith.mulf %602, %545 : vector<14x14xf32>
    %604 = arith.addf %601, %603 : vector<14x14xf32>
    %605 = arith.cmpf ogt, %604, %585 : vector<14x14xf32>
    %606 = arith.select %605, %604, %585 : vector<14x14xi1>, vector<14x14xf32>
    %c26_i32 = arith.constant 26 : i32
    %607 = vector.broadcast %c26_i32 : i32 to vector<14x14xi32>
    %608 = arith.select %605, %607, %587 : vector<14x14xi1>, vector<14x14xi32>
    %cst_175 = arith.constant -0.114276692 : f32
    %609 = vector.broadcast %cst_175 : f32 to vector<14x14xf32>
    %610 = arith.mulf %609, %539 : vector<14x14xf32>
    %cst_176 = arith.constant -2.500000e-01 : f32
    %611 = vector.broadcast %cst_176 : f32 to vector<14x14xf32>
    %612 = arith.mulf %611, %540 : vector<14x14xf32>
    %613 = arith.addf %610, %612 : vector<14x14xf32>
    %cst_177 = arith.constant 0.114276692 : f32
    %614 = vector.broadcast %cst_177 : f32 to vector<14x14xf32>
    %615 = arith.mulf %614, %541 : vector<14x14xf32>
    %616 = arith.addf %613, %615 : vector<14x14xf32>
    %cst_178 = arith.constant -0.114276692 : f32
    %617 = vector.broadcast %cst_178 : f32 to vector<14x14xf32>
    %618 = arith.mulf %617, %542 : vector<14x14xf32>
    %619 = arith.addf %616, %618 : vector<14x14xf32>
    %cst_179 = arith.constant 2.500000e-01 : f32
    %620 = vector.broadcast %cst_179 : f32 to vector<14x14xf32>
    %621 = arith.mulf %620, %543 : vector<14x14xf32>
    %622 = arith.addf %619, %621 : vector<14x14xf32>
    %cst_180 = arith.constant 0.114276692 : f32
    %623 = vector.broadcast %cst_180 : f32 to vector<14x14xf32>
    %624 = arith.mulf %623, %544 : vector<14x14xf32>
    %625 = arith.addf %622, %624 : vector<14x14xf32>
    %626 = arith.cmpf ogt, %625, %606 : vector<14x14xf32>
    %627 = arith.select %626, %625, %606 : vector<14x14xi1>, vector<14x14xf32>
    %c27_i32 = arith.constant 27 : i32
    %628 = vector.broadcast %c27_i32 : i32 to vector<14x14xi32>
    %629 = arith.select %626, %628, %608 : vector<14x14xi1>, vector<14x14xi32>
    %cst_181 = arith.constant -1.250000e-01 : f32
    %630 = vector.broadcast %cst_181 : f32 to vector<14x14xf32>
    %631 = arith.mulf %630, %538 : vector<14x14xf32>
    %cst_182 = arith.constant -2.500000e-01 : f32
    %632 = vector.broadcast %cst_182 : f32 to vector<14x14xf32>
    %633 = arith.mulf %632, %539 : vector<14x14xf32>
    %634 = arith.addf %631, %633 : vector<14x14xf32>
    %cst_183 = arith.constant -1.250000e-01 : f32
    %635 = vector.broadcast %cst_183 : f32 to vector<14x14xf32>
    %636 = arith.mulf %635, %540 : vector<14x14xf32>
    %637 = arith.addf %634, %636 : vector<14x14xf32>
    %cst_184 = arith.constant 1.250000e-01 : f32
    %638 = vector.broadcast %cst_184 : f32 to vector<14x14xf32>
    %639 = arith.mulf %638, %543 : vector<14x14xf32>
    %640 = arith.addf %637, %639 : vector<14x14xf32>
    %cst_185 = arith.constant 2.500000e-01 : f32
    %641 = vector.broadcast %cst_185 : f32 to vector<14x14xf32>
    %642 = arith.mulf %641, %544 : vector<14x14xf32>
    %643 = arith.addf %640, %642 : vector<14x14xf32>
    %cst_186 = arith.constant 1.250000e-01 : f32
    %644 = vector.broadcast %cst_186 : f32 to vector<14x14xf32>
    %645 = arith.mulf %644, %545 : vector<14x14xf32>
    %646 = arith.addf %643, %645 : vector<14x14xf32>
    %647 = arith.cmpf ogt, %646, %627 : vector<14x14xf32>
    %648 = arith.select %647, %646, %627 : vector<14x14xi1>, vector<14x14xf32>
    %c28_i32 = arith.constant 28 : i32
    %649 = vector.broadcast %c28_i32 : i32 to vector<14x14xi32>
    %650 = arith.select %647, %649, %629 : vector<14x14xi1>, vector<14x14xi32>
    %cst_187 = arith.constant -2.500000e-01 : f32
    %651 = vector.broadcast %cst_187 : f32 to vector<14x14xf32>
    %652 = arith.mulf %651, %538 : vector<14x14xf32>
    %cst_188 = arith.constant -0.114276692 : f32
    %653 = vector.broadcast %cst_188 : f32 to vector<14x14xf32>
    %654 = arith.mulf %653, %539 : vector<14x14xf32>
    %655 = arith.addf %652, %654 : vector<14x14xf32>
    %cst_189 = arith.constant -0.114276692 : f32
    %656 = vector.broadcast %cst_189 : f32 to vector<14x14xf32>
    %657 = arith.mulf %656, %541 : vector<14x14xf32>
    %658 = arith.addf %655, %657 : vector<14x14xf32>
    %cst_190 = arith.constant 0.114276692 : f32
    %659 = vector.broadcast %cst_190 : f32 to vector<14x14xf32>
    %660 = arith.mulf %659, %542 : vector<14x14xf32>
    %661 = arith.addf %658, %660 : vector<14x14xf32>
    %cst_191 = arith.constant 0.114276692 : f32
    %662 = vector.broadcast %cst_191 : f32 to vector<14x14xf32>
    %663 = arith.mulf %662, %544 : vector<14x14xf32>
    %664 = arith.addf %661, %663 : vector<14x14xf32>
    %cst_192 = arith.constant 2.500000e-01 : f32
    %665 = vector.broadcast %cst_192 : f32 to vector<14x14xf32>
    %666 = arith.mulf %665, %545 : vector<14x14xf32>
    %667 = arith.addf %664, %666 : vector<14x14xf32>
    %668 = arith.cmpf ogt, %667, %648 : vector<14x14xf32>
    %669 = arith.select %668, %667, %648 : vector<14x14xi1>, vector<14x14xf32>
    %c29_i32 = arith.constant 29 : i32
    %670 = vector.broadcast %c29_i32 : i32 to vector<14x14xi32>
    %671 = arith.select %668, %670, %650 : vector<14x14xi1>, vector<14x14xi32>
    %cst_193 = arith.constant -1.250000e-01 : f32
    %672 = vector.broadcast %cst_193 : f32 to vector<14x14xf32>
    %673 = arith.mulf %672, %538 : vector<14x14xf32>
    %cst_194 = arith.constant 1.250000e-01 : f32
    %674 = vector.broadcast %cst_194 : f32 to vector<14x14xf32>
    %675 = arith.mulf %674, %540 : vector<14x14xf32>
    %676 = arith.addf %673, %675 : vector<14x14xf32>
    %cst_195 = arith.constant -2.500000e-01 : f32
    %677 = vector.broadcast %cst_195 : f32 to vector<14x14xf32>
    %678 = arith.mulf %677, %541 : vector<14x14xf32>
    %679 = arith.addf %676, %678 : vector<14x14xf32>
    %cst_196 = arith.constant 2.500000e-01 : f32
    %680 = vector.broadcast %cst_196 : f32 to vector<14x14xf32>
    %681 = arith.mulf %680, %542 : vector<14x14xf32>
    %682 = arith.addf %679, %681 : vector<14x14xf32>
    %cst_197 = arith.constant -1.250000e-01 : f32
    %683 = vector.broadcast %cst_197 : f32 to vector<14x14xf32>
    %684 = arith.mulf %683, %543 : vector<14x14xf32>
    %685 = arith.addf %682, %684 : vector<14x14xf32>
    %cst_198 = arith.constant 1.250000e-01 : f32
    %686 = vector.broadcast %cst_198 : f32 to vector<14x14xf32>
    %687 = arith.mulf %686, %545 : vector<14x14xf32>
    %688 = arith.addf %685, %687 : vector<14x14xf32>
    %689 = arith.cmpf ogt, %688, %669 : vector<14x14xf32>
    %690 = arith.select %689, %688, %669 : vector<14x14xi1>, vector<14x14xf32>
    %c30_i32 = arith.constant 30 : i32
    %691 = vector.broadcast %c30_i32 : i32 to vector<14x14xi32>
    %692 = arith.select %689, %691, %671 : vector<14x14xi1>, vector<14x14xi32>
    %cst_199 = arith.constant 0.114276692 : f32
    %693 = vector.broadcast %cst_199 : f32 to vector<14x14xf32>
    %694 = arith.mulf %693, %539 : vector<14x14xf32>
    %cst_200 = arith.constant 2.500000e-01 : f32
    %695 = vector.broadcast %cst_200 : f32 to vector<14x14xf32>
    %696 = arith.mulf %695, %540 : vector<14x14xf32>
    %697 = arith.addf %694, %696 : vector<14x14xf32>
    %cst_201 = arith.constant -0.114276692 : f32
    %698 = vector.broadcast %cst_201 : f32 to vector<14x14xf32>
    %699 = arith.mulf %698, %541 : vector<14x14xf32>
    %700 = arith.addf %697, %699 : vector<14x14xf32>
    %cst_202 = arith.constant 0.114276692 : f32
    %701 = vector.broadcast %cst_202 : f32 to vector<14x14xf32>
    %702 = arith.mulf %701, %542 : vector<14x14xf32>
    %703 = arith.addf %700, %702 : vector<14x14xf32>
    %cst_203 = arith.constant -2.500000e-01 : f32
    %704 = vector.broadcast %cst_203 : f32 to vector<14x14xf32>
    %705 = arith.mulf %704, %543 : vector<14x14xf32>
    %706 = arith.addf %703, %705 : vector<14x14xf32>
    %cst_204 = arith.constant -0.114276692 : f32
    %707 = vector.broadcast %cst_204 : f32 to vector<14x14xf32>
    %708 = arith.mulf %707, %544 : vector<14x14xf32>
    %709 = arith.addf %706, %708 : vector<14x14xf32>
    %710 = arith.cmpf ogt, %709, %690 : vector<14x14xf32>
    %711 = arith.select %710, %709, %690 : vector<14x14xi1>, vector<14x14xf32>
    %c31_i32 = arith.constant 31 : i32
    %712 = vector.broadcast %c31_i32 : i32 to vector<14x14xi32>
    %713 = arith.select %710, %712, %692 : vector<14x14xi1>, vector<14x14xi32>
    %cst_205 = arith.constant 2.500000e-01 : f32
    %714 = vector.broadcast %cst_205 : f32 to vector<14x14xf32>
    %715 = arith.cmpf olt, %711, %714 : vector<14x14xf32>
    %c8_i32_206 = arith.constant 8 : i32
    %716 = vector.broadcast %c8_i32_206 : i32 to vector<14x14xi32>
    %717 = arith.select %715, %716, %713 : vector<14x14xi1>, vector<14x14xi32>
    %c-1_i32 = arith.constant -1 : i32
    %718 = vector.broadcast %c-1_i32 : i32 to vector<14x114xi32>
    %719 = tpu.concatenate %717, %718 in 1 : vector<14x14xi32>, vector<14x114xi32> -> vector<14x128xi32>
    %c0_i32_207 = arith.constant 0 : i32
    %720 = vector.broadcast %c0_i32_207 : i32 to vector<14x128xi32>
    %721 = arith.cmpi eq, %719, %720 : vector<14x128xi32>
    %722 = arith.extui %721 : vector<14x128xi1> to vector<14x128xi32>
    %723 = arith.sitofp %722 : vector<14x128xi32> to vector<14x128xf32>
    %724 = arith.truncf %723 : vector<14x128xf32> to vector<14x128xbf16>
    %c0_208 = arith.constant 0 : index
    %c0_209 = arith.constant 0 : index
    %725 = vector.load %arg5[%c0_208, %c0_209] : memref<28x1152xbf16, #tpu.memory_space<vmem>>, vector<14x128xbf16>
    tpu.vector_store %arg5[%c0_208, %c0_209], %724 {strides = array<i32>} : memref<28x1152xbf16, #tpu.memory_space<vmem>>, vector<14x128xbf16>,
    %c1_i32_210 = arith.constant 1 : i32
    %726 = vector.broadcast %c1_i32_210 : i32 to vector<14x128xi32>
    %727 = arith.cmpi eq, %719, %726 : vector<14x128xi32>
    %728 = arith.extui %727 : vector<14x128xi1> to vector<14x128xi32>
    %729 = arith.sitofp %728 : vector<14x128xi32> to vector<14x128xf32>
    %730 = arith.truncf %729 : vector<14x128xf32> to vector<14x128xbf16>
    %c0_211 = arith.constant 0 : index
    %c128 = arith.constant 128 : index
    %731 = vector.load %arg5[%c0_211, %c128] : memref<28x1152xbf16, #tpu.memory_space<vmem>>, vector<14x128xbf16>
    tpu.vector_store %arg5[%c0_211, %c128], %730 {strides = array<i32>} : memref<28x1152xbf16, #tpu.memory_space<vmem>>, vector<14x128xbf16>,
    %c2_i32_212 = arith.constant 2 : i32
    %732 = vector.broadcast %c2_i32_212 : i32 to vector<14x128xi32>
    %733 = arith.cmpi eq, %719, %732 : vector<14x128xi32>
    %734 = arith.extui %733 : vector<14x128xi1> to vector<14x128xi32>
    %735 = arith.sitofp %734 : vector<14x128xi32> to vector<14x128xf32>
    %736 = arith.truncf %735 : vector<14x128xf32> to vector<14x128xbf16>
    %c0_213 = arith.constant 0 : index
    %c256 = arith.constant 256 : index
    %737 = vector.load %arg5[%c0_213, %c256] : memref<28x1152xbf16, #tpu.memory_space<vmem>>, vector<14x128xbf16>
    tpu.vector_store %arg5[%c0_213, %c256], %736 {strides = array<i32>} : memref<28x1152xbf16, #tpu.memory_space<vmem>>, vector<14x128xbf16>,
    %c3_i32_214 = arith.constant 3 : i32
    %738 = vector.broadcast %c3_i32_214 : i32 to vector<14x128xi32>
    %739 = arith.cmpi eq, %719, %738 : vector<14x128xi32>
    %740 = arith.extui %739 : vector<14x128xi1> to vector<14x128xi32>
    %741 = arith.sitofp %740 : vector<14x128xi32> to vector<14x128xf32>
    %742 = arith.truncf %741 : vector<14x128xf32> to vector<14x128xbf16>
    %c0_215 = arith.constant 0 : index
    %c384 = arith.constant 384 : index
    %743 = vector.load %arg5[%c0_215, %c384] : memref<28x1152xbf16, #tpu.memory_space<vmem>>, vector<14x128xbf16>
    tpu.vector_store %arg5[%c0_215, %c384], %742 {strides = array<i32>} : memref<28x1152xbf16, #tpu.memory_space<vmem>>, vector<14x128xbf16>,
    %c4_i32_216 = arith.constant 4 : i32
    %744 = vector.broadcast %c4_i32_216 : i32 to vector<14x128xi32>
    %745 = arith.cmpi eq, %719, %744 : vector<14x128xi32>
    %746 = arith.extui %745 : vector<14x128xi1> to vector<14x128xi32>
    %747 = arith.sitofp %746 : vector<14x128xi32> to vector<14x128xf32>
    %748 = arith.truncf %747 : vector<14x128xf32> to vector<14x128xbf16>
    %c0_217 = arith.constant 0 : index
    %c512 = arith.constant 512 : index
    %749 = vector.load %arg5[%c0_217, %c512] : memref<28x1152xbf16, #tpu.memory_space<vmem>>, vector<14x128xbf16>
    tpu.vector_store %arg5[%c0_217, %c512], %748 {strides = array<i32>} : memref<28x1152xbf16, #tpu.memory_space<vmem>>, vector<14x128xbf16>,
    %c5_i32_218 = arith.constant 5 : i32
    %750 = vector.broadcast %c5_i32_218 : i32 to vector<14x128xi32>
    %751 = arith.cmpi eq, %719, %750 : vector<14x128xi32>
    %752 = arith.extui %751 : vector<14x128xi1> to vector<14x128xi32>
    %753 = arith.sitofp %752 : vector<14x128xi32> to vector<14x128xf32>
    %754 = arith.truncf %753 : vector<14x128xf32> to vector<14x128xbf16>
    %c0_219 = arith.constant 0 : index
    %c640 = arith.constant 640 : index
    %755 = vector.load %arg5[%c0_219, %c640] : memref<28x1152xbf16, #tpu.memory_space<vmem>>, vector<14x128xbf16>
    tpu.vector_store %arg5[%c0_219, %c640], %754 {strides = array<i32>} : memref<28x1152xbf16, #tpu.memory_space<vmem>>, vector<14x128xbf16>,
    %c6_i32_220 = arith.constant 6 : i32
    %756 = vector.broadcast %c6_i32_220 : i32 to vector<14x128xi32>
    %757 = arith.cmpi eq, %719, %756 : vector<14x128xi32>
    %758 = arith.extui %757 : vector<14x128xi1> to vector<14x128xi32>
    %759 = arith.sitofp %758 : vector<14x128xi32> to vector<14x128xf32>
    %760 = arith.truncf %759 : vector<14x128xf32> to vector<14x128xbf16>
    %c0_221 = arith.constant 0 : index
    %c768 = arith.constant 768 : index
    %761 = vector.load %arg5[%c0_221, %c768] : memref<28x1152xbf16, #tpu.memory_space<vmem>>, vector<14x128xbf16>
    tpu.vector_store %arg5[%c0_221, %c768], %760 {strides = array<i32>} : memref<28x1152xbf16, #tpu.memory_space<vmem>>, vector<14x128xbf16>,
    %c7_i32_222 = arith.constant 7 : i32
    %762 = vector.broadcast %c7_i32_222 : i32 to vector<14x128xi32>
    %763 = arith.cmpi eq, %719, %762 : vector<14x128xi32>
    %764 = arith.extui %763 : vector<14x128xi1> to vector<14x128xi32>
    %765 = arith.sitofp %764 : vector<14x128xi32> to vector<14x128xf32>
    %766 = arith.truncf %765 : vector<14x128xf32> to vector<14x128xbf16>
    %c0_223 = arith.constant 0 : index
    %c896 = arith.constant 896 : index
    %767 = vector.load %arg5[%c0_223, %c896] : memref<28x1152xbf16, #tpu.memory_space<vmem>>, vector<14x128xbf16>
    tpu.vector_store %arg5[%c0_223, %c896], %766 {strides = array<i32>} : memref<28x1152xbf16, #tpu.memory_space<vmem>>, vector<14x128xbf16>,
    %c8_i32_224 = arith.constant 8 : i32
    %768 = vector.broadcast %c8_i32_224 : i32 to vector<14x128xi32>
    %769 = arith.cmpi eq, %719, %768 : vector<14x128xi32>
    %770 = arith.extui %769 : vector<14x128xi1> to vector<14x128xi32>
    %771 = arith.sitofp %770 : vector<14x128xi32> to vector<14x128xf32>
    %772 = arith.truncf %771 : vector<14x128xf32> to vector<14x128xbf16>
    %c0_225 = arith.constant 0 : index
    %c1024 = arith.constant 1024 : index
    %773 = vector.load %arg5[%c0_225, %c1024] : memref<28x1152xbf16, #tpu.memory_space<vmem>>, vector<14x128xbf16>
    tpu.vector_store %arg5[%c0_225, %c1024], %772 {strides = array<i32>} : memref<28x1152xbf16, #tpu.memory_space<vmem>>, vector<14x128xbf16>,
    %cst_226 = arith.constant 0xFF800000 : f32
    %774 = vector.broadcast %cst_226 : f32 to vector<14x14xf32>
    %c0_i32_227 = arith.constant 0 : i32
    %775 = vector.broadcast %c0_i32_227 : i32 to vector<14x14xi32>
    %c1_228 = arith.constant 1 : index
    %c0_229 = arith.constant 0 : index
    %c0_230 = arith.constant 0 : index
    %c0_231 = arith.constant 0 : index
    %776 = vector.load %arg1[%c1_228, %c0_229, %c0_230, %c0_231] : memref<2x4x16x16xf32, #tpu.memory_space<vmem>>, vector<1x1x16x16xf32>
    %777 = vector.shape_cast %776 : vector<1x1x16x16xf32> to vector<16x16xf32>
    %778 = vector.extract_strided_slice %777 {offsets = [0, 0], sizes = [14, 14], strides = [1, 1]} : vector<16x16xf32> to vector<14x14xf32>
    %779 = vector.extract_strided_slice %777 {offsets = [0, 1], sizes = [14, 14], strides = [1, 1]} : vector<16x16xf32> to vector<14x14xf32>
    %780 = vector.extract_strided_slice %777 {offsets = [0, 2], sizes = [14, 14], strides = [1, 1]} : vector<16x16xf32> to vector<14x14xf32>
    %781 = vector.extract_strided_slice %777 {offsets = [1, 0], sizes = [14, 14], strides = [1, 1]} : vector<16x16xf32> to vector<14x14xf32>
    %782 = vector.extract_strided_slice %777 {offsets = [1, 2], sizes = [14, 14], strides = [1, 1]} : vector<16x16xf32> to vector<14x14xf32>
    %783 = vector.extract_strided_slice %777 {offsets = [2, 0], sizes = [14, 14], strides = [1, 1]} : vector<16x16xf32> to vector<14x14xf32>
    %784 = vector.extract_strided_slice %777 {offsets = [2, 1], sizes = [14, 14], strides = [1, 1]} : vector<16x16xf32> to vector<14x14xf32>
    %785 = vector.extract_strided_slice %777 {offsets = [2, 2], sizes = [14, 14], strides = [1, 1]} : vector<16x16xf32> to vector<14x14xf32>
    %cst_232 = arith.constant 1.250000e-01 : f32
    %786 = vector.broadcast %cst_232 : f32 to vector<14x14xf32>
    %787 = arith.mulf %786, %778 : vector<14x14xf32>
    %cst_233 = arith.constant 2.500000e-01 : f32
    %788 = vector.broadcast %cst_233 : f32 to vector<14x14xf32>
    %789 = arith.mulf %788, %779 : vector<14x14xf32>
    %790 = arith.addf %787, %789 : vector<14x14xf32>
    %cst_234 = arith.constant 1.250000e-01 : f32
    %791 = vector.broadcast %cst_234 : f32 to vector<14x14xf32>
    %792 = arith.mulf %791, %780 : vector<14x14xf32>
    %793 = arith.addf %790, %792 : vector<14x14xf32>
    %cst_235 = arith.constant -1.250000e-01 : f32
    %794 = vector.broadcast %cst_235 : f32 to vector<14x14xf32>
    %795 = arith.mulf %794, %783 : vector<14x14xf32>
    %796 = arith.addf %793, %795 : vector<14x14xf32>
    %cst_236 = arith.constant -2.500000e-01 : f32
    %797 = vector.broadcast %cst_236 : f32 to vector<14x14xf32>
    %798 = arith.mulf %797, %784 : vector<14x14xf32>
    %799 = arith.addf %796, %798 : vector<14x14xf32>
    %cst_237 = arith.constant -1.250000e-01 : f32
    %800 = vector.broadcast %cst_237 : f32 to vector<14x14xf32>
    %801 = arith.mulf %800, %785 : vector<14x14xf32>
    %802 = arith.addf %799, %801 : vector<14x14xf32>
    %803 = arith.cmpf ogt, %802, %774 : vector<14x14xf32>
    %804 = arith.select %803, %802, %774 : vector<14x14xi1>, vector<14x14xf32>
    %c0_i32_238 = arith.constant 0 : i32
    %805 = vector.broadcast %c0_i32_238 : i32 to vector<14x14xi32>
    %806 = arith.select %803, %805, %775 : vector<14x14xi1>, vector<14x14xi32>
    %cst_239 = arith.constant 2.500000e-01 : f32
    %807 = vector.broadcast %cst_239 : f32 to vector<14x14xf32>
    %808 = arith.mulf %807, %778 : vector<14x14xf32>
    %cst_240 = arith.constant 0.114276692 : f32
    %809 = vector.broadcast %cst_240 : f32 to vector<14x14xf32>
    %810 = arith.mulf %809, %779 : vector<14x14xf32>
    %811 = arith.addf %808, %810 : vector<14x14xf32>
    %cst_241 = arith.constant 0.114276692 : f32
    %812 = vector.broadcast %cst_241 : f32 to vector<14x14xf32>
    %813 = arith.mulf %812, %781 : vector<14x14xf32>
    %814 = arith.addf %811, %813 : vector<14x14xf32>
    %cst_242 = arith.constant -0.114276692 : f32
    %815 = vector.broadcast %cst_242 : f32 to vector<14x14xf32>
    %816 = arith.mulf %815, %782 : vector<14x14xf32>
    %817 = arith.addf %814, %816 : vector<14x14xf32>
    %cst_243 = arith.constant -0.114276692 : f32
    %818 = vector.broadcast %cst_243 : f32 to vector<14x14xf32>
    %819 = arith.mulf %818, %784 : vector<14x14xf32>
    %820 = arith.addf %817, %819 : vector<14x14xf32>
    %cst_244 = arith.constant -2.500000e-01 : f32
    %821 = vector.broadcast %cst_244 : f32 to vector<14x14xf32>
    %822 = arith.mulf %821, %785 : vector<14x14xf32>
    %823 = arith.addf %820, %822 : vector<14x14xf32>
    %824 = arith.cmpf ogt, %823, %804 : vector<14x14xf32>
    %825 = arith.select %824, %823, %804 : vector<14x14xi1>, vector<14x14xf32>
    %c1_i32_245 = arith.constant 1 : i32
    %826 = vector.broadcast %c1_i32_245 : i32 to vector<14x14xi32>
    %827 = arith.select %824, %826, %806 : vector<14x14xi1>, vector<14x14xi32>
    %cst_246 = arith.constant 1.250000e-01 : f32
    %828 = vector.broadcast %cst_246 : f32 to vector<14x14xf32>
    %829 = arith.mulf %828, %778 : vector<14x14xf32>
    %cst_247 = arith.constant -1.250000e-01 : f32
    %830 = vector.broadcast %cst_247 : f32 to vector<14x14xf32>
    %831 = arith.mulf %830, %780 : vector<14x14xf32>
    %832 = arith.addf %829, %831 : vector<14x14xf32>
    %cst_248 = arith.constant 2.500000e-01 : f32
    %833 = vector.broadcast %cst_248 : f32 to vector<14x14xf32>
    %834 = arith.mulf %833, %781 : vector<14x14xf32>
    %835 = arith.addf %832, %834 : vector<14x14xf32>
    %cst_249 = arith.constant -2.500000e-01 : f32
    %836 = vector.broadcast %cst_249 : f32 to vector<14x14xf32>
    %837 = arith.mulf %836, %782 : vector<14x14xf32>
    %838 = arith.addf %835, %837 : vector<14x14xf32>
    %cst_250 = arith.constant 1.250000e-01 : f32
    %839 = vector.broadcast %cst_250 : f32 to vector<14x14xf32>
    %840 = arith.mulf %839, %783 : vector<14x14xf32>
    %841 = arith.addf %838, %840 : vector<14x14xf32>
    %cst_251 = arith.constant -1.250000e-01 : f32
    %842 = vector.broadcast %cst_251 : f32 to vector<14x14xf32>
    %843 = arith.mulf %842, %785 : vector<14x14xf32>
    %844 = arith.addf %841, %843 : vector<14x14xf32>
    %845 = arith.cmpf ogt, %844, %825 : vector<14x14xf32>
    %846 = arith.select %845, %844, %825 : vector<14x14xi1>, vector<14x14xf32>
    %c2_i32_252 = arith.constant 2 : i32
    %847 = vector.broadcast %c2_i32_252 : i32 to vector<14x14xi32>
    %848 = arith.select %845, %847, %827 : vector<14x14xi1>, vector<14x14xi32>
    %cst_253 = arith.constant -0.114276692 : f32
    %849 = vector.broadcast %cst_253 : f32 to vector<14x14xf32>
    %850 = arith.mulf %849, %779 : vector<14x14xf32>
    %cst_254 = arith.constant -2.500000e-01 : f32
    %851 = vector.broadcast %cst_254 : f32 to vector<14x14xf32>
    %852 = arith.mulf %851, %780 : vector<14x14xf32>
    %853 = arith.addf %850, %852 : vector<14x14xf32>
    %cst_255 = arith.constant 0.114276692 : f32
    %854 = vector.broadcast %cst_255 : f32 to vector<14x14xf32>
    %855 = arith.mulf %854, %781 : vector<14x14xf32>
    %856 = arith.addf %853, %855 : vector<14x14xf32>
    %cst_256 = arith.constant -0.114276692 : f32
    %857 = vector.broadcast %cst_256 : f32 to vector<14x14xf32>
    %858 = arith.mulf %857, %782 : vector<14x14xf32>
    %859 = arith.addf %856, %858 : vector<14x14xf32>
    %cst_257 = arith.constant 2.500000e-01 : f32
    %860 = vector.broadcast %cst_257 : f32 to vector<14x14xf32>
    %861 = arith.mulf %860, %783 : vector<14x14xf32>
    %862 = arith.addf %859, %861 : vector<14x14xf32>
    %cst_258 = arith.constant 0.114276692 : f32
    %863 = vector.broadcast %cst_258 : f32 to vector<14x14xf32>
    %864 = arith.mulf %863, %784 : vector<14x14xf32>
    %865 = arith.addf %862, %864 : vector<14x14xf32>
    %866 = arith.cmpf ogt, %865, %846 : vector<14x14xf32>
    %867 = arith.select %866, %865, %846 : vector<14x14xi1>, vector<14x14xf32>
    %c3_i32_259 = arith.constant 3 : i32
    %868 = vector.broadcast %c3_i32_259 : i32 to vector<14x14xi32>
    %869 = arith.select %866, %868, %848 : vector<14x14xi1>, vector<14x14xi32>
    %cst_260 = arith.constant -1.250000e-01 : f32
    %870 = vector.broadcast %cst_260 : f32 to vector<14x14xf32>
    %871 = arith.mulf %870, %778 : vector<14x14xf32>
    %cst_261 = arith.constant -2.500000e-01 : f32
    %872 = vector.broadcast %cst_261 : f32 to vector<14x14xf32>
    %873 = arith.mulf %872, %779 : vector<14x14xf32>
    %874 = arith.addf %871, %873 : vector<14x14xf32>
    %cst_262 = arith.constant -1.250000e-01 : f32
    %875 = vector.broadcast %cst_262 : f32 to vector<14x14xf32>
    %876 = arith.mulf %875, %780 : vector<14x14xf32>
    %877 = arith.addf %874, %876 : vector<14x14xf32>
    %cst_263 = arith.constant 1.250000e-01 : f32
    %878 = vector.broadcast %cst_263 : f32 to vector<14x14xf32>
    %879 = arith.mulf %878, %783 : vector<14x14xf32>
    %880 = arith.addf %877, %879 : vector<14x14xf32>
    %cst_264 = arith.constant 2.500000e-01 : f32
    %881 = vector.broadcast %cst_264 : f32 to vector<14x14xf32>
    %882 = arith.mulf %881, %784 : vector<14x14xf32>
    %883 = arith.addf %880, %882 : vector<14x14xf32>
    %cst_265 = arith.constant 1.250000e-01 : f32
    %884 = vector.broadcast %cst_265 : f32 to vector<14x14xf32>
    %885 = arith.mulf %884, %785 : vector<14x14xf32>
    %886 = arith.addf %883, %885 : vector<14x14xf32>
    %887 = arith.cmpf ogt, %886, %867 : vector<14x14xf32>
    %888 = arith.select %887, %886, %867 : vector<14x14xi1>, vector<14x14xf32>
    %c4_i32_266 = arith.constant 4 : i32
    %889 = vector.broadcast %c4_i32_266 : i32 to vector<14x14xi32>
    %890 = arith.select %887, %889, %869 : vector<14x14xi1>, vector<14x14xi32>
    %cst_267 = arith.constant -2.500000e-01 : f32
    %891 = vector.broadcast %cst_267 : f32 to vector<14x14xf32>
    %892 = arith.mulf %891, %778 : vector<14x14xf32>
    %cst_268 = arith.constant -0.114276692 : f32
    %893 = vector.broadcast %cst_268 : f32 to vector<14x14xf32>
    %894 = arith.mulf %893, %779 : vector<14x14xf32>
    %895 = arith.addf %892, %894 : vector<14x14xf32>
    %cst_269 = arith.constant -0.114276692 : f32
    %896 = vector.broadcast %cst_269 : f32 to vector<14x14xf32>
    %897 = arith.mulf %896, %781 : vector<14x14xf32>
    %898 = arith.addf %895, %897 : vector<14x14xf32>
    %cst_270 = arith.constant 0.114276692 : f32
    %899 = vector.broadcast %cst_270 : f32 to vector<14x14xf32>
    %900 = arith.mulf %899, %782 : vector<14x14xf32>
    %901 = arith.addf %898, %900 : vector<14x14xf32>
    %cst_271 = arith.constant 0.114276692 : f32
    %902 = vector.broadcast %cst_271 : f32 to vector<14x14xf32>
    %903 = arith.mulf %902, %784 : vector<14x14xf32>
    %904 = arith.addf %901, %903 : vector<14x14xf32>
    %cst_272 = arith.constant 2.500000e-01 : f32
    %905 = vector.broadcast %cst_272 : f32 to vector<14x14xf32>
    %906 = arith.mulf %905, %785 : vector<14x14xf32>
    %907 = arith.addf %904, %906 : vector<14x14xf32>
    %908 = arith.cmpf ogt, %907, %888 : vector<14x14xf32>
    %909 = arith.select %908, %907, %888 : vector<14x14xi1>, vector<14x14xf32>
    %c5_i32_273 = arith.constant 5 : i32
    %910 = vector.broadcast %c5_i32_273 : i32 to vector<14x14xi32>
    %911 = arith.select %908, %910, %890 : vector<14x14xi1>, vector<14x14xi32>
    %cst_274 = arith.constant -1.250000e-01 : f32
    %912 = vector.broadcast %cst_274 : f32 to vector<14x14xf32>
    %913 = arith.mulf %912, %778 : vector<14x14xf32>
    %cst_275 = arith.constant 1.250000e-01 : f32
    %914 = vector.broadcast %cst_275 : f32 to vector<14x14xf32>
    %915 = arith.mulf %914, %780 : vector<14x14xf32>
    %916 = arith.addf %913, %915 : vector<14x14xf32>
    %cst_276 = arith.constant -2.500000e-01 : f32
    %917 = vector.broadcast %cst_276 : f32 to vector<14x14xf32>
    %918 = arith.mulf %917, %781 : vector<14x14xf32>
    %919 = arith.addf %916, %918 : vector<14x14xf32>
    %cst_277 = arith.constant 2.500000e-01 : f32
    %920 = vector.broadcast %cst_277 : f32 to vector<14x14xf32>
    %921 = arith.mulf %920, %782 : vector<14x14xf32>
    %922 = arith.addf %919, %921 : vector<14x14xf32>
    %cst_278 = arith.constant -1.250000e-01 : f32
    %923 = vector.broadcast %cst_278 : f32 to vector<14x14xf32>
    %924 = arith.mulf %923, %783 : vector<14x14xf32>
    %925 = arith.addf %922, %924 : vector<14x14xf32>
    %cst_279 = arith.constant 1.250000e-01 : f32
    %926 = vector.broadcast %cst_279 : f32 to vector<14x14xf32>
    %927 = arith.mulf %926, %785 : vector<14x14xf32>
    %928 = arith.addf %925, %927 : vector<14x14xf32>
    %929 = arith.cmpf ogt, %928, %909 : vector<14x14xf32>
    %930 = arith.select %929, %928, %909 : vector<14x14xi1>, vector<14x14xf32>
    %c6_i32_280 = arith.constant 6 : i32
    %931 = vector.broadcast %c6_i32_280 : i32 to vector<14x14xi32>
    %932 = arith.select %929, %931, %911 : vector<14x14xi1>, vector<14x14xi32>
    %cst_281 = arith.constant 0.114276692 : f32
    %933 = vector.broadcast %cst_281 : f32 to vector<14x14xf32>
    %934 = arith.mulf %933, %779 : vector<14x14xf32>
    %cst_282 = arith.constant 2.500000e-01 : f32
    %935 = vector.broadcast %cst_282 : f32 to vector<14x14xf32>
    %936 = arith.mulf %935, %780 : vector<14x14xf32>
    %937 = arith.addf %934, %936 : vector<14x14xf32>
    %cst_283 = arith.constant -0.114276692 : f32
    %938 = vector.broadcast %cst_283 : f32 to vector<14x14xf32>
    %939 = arith.mulf %938, %781 : vector<14x14xf32>
    %940 = arith.addf %937, %939 : vector<14x14xf32>
    %cst_284 = arith.constant 0.114276692 : f32
    %941 = vector.broadcast %cst_284 : f32 to vector<14x14xf32>
    %942 = arith.mulf %941, %782 : vector<14x14xf32>
    %943 = arith.addf %940, %942 : vector<14x14xf32>
    %cst_285 = arith.constant -2.500000e-01 : f32
    %944 = vector.broadcast %cst_285 : f32 to vector<14x14xf32>
    %945 = arith.mulf %944, %783 : vector<14x14xf32>
    %946 = arith.addf %943, %945 : vector<14x14xf32>
    %cst_286 = arith.constant -0.114276692 : f32
    %947 = vector.broadcast %cst_286 : f32 to vector<14x14xf32>
    %948 = arith.mulf %947, %784 : vector<14x14xf32>
    %949 = arith.addf %946, %948 : vector<14x14xf32>
    %950 = arith.cmpf ogt, %949, %930 : vector<14x14xf32>
    %951 = arith.select %950, %949, %930 : vector<14x14xi1>, vector<14x14xf32>
    %c7_i32_287 = arith.constant 7 : i32
    %952 = vector.broadcast %c7_i32_287 : i32 to vector<14x14xi32>
    %953 = arith.select %950, %952, %932 : vector<14x14xi1>, vector<14x14xi32>
    %c1_288 = arith.constant 1 : index
    %c1_289 = arith.constant 1 : index
    %c0_290 = arith.constant 0 : index
    %c0_291 = arith.constant 0 : index
    %954 = vector.load %arg1[%c1_288, %c1_289, %c0_290, %c0_291] : memref<2x4x16x16xf32, #tpu.memory_space<vmem>>, vector<1x1x16x16xf32>
    %955 = vector.shape_cast %954 : vector<1x1x16x16xf32> to vector<16x16xf32>
    %956 = vector.extract_strided_slice %955 {offsets = [0, 0], sizes = [14, 14], strides = [1, 1]} : vector<16x16xf32> to vector<14x14xf32>
    %957 = vector.extract_strided_slice %955 {offsets = [0, 1], sizes = [14, 14], strides = [1, 1]} : vector<16x16xf32> to vector<14x14xf32>
    %958 = vector.extract_strided_slice %955 {offsets = [0, 2], sizes = [14, 14], strides = [1, 1]} : vector<16x16xf32> to vector<14x14xf32>
    %959 = vector.extract_strided_slice %955 {offsets = [1, 0], sizes = [14, 14], strides = [1, 1]} : vector<16x16xf32> to vector<14x14xf32>
    %960 = vector.extract_strided_slice %955 {offsets = [1, 2], sizes = [14, 14], strides = [1, 1]} : vector<16x16xf32> to vector<14x14xf32>
    %961 = vector.extract_strided_slice %955 {offsets = [2, 0], sizes = [14, 14], strides = [1, 1]} : vector<16x16xf32> to vector<14x14xf32>
    %962 = vector.extract_strided_slice %955 {offsets = [2, 1], sizes = [14, 14], strides = [1, 1]} : vector<16x16xf32> to vector<14x14xf32>
    %963 = vector.extract_strided_slice %955 {offsets = [2, 2], sizes = [14, 14], strides = [1, 1]} : vector<16x16xf32> to vector<14x14xf32>
    %cst_292 = arith.constant 1.250000e-01 : f32
    %964 = vector.broadcast %cst_292 : f32 to vector<14x14xf32>
    %965 = arith.mulf %964, %956 : vector<14x14xf32>
    %cst_293 = arith.constant 2.500000e-01 : f32
    %966 = vector.broadcast %cst_293 : f32 to vector<14x14xf32>
    %967 = arith.mulf %966, %957 : vector<14x14xf32>
    %968 = arith.addf %965, %967 : vector<14x14xf32>
    %cst_294 = arith.constant 1.250000e-01 : f32
    %969 = vector.broadcast %cst_294 : f32 to vector<14x14xf32>
    %970 = arith.mulf %969, %958 : vector<14x14xf32>
    %971 = arith.addf %968, %970 : vector<14x14xf32>
    %cst_295 = arith.constant -1.250000e-01 : f32
    %972 = vector.broadcast %cst_295 : f32 to vector<14x14xf32>
    %973 = arith.mulf %972, %961 : vector<14x14xf32>
    %974 = arith.addf %971, %973 : vector<14x14xf32>
    %cst_296 = arith.constant -2.500000e-01 : f32
    %975 = vector.broadcast %cst_296 : f32 to vector<14x14xf32>
    %976 = arith.mulf %975, %962 : vector<14x14xf32>
    %977 = arith.addf %974, %976 : vector<14x14xf32>
    %cst_297 = arith.constant -1.250000e-01 : f32
    %978 = vector.broadcast %cst_297 : f32 to vector<14x14xf32>
    %979 = arith.mulf %978, %963 : vector<14x14xf32>
    %980 = arith.addf %977, %979 : vector<14x14xf32>
    %981 = arith.cmpf ogt, %980, %951 : vector<14x14xf32>
    %982 = arith.select %981, %980, %951 : vector<14x14xi1>, vector<14x14xf32>
    %c8_i32_298 = arith.constant 8 : i32
    %983 = vector.broadcast %c8_i32_298 : i32 to vector<14x14xi32>
    %984 = arith.select %981, %983, %953 : vector<14x14xi1>, vector<14x14xi32>
    %cst_299 = arith.constant 2.500000e-01 : f32
    %985 = vector.broadcast %cst_299 : f32 to vector<14x14xf32>
    %986 = arith.mulf %985, %956 : vector<14x14xf32>
    %cst_300 = arith.constant 0.114276692 : f32
    %987 = vector.broadcast %cst_300 : f32 to vector<14x14xf32>
    %988 = arith.mulf %987, %957 : vector<14x14xf32>
    %989 = arith.addf %986, %988 : vector<14x14xf32>
    %cst_301 = arith.constant 0.114276692 : f32
    %990 = vector.broadcast %cst_301 : f32 to vector<14x14xf32>
    %991 = arith.mulf %990, %959 : vector<14x14xf32>
    %992 = arith.addf %989, %991 : vector<14x14xf32>
    %cst_302 = arith.constant -0.114276692 : f32
    %993 = vector.broadcast %cst_302 : f32 to vector<14x14xf32>
    %994 = arith.mulf %993, %960 : vector<14x14xf32>
    %995 = arith.addf %992, %994 : vector<14x14xf32>
    %cst_303 = arith.constant -0.114276692 : f32
    %996 = vector.broadcast %cst_303 : f32 to vector<14x14xf32>
    %997 = arith.mulf %996, %962 : vector<14x14xf32>
    %998 = arith.addf %995, %997 : vector<14x14xf32>
    %cst_304 = arith.constant -2.500000e-01 : f32
    %999 = vector.broadcast %cst_304 : f32 to vector<14x14xf32>
    %1000 = arith.mulf %999, %963 : vector<14x14xf32>
    %1001 = arith.addf %998, %1000 : vector<14x14xf32>
    %1002 = arith.cmpf ogt, %1001, %982 : vector<14x14xf32>
    %1003 = arith.select %1002, %1001, %982 : vector<14x14xi1>, vector<14x14xf32>
    %c9_i32_305 = arith.constant 9 : i32
    %1004 = vector.broadcast %c9_i32_305 : i32 to vector<14x14xi32>
    %1005 = arith.select %1002, %1004, %984 : vector<14x14xi1>, vector<14x14xi32>
    %cst_306 = arith.constant 1.250000e-01 : f32
    %1006 = vector.broadcast %cst_306 : f32 to vector<14x14xf32>
    %1007 = arith.mulf %1006, %956 : vector<14x14xf32>
    %cst_307 = arith.constant -1.250000e-01 : f32
    %1008 = vector.broadcast %cst_307 : f32 to vector<14x14xf32>
    %1009 = arith.mulf %1008, %958 : vector<14x14xf32>
    %1010 = arith.addf %1007, %1009 : vector<14x14xf32>
    %cst_308 = arith.constant 2.500000e-01 : f32
    %1011 = vector.broadcast %cst_308 : f32 to vector<14x14xf32>
    %1012 = arith.mulf %1011, %959 : vector<14x14xf32>
    %1013 = arith.addf %1010, %1012 : vector<14x14xf32>
    %cst_309 = arith.constant -2.500000e-01 : f32
    %1014 = vector.broadcast %cst_309 : f32 to vector<14x14xf32>
    %1015 = arith.mulf %1014, %960 : vector<14x14xf32>
    %1016 = arith.addf %1013, %1015 : vector<14x14xf32>
    %cst_310 = arith.constant 1.250000e-01 : f32
    %1017 = vector.broadcast %cst_310 : f32 to vector<14x14xf32>
    %1018 = arith.mulf %1017, %961 : vector<14x14xf32>
    %1019 = arith.addf %1016, %1018 : vector<14x14xf32>
    %cst_311 = arith.constant -1.250000e-01 : f32
    %1020 = vector.broadcast %cst_311 : f32 to vector<14x14xf32>
    %1021 = arith.mulf %1020, %963 : vector<14x14xf32>
    %1022 = arith.addf %1019, %1021 : vector<14x14xf32>
    %1023 = arith.cmpf ogt, %1022, %1003 : vector<14x14xf32>
    %1024 = arith.select %1023, %1022, %1003 : vector<14x14xi1>, vector<14x14xf32>
    %c10_i32_312 = arith.constant 10 : i32
    %1025 = vector.broadcast %c10_i32_312 : i32 to vector<14x14xi32>
    %1026 = arith.select %1023, %1025, %1005 : vector<14x14xi1>, vector<14x14xi32>
    %cst_313 = arith.constant -0.114276692 : f32
    %1027 = vector.broadcast %cst_313 : f32 to vector<14x14xf32>
    %1028 = arith.mulf %1027, %957 : vector<14x14xf32>
    %cst_314 = arith.constant -2.500000e-01 : f32
    %1029 = vector.broadcast %cst_314 : f32 to vector<14x14xf32>
    %1030 = arith.mulf %1029, %958 : vector<14x14xf32>
    %1031 = arith.addf %1028, %1030 : vector<14x14xf32>
    %cst_315 = arith.constant 0.114276692 : f32
    %1032 = vector.broadcast %cst_315 : f32 to vector<14x14xf32>
    %1033 = arith.mulf %1032, %959 : vector<14x14xf32>
    %1034 = arith.addf %1031, %1033 : vector<14x14xf32>
    %cst_316 = arith.constant -0.114276692 : f32
    %1035 = vector.broadcast %cst_316 : f32 to vector<14x14xf32>
    %1036 = arith.mulf %1035, %960 : vector<14x14xf32>
    %1037 = arith.addf %1034, %1036 : vector<14x14xf32>
    %cst_317 = arith.constant 2.500000e-01 : f32
    %1038 = vector.broadcast %cst_317 : f32 to vector<14x14xf32>
    %1039 = arith.mulf %1038, %961 : vector<14x14xf32>
    %1040 = arith.addf %1037, %1039 : vector<14x14xf32>
    %cst_318 = arith.constant 0.114276692 : f32
    %1041 = vector.broadcast %cst_318 : f32 to vector<14x14xf32>
    %1042 = arith.mulf %1041, %962 : vector<14x14xf32>
    %1043 = arith.addf %1040, %1042 : vector<14x14xf32>
    %1044 = arith.cmpf ogt, %1043, %1024 : vector<14x14xf32>
    %1045 = arith.select %1044, %1043, %1024 : vector<14x14xi1>, vector<14x14xf32>
    %c11_i32_319 = arith.constant 11 : i32
    %1046 = vector.broadcast %c11_i32_319 : i32 to vector<14x14xi32>
    %1047 = arith.select %1044, %1046, %1026 : vector<14x14xi1>, vector<14x14xi32>
    %cst_320 = arith.constant -1.250000e-01 : f32
    %1048 = vector.broadcast %cst_320 : f32 to vector<14x14xf32>
    %1049 = arith.mulf %1048, %956 : vector<14x14xf32>
    %cst_321 = arith.constant -2.500000e-01 : f32
    %1050 = vector.broadcast %cst_321 : f32 to vector<14x14xf32>
    %1051 = arith.mulf %1050, %957 : vector<14x14xf32>
    %1052 = arith.addf %1049, %1051 : vector<14x14xf32>
    %cst_322 = arith.constant -1.250000e-01 : f32
    %1053 = vector.broadcast %cst_322 : f32 to vector<14x14xf32>
    %1054 = arith.mulf %1053, %958 : vector<14x14xf32>
    %1055 = arith.addf %1052, %1054 : vector<14x14xf32>
    %cst_323 = arith.constant 1.250000e-01 : f32
    %1056 = vector.broadcast %cst_323 : f32 to vector<14x14xf32>
    %1057 = arith.mulf %1056, %961 : vector<14x14xf32>
    %1058 = arith.addf %1055, %1057 : vector<14x14xf32>
    %cst_324 = arith.constant 2.500000e-01 : f32
    %1059 = vector.broadcast %cst_324 : f32 to vector<14x14xf32>
    %1060 = arith.mulf %1059, %962 : vector<14x14xf32>
    %1061 = arith.addf %1058, %1060 : vector<14x14xf32>
    %cst_325 = arith.constant 1.250000e-01 : f32
    %1062 = vector.broadcast %cst_325 : f32 to vector<14x14xf32>
    %1063 = arith.mulf %1062, %963 : vector<14x14xf32>
    %1064 = arith.addf %1061, %1063 : vector<14x14xf32>
    %1065 = arith.cmpf ogt, %1064, %1045 : vector<14x14xf32>
    %1066 = arith.select %1065, %1064, %1045 : vector<14x14xi1>, vector<14x14xf32>
    %c12_i32_326 = arith.constant 12 : i32
    %1067 = vector.broadcast %c12_i32_326 : i32 to vector<14x14xi32>
    %1068 = arith.select %1065, %1067, %1047 : vector<14x14xi1>, vector<14x14xi32>
    %cst_327 = arith.constant -2.500000e-01 : f32
    %1069 = vector.broadcast %cst_327 : f32 to vector<14x14xf32>
    %1070 = arith.mulf %1069, %956 : vector<14x14xf32>
    %cst_328 = arith.constant -0.114276692 : f32
    %1071 = vector.broadcast %cst_328 : f32 to vector<14x14xf32>
    %1072 = arith.mulf %1071, %957 : vector<14x14xf32>
    %1073 = arith.addf %1070, %1072 : vector<14x14xf32>
    %cst_329 = arith.constant -0.114276692 : f32
    %1074 = vector.broadcast %cst_329 : f32 to vector<14x14xf32>
    %1075 = arith.mulf %1074, %959 : vector<14x14xf32>
    %1076 = arith.addf %1073, %1075 : vector<14x14xf32>
    %cst_330 = arith.constant 0.114276692 : f32
    %1077 = vector.broadcast %cst_330 : f32 to vector<14x14xf32>
    %1078 = arith.mulf %1077, %960 : vector<14x14xf32>
    %1079 = arith.addf %1076, %1078 : vector<14x14xf32>
    %cst_331 = arith.constant 0.114276692 : f32
    %1080 = vector.broadcast %cst_331 : f32 to vector<14x14xf32>
    %1081 = arith.mulf %1080, %962 : vector<14x14xf32>
    %1082 = arith.addf %1079, %1081 : vector<14x14xf32>
    %cst_332 = arith.constant 2.500000e-01 : f32
    %1083 = vector.broadcast %cst_332 : f32 to vector<14x14xf32>
    %1084 = arith.mulf %1083, %963 : vector<14x14xf32>
    %1085 = arith.addf %1082, %1084 : vector<14x14xf32>
    %1086 = arith.cmpf ogt, %1085, %1066 : vector<14x14xf32>
    %1087 = arith.select %1086, %1085, %1066 : vector<14x14xi1>, vector<14x14xf32>
    %c13_i32_333 = arith.constant 13 : i32
    %1088 = vector.broadcast %c13_i32_333 : i32 to vector<14x14xi32>
    %1089 = arith.select %1086, %1088, %1068 : vector<14x14xi1>, vector<14x14xi32>
    %cst_334 = arith.constant -1.250000e-01 : f32
    %1090 = vector.broadcast %cst_334 : f32 to vector<14x14xf32>
    %1091 = arith.mulf %1090, %956 : vector<14x14xf32>
    %cst_335 = arith.constant 1.250000e-01 : f32
    %1092 = vector.broadcast %cst_335 : f32 to vector<14x14xf32>
    %1093 = arith.mulf %1092, %958 : vector<14x14xf32>
    %1094 = arith.addf %1091, %1093 : vector<14x14xf32>
    %cst_336 = arith.constant -2.500000e-01 : f32
    %1095 = vector.broadcast %cst_336 : f32 to vector<14x14xf32>
    %1096 = arith.mulf %1095, %959 : vector<14x14xf32>
    %1097 = arith.addf %1094, %1096 : vector<14x14xf32>
    %cst_337 = arith.constant 2.500000e-01 : f32
    %1098 = vector.broadcast %cst_337 : f32 to vector<14x14xf32>
    %1099 = arith.mulf %1098, %960 : vector<14x14xf32>
    %1100 = arith.addf %1097, %1099 : vector<14x14xf32>
    %cst_338 = arith.constant -1.250000e-01 : f32
    %1101 = vector.broadcast %cst_338 : f32 to vector<14x14xf32>
    %1102 = arith.mulf %1101, %961 : vector<14x14xf32>
    %1103 = arith.addf %1100, %1102 : vector<14x14xf32>
    %cst_339 = arith.constant 1.250000e-01 : f32
    %1104 = vector.broadcast %cst_339 : f32 to vector<14x14xf32>
    %1105 = arith.mulf %1104, %963 : vector<14x14xf32>
    %1106 = arith.addf %1103, %1105 : vector<14x14xf32>
    %1107 = arith.cmpf ogt, %1106, %1087 : vector<14x14xf32>
    %1108 = arith.select %1107, %1106, %1087 : vector<14x14xi1>, vector<14x14xf32>
    %c14_i32_340 = arith.constant 14 : i32
    %1109 = vector.broadcast %c14_i32_340 : i32 to vector<14x14xi32>
    %1110 = arith.select %1107, %1109, %1089 : vector<14x14xi1>, vector<14x14xi32>
    %cst_341 = arith.constant 0.114276692 : f32
    %1111 = vector.broadcast %cst_341 : f32 to vector<14x14xf32>
    %1112 = arith.mulf %1111, %957 : vector<14x14xf32>
    %cst_342 = arith.constant 2.500000e-01 : f32
    %1113 = vector.broadcast %cst_342 : f32 to vector<14x14xf32>
    %1114 = arith.mulf %1113, %958 : vector<14x14xf32>
    %1115 = arith.addf %1112, %1114 : vector<14x14xf32>
    %cst_343 = arith.constant -0.114276692 : f32
    %1116 = vector.broadcast %cst_343 : f32 to vector<14x14xf32>
    %1117 = arith.mulf %1116, %959 : vector<14x14xf32>
    %1118 = arith.addf %1115, %1117 : vector<14x14xf32>
    %cst_344 = arith.constant 0.114276692 : f32
    %1119 = vector.broadcast %cst_344 : f32 to vector<14x14xf32>
    %1120 = arith.mulf %1119, %960 : vector<14x14xf32>
    %1121 = arith.addf %1118, %1120 : vector<14x14xf32>
    %cst_345 = arith.constant -2.500000e-01 : f32
    %1122 = vector.broadcast %cst_345 : f32 to vector<14x14xf32>
    %1123 = arith.mulf %1122, %961 : vector<14x14xf32>
    %1124 = arith.addf %1121, %1123 : vector<14x14xf32>
    %cst_346 = arith.constant -0.114276692 : f32
    %1125 = vector.broadcast %cst_346 : f32 to vector<14x14xf32>
    %1126 = arith.mulf %1125, %962 : vector<14x14xf32>
    %1127 = arith.addf %1124, %1126 : vector<14x14xf32>
    %1128 = arith.cmpf ogt, %1127, %1108 : vector<14x14xf32>
    %1129 = arith.select %1128, %1127, %1108 : vector<14x14xi1>, vector<14x14xf32>
    %c15_i32_347 = arith.constant 15 : i32
    %1130 = vector.broadcast %c15_i32_347 : i32 to vector<14x14xi32>
    %1131 = arith.select %1128, %1130, %1110 : vector<14x14xi1>, vector<14x14xi32>
    %c1_348 = arith.constant 1 : index
    %c2_349 = arith.constant 2 : index
    %c0_350 = arith.constant 0 : index
    %c0_351 = arith.constant 0 : index
    %1132 = vector.load %arg1[%c1_348, %c2_349, %c0_350, %c0_351] : memref<2x4x16x16xf32, #tpu.memory_space<vmem>>, vector<1x1x16x16xf32>
    %1133 = vector.shape_cast %1132 : vector<1x1x16x16xf32> to vector<16x16xf32>
    %1134 = vector.extract_strided_slice %1133 {offsets = [0, 0], sizes = [14, 14], strides = [1, 1]} : vector<16x16xf32> to vector<14x14xf32>
    %1135 = vector.extract_strided_slice %1133 {offsets = [0, 1], sizes = [14, 14], strides = [1, 1]} : vector<16x16xf32> to vector<14x14xf32>
    %1136 = vector.extract_strided_slice %1133 {offsets = [0, 2], sizes = [14, 14], strides = [1, 1]} : vector<16x16xf32> to vector<14x14xf32>
    %1137 = vector.extract_strided_slice %1133 {offsets = [1, 0], sizes = [14, 14], strides = [1, 1]} : vector<16x16xf32> to vector<14x14xf32>
    %1138 = vector.extract_strided_slice %1133 {offsets = [1, 2], sizes = [14, 14], strides = [1, 1]} : vector<16x16xf32> to vector<14x14xf32>
    %1139 = vector.extract_strided_slice %1133 {offsets = [2, 0], sizes = [14, 14], strides = [1, 1]} : vector<16x16xf32> to vector<14x14xf32>
    %1140 = vector.extract_strided_slice %1133 {offsets = [2, 1], sizes = [14, 14], strides = [1, 1]} : vector<16x16xf32> to vector<14x14xf32>
    %1141 = vector.extract_strided_slice %1133 {offsets = [2, 2], sizes = [14, 14], strides = [1, 1]} : vector<16x16xf32> to vector<14x14xf32>
    %cst_352 = arith.constant 1.250000e-01 : f32
    %1142 = vector.broadcast %cst_352 : f32 to vector<14x14xf32>
    %1143 = arith.mulf %1142, %1134 : vector<14x14xf32>
    %cst_353 = arith.constant 2.500000e-01 : f32
    %1144 = vector.broadcast %cst_353 : f32 to vector<14x14xf32>
    %1145 = arith.mulf %1144, %1135 : vector<14x14xf32>
    %1146 = arith.addf %1143, %1145 : vector<14x14xf32>
    %cst_354 = arith.constant 1.250000e-01 : f32
    %1147 = vector.broadcast %cst_354 : f32 to vector<14x14xf32>
    %1148 = arith.mulf %1147, %1136 : vector<14x14xf32>
    %1149 = arith.addf %1146, %1148 : vector<14x14xf32>
    %cst_355 = arith.constant -1.250000e-01 : f32
    %1150 = vector.broadcast %cst_355 : f32 to vector<14x14xf32>
    %1151 = arith.mulf %1150, %1139 : vector<14x14xf32>
    %1152 = arith.addf %1149, %1151 : vector<14x14xf32>
    %cst_356 = arith.constant -2.500000e-01 : f32
    %1153 = vector.broadcast %cst_356 : f32 to vector<14x14xf32>
    %1154 = arith.mulf %1153, %1140 : vector<14x14xf32>
    %1155 = arith.addf %1152, %1154 : vector<14x14xf32>
    %cst_357 = arith.constant -1.250000e-01 : f32
    %1156 = vector.broadcast %cst_357 : f32 to vector<14x14xf32>
    %1157 = arith.mulf %1156, %1141 : vector<14x14xf32>
    %1158 = arith.addf %1155, %1157 : vector<14x14xf32>
    %1159 = arith.cmpf ogt, %1158, %1129 : vector<14x14xf32>
    %1160 = arith.select %1159, %1158, %1129 : vector<14x14xi1>, vector<14x14xf32>
    %c16_i32_358 = arith.constant 16 : i32
    %1161 = vector.broadcast %c16_i32_358 : i32 to vector<14x14xi32>
    %1162 = arith.select %1159, %1161, %1131 : vector<14x14xi1>, vector<14x14xi32>
    %cst_359 = arith.constant 2.500000e-01 : f32
    %1163 = vector.broadcast %cst_359 : f32 to vector<14x14xf32>
    %1164 = arith.mulf %1163, %1134 : vector<14x14xf32>
    %cst_360 = arith.constant 0.114276692 : f32
    %1165 = vector.broadcast %cst_360 : f32 to vector<14x14xf32>
    %1166 = arith.mulf %1165, %1135 : vector<14x14xf32>
    %1167 = arith.addf %1164, %1166 : vector<14x14xf32>
    %cst_361 = arith.constant 0.114276692 : f32
    %1168 = vector.broadcast %cst_361 : f32 to vector<14x14xf32>
    %1169 = arith.mulf %1168, %1137 : vector<14x14xf32>
    %1170 = arith.addf %1167, %1169 : vector<14x14xf32>
    %cst_362 = arith.constant -0.114276692 : f32
    %1171 = vector.broadcast %cst_362 : f32 to vector<14x14xf32>
    %1172 = arith.mulf %1171, %1138 : vector<14x14xf32>
    %1173 = arith.addf %1170, %1172 : vector<14x14xf32>
    %cst_363 = arith.constant -0.114276692 : f32
    %1174 = vector.broadcast %cst_363 : f32 to vector<14x14xf32>
    %1175 = arith.mulf %1174, %1140 : vector<14x14xf32>
    %1176 = arith.addf %1173, %1175 : vector<14x14xf32>
    %cst_364 = arith.constant -2.500000e-01 : f32
    %1177 = vector.broadcast %cst_364 : f32 to vector<14x14xf32>
    %1178 = arith.mulf %1177, %1141 : vector<14x14xf32>
    %1179 = arith.addf %1176, %1178 : vector<14x14xf32>
    %1180 = arith.cmpf ogt, %1179, %1160 : vector<14x14xf32>
    %1181 = arith.select %1180, %1179, %1160 : vector<14x14xi1>, vector<14x14xf32>
    %c17_i32_365 = arith.constant 17 : i32
    %1182 = vector.broadcast %c17_i32_365 : i32 to vector<14x14xi32>
    %1183 = arith.select %1180, %1182, %1162 : vector<14x14xi1>, vector<14x14xi32>
    %cst_366 = arith.constant 1.250000e-01 : f32
    %1184 = vector.broadcast %cst_366 : f32 to vector<14x14xf32>
    %1185 = arith.mulf %1184, %1134 : vector<14x14xf32>
    %cst_367 = arith.constant -1.250000e-01 : f32
    %1186 = vector.broadcast %cst_367 : f32 to vector<14x14xf32>
    %1187 = arith.mulf %1186, %1136 : vector<14x14xf32>
    %1188 = arith.addf %1185, %1187 : vector<14x14xf32>
    %cst_368 = arith.constant 2.500000e-01 : f32
    %1189 = vector.broadcast %cst_368 : f32 to vector<14x14xf32>
    %1190 = arith.mulf %1189, %1137 : vector<14x14xf32>
    %1191 = arith.addf %1188, %1190 : vector<14x14xf32>
    %cst_369 = arith.constant -2.500000e-01 : f32
    %1192 = vector.broadcast %cst_369 : f32 to vector<14x14xf32>
    %1193 = arith.mulf %1192, %1138 : vector<14x14xf32>
    %1194 = arith.addf %1191, %1193 : vector<14x14xf32>
    %cst_370 = arith.constant 1.250000e-01 : f32
    %1195 = vector.broadcast %cst_370 : f32 to vector<14x14xf32>
    %1196 = arith.mulf %1195, %1139 : vector<14x14xf32>
    %1197 = arith.addf %1194, %1196 : vector<14x14xf32>
    %cst_371 = arith.constant -1.250000e-01 : f32
    %1198 = vector.broadcast %cst_371 : f32 to vector<14x14xf32>
    %1199 = arith.mulf %1198, %1141 : vector<14x14xf32>
    %1200 = arith.addf %1197, %1199 : vector<14x14xf32>
    %1201 = arith.cmpf ogt, %1200, %1181 : vector<14x14xf32>
    %1202 = arith.select %1201, %1200, %1181 : vector<14x14xi1>, vector<14x14xf32>
    %c18_i32_372 = arith.constant 18 : i32
    %1203 = vector.broadcast %c18_i32_372 : i32 to vector<14x14xi32>
    %1204 = arith.select %1201, %1203, %1183 : vector<14x14xi1>, vector<14x14xi32>
    %cst_373 = arith.constant -0.114276692 : f32
    %1205 = vector.broadcast %cst_373 : f32 to vector<14x14xf32>
    %1206 = arith.mulf %1205, %1135 : vector<14x14xf32>
    %cst_374 = arith.constant -2.500000e-01 : f32
    %1207 = vector.broadcast %cst_374 : f32 to vector<14x14xf32>
    %1208 = arith.mulf %1207, %1136 : vector<14x14xf32>
    %1209 = arith.addf %1206, %1208 : vector<14x14xf32>
    %cst_375 = arith.constant 0.114276692 : f32
    %1210 = vector.broadcast %cst_375 : f32 to vector<14x14xf32>
    %1211 = arith.mulf %1210, %1137 : vector<14x14xf32>
    %1212 = arith.addf %1209, %1211 : vector<14x14xf32>
    %cst_376 = arith.constant -0.114276692 : f32
    %1213 = vector.broadcast %cst_376 : f32 to vector<14x14xf32>
    %1214 = arith.mulf %1213, %1138 : vector<14x14xf32>
    %1215 = arith.addf %1212, %1214 : vector<14x14xf32>
    %cst_377 = arith.constant 2.500000e-01 : f32
    %1216 = vector.broadcast %cst_377 : f32 to vector<14x14xf32>
    %1217 = arith.mulf %1216, %1139 : vector<14x14xf32>
    %1218 = arith.addf %1215, %1217 : vector<14x14xf32>
    %cst_378 = arith.constant 0.114276692 : f32
    %1219 = vector.broadcast %cst_378 : f32 to vector<14x14xf32>
    %1220 = arith.mulf %1219, %1140 : vector<14x14xf32>
    %1221 = arith.addf %1218, %1220 : vector<14x14xf32>
    %1222 = arith.cmpf ogt, %1221, %1202 : vector<14x14xf32>
    %1223 = arith.select %1222, %1221, %1202 : vector<14x14xi1>, vector<14x14xf32>
    %c19_i32_379 = arith.constant 19 : i32
    %1224 = vector.broadcast %c19_i32_379 : i32 to vector<14x14xi32>
    %1225 = arith.select %1222, %1224, %1204 : vector<14x14xi1>, vector<14x14xi32>
    %cst_380 = arith.constant -1.250000e-01 : f32
    %1226 = vector.broadcast %cst_380 : f32 to vector<14x14xf32>
    %1227 = arith.mulf %1226, %1134 : vector<14x14xf32>
    %cst_381 = arith.constant -2.500000e-01 : f32
    %1228 = vector.broadcast %cst_381 : f32 to vector<14x14xf32>
    %1229 = arith.mulf %1228, %1135 : vector<14x14xf32>
    %1230 = arith.addf %1227, %1229 : vector<14x14xf32>
    %cst_382 = arith.constant -1.250000e-01 : f32
    %1231 = vector.broadcast %cst_382 : f32 to vector<14x14xf32>
    %1232 = arith.mulf %1231, %1136 : vector<14x14xf32>
    %1233 = arith.addf %1230, %1232 : vector<14x14xf32>
    %cst_383 = arith.constant 1.250000e-01 : f32
    %1234 = vector.broadcast %cst_383 : f32 to vector<14x14xf32>
    %1235 = arith.mulf %1234, %1139 : vector<14x14xf32>
    %1236 = arith.addf %1233, %1235 : vector<14x14xf32>
    %cst_384 = arith.constant 2.500000e-01 : f32
    %1237 = vector.broadcast %cst_384 : f32 to vector<14x14xf32>
    %1238 = arith.mulf %1237, %1140 : vector<14x14xf32>
    %1239 = arith.addf %1236, %1238 : vector<14x14xf32>
    %cst_385 = arith.constant 1.250000e-01 : f32
    %1240 = vector.broadcast %cst_385 : f32 to vector<14x14xf32>
    %1241 = arith.mulf %1240, %1141 : vector<14x14xf32>
    %1242 = arith.addf %1239, %1241 : vector<14x14xf32>
    %1243 = arith.cmpf ogt, %1242, %1223 : vector<14x14xf32>
    %1244 = arith.select %1243, %1242, %1223 : vector<14x14xi1>, vector<14x14xf32>
    %c20_i32_386 = arith.constant 20 : i32
    %1245 = vector.broadcast %c20_i32_386 : i32 to vector<14x14xi32>
    %1246 = arith.select %1243, %1245, %1225 : vector<14x14xi1>, vector<14x14xi32>
    %cst_387 = arith.constant -2.500000e-01 : f32
    %1247 = vector.broadcast %cst_387 : f32 to vector<14x14xf32>
    %1248 = arith.mulf %1247, %1134 : vector<14x14xf32>
    %cst_388 = arith.constant -0.114276692 : f32
    %1249 = vector.broadcast %cst_388 : f32 to vector<14x14xf32>
    %1250 = arith.mulf %1249, %1135 : vector<14x14xf32>
    %1251 = arith.addf %1248, %1250 : vector<14x14xf32>
    %cst_389 = arith.constant -0.114276692 : f32
    %1252 = vector.broadcast %cst_389 : f32 to vector<14x14xf32>
    %1253 = arith.mulf %1252, %1137 : vector<14x14xf32>
    %1254 = arith.addf %1251, %1253 : vector<14x14xf32>
    %cst_390 = arith.constant 0.114276692 : f32
    %1255 = vector.broadcast %cst_390 : f32 to vector<14x14xf32>
    %1256 = arith.mulf %1255, %1138 : vector<14x14xf32>
    %1257 = arith.addf %1254, %1256 : vector<14x14xf32>
    %cst_391 = arith.constant 0.114276692 : f32
    %1258 = vector.broadcast %cst_391 : f32 to vector<14x14xf32>
    %1259 = arith.mulf %1258, %1140 : vector<14x14xf32>
    %1260 = arith.addf %1257, %1259 : vector<14x14xf32>
    %cst_392 = arith.constant 2.500000e-01 : f32
    %1261 = vector.broadcast %cst_392 : f32 to vector<14x14xf32>
    %1262 = arith.mulf %1261, %1141 : vector<14x14xf32>
    %1263 = arith.addf %1260, %1262 : vector<14x14xf32>
    %1264 = arith.cmpf ogt, %1263, %1244 : vector<14x14xf32>
    %1265 = arith.select %1264, %1263, %1244 : vector<14x14xi1>, vector<14x14xf32>
    %c21_i32_393 = arith.constant 21 : i32
    %1266 = vector.broadcast %c21_i32_393 : i32 to vector<14x14xi32>
    %1267 = arith.select %1264, %1266, %1246 : vector<14x14xi1>, vector<14x14xi32>
    %cst_394 = arith.constant -1.250000e-01 : f32
    %1268 = vector.broadcast %cst_394 : f32 to vector<14x14xf32>
    %1269 = arith.mulf %1268, %1134 : vector<14x14xf32>
    %cst_395 = arith.constant 1.250000e-01 : f32
    %1270 = vector.broadcast %cst_395 : f32 to vector<14x14xf32>
    %1271 = arith.mulf %1270, %1136 : vector<14x14xf32>
    %1272 = arith.addf %1269, %1271 : vector<14x14xf32>
    %cst_396 = arith.constant -2.500000e-01 : f32
    %1273 = vector.broadcast %cst_396 : f32 to vector<14x14xf32>
    %1274 = arith.mulf %1273, %1137 : vector<14x14xf32>
    %1275 = arith.addf %1272, %1274 : vector<14x14xf32>
    %cst_397 = arith.constant 2.500000e-01 : f32
    %1276 = vector.broadcast %cst_397 : f32 to vector<14x14xf32>
    %1277 = arith.mulf %1276, %1138 : vector<14x14xf32>
    %1278 = arith.addf %1275, %1277 : vector<14x14xf32>
    %cst_398 = arith.constant -1.250000e-01 : f32
    %1279 = vector.broadcast %cst_398 : f32 to vector<14x14xf32>
    %1280 = arith.mulf %1279, %1139 : vector<14x14xf32>
    %1281 = arith.addf %1278, %1280 : vector<14x14xf32>
    %cst_399 = arith.constant 1.250000e-01 : f32
    %1282 = vector.broadcast %cst_399 : f32 to vector<14x14xf32>
    %1283 = arith.mulf %1282, %1141 : vector<14x14xf32>
    %1284 = arith.addf %1281, %1283 : vector<14x14xf32>
    %1285 = arith.cmpf ogt, %1284, %1265 : vector<14x14xf32>
    %1286 = arith.select %1285, %1284, %1265 : vector<14x14xi1>, vector<14x14xf32>
    %c22_i32_400 = arith.constant 22 : i32
    %1287 = vector.broadcast %c22_i32_400 : i32 to vector<14x14xi32>
    %1288 = arith.select %1285, %1287, %1267 : vector<14x14xi1>, vector<14x14xi32>
    %cst_401 = arith.constant 0.114276692 : f32
    %1289 = vector.broadcast %cst_401 : f32 to vector<14x14xf32>
    %1290 = arith.mulf %1289, %1135 : vector<14x14xf32>
    %cst_402 = arith.constant 2.500000e-01 : f32
    %1291 = vector.broadcast %cst_402 : f32 to vector<14x14xf32>
    %1292 = arith.mulf %1291, %1136 : vector<14x14xf32>
    %1293 = arith.addf %1290, %1292 : vector<14x14xf32>
    %cst_403 = arith.constant -0.114276692 : f32
    %1294 = vector.broadcast %cst_403 : f32 to vector<14x14xf32>
    %1295 = arith.mulf %1294, %1137 : vector<14x14xf32>
    %1296 = arith.addf %1293, %1295 : vector<14x14xf32>
    %cst_404 = arith.constant 0.114276692 : f32
    %1297 = vector.broadcast %cst_404 : f32 to vector<14x14xf32>
    %1298 = arith.mulf %1297, %1138 : vector<14x14xf32>
    %1299 = arith.addf %1296, %1298 : vector<14x14xf32>
    %cst_405 = arith.constant -2.500000e-01 : f32
    %1300 = vector.broadcast %cst_405 : f32 to vector<14x14xf32>
    %1301 = arith.mulf %1300, %1139 : vector<14x14xf32>
    %1302 = arith.addf %1299, %1301 : vector<14x14xf32>
    %cst_406 = arith.constant -0.114276692 : f32
    %1303 = vector.broadcast %cst_406 : f32 to vector<14x14xf32>
    %1304 = arith.mulf %1303, %1140 : vector<14x14xf32>
    %1305 = arith.addf %1302, %1304 : vector<14x14xf32>
    %1306 = arith.cmpf ogt, %1305, %1286 : vector<14x14xf32>
    %1307 = arith.select %1306, %1305, %1286 : vector<14x14xi1>, vector<14x14xf32>
    %c23_i32_407 = arith.constant 23 : i32
    %1308 = vector.broadcast %c23_i32_407 : i32 to vector<14x14xi32>
    %1309 = arith.select %1306, %1308, %1288 : vector<14x14xi1>, vector<14x14xi32>
    %c1_408 = arith.constant 1 : index
    %c3_409 = arith.constant 3 : index
    %c0_410 = arith.constant 0 : index
    %c0_411 = arith.constant 0 : index
    %1310 = vector.load %arg1[%c1_408, %c3_409, %c0_410, %c0_411] : memref<2x4x16x16xf32, #tpu.memory_space<vmem>>, vector<1x1x16x16xf32>
    %1311 = vector.shape_cast %1310 : vector<1x1x16x16xf32> to vector<16x16xf32>
    %1312 = vector.extract_strided_slice %1311 {offsets = [0, 0], sizes = [14, 14], strides = [1, 1]} : vector<16x16xf32> to vector<14x14xf32>
    %1313 = vector.extract_strided_slice %1311 {offsets = [0, 1], sizes = [14, 14], strides = [1, 1]} : vector<16x16xf32> to vector<14x14xf32>
    %1314 = vector.extract_strided_slice %1311 {offsets = [0, 2], sizes = [14, 14], strides = [1, 1]} : vector<16x16xf32> to vector<14x14xf32>
    %1315 = vector.extract_strided_slice %1311 {offsets = [1, 0], sizes = [14, 14], strides = [1, 1]} : vector<16x16xf32> to vector<14x14xf32>
    %1316 = vector.extract_strided_slice %1311 {offsets = [1, 2], sizes = [14, 14], strides = [1, 1]} : vector<16x16xf32> to vector<14x14xf32>
    %1317 = vector.extract_strided_slice %1311 {offsets = [2, 0], sizes = [14, 14], strides = [1, 1]} : vector<16x16xf32> to vector<14x14xf32>
    %1318 = vector.extract_strided_slice %1311 {offsets = [2, 1], sizes = [14, 14], strides = [1, 1]} : vector<16x16xf32> to vector<14x14xf32>
    %1319 = vector.extract_strided_slice %1311 {offsets = [2, 2], sizes = [14, 14], strides = [1, 1]} : vector<16x16xf32> to vector<14x14xf32>
    %cst_412 = arith.constant 1.250000e-01 : f32
    %1320 = vector.broadcast %cst_412 : f32 to vector<14x14xf32>
    %1321 = arith.mulf %1320, %1312 : vector<14x14xf32>
    %cst_413 = arith.constant 2.500000e-01 : f32
    %1322 = vector.broadcast %cst_413 : f32 to vector<14x14xf32>
    %1323 = arith.mulf %1322, %1313 : vector<14x14xf32>
    %1324 = arith.addf %1321, %1323 : vector<14x14xf32>
    %cst_414 = arith.constant 1.250000e-01 : f32
    %1325 = vector.broadcast %cst_414 : f32 to vector<14x14xf32>
    %1326 = arith.mulf %1325, %1314 : vector<14x14xf32>
    %1327 = arith.addf %1324, %1326 : vector<14x14xf32>
    %cst_415 = arith.constant -1.250000e-01 : f32
    %1328 = vector.broadcast %cst_415 : f32 to vector<14x14xf32>
    %1329 = arith.mulf %1328, %1317 : vector<14x14xf32>
    %1330 = arith.addf %1327, %1329 : vector<14x14xf32>
    %cst_416 = arith.constant -2.500000e-01 : f32
    %1331 = vector.broadcast %cst_416 : f32 to vector<14x14xf32>
    %1332 = arith.mulf %1331, %1318 : vector<14x14xf32>
    %1333 = arith.addf %1330, %1332 : vector<14x14xf32>
    %cst_417 = arith.constant -1.250000e-01 : f32
    %1334 = vector.broadcast %cst_417 : f32 to vector<14x14xf32>
    %1335 = arith.mulf %1334, %1319 : vector<14x14xf32>
    %1336 = arith.addf %1333, %1335 : vector<14x14xf32>
    %1337 = arith.cmpf ogt, %1336, %1307 : vector<14x14xf32>
    %1338 = arith.select %1337, %1336, %1307 : vector<14x14xi1>, vector<14x14xf32>
    %c24_i32_418 = arith.constant 24 : i32
    %1339 = vector.broadcast %c24_i32_418 : i32 to vector<14x14xi32>
    %1340 = arith.select %1337, %1339, %1309 : vector<14x14xi1>, vector<14x14xi32>
    %cst_419 = arith.constant 2.500000e-01 : f32
    %1341 = vector.broadcast %cst_419 : f32 to vector<14x14xf32>
    %1342 = arith.mulf %1341, %1312 : vector<14x14xf32>
    %cst_420 = arith.constant 0.114276692 : f32
    %1343 = vector.broadcast %cst_420 : f32 to vector<14x14xf32>
    %1344 = arith.mulf %1343, %1313 : vector<14x14xf32>
    %1345 = arith.addf %1342, %1344 : vector<14x14xf32>
    %cst_421 = arith.constant 0.114276692 : f32
    %1346 = vector.broadcast %cst_421 : f32 to vector<14x14xf32>
    %1347 = arith.mulf %1346, %1315 : vector<14x14xf32>
    %1348 = arith.addf %1345, %1347 : vector<14x14xf32>
    %cst_422 = arith.constant -0.114276692 : f32
    %1349 = vector.broadcast %cst_422 : f32 to vector<14x14xf32>
    %1350 = arith.mulf %1349, %1316 : vector<14x14xf32>
    %1351 = arith.addf %1348, %1350 : vector<14x14xf32>
    %cst_423 = arith.constant -0.114276692 : f32
    %1352 = vector.broadcast %cst_423 : f32 to vector<14x14xf32>
    %1353 = arith.mulf %1352, %1318 : vector<14x14xf32>
    %1354 = arith.addf %1351, %1353 : vector<14x14xf32>
    %cst_424 = arith.constant -2.500000e-01 : f32
    %1355 = vector.broadcast %cst_424 : f32 to vector<14x14xf32>
    %1356 = arith.mulf %1355, %1319 : vector<14x14xf32>
    %1357 = arith.addf %1354, %1356 : vector<14x14xf32>
    %1358 = arith.cmpf ogt, %1357, %1338 : vector<14x14xf32>
    %1359 = arith.select %1358, %1357, %1338 : vector<14x14xi1>, vector<14x14xf32>
    %c25_i32_425 = arith.constant 25 : i32
    %1360 = vector.broadcast %c25_i32_425 : i32 to vector<14x14xi32>
    %1361 = arith.select %1358, %1360, %1340 : vector<14x14xi1>, vector<14x14xi32>
    %cst_426 = arith.constant 1.250000e-01 : f32
    %1362 = vector.broadcast %cst_426 : f32 to vector<14x14xf32>
    %1363 = arith.mulf %1362, %1312 : vector<14x14xf32>
    %cst_427 = arith.constant -1.250000e-01 : f32
    %1364 = vector.broadcast %cst_427 : f32 to vector<14x14xf32>
    %1365 = arith.mulf %1364, %1314 : vector<14x14xf32>
    %1366 = arith.addf %1363, %1365 : vector<14x14xf32>
    %cst_428 = arith.constant 2.500000e-01 : f32
    %1367 = vector.broadcast %cst_428 : f32 to vector<14x14xf32>
    %1368 = arith.mulf %1367, %1315 : vector<14x14xf32>
    %1369 = arith.addf %1366, %1368 : vector<14x14xf32>
    %cst_429 = arith.constant -2.500000e-01 : f32
    %1370 = vector.broadcast %cst_429 : f32 to vector<14x14xf32>
    %1371 = arith.mulf %1370, %1316 : vector<14x14xf32>
    %1372 = arith.addf %1369, %1371 : vector<14x14xf32>
    %cst_430 = arith.constant 1.250000e-01 : f32
    %1373 = vector.broadcast %cst_430 : f32 to vector<14x14xf32>
    %1374 = arith.mulf %1373, %1317 : vector<14x14xf32>
    %1375 = arith.addf %1372, %1374 : vector<14x14xf32>
    %cst_431 = arith.constant -1.250000e-01 : f32
    %1376 = vector.broadcast %cst_431 : f32 to vector<14x14xf32>
    %1377 = arith.mulf %1376, %1319 : vector<14x14xf32>
    %1378 = arith.addf %1375, %1377 : vector<14x14xf32>
    %1379 = arith.cmpf ogt, %1378, %1359 : vector<14x14xf32>
    %1380 = arith.select %1379, %1378, %1359 : vector<14x14xi1>, vector<14x14xf32>
    %c26_i32_432 = arith.constant 26 : i32
    %1381 = vector.broadcast %c26_i32_432 : i32 to vector<14x14xi32>
    %1382 = arith.select %1379, %1381, %1361 : vector<14x14xi1>, vector<14x14xi32>
    %cst_433 = arith.constant -0.114276692 : f32
    %1383 = vector.broadcast %cst_433 : f32 to vector<14x14xf32>
    %1384 = arith.mulf %1383, %1313 : vector<14x14xf32>
    %cst_434 = arith.constant -2.500000e-01 : f32
    %1385 = vector.broadcast %cst_434 : f32 to vector<14x14xf32>
    %1386 = arith.mulf %1385, %1314 : vector<14x14xf32>
    %1387 = arith.addf %1384, %1386 : vector<14x14xf32>
    %cst_435 = arith.constant 0.114276692 : f32
    %1388 = vector.broadcast %cst_435 : f32 to vector<14x14xf32>
    %1389 = arith.mulf %1388, %1315 : vector<14x14xf32>
    %1390 = arith.addf %1387, %1389 : vector<14x14xf32>
    %cst_436 = arith.constant -0.114276692 : f32
    %1391 = vector.broadcast %cst_436 : f32 to vector<14x14xf32>
    %1392 = arith.mulf %1391, %1316 : vector<14x14xf32>
    %1393 = arith.addf %1390, %1392 : vector<14x14xf32>
    %cst_437 = arith.constant 2.500000e-01 : f32
    %1394 = vector.broadcast %cst_437 : f32 to vector<14x14xf32>
    %1395 = arith.mulf %1394, %1317 : vector<14x14xf32>
    %1396 = arith.addf %1393, %1395 : vector<14x14xf32>
    %cst_438 = arith.constant 0.114276692 : f32
    %1397 = vector.broadcast %cst_438 : f32 to vector<14x14xf32>
    %1398 = arith.mulf %1397, %1318 : vector<14x14xf32>
    %1399 = arith.addf %1396, %1398 : vector<14x14xf32>
    %1400 = arith.cmpf ogt, %1399, %1380 : vector<14x14xf32>
    %1401 = arith.select %1400, %1399, %1380 : vector<14x14xi1>, vector<14x14xf32>
    %c27_i32_439 = arith.constant 27 : i32
    %1402 = vector.broadcast %c27_i32_439 : i32 to vector<14x14xi32>
    %1403 = arith.select %1400, %1402, %1382 : vector<14x14xi1>, vector<14x14xi32>
    %cst_440 = arith.constant -1.250000e-01 : f32
    %1404 = vector.broadcast %cst_440 : f32 to vector<14x14xf32>
    %1405 = arith.mulf %1404, %1312 : vector<14x14xf32>
    %cst_441 = arith.constant -2.500000e-01 : f32
    %1406 = vector.broadcast %cst_441 : f32 to vector<14x14xf32>
    %1407 = arith.mulf %1406, %1313 : vector<14x14xf32>
    %1408 = arith.addf %1405, %1407 : vector<14x14xf32>
    %cst_442 = arith.constant -1.250000e-01 : f32
    %1409 = vector.broadcast %cst_442 : f32 to vector<14x14xf32>
    %1410 = arith.mulf %1409, %1314 : vector<14x14xf32>
    %1411 = arith.addf %1408, %1410 : vector<14x14xf32>
    %cst_443 = arith.constant 1.250000e-01 : f32
    %1412 = vector.broadcast %cst_443 : f32 to vector<14x14xf32>
    %1413 = arith.mulf %1412, %1317 : vector<14x14xf32>
    %1414 = arith.addf %1411, %1413 : vector<14x14xf32>
    %cst_444 = arith.constant 2.500000e-01 : f32
    %1415 = vector.broadcast %cst_444 : f32 to vector<14x14xf32>
    %1416 = arith.mulf %1415, %1318 : vector<14x14xf32>
    %1417 = arith.addf %1414, %1416 : vector<14x14xf32>
    %cst_445 = arith.constant 1.250000e-01 : f32
    %1418 = vector.broadcast %cst_445 : f32 to vector<14x14xf32>
    %1419 = arith.mulf %1418, %1319 : vector<14x14xf32>
    %1420 = arith.addf %1417, %1419 : vector<14x14xf32>
    %1421 = arith.cmpf ogt, %1420, %1401 : vector<14x14xf32>
    %1422 = arith.select %1421, %1420, %1401 : vector<14x14xi1>, vector<14x14xf32>
    %c28_i32_446 = arith.constant 28 : i32
    %1423 = vector.broadcast %c28_i32_446 : i32 to vector<14x14xi32>
    %1424 = arith.select %1421, %1423, %1403 : vector<14x14xi1>, vector<14x14xi32>
    %cst_447 = arith.constant -2.500000e-01 : f32
    %1425 = vector.broadcast %cst_447 : f32 to vector<14x14xf32>
    %1426 = arith.mulf %1425, %1312 : vector<14x14xf32>
    %cst_448 = arith.constant -0.114276692 : f32
    %1427 = vector.broadcast %cst_448 : f32 to vector<14x14xf32>
    %1428 = arith.mulf %1427, %1313 : vector<14x14xf32>
    %1429 = arith.addf %1426, %1428 : vector<14x14xf32>
    %cst_449 = arith.constant -0.114276692 : f32
    %1430 = vector.broadcast %cst_449 : f32 to vector<14x14xf32>
    %1431 = arith.mulf %1430, %1315 : vector<14x14xf32>
    %1432 = arith.addf %1429, %1431 : vector<14x14xf32>
    %cst_450 = arith.constant 0.114276692 : f32
    %1433 = vector.broadcast %cst_450 : f32 to vector<14x14xf32>
    %1434 = arith.mulf %1433, %1316 : vector<14x14xf32>
    %1435 = arith.addf %1432, %1434 : vector<14x14xf32>
    %cst_451 = arith.constant 0.114276692 : f32
    %1436 = vector.broadcast %cst_451 : f32 to vector<14x14xf32>
    %1437 = arith.mulf %1436, %1318 : vector<14x14xf32>
    %1438 = arith.addf %1435, %1437 : vector<14x14xf32>
    %cst_452 = arith.constant 2.500000e-01 : f32
    %1439 = vector.broadcast %cst_452 : f32 to vector<14x14xf32>
    %1440 = arith.mulf %1439, %1319 : vector<14x14xf32>
    %1441 = arith.addf %1438, %1440 : vector<14x14xf32>
    %1442 = arith.cmpf ogt, %1441, %1422 : vector<14x14xf32>
    %1443 = arith.select %1442, %1441, %1422 : vector<14x14xi1>, vector<14x14xf32>
    %c29_i32_453 = arith.constant 29 : i32
    %1444 = vector.broadcast %c29_i32_453 : i32 to vector<14x14xi32>
    %1445 = arith.select %1442, %1444, %1424 : vector<14x14xi1>, vector<14x14xi32>
    %cst_454 = arith.constant -1.250000e-01 : f32
    %1446 = vector.broadcast %cst_454 : f32 to vector<14x14xf32>
    %1447 = arith.mulf %1446, %1312 : vector<14x14xf32>
    %cst_455 = arith.constant 1.250000e-01 : f32
    %1448 = vector.broadcast %cst_455 : f32 to vector<14x14xf32>
    %1449 = arith.mulf %1448, %1314 : vector<14x14xf32>
    %1450 = arith.addf %1447, %1449 : vector<14x14xf32>
    %cst_456 = arith.constant -2.500000e-01 : f32
    %1451 = vector.broadcast %cst_456 : f32 to vector<14x14xf32>
    %1452 = arith.mulf %1451, %1315 : vector<14x14xf32>
    %1453 = arith.addf %1450, %1452 : vector<14x14xf32>
    %cst_457 = arith.constant 2.500000e-01 : f32
    %1454 = vector.broadcast %cst_457 : f32 to vector<14x14xf32>
    %1455 = arith.mulf %1454, %1316 : vector<14x14xf32>
    %1456 = arith.addf %1453, %1455 : vector<14x14xf32>
    %cst_458 = arith.constant -1.250000e-01 : f32
    %1457 = vector.broadcast %cst_458 : f32 to vector<14x14xf32>
    %1458 = arith.mulf %1457, %1317 : vector<14x14xf32>
    %1459 = arith.addf %1456, %1458 : vector<14x14xf32>
    %cst_459 = arith.constant 1.250000e-01 : f32
    %1460 = vector.broadcast %cst_459 : f32 to vector<14x14xf32>
    %1461 = arith.mulf %1460, %1319 : vector<14x14xf32>
    %1462 = arith.addf %1459, %1461 : vector<14x14xf32>
    %1463 = arith.cmpf ogt, %1462, %1443 : vector<14x14xf32>
    %1464 = arith.select %1463, %1462, %1443 : vector<14x14xi1>, vector<14x14xf32>
    %c30_i32_460 = arith.constant 30 : i32
    %1465 = vector.broadcast %c30_i32_460 : i32 to vector<14x14xi32>
    %1466 = arith.select %1463, %1465, %1445 : vector<14x14xi1>, vector<14x14xi32>
    %cst_461 = arith.constant 0.114276692 : f32
    %1467 = vector.broadcast %cst_461 : f32 to vector<14x14xf32>
    %1468 = arith.mulf %1467, %1313 : vector<14x14xf32>
    %cst_462 = arith.constant 2.500000e-01 : f32
    %1469 = vector.broadcast %cst_462 : f32 to vector<14x14xf32>
    %1470 = arith.mulf %1469, %1314 : vector<14x14xf32>
    %1471 = arith.addf %1468, %1470 : vector<14x14xf32>
    %cst_463 = arith.constant -0.114276692 : f32
    %1472 = vector.broadcast %cst_463 : f32 to vector<14x14xf32>
    %1473 = arith.mulf %1472, %1315 : vector<14x14xf32>
    %1474 = arith.addf %1471, %1473 : vector<14x14xf32>
    %cst_464 = arith.constant 0.114276692 : f32
    %1475 = vector.broadcast %cst_464 : f32 to vector<14x14xf32>
    %1476 = arith.mulf %1475, %1316 : vector<14x14xf32>
    %1477 = arith.addf %1474, %1476 : vector<14x14xf32>
    %cst_465 = arith.constant -2.500000e-01 : f32
    %1478 = vector.broadcast %cst_465 : f32 to vector<14x14xf32>
    %1479 = arith.mulf %1478, %1317 : vector<14x14xf32>
    %1480 = arith.addf %1477, %1479 : vector<14x14xf32>
    %cst_466 = arith.constant -0.114276692 : f32
    %1481 = vector.broadcast %cst_466 : f32 to vector<14x14xf32>
    %1482 = arith.mulf %1481, %1318 : vector<14x14xf32>
    %1483 = arith.addf %1480, %1482 : vector<14x14xf32>
    %1484 = arith.cmpf ogt, %1483, %1464 : vector<14x14xf32>
    %1485 = arith.select %1484, %1483, %1464 : vector<14x14xi1>, vector<14x14xf32>
    %c31_i32_467 = arith.constant 31 : i32
    %1486 = vector.broadcast %c31_i32_467 : i32 to vector<14x14xi32>
    %1487 = arith.select %1484, %1486, %1466 : vector<14x14xi1>, vector<14x14xi32>
    %cst_468 = arith.constant 2.500000e-01 : f32
    %1488 = vector.broadcast %cst_468 : f32 to vector<14x14xf32>
    %1489 = arith.cmpf olt, %1485, %1488 : vector<14x14xf32>
    %c8_i32_469 = arith.constant 8 : i32
    %1490 = vector.broadcast %c8_i32_469 : i32 to vector<14x14xi32>
    %1491 = arith.select %1489, %1490, %1487 : vector<14x14xi1>, vector<14x14xi32>
    %c-1_i32_470 = arith.constant -1 : i32
    %1492 = vector.broadcast %c-1_i32_470 : i32 to vector<14x114xi32>
    %1493 = tpu.concatenate %1491, %1492 in 1 : vector<14x14xi32>, vector<14x114xi32> -> vector<14x128xi32>
    %c0_i32_471 = arith.constant 0 : i32
    %1494 = vector.broadcast %c0_i32_471 : i32 to vector<14x128xi32>
    %1495 = arith.cmpi eq, %1493, %1494 : vector<14x128xi32>
    %1496 = arith.extui %1495 : vector<14x128xi1> to vector<14x128xi32>
    %1497 = arith.sitofp %1496 : vector<14x128xi32> to vector<14x128xf32>
    %1498 = arith.truncf %1497 : vector<14x128xf32> to vector<14x128xbf16>
    %c14 = arith.constant 14 : index
    %c0_472 = arith.constant 0 : index
    %1499 = vector.load %arg5[%c14, %c0_472] : memref<28x1152xbf16, #tpu.memory_space<vmem>>, vector<14x128xbf16>
    tpu.vector_store %arg5[%c14, %c0_472], %1498 {strides = array<i32>} : memref<28x1152xbf16, #tpu.memory_space<vmem>>, vector<14x128xbf16>,
    %c1_i32_473 = arith.constant 1 : i32
    %1500 = vector.broadcast %c1_i32_473 : i32 to vector<14x128xi32>
    %1501 = arith.cmpi eq, %1493, %1500 : vector<14x128xi32>
    %1502 = arith.extui %1501 : vector<14x128xi1> to vector<14x128xi32>
    %1503 = arith.sitofp %1502 : vector<14x128xi32> to vector<14x128xf32>
    %1504 = arith.truncf %1503 : vector<14x128xf32> to vector<14x128xbf16>
    %c14_474 = arith.constant 14 : index
    %c128_475 = arith.constant 128 : index
    %1505 = vector.load %arg5[%c14_474, %c128_475] : memref<28x1152xbf16, #tpu.memory_space<vmem>>, vector<14x128xbf16>
    tpu.vector_store %arg5[%c14_474, %c128_475], %1504 {strides = array<i32>} : memref<28x1152xbf16, #tpu.memory_space<vmem>>, vector<14x128xbf16>,
    %c2_i32_476 = arith.constant 2 : i32
    %1506 = vector.broadcast %c2_i32_476 : i32 to vector<14x128xi32>
    %1507 = arith.cmpi eq, %1493, %1506 : vector<14x128xi32>
    %1508 = arith.extui %1507 : vector<14x128xi1> to vector<14x128xi32>
    %1509 = arith.sitofp %1508 : vector<14x128xi32> to vector<14x128xf32>
    %1510 = arith.truncf %1509 : vector<14x128xf32> to vector<14x128xbf16>
    %c14_477 = arith.constant 14 : index
    %c256_478 = arith.constant 256 : index
    %1511 = vector.load %arg5[%c14_477, %c256_478] : memref<28x1152xbf16, #tpu.memory_space<vmem>>, vector<14x128xbf16>
    tpu.vector_store %arg5[%c14_477, %c256_478], %1510 {strides = array<i32>} : memref<28x1152xbf16, #tpu.memory_space<vmem>>, vector<14x128xbf16>,
    %c3_i32_479 = arith.constant 3 : i32
    %1512 = vector.broadcast %c3_i32_479 : i32 to vector<14x128xi32>
    %1513 = arith.cmpi eq, %1493, %1512 : vector<14x128xi32>
    %1514 = arith.extui %1513 : vector<14x128xi1> to vector<14x128xi32>
    %1515 = arith.sitofp %1514 : vector<14x128xi32> to vector<14x128xf32>
    %1516 = arith.truncf %1515 : vector<14x128xf32> to vector<14x128xbf16>
    %c14_480 = arith.constant 14 : index
    %c384_481 = arith.constant 384 : index
    %1517 = vector.load %arg5[%c14_480, %c384_481] : memref<28x1152xbf16, #tpu.memory_space<vmem>>, vector<14x128xbf16>
    tpu.vector_store %arg5[%c14_480, %c384_481], %1516 {strides = array<i32>} : memref<28x1152xbf16, #tpu.memory_space<vmem>>, vector<14x128xbf16>,
    %c4_i32_482 = arith.constant 4 : i32
    %1518 = vector.broadcast %c4_i32_482 : i32 to vector<14x128xi32>
    %1519 = arith.cmpi eq, %1493, %1518 : vector<14x128xi32>
    %1520 = arith.extui %1519 : vector<14x128xi1> to vector<14x128xi32>
    %1521 = arith.sitofp %1520 : vector<14x128xi32> to vector<14x128xf32>
    %1522 = arith.truncf %1521 : vector<14x128xf32> to vector<14x128xbf16>
    %c14_483 = arith.constant 14 : index
    %c512_484 = arith.constant 512 : index
    %1523 = vector.load %arg5[%c14_483, %c512_484] : memref<28x1152xbf16, #tpu.memory_space<vmem>>, vector<14x128xbf16>
    tpu.vector_store %arg5[%c14_483, %c512_484], %1522 {strides = array<i32>} : memref<28x1152xbf16, #tpu.memory_space<vmem>>, vector<14x128xbf16>,
    %c5_i32_485 = arith.constant 5 : i32
    %1524 = vector.broadcast %c5_i32_485 : i32 to vector<14x128xi32>
    %1525 = arith.cmpi eq, %1493, %1524 : vector<14x128xi32>
    %1526 = arith.extui %1525 : vector<14x128xi1> to vector<14x128xi32>
    %1527 = arith.sitofp %1526 : vector<14x128xi32> to vector<14x128xf32>
    %1528 = arith.truncf %1527 : vector<14x128xf32> to vector<14x128xbf16>
    %c14_486 = arith.constant 14 : index
    %c640_487 = arith.constant 640 : index
    %1529 = vector.load %arg5[%c14_486, %c640_487] : memref<28x1152xbf16, #tpu.memory_space<vmem>>, vector<14x128xbf16>
    tpu.vector_store %arg5[%c14_486, %c640_487], %1528 {strides = array<i32>} : memref<28x1152xbf16, #tpu.memory_space<vmem>>, vector<14x128xbf16>,
    %c6_i32_488 = arith.constant 6 : i32
    %1530 = vector.broadcast %c6_i32_488 : i32 to vector<14x128xi32>
    %1531 = arith.cmpi eq, %1493, %1530 : vector<14x128xi32>
    %1532 = arith.extui %1531 : vector<14x128xi1> to vector<14x128xi32>
    %1533 = arith.sitofp %1532 : vector<14x128xi32> to vector<14x128xf32>
    %1534 = arith.truncf %1533 : vector<14x128xf32> to vector<14x128xbf16>
    %c14_489 = arith.constant 14 : index
    %c768_490 = arith.constant 768 : index
    %1535 = vector.load %arg5[%c14_489, %c768_490] : memref<28x1152xbf16, #tpu.memory_space<vmem>>, vector<14x128xbf16>
    tpu.vector_store %arg5[%c14_489, %c768_490], %1534 {strides = array<i32>} : memref<28x1152xbf16, #tpu.memory_space<vmem>>, vector<14x128xbf16>,
    %c7_i32_491 = arith.constant 7 : i32
    %1536 = vector.broadcast %c7_i32_491 : i32 to vector<14x128xi32>
    %1537 = arith.cmpi eq, %1493, %1536 : vector<14x128xi32>
    %1538 = arith.extui %1537 : vector<14x128xi1> to vector<14x128xi32>
    %1539 = arith.sitofp %1538 : vector<14x128xi32> to vector<14x128xf32>
    %1540 = arith.truncf %1539 : vector<14x128xf32> to vector<14x128xbf16>
    %c14_492 = arith.constant 14 : index
    %c896_493 = arith.constant 896 : index
    %1541 = vector.load %arg5[%c14_492, %c896_493] : memref<28x1152xbf16, #tpu.memory_space<vmem>>, vector<14x128xbf16>
    tpu.vector_store %arg5[%c14_492, %c896_493], %1540 {strides = array<i32>} : memref<28x1152xbf16, #tpu.memory_space<vmem>>, vector<14x128xbf16>,
    %c8_i32_494 = arith.constant 8 : i32
    %1542 = vector.broadcast %c8_i32_494 : i32 to vector<14x128xi32>
    %1543 = arith.cmpi eq, %1493, %1542 : vector<14x128xi32>
    %1544 = arith.extui %1543 : vector<14x128xi1> to vector<14x128xi32>
    %1545 = arith.sitofp %1544 : vector<14x128xi32> to vector<14x128xf32>
    %1546 = arith.truncf %1545 : vector<14x128xf32> to vector<14x128xbf16>
    %c14_495 = arith.constant 14 : index
    %c1024_496 = arith.constant 1024 : index
    %1547 = vector.load %arg5[%c14_495, %c1024_496] : memref<28x1152xbf16, #tpu.memory_space<vmem>>, vector<14x128xbf16>
    tpu.vector_store %arg5[%c14_495, %c1024_496], %1546 {strides = array<i32>} : memref<28x1152xbf16, #tpu.memory_space<vmem>>, vector<14x128xbf16>,
    %c0_497 = arith.constant 0 : index
    %c0_498 = arith.constant 0 : index
    %1548 = vector.load %arg5[%c0_497, %c0_498] : memref<28x1152xbf16, #tpu.memory_space<vmem>>, vector<28x1152xbf16>
    %c0_499 = arith.constant 0 : index
    %c0_500 = arith.constant 0 : index
    %1549 = vector.load %arg2[%c0_499, %c0_500] : memref<12x28xbf16, #tpu.memory_space<vmem>>, vector<12x28xbf16>
    %cst_501 = arith.constant dense<0.000000e+00> : vector<12x1152xf32>
    %1550 = tpu.matmul %1549, %1548, %cst_501 {dimension_numbers = #tpu.dot_dimension_numbers<[1], [0], [0], [1], [0, 0, 1, 1], [], []>} : vector<12x28xbf16>, vector<28x1152xbf16>, vector<12x1152xf32> -> vector<12x1152xf32>
    %1551 = arith.truncf %1550 : vector<12x1152xf32> to vector<12x1152xbf16>
    %c0_502 = arith.constant 0 : index
    %c0_503 = arith.constant 0 : index
    %1552 = vector.load %arg3[%c0_502, %c0_503] : memref<1152x128xbf16, #tpu.memory_space<vmem>>, vector<1152x128xbf16>
    %cst_504 = arith.constant dense<0.000000e+00> : vector<12x128xf32>
    %1553 = tpu.matmul %1551, %1552, %cst_504 {dimension_numbers = #tpu.dot_dimension_numbers<[1], [0], [0], [1], [0, 0, 1, 1], [], []>} : vector<12x1152xbf16>, vector<1152x128xbf16>, vector<12x128xf32> -> vector<12x128xf32>
    %c0_505 = arith.constant 0 : index
    %c0_506 = arith.constant 0 : index
    %c0_507 = arith.constant 0 : index
    %1554 = vector.load %arg4[%c0_505, %c0_506, %c0_507] : memref<1x12x128xf32, #tpu.memory_space<vmem>>, vector<1x12x128xf32>
    %1555 = vector.shape_cast %1554 : vector<1x12x128xf32> to vector<12x128xf32>
    %1556 = vector.shape_cast %1553 : vector<12x128xf32> to vector<1x12x128xf32>
    tpu.vector_store %arg4[%c0_505, %c0_506, %c0_507], %1556 {strides = array<i32>} : memref<1x12x128xf32, #tpu.memory_space<vmem>>, vector<1x12x128xf32>,
    return
  }
  func.func @transform_0(%arg0: i32) -> (i32, i32, i32, i32) {
    %c0_i32 = arith.constant 0 : i32
    %c0_i32_0 = arith.constant 0 : i32
    %c0_i32_1 = arith.constant 0 : i32
    %c0_i32_2 = arith.constant 0 : i32
    return %arg0, %c0_i32, %c0_i32_0, %c0_i32_1 : i32, i32, i32, i32
  }
  func.func @transform_1(%arg0: i32) -> (i32, i32) {
    %c0_i32 = arith.constant 0 : i32
    %c0_i32_0 = arith.constant 0 : i32
    %c0_i32_1 = arith.constant 0 : i32
    return %c0_i32, %c0_i32_0 : i32, i32
  }
  func.func @transform_2(%arg0: i32) -> (i32, i32) {
    %c0_i32 = arith.constant 0 : i32
    %c0_i32_0 = arith.constant 0 : i32
    %c0_i32_1 = arith.constant 0 : i32
    return %c0_i32, %c0_i32_0 : i32, i32
  }
  func.func @transform_3(%arg0: i32) -> (i32, i32, i32) {
    %c0_i32 = arith.constant 0 : i32
    %c0_i32_0 = arith.constant 0 : i32
    %c0_i32_1 = arith.constant 0 : i32
    return %arg0, %c0_i32, %c0_i32_0 : i32, i32, i32
  }
}

</mosaic_0001>

<llo_original>
// kernel: forward.1
$region0: #{forward.1}
  #allocation0 [shape = 'u32[]', space=smem, size = 0x4, offset = 0x4, fixed_abs, tag = 'smem constant byte address 0x4 - core index']
  #allocation1 [shape = 'u32[144,128]{1,0:T(1,128)}', space=vmem, size = 0x12000, scoped, tag = 'internal scratch']
  #allocation2 [shape = 'bf16[28,1152]{1,0:T(8,128)(2,1)}', space=vmem, size = 0x12000, scoped, tag = 'scratch operand']
  %s0 = inlined_call_operand.hbm [shape: f32[2,4,16,16], index: 0, kind: input, shape index: {}]
  %s1 = inlined_call_operand.vmem [shape: bf16[12,28], index: 1, kind: input, shape index: {}]
  %s2 = inlined_call_operand.hbm [shape: bf16[1152,128], index: 2, kind: input, shape index: {}]
  %s3 = inlined_call_operand.vmem [shape: f32[1,12,128], index: 3, kind: output, shape index: {}]
  %s4 = sld [smem:[#allocation0]]
  $region30: #{forward.1} parent=0
    _
  %s6 = ssub.s32 1, %s4
  %s7 = scalar_select 0, %s6, %s4
  $region1: #{forward.1} parent=0
    #allocation3 [shape = 'u8[65536]{0}', space=vmem, size = 0x10000, scoped, tag = 'input window, operand 0, single buffered']
    #allocation4 [shape = 's32[1]{0}', space=sflag, size = 0x4, scoped, tag = 'scoped memory for forward.1']
    #allocation5 [shape = 'u8[294912]{0}', space=vmem, size = 0x48000, scoped, tag = 'input window, operand 2, single buffered']
    #allocation6 [shape = 's32[1]{0}', space=sflag, size = 0x4, scoped, tag = 'scoped memory for forward.1']
    %8 = vsyncpa [#allocation4], 0
    %9 = vsyncpa [#allocation6], 0
    // Predicated region
    $region2: #{forward.1} parent=1 // pred_check
      _
    $region3: #{forward.1} parent=1 // pred_check_branch
      %11 = sbr.rel (0) target = $region5
    $region4: #{forward.1} parent=1 // pred_region
      %s13 = ssub.s32 2048, 2048
      %14 = vsyncadd [#allocation4], %s13
      %s15 = sshll.u32 [#allocation3], 4
      %s16 = int_to_ptr.vmem [resolvable:$true] %s15
      %21 = dma.hbm_to_vmem [thread:$0]  %s0, 2048, %s16, [#allocation4], 128, 128, 8
    $region5: #{forward.1} parent=1 // pred_fallthru
      _
    // Predicated region
    $region6: #{forward.1} parent=1 // pred_check
      _
    $region7: #{forward.1} parent=1 // pred_check_branch
      %23 = sbr.rel (0) target = $region9
    $region8: #{forward.1} parent=1 // pred_region
      _
    $region9: #{forward.1} parent=1 // pred_fallthru
      _
    // Predicated region
    $region10: #{forward.1} parent=1 // pred_check
      _
    $region11: #{forward.1} parent=1 // pred_check_branch
      %25 = sbr.rel (0) target = $region13
    $region12: #{forward.1} parent=1 // pred_region
      %s27 = ssub.s32 9216, 9216
      %28 = vsyncadd [#allocation6], %s27
      %s29 = sshll.u32 [#allocation5], 4
      %s30 = int_to_ptr.vmem [resolvable:$true] %s29
      %35 = dma.hbm_to_vmem [thread:$0]  %s2, 9216, %s30, [#allocation6], 64, 64, 4
    $region13: #{forward.1} parent=1 // pred_fallthru
      _
    // Predicated region
    $region14: #{forward.1} parent=1 // pred_check
      _
    $region15: #{forward.1} parent=1 // pred_check_branch
      %37 = sbr.rel (0) target = $region17
    $region16: #{forward.1} parent=1 // pred_region
      %38 = dma.done [#allocation4], 2048
    $region17: #{forward.1} parent=1 // pred_fallthru
      _
    // Predicated region
    $region18: #{forward.1} parent=1 // pred_check
      _
    $region19: #{forward.1} parent=1 // pred_check_branch
      %40 = sbr.rel (0) target = $region21
    $region20: #{forward.1} parent=1 // pred_region
      %41 = dma.done [#allocation6], 9216
    $region21: #{forward.1} parent=1 // pred_fallthru
      _
    %v43 = vld [vmem:[#allocation3] sm:$0xff]
    %v44 = vld [vmem:[#allocation3 + $0x8] sm:$0xff]
    %v45 = vmul.f32 %v43, 0.125
    %v46 = vmul.f32 %v44, 0.125
    %v47 = vmul.f32 %v43, 0.25
    %v48 = vmul.f32 %v44, 0.25
    %51 = vrot.lane.b32.xlu0 %v47, 127
    %v52 = vpop.permute.xlu0 %51
    %53 = vrot.lane.b32.xlu0 %v48, 127
    %v54 = vpop.permute.xlu0 %53
    %v57 = vadd.f32 %v45, %v52
    %v58 = vadd.f32 %v46, %v54
    %61 = vrot.lane.b32.xlu0 %v45, 126
    %v62 = vpop.permute.xlu0 %61
    %63 = vrot.lane.b32.xlu0 %v46, 126
    %v64 = vpop.permute.xlu0 %63
    %v67 = vadd.f32 %v57, %v62
    %v68 = vadd.f32 %v58, %v64
    %v69 = vmul.f32 %v43, -0.125
    %v70 = vmul.f32 %v44, -0.125
    %vm73 = vcmask 1045504
    %v74 = vrot.slane %v69, 2
    %v75 = vrot.slane %v70, 2
    %v76 = vsel %vm73, %v74, %v75
    %v79 = vadd.f32 %v67, %v76
    %v80 = vadd.f32 %v68, %v75
    %v81 = vmul.f32 %v43, -0.25
    %v82 = vmul.f32 %v44, -0.25
    %v85 = vrot.slane %v81, 2
    %v86 = vrot.slane %v82, 2
    %v87 = vsel %vm73, %v85, %v86
    %88 = vrot.lane.b32.xlu0 %v87, 127
    %v89 = vpop.permute.xlu0 %88
    %90 = vrot.lane.b32.xlu0 %v86, 127
    %v91 = vpop.permute.xlu0 %90
    %v94 = vadd.f32 %v79, %v89
    %v95 = vadd.f32 %v80, %v91
    %96 = vrot.lane.b32.xlu0 %v76, 126
    %v97 = vpop.permute.xlu0 %96
    %98 = vrot.lane.b32.xlu0 %v75, 126
    %v99 = vpop.permute.xlu0 %98
    %v102 = vadd.f32 %v94, %v97
    %v103 = vadd.f32 %v95, %v99
    %vm104 = vcmp.gt.f32.partialorder %v102, -inf
    %vm105 = vcmp.gt.f32.partialorder %v103, -inf
    %v106 = vsel %vm104, %v102, -inf
    %v107 = vsel %vm105, %v103, -inf
    %v108 = vmul.f32 %v43, 0.11427669
    %v109 = vmul.f32 %v44, 0.11427669
    %112 = vrot.lane.b32.xlu0 %v108, 127
    %v113 = vpop.permute.xlu0 %112
    %114 = vrot.lane.b32.xlu0 %v109, 127
    %v115 = vpop.permute.xlu0 %114
    %v118 = vadd.f32 %v47, %v113
    %v119 = vadd.f32 %v48, %v115
    %vm120 = vcmask 1046528
    %v121 = vrot.slane %v108, 1
    %v122 = vrot.slane %v109, 1
    %v123 = vsel %vm120, %v121, %v122
    %v126 = vadd.f32 %v118, %v123
    %v127 = vadd.f32 %v119, %v122
    %v128 = vmul.f32 %v43, -0.11427669
    %v129 = vmul.f32 %v44, -0.11427669
    %v132 = vrot.slane %v128, 1
    %v133 = vrot.slane %v129, 1
    %v134 = vsel %vm120, %v132, %v133
    %135 = vrot.lane.b32.xlu0 %v134, 126
    %v136 = vpop.permute.xlu0 %135
    %137 = vrot.lane.b32.xlu0 %v133, 126
    %v138 = vpop.permute.xlu0 %137
    %v141 = vadd.f32 %v126, %v136
    %v142 = vadd.f32 %v127, %v138
    %v143 = vrot.slane %v128, 2
    %v144 = vrot.slane %v129, 2
    %v145 = vsel %vm73, %v143, %v144
    %146 = vrot.lane.b32.xlu0 %v145, 127
    %v147 = vpop.permute.xlu0 %146
    %148 = vrot.lane.b32.xlu0 %v144, 127
    %v149 = vpop.permute.xlu0 %148
    %v152 = vadd.f32 %v141, %v147
    %v153 = vadd.f32 %v142, %v149
    %154 = vrot.lane.b32.xlu0 %v87, 126
    %v155 = vpop.permute.xlu0 %154
    %156 = vrot.lane.b32.xlu0 %v86, 126
    %v157 = vpop.permute.xlu0 %156
    %v160 = vadd.f32 %v152, %v155
    %v161 = vadd.f32 %v153, %v157
    %vm162 = vcmp.gt.f32.partialorder %v160, %v106
    %vm163 = vcmp.gt.f32.partialorder %v161, %v107
    %v164 = vsel %vm162, %v160, %v106
    %v165 = vsel %vm163, %v161, %v107
    %v166 = vsel %vm162, 1, 0
    %v167 = vsel %vm163, 1, 0
    %168 = vrot.lane.b32.xlu0 %v69, 126
    %v169 = vpop.permute.xlu0 %168
    %170 = vrot.lane.b32.xlu0 %v70, 126
    %v171 = vpop.permute.xlu0 %170
    %v174 = vadd.f32 %v45, %v169
    %v175 = vadd.f32 %v46, %v171
    %v176 = vrot.slane %v47, 1
    %v177 = vrot.slane %v48, 1
    %v178 = vsel %vm120, %v176, %v177
    %v181 = vadd.f32 %v174, %v178
    %v182 = vadd.f32 %v175, %v177
    %v183 = vrot.slane %v81, 1
    %v184 = vrot.slane %v82, 1
    %v185 = vsel %vm120, %v183, %v184
    %186 = vrot.lane.b32.xlu0 %v185, 126
    %v187 = vpop.permute.xlu0 %186
    %188 = vrot.lane.b32.xlu0 %v184, 126
    %v189 = vpop.permute.xlu0 %188
    %v192 = vadd.f32 %v181, %v187
    %v193 = vadd.f32 %v182, %v189
    %v194 = vrot.slane %v45, 2
    %v195 = vrot.slane %v46, 2
    %v196 = vsel %vm73, %v194, %v195
    %v199 = vadd.f32 %v192, %v196
    %v200 = vadd.f32 %v193, %v195
    %v201 = vadd.f32 %v199, %v97
    %v202 = vadd.f32 %v200, %v99
    %vm203 = vcmp.gt.f32.partialorder %v201, %v164
    %vm204 = vcmp.gt.f32.partialorder %v202, %v165
    %v205 = vsel %vm203, %v201, %v164
    %v206 = vsel %vm204, %v202, %v165
    %v207 = vsel %vm203, 2, %v166
    %v208 = vsel %vm204, 2, %v167
    %209 = vrot.lane.b32.xlu0 %v81, 127
    %v210 = vpop.permute.xlu0 %209
    %211 = vrot.lane.b32.xlu0 %v82, 127
    %v212 = vpop.permute.xlu0 %211
    %v215 = vadd.f32 %v128, %v210
    %v216 = vadd.f32 %v129, %v212
    %217 = vrot.lane.b32.xlu0 %v123, 1
    %v218 = vpop.permute.xlu0 %217
    %219 = vrot.lane.b32.xlu0 %v122, 1
    %v220 = vpop.permute.xlu0 %219
    %v223 = vadd.f32 %v215, %v218
    %v224 = vadd.f32 %v216, %v220
    %225 = vrot.lane.b32.xlu0 %v134, 127
    %v226 = vpop.permute.xlu0 %225
    %227 = vrot.lane.b32.xlu0 %v133, 127
    %v228 = vpop.permute.xlu0 %227
    %v231 = vadd.f32 %v223, %v226
    %v232 = vadd.f32 %v224, %v228
    %v233 = vrot.slane %v47, 2
    %v234 = vrot.slane %v48, 2
    %v235 = vsel %vm73, %v233, %v234
    %236 = vrot.lane.b32.xlu0 %v235, 1
    %v237 = vpop.permute.xlu0 %236
    %238 = vrot.lane.b32.xlu0 %v234, 1
    %v239 = vpop.permute.xlu0 %238
    %v242 = vadd.f32 %v231, %v237
    %v243 = vadd.f32 %v232, %v239
    %v244 = vrot.slane %v108, 2
    %v245 = vrot.slane %v109, 2
    %v246 = vsel %vm73, %v244, %v245
    %v249 = vadd.f32 %v242, %v246
    %v250 = vadd.f32 %v243, %v245
    %253 = vrot.lane.b32.xlu0 %v205, 1
    %v254 = vpop.permute.xlu0 %253
    %255 = vrot.lane.b32.xlu0 %v206, 1
    %v256 = vpop.permute.xlu0 %255
    %vm259 = vcmp.gt.f32.partialorder %v249, %v254
    %vm260 = vcmp.gt.f32.partialorder %v250, %v256
    %v261 = vsel %vm259, %v249, %v254
    %v262 = vsel %vm260, %v250, %v256
    %263 = vrot.lane.b32.xlu0 %v207, 1
    %v264 = vpop.permute.xlu0 %263
    %265 = vrot.lane.b32.xlu0 %v208, 1
    %v266 = vpop.permute.xlu0 %265
    %v267 = vsel %vm259, 3, %v264
    %v268 = vsel %vm260, 3, %v266
    %v269 = vadd.f32 %v69, %v210
    %v270 = vadd.f32 %v70, %v212
    %v271 = vadd.f32 %v269, %v169
    %v272 = vadd.f32 %v270, %v171
    %v273 = vadd.f32 %v271, %v196
    %v274 = vadd.f32 %v272, %v195
    %275 = vrot.lane.b32.xlu0 %v235, 127
    %v276 = vpop.permute.xlu0 %275
    %277 = vrot.lane.b32.xlu0 %v234, 127
    %v278 = vpop.permute.xlu0 %277
    %v281 = vadd.f32 %v273, %v276
    %v282 = vadd.f32 %v274, %v278
    %283 = vrot.lane.b32.xlu0 %v196, 126
    %v284 = vpop.permute.xlu0 %283
    %285 = vrot.lane.b32.xlu0 %v195, 126
    %v286 = vpop.permute.xlu0 %285
    %v289 = vadd.f32 %v281, %v284
    %v290 = vadd.f32 %v282, %v286
    %293 = vrot.lane.b32.xlu0 %v261, 127
    %v294 = vpop.permute.xlu0 %293
    %295 = vrot.lane.b32.xlu0 %v262, 127
    %v296 = vpop.permute.xlu0 %295
    %vm299 = vcmp.gt.f32.partialorder %v289, %v294
    %vm300 = vcmp.gt.f32.partialorder %v290, %v296
    %v301 = vsel %vm299, %v289, %v294
    %v302 = vsel %vm300, %v290, %v296
    %303 = vrot.lane.b32.xlu0 %v267, 127
    %v304 = vpop.permute.xlu0 %303
    %305 = vrot.lane.b32.xlu0 %v268, 127
    %v306 = vpop.permute.xlu0 %305
    %v307 = vsel %vm299, 4, %v304
    %v308 = vsel %vm300, 4, %v306
    %309 = vrot.lane.b32.xlu0 %v128, 127
    %v310 = vpop.permute.xlu0 %309
    %311 = vrot.lane.b32.xlu0 %v129, 127
    %v312 = vpop.permute.xlu0 %311
    %v315 = vadd.f32 %v81, %v310
    %v316 = vadd.f32 %v82, %v312
    %v319 = vadd.f32 %v315, %v134
    %v320 = vadd.f32 %v316, %v133
    %321 = vrot.lane.b32.xlu0 %v123, 126
    %v322 = vpop.permute.xlu0 %321
    %323 = vrot.lane.b32.xlu0 %v122, 126
    %v324 = vpop.permute.xlu0 %323
    %v327 = vadd.f32 %v319, %v322
    %v328 = vadd.f32 %v320, %v324
    %329 = vrot.lane.b32.xlu0 %v246, 127
    %v330 = vpop.permute.xlu0 %329
    %331 = vrot.lane.b32.xlu0 %v245, 127
    %v332 = vpop.permute.xlu0 %331
    %v335 = vadd.f32 %v327, %v330
    %v336 = vadd.f32 %v328, %v332
    %337 = vrot.lane.b32.xlu0 %v235, 126
    %v338 = vpop.permute.xlu0 %337
    %339 = vrot.lane.b32.xlu0 %v234, 126
    %v340 = vpop.permute.xlu0 %339
    %v343 = vadd.f32 %v335, %v338
    %v344 = vadd.f32 %v336, %v340
    %vm345 = vcmp.gt.f32.partialorder %v343, %v301
    %vm346 = vcmp.gt.f32.partialorder %v344, %v302
    %v347 = vsel %vm345, %v343, %v301
    %v348 = vsel %vm346, %v344, %v302
    %v349 = vsel %vm345, 5, %v307
    %v350 = vsel %vm346, 5, %v308
    %v351 = vadd.f32 %v69, %v62
    %v352 = vadd.f32 %v70, %v64
    %v355 = vadd.f32 %v351, %v185
    %v356 = vadd.f32 %v352, %v184
    %357 = vrot.lane.b32.xlu0 %v178, 126
    %v358 = vpop.permute.xlu0 %357
    %359 = vrot.lane.b32.xlu0 %v177, 126
    %v360 = vpop.permute.xlu0 %359
    %v363 = vadd.f32 %v355, %v358
    %v364 = vadd.f32 %v356, %v360
    %v365 = vadd.f32 %v363, %v76
    %v366 = vadd.f32 %v364, %v75
    %v367 = vadd.f32 %v365, %v284
    %v368 = vadd.f32 %v366, %v286
    %vm369 = vcmp.gt.f32.partialorder %v367, %v347
    %vm370 = vcmp.gt.f32.partialorder %v368, %v348
    %v371 = vsel %vm369, %v367, %v347
    %v372 = vsel %vm370, %v368, %v348
    %v373 = vsel %vm369, 6, %v349
    %v374 = vsel %vm370, 6, %v350
    %v375 = vadd.f32 %v108, %v52
    %v376 = vadd.f32 %v109, %v54
    %377 = vrot.lane.b32.xlu0 %v134, 1
    %v378 = vpop.permute.xlu0 %377
    %379 = vrot.lane.b32.xlu0 %v133, 1
    %v380 = vpop.permute.xlu0 %379
    %v383 = vadd.f32 %v375, %v378
    %v384 = vadd.f32 %v376, %v380
    %385 = vrot.lane.b32.xlu0 %v123, 127
    %v386 = vpop.permute.xlu0 %385
    %387 = vrot.lane.b32.xlu0 %v122, 127
    %v388 = vpop.permute.xlu0 %387
    %v391 = vadd.f32 %v383, %v386
    %v392 = vadd.f32 %v384, %v388
    %393 = vrot.lane.b32.xlu0 %v87, 1
    %v394 = vpop.permute.xlu0 %393
    %395 = vrot.lane.b32.xlu0 %v86, 1
    %v396 = vpop.permute.xlu0 %395
    %v399 = vadd.f32 %v391, %v394
    %v400 = vadd.f32 %v392, %v396
    %v403 = vadd.f32 %v399, %v145
    %v404 = vadd.f32 %v400, %v144
    %407 = vrot.lane.b32.xlu0 %v371, 1
    %v408 = vpop.permute.xlu0 %407
    %409 = vrot.lane.b32.xlu0 %v372, 1
    %v410 = vpop.permute.xlu0 %409
    %vm413 = vcmp.gt.f32.partialorder %v403, %v408
    %vm414 = vcmp.gt.f32.partialorder %v404, %v410
    %v415 = vsel %vm413, %v403, %v408
    %v416 = vsel %vm414, %v404, %v410
    %417 = vrot.lane.b32.xlu0 %v373, 1
    %v418 = vpop.permute.xlu0 %417
    %419 = vrot.lane.b32.xlu0 %v374, 1
    %v420 = vpop.permute.xlu0 %419
    %v421 = vsel %vm413, 7, %v418
    %v422 = vsel %vm414, 7, %v420
    %s423 = scalar_lea.vmem [#allocation3], 16
    %v424 = vld [vmem:[%s423] sm:$0xff]
    %v425 = vld [vmem:[%s423 + $0x8] sm:$0xff]
    %v426 = vmul.f32 %v424, 0.125
    %v427 = vmul.f32 %v425, 0.125
    %v428 = vmul.f32 %v424, 0.25
    %v429 = vmul.f32 %v425, 0.25
    %432 = vrot.lane.b32.xlu0 %v428, 127
    %v433 = vpop.permute.xlu0 %432
    %434 = vrot.lane.b32.xlu0 %v429, 127
    %v435 = vpop.permute.xlu0 %434
    %v438 = vadd.f32 %v426, %v433
    %v439 = vadd.f32 %v427, %v435
    %442 = vrot.lane.b32.xlu0 %v426, 126
    %v443 = vpop.permute.xlu0 %442
    %444 = vrot.lane.b32.xlu0 %v427, 126
    %v445 = vpop.permute.xlu0 %444
    %v448 = vadd.f32 %v438, %v443
    %v449 = vadd.f32 %v439, %v445
    %v450 = vmul.f32 %v424, -0.125
    %v451 = vmul.f32 %v425, -0.125
    %v454 = vrot.slane %v450, 2
    %v455 = vrot.slane %v451, 2
    %v456 = vsel %vm73, %v454, %v455
    %v459 = vadd.f32 %v448, %v456
    %v460 = vadd.f32 %v449, %v455
    %v461 = vmul.f32 %v424, -0.25
    %v462 = vmul.f32 %v425, -0.25
    %v465 = vrot.slane %v461, 2
    %v466 = vrot.slane %v462, 2
    %v467 = vsel %vm73, %v465, %v466
    %468 = vrot.lane.b32.xlu0 %v467, 127
    %v469 = vpop.permute.xlu0 %468
    %470 = vrot.lane.b32.xlu0 %v466, 127
    %v471 = vpop.permute.xlu0 %470
    %v474 = vadd.f32 %v459, %v469
    %v475 = vadd.f32 %v460, %v471
    %476 = vrot.lane.b32.xlu0 %v456, 126
    %v477 = vpop.permute.xlu0 %476
    %478 = vrot.lane.b32.xlu0 %v455, 126
    %v479 = vpop.permute.xlu0 %478
    %v482 = vadd.f32 %v474, %v477
    %v483 = vadd.f32 %v475, %v479
    %486 = vrot.lane.b32.xlu0 %v415, 127
    %v487 = vpop.permute.xlu0 %486
    %488 = vrot.lane.b32.xlu0 %v416, 127
    %v489 = vpop.permute.xlu0 %488
    %vm492 = vcmp.gt.f32.partialorder %v482, %v487
    %vm493 = vcmp.gt.f32.partialorder %v483, %v489
    %v494 = vsel %vm492, %v482, %v487
    %v495 = vsel %vm493, %v483, %v489
    %496 = vrot.lane.b32.xlu0 %v421, 127
    %v497 = vpop.permute.xlu0 %496
    %498 = vrot.lane.b32.xlu0 %v422, 127
    %v499 = vpop.permute.xlu0 %498
    %v500 = vsel %vm492, 8, %v497
    %v501 = vsel %vm493, 8, %v499
    %v502 = vmul.f32 %v424, 0.11427669
    %v503 = vmul.f32 %v425, 0.11427669
    %506 = vrot.lane.b32.xlu0 %v502, 127
    %v507 = vpop.permute.xlu0 %506
    %508 = vrot.lane.b32.xlu0 %v503, 127
    %v509 = vpop.permute.xlu0 %508
    %v512 = vadd.f32 %v428, %v507
    %v513 = vadd.f32 %v429, %v509
    %v514 = vrot.slane %v502, 1
    %v515 = vrot.slane %v503, 1
    %v516 = vsel %vm120, %v514, %v515
    %v519 = vadd.f32 %v512, %v516
    %v520 = vadd.f32 %v513, %v515
    %v521 = vmul.f32 %v424, -0.11427669
    %v522 = vmul.f32 %v425, -0.11427669
    %v525 = vrot.slane %v521, 1
    %v526 = vrot.slane %v522, 1
    %v527 = vsel %vm120, %v525, %v526
    %528 = vrot.lane.b32.xlu0 %v527, 126
    %v529 = vpop.permute.xlu0 %528
    %530 = vrot.lane.b32.xlu0 %v526, 126
    %v531 = vpop.permute.xlu0 %530
    %v534 = vadd.f32 %v519, %v529
    %v535 = vadd.f32 %v520, %v531
    %v536 = vrot.slane %v521, 2
    %v537 = vrot.slane %v522, 2
    %v538 = vsel %vm73, %v536, %v537
    %539 = vrot.lane.b32.xlu0 %v538, 127
    %v540 = vpop.permute.xlu0 %539
    %541 = vrot.lane.b32.xlu0 %v537, 127
    %v542 = vpop.permute.xlu0 %541
    %v545 = vadd.f32 %v534, %v540
    %v546 = vadd.f32 %v535, %v542
    %547 = vrot.lane.b32.xlu0 %v467, 126
    %v548 = vpop.permute.xlu0 %547
    %549 = vrot.lane.b32.xlu0 %v466, 126
    %v550 = vpop.permute.xlu0 %549
    %v553 = vadd.f32 %v545, %v548
    %v554 = vadd.f32 %v546, %v550
    %vm555 = vcmp.gt.f32.partialorder %v553, %v494
    %vm556 = vcmp.gt.f32.partialorder %v554, %v495
    %v557 = vsel %vm555, %v553, %v494
    %v558 = vsel %vm556, %v554, %v495
    %v559 = vsel %vm555, 9, %v500
    %v560 = vsel %vm556, 9, %v501
    %561 = vrot.lane.b32.xlu0 %v450, 126
    %v562 = vpop.permute.xlu0 %561
    %563 = vrot.lane.b32.xlu0 %v451, 126
    %v564 = vpop.permute.xlu0 %563
    %v567 = vadd.f32 %v426, %v562
    %v568 = vadd.f32 %v427, %v564
    %v569 = vrot.slane %v428, 1
    %v570 = vrot.slane %v429, 1
    %v571 = vsel %vm120, %v569, %v570
    %v574 = vadd.f32 %v567, %v571
    %v575 = vadd.f32 %v568, %v570
    %v576 = vrot.slane %v461, 1
    %v577 = vrot.slane %v462, 1
    %v578 = vsel %vm120, %v576, %v577
    %579 = vrot.lane.b32.xlu0 %v578, 126
    %v580 = vpop.permute.xlu0 %579
    %581 = vrot.lane.b32.xlu0 %v577, 126
    %v582 = vpop.permute.xlu0 %581
    %v585 = vadd.f32 %v574, %v580
    %v586 = vadd.f32 %v575, %v582
    %v587 = vrot.slane %v426, 2
    %v588 = vrot.slane %v427, 2
    %v589 = vsel %vm73, %v587, %v588
    %v592 = vadd.f32 %v585, %v589
    %v593 = vadd.f32 %v586, %v588
    %v594 = vadd.f32 %v592, %v477
    %v595 = vadd.f32 %v593, %v479
    %vm596 = vcmp.gt.f32.partialorder %v594, %v557
    %vm597 = vcmp.gt.f32.partialorder %v595, %v558
    %v598 = vsel %vm596, %v594, %v557
    %v599 = vsel %vm597, %v595, %v558
    %v600 = vsel %vm596, 10, %v559
    %v601 = vsel %vm597, 10, %v560
    %602 = vrot.lane.b32.xlu0 %v461, 127
    %v603 = vpop.permute.xlu0 %602
    %604 = vrot.lane.b32.xlu0 %v462, 127
    %v605 = vpop.permute.xlu0 %604
    %v608 = vadd.f32 %v521, %v603
    %v609 = vadd.f32 %v522, %v605
    %610 = vrot.lane.b32.xlu0 %v516, 1
    %v611 = vpop.permute.xlu0 %610
    %612 = vrot.lane.b32.xlu0 %v515, 1
    %v613 = vpop.permute.xlu0 %612
    %v616 = vadd.f32 %v608, %v611
    %v617 = vadd.f32 %v609, %v613
    %618 = vrot.lane.b32.xlu0 %v527, 127
    %v619 = vpop.permute.xlu0 %618
    %620 = vrot.lane.b32.xlu0 %v526, 127
    %v621 = vpop.permute.xlu0 %620
    %v624 = vadd.f32 %v616, %v619
    %v625 = vadd.f32 %v617, %v621
    %v626 = vrot.slane %v428, 2
    %v627 = vrot.slane %v429, 2
    %v628 = vsel %vm73, %v626, %v627
    %629 = vrot.lane.b32.xlu0 %v628, 1
    %v630 = vpop.permute.xlu0 %629
    %631 = vrot.lane.b32.xlu0 %v627, 1
    %v632 = vpop.permute.xlu0 %631
    %v635 = vadd.f32 %v624, %v630
    %v636 = vadd.f32 %v625, %v632
    %v637 = vrot.slane %v502, 2
    %v638 = vrot.slane %v503, 2
    %v639 = vsel %vm73, %v637, %v638
    %v642 = vadd.f32 %v635, %v639
    %v643 = vadd.f32 %v636, %v638
    %646 = vrot.lane.b32.xlu0 %v598, 1
    %v647 = vpop.permute.xlu0 %646
    %648 = vrot.lane.b32.xlu0 %v599, 1
    %v649 = vpop.permute.xlu0 %648
    %vm652 = vcmp.gt.f32.partialorder %v642, %v647
    %vm653 = vcmp.gt.f32.partialorder %v643, %v649
    %v654 = vsel %vm652, %v642, %v647
    %v655 = vsel %vm653, %v643, %v649
    %656 = vrot.lane.b32.xlu0 %v600, 1
    %v657 = vpop.permute.xlu0 %656
    %658 = vrot.lane.b32.xlu0 %v601, 1
    %v659 = vpop.permute.xlu0 %658
    %v660 = vsel %vm652, 11, %v657
    %v661 = vsel %vm653, 11, %v659
    %v662 = vadd.f32 %v450, %v603
    %v663 = vadd.f32 %v451, %v605
    %v664 = vadd.f32 %v662, %v562
    %v665 = vadd.f32 %v663, %v564
    %v666 = vadd.f32 %v664, %v589
    %v667 = vadd.f32 %v665, %v588
    %668 = vrot.lane.b32.xlu0 %v628, 127
    %v669 = vpop.permute.xlu0 %668
    %670 = vrot.lane.b32.xlu0 %v627, 127
    %v671 = vpop.permute.xlu0 %670
    %v674 = vadd.f32 %v666, %v669
    %v675 = vadd.f32 %v667, %v671
    %676 = vrot.lane.b32.xlu0 %v589, 126
    %v677 = vpop.permute.xlu0 %676
    %678 = vrot.lane.b32.xlu0 %v588, 126
    %v679 = vpop.permute.xlu0 %678
    %v682 = vadd.f32 %v674, %v677
    %v683 = vadd.f32 %v675, %v679
    %686 = vrot.lane.b32.xlu0 %v654, 127
    %v687 = vpop.permute.xlu0 %686
    %688 = vrot.lane.b32.xlu0 %v655, 127
    %v689 = vpop.permute.xlu0 %688
    %vm692 = vcmp.gt.f32.partialorder %v682, %v687
    %vm693 = vcmp.gt.f32.partialorder %v683, %v689
    %v694 = vsel %vm692, %v682, %v687
    %v695 = vsel %vm693, %v683, %v689
    %696 = vrot.lane.b32.xlu0 %v660, 127
    %v697 = vpop.permute.xlu0 %696
    %698 = vrot.lane.b32.xlu0 %v661, 127
    %v699 = vpop.permute.xlu0 %698
    %v700 = vsel %vm692, 12, %v697
    %v701 = vsel %vm693, 12, %v699
    %702 = vrot.lane.b32.xlu0 %v521, 127
    %v703 = vpop.permute.xlu0 %702
    %704 = vrot.lane.b32.xlu0 %v522, 127
    %v705 = vpop.permute.xlu0 %704
    %v708 = vadd.f32 %v461, %v703
    %v709 = vadd.f32 %v462, %v705
    %v712 = vadd.f32 %v708, %v527
    %v713 = vadd.f32 %v709, %v526
    %714 = vrot.lane.b32.xlu0 %v516, 126
    %v715 = vpop.permute.xlu0 %714
    %716 = vrot.lane.b32.xlu0 %v515, 126
    %v717 = vpop.permute.xlu0 %716
    %v720 = vadd.f32 %v712, %v715
    %v721 = vadd.f32 %v713, %v717
    %722 = vrot.lane.b32.xlu0 %v639, 127
    %v723 = vpop.permute.xlu0 %722
    %724 = vrot.lane.b32.xlu0 %v638, 127
    %v725 = vpop.permute.xlu0 %724
    %v728 = vadd.f32 %v720, %v723
    %v729 = vadd.f32 %v721, %v725
    %730 = vrot.lane.b32.xlu0 %v628, 126
    %v731 = vpop.permute.xlu0 %730
    %732 = vrot.lane.b32.xlu0 %v627, 126
    %v733 = vpop.permute.xlu0 %732
    %v736 = vadd.f32 %v728, %v731
    %v737 = vadd.f32 %v729, %v733
    %vm738 = vcmp.gt.f32.partialorder %v736, %v694
    %vm739 = vcmp.gt.f32.partialorder %v737, %v695
    %v740 = vsel %vm738, %v736, %v694
    %v741 = vsel %vm739, %v737, %v695
    %v742 = vsel %vm738, 13, %v700
    %v743 = vsel %vm739, 13, %v701
    %v744 = vadd.f32 %v450, %v443
    %v745 = vadd.f32 %v451, %v445
    %v748 = vadd.f32 %v744, %v578
    %v749 = vadd.f32 %v745, %v577
    %750 = vrot.lane.b32.xlu0 %v571, 126
    %v751 = vpop.permute.xlu0 %750
    %752 = vrot.lane.b32.xlu0 %v570, 126
    %v753 = vpop.permute.xlu0 %752
    %v756 = vadd.f32 %v748, %v751
    %v757 = vadd.f32 %v749, %v753
    %v758 = vadd.f32 %v756, %v456
    %v759 = vadd.f32 %v757, %v455
    %v760 = vadd.f32 %v758, %v677
    %v761 = vadd.f32 %v759, %v679
    %vm762 = vcmp.gt.f32.partialorder %v760, %v740
    %vm763 = vcmp.gt.f32.partialorder %v761, %v741
    %v764 = vsel %vm762, %v760, %v740
    %v765 = vsel %vm763, %v761, %v741
    %v766 = vsel %vm762, 14, %v742
    %v767 = vsel %vm763, 14, %v743
    %v768 = vadd.f32 %v502, %v433
    %v769 = vadd.f32 %v503, %v435
    %770 = vrot.lane.b32.xlu0 %v527, 1
    %v771 = vpop.permute.xlu0 %770
    %772 = vrot.lane.b32.xlu0 %v526, 1
    %v773 = vpop.permute.xlu0 %772
    %v776 = vadd.f32 %v768, %v771
    %v777 = vadd.f32 %v769, %v773
    %778 = vrot.lane.b32.xlu0 %v516, 127
    %v779 = vpop.permute.xlu0 %778
    %780 = vrot.lane.b32.xlu0 %v515, 127
    %v781 = vpop.permute.xlu0 %780
    %v784 = vadd.f32 %v776, %v779
    %v785 = vadd.f32 %v777, %v781
    %786 = vrot.lane.b32.xlu0 %v467, 1
    %v787 = vpop.permute.xlu0 %786
    %788 = vrot.lane.b32.xlu0 %v466, 1
    %v789 = vpop.permute.xlu0 %788
    %v792 = vadd.f32 %v784, %v787
    %v793 = vadd.f32 %v785, %v789
    %v796 = vadd.f32 %v792, %v538
    %v797 = vadd.f32 %v793, %v537
    %800 = vrot.lane.b32.xlu0 %v764, 1
    %v801 = vpop.permute.xlu0 %800
    %802 = vrot.lane.b32.xlu0 %v765, 1
    %v803 = vpop.permute.xlu0 %802
    %vm806 = vcmp.gt.f32.partialorder %v796, %v801
    %vm807 = vcmp.gt.f32.partialorder %v797, %v803
    %v808 = vsel %vm806, %v796, %v801
    %v809 = vsel %vm807, %v797, %v803
    %810 = vrot.lane.b32.xlu0 %v766, 1
    %v811 = vpop.permute.xlu0 %810
    %812 = vrot.lane.b32.xlu0 %v767, 1
    %v813 = vpop.permute.xlu0 %812
    %v814 = vsel %vm806, 15, %v811
    %v815 = vsel %vm807, 15, %v813
    %s816 = scalar_lea.vmem [#allocation3], 32
    %v817 = vld [vmem:[%s816] sm:$0xff]
    %v818 = vld [vmem:[%s816 + $0x8] sm:$0xff]
    %v819 = vmul.f32 %v817, 0.125
    %v820 = vmul.f32 %v818, 0.125
    %v821 = vmul.f32 %v817, 0.25
    %v822 = vmul.f32 %v818, 0.25
    %825 = vrot.lane.b32.xlu0 %v821, 127
    %v826 = vpop.permute.xlu0 %825
    %827 = vrot.lane.b32.xlu0 %v822, 127
    %v828 = vpop.permute.xlu0 %827
    %v831 = vadd.f32 %v819, %v826
    %v832 = vadd.f32 %v820, %v828
    %835 = vrot.lane.b32.xlu0 %v819, 126
    %v836 = vpop.permute.xlu0 %835
    %837 = vrot.lane.b32.xlu0 %v820, 126
    %v838 = vpop.permute.xlu0 %837
    %v841 = vadd.f32 %v831, %v836
    %v842 = vadd.f32 %v832, %v838
    %v843 = vmul.f32 %v817, -0.125
    %v844 = vmul.f32 %v818, -0.125
    %v847 = vrot.slane %v843, 2
    %v848 = vrot.slane %v844, 2
    %v849 = vsel %vm73, %v847, %v848
    %v852 = vadd.f32 %v841, %v849
    %v853 = vadd.f32 %v842, %v848
    %v854 = vmul.f32 %v817, -0.25
    %v855 = vmul.f32 %v818, -0.25
    %v858 = vrot.slane %v854, 2
    %v859 = vrot.slane %v855, 2
    %v860 = vsel %vm73, %v858, %v859
    %861 = vrot.lane.b32.xlu0 %v860, 127
    %v862 = vpop.permute.xlu0 %861
    %863 = vrot.lane.b32.xlu0 %v859, 127
    %v864 = vpop.permute.xlu0 %863
    %v867 = vadd.f32 %v852, %v862
    %v868 = vadd.f32 %v853, %v864
    %869 = vrot.lane.b32.xlu0 %v849, 126
    %v870 = vpop.permute.xlu0 %869
    %871 = vrot.lane.b32.xlu0 %v848, 126
    %v872 = vpop.permute.xlu0 %871
    %v875 = vadd.f32 %v867, %v870
    %v876 = vadd.f32 %v868, %v872
    %879 = vrot.lane.b32.xlu0 %v808, 127
    %v880 = vpop.permute.xlu0 %879
    %881 = vrot.lane.b32.xlu0 %v809, 127
    %v882 = vpop.permute.xlu0 %881
    %vm885 = vcmp.gt.f32.partialorder %v875, %v880
    %vm886 = vcmp.gt.f32.partialorder %v876, %v882
    %v887 = vsel %vm885, %v875, %v880
    %v888 = vsel %vm886, %v876, %v882
    %889 = vrot.lane.b32.xlu0 %v814, 127
    %v890 = vpop.permute.xlu0 %889
    %891 = vrot.lane.b32.xlu0 %v815, 127
    %v892 = vpop.permute.xlu0 %891
    %v893 = vsel %vm885, 16, %v890
    %v894 = vsel %vm886, 16, %v892
    %v895 = vmul.f32 %v817, 0.11427669
    %v896 = vmul.f32 %v818, 0.11427669
    %899 = vrot.lane.b32.xlu0 %v895, 127
    %v900 = vpop.permute.xlu0 %899
    %901 = vrot.lane.b32.xlu0 %v896, 127
    %v902 = vpop.permute.xlu0 %901
    %v905 = vadd.f32 %v821, %v900
    %v906 = vadd.f32 %v822, %v902
    %v907 = vrot.slane %v895, 1
    %v908 = vrot.slane %v896, 1
    %v909 = vsel %vm120, %v907, %v908
    %v912 = vadd.f32 %v905, %v909
    %v913 = vadd.f32 %v906, %v908
    %v914 = vmul.f32 %v817, -0.11427669
    %v915 = vmul.f32 %v818, -0.11427669
    %v918 = vrot.slane %v914, 1
    %v919 = vrot.slane %v915, 1
    %v920 = vsel %vm120, %v918, %v919
    %921 = vrot.lane.b32.xlu0 %v920, 126
    %v922 = vpop.permute.xlu0 %921
    %923 = vrot.lane.b32.xlu0 %v919, 126
    %v924 = vpop.permute.xlu0 %923
    %v927 = vadd.f32 %v912, %v922
    %v928 = vadd.f32 %v913, %v924
    %v929 = vrot.slane %v914, 2
    %v930 = vrot.slane %v915, 2
    %v931 = vsel %vm73, %v929, %v930
    %932 = vrot.lane.b32.xlu0 %v931, 127
    %v933 = vpop.permute.xlu0 %932
    %934 = vrot.lane.b32.xlu0 %v930, 127
    %v935 = vpop.permute.xlu0 %934
    %v938 = vadd.f32 %v927, %v933
    %v939 = vadd.f32 %v928, %v935
    %940 = vrot.lane.b32.xlu0 %v860, 126
    %v941 = vpop.permute.xlu0 %940
    %942 = vrot.lane.b32.xlu0 %v859, 126
    %v943 = vpop.permute.xlu0 %942
    %v946 = vadd.f32 %v938, %v941
    %v947 = vadd.f32 %v939, %v943
    %vm948 = vcmp.gt.f32.partialorder %v946, %v887
    %vm949 = vcmp.gt.f32.partialorder %v947, %v888
    %v950 = vsel %vm948, %v946, %v887
    %v951 = vsel %vm949, %v947, %v888
    %v952 = vsel %vm948, 17, %v893
    %v953 = vsel %vm949, 17, %v894
    %954 = vrot.lane.b32.xlu0 %v843, 126
    %v955 = vpop.permute.xlu0 %954
    %956 = vrot.lane.b32.xlu0 %v844, 126
    %v957 = vpop.permute.xlu0 %956
    %v960 = vadd.f32 %v819, %v955
    %v961 = vadd.f32 %v820, %v957
    %v962 = vrot.slane %v821, 1
    %v963 = vrot.slane %v822, 1
    %v964 = vsel %vm120, %v962, %v963
    %v967 = vadd.f32 %v960, %v964
    %v968 = vadd.f32 %v961, %v963
    %v969 = vrot.slane %v854, 1
    %v970 = vrot.slane %v855, 1
    %v971 = vsel %vm120, %v969, %v970
    %972 = vrot.lane.b32.xlu0 %v971, 126
    %v973 = vpop.permute.xlu0 %972
    %974 = vrot.lane.b32.xlu0 %v970, 126
    %v975 = vpop.permute.xlu0 %974
    %v978 = vadd.f32 %v967, %v973
    %v979 = vadd.f32 %v968, %v975
    %v980 = vrot.slane %v819, 2
    %v981 = vrot.slane %v820, 2
    %v982 = vsel %vm73, %v980, %v981
    %v985 = vadd.f32 %v978, %v982
    %v986 = vadd.f32 %v979, %v981
    %v987 = vadd.f32 %v985, %v870
    %v988 = vadd.f32 %v986, %v872
    %vm989 = vcmp.gt.f32.partialorder %v987, %v950
    %vm990 = vcmp.gt.f32.partialorder %v988, %v951
    %v991 = vsel %vm989, %v987, %v950
    %v992 = vsel %vm990, %v988, %v951
    %v993 = vsel %vm989, 18, %v952
    %v994 = vsel %vm990, 18, %v953
    %995 = vrot.lane.b32.xlu0 %v854, 127
    %v996 = vpop.permute.xlu0 %995
    %997 = vrot.lane.b32.xlu0 %v855, 127
    %v998 = vpop.permute.xlu0 %997
    %v1001 = vadd.f32 %v914, %v996
    %v1002 = vadd.f32 %v915, %v998
    %1003 = vrot.lane.b32.xlu0 %v909, 1
    %v1004 = vpop.permute.xlu0 %1003
    %1005 = vrot.lane.b32.xlu0 %v908, 1
    %v1006 = vpop.permute.xlu0 %1005
    %v1009 = vadd.f32 %v1001, %v1004
    %v1010 = vadd.f32 %v1002, %v1006
    %1011 = vrot.lane.b32.xlu0 %v920, 127
    %v1012 = vpop.permute.xlu0 %1011
    %1013 = vrot.lane.b32.xlu0 %v919, 127
    %v1014 = vpop.permute.xlu0 %1013
    %v1017 = vadd.f32 %v1009, %v1012
    %v1018 = vadd.f32 %v1010, %v1014
    %v1019 = vrot.slane %v821, 2
    %v1020 = vrot.slane %v822, 2
    %v1021 = vsel %vm73, %v1019, %v1020
    %1022 = vrot.lane.b32.xlu0 %v1021, 1
    %v1023 = vpop.permute.xlu0 %1022
    %1024 = vrot.lane.b32.xlu0 %v1020, 1
    %v1025 = vpop.permute.xlu0 %1024
    %v1028 = vadd.f32 %v1017, %v1023
    %v1029 = vadd.f32 %v1018, %v1025
    %v1030 = vrot.slane %v895, 2
    %v1031 = vrot.slane %v896, 2
    %v1032 = vsel %vm73, %v1030, %v1031
    %v1035 = vadd.f32 %v1028, %v1032
    %v1036 = vadd.f32 %v1029, %v1031
    %1039 = vrot.lane.b32.xlu0 %v991, 1
    %v1040 = vpop.permute.xlu0 %1039
    %1041 = vrot.lane.b32.xlu0 %v992, 1
    %v1042 = vpop.permute.xlu0 %1041
    %vm1045 = vcmp.gt.f32.partialorder %v1035, %v1040
    %vm1046 = vcmp.gt.f32.partialorder %v1036, %v1042
    %v1047 = vsel %vm1045, %v1035, %v1040
    %v1048 = vsel %vm1046, %v1036, %v1042
    %1049 = vrot.lane.b32.xlu0 %v993, 1
    %v1050 = vpop.permute.xlu0 %1049
    %1051 = vrot.lane.b32.xlu0 %v994, 1
    %v1052 = vpop.permute.xlu0 %1051
    %v1053 = vsel %vm1045, 19, %v1050
    %v1054 = vsel %vm1046, 19, %v1052
    %v1055 = vadd.f32 %v843, %v996
    %v1056 = vadd.f32 %v844, %v998
    %v1057 = vadd.f32 %v1055, %v955
    %v1058 = vadd.f32 %v1056, %v957
    %v1059 = vadd.f32 %v1057, %v982
    %v1060 = vadd.f32 %v1058, %v981
    %1061 = vrot.lane.b32.xlu0 %v1021, 127
    %v1062 = vpop.permute.xlu0 %1061
    %1063 = vrot.lane.b32.xlu0 %v1020, 127
    %v1064 = vpop.permute.xlu0 %1063
    %v1067 = vadd.f32 %v1059, %v1062
    %v1068 = vadd.f32 %v1060, %v1064
    %1069 = vrot.lane.b32.xlu0 %v982, 126
    %v1070 = vpop.permute.xlu0 %1069
    %1071 = vrot.lane.b32.xlu0 %v981, 126
    %v1072 = vpop.permute.xlu0 %1071
    %v1075 = vadd.f32 %v1067, %v1070
    %v1076 = vadd.f32 %v1068, %v1072
    %1079 = vrot.lane.b32.xlu0 %v1047, 127
    %v1080 = vpop.permute.xlu0 %1079
    %1081 = vrot.lane.b32.xlu0 %v1048, 127
    %v1082 = vpop.permute.xlu0 %1081
    %vm1085 = vcmp.gt.f32.partialorder %v1075, %v1080
    %vm1086 = vcmp.gt.f32.partialorder %v1076, %v1082
    %v1087 = vsel %vm1085, %v1075, %v1080
    %v1088 = vsel %vm1086, %v1076, %v1082
    %1089 = vrot.lane.b32.xlu0 %v1053, 127
    %v1090 = vpop.permute.xlu0 %1089
    %1091 = vrot.lane.b32.xlu0 %v1054, 127
    %v1092 = vpop.permute.xlu0 %1091
    %v1093 = vsel %vm1085, 20, %v1090
    %v1094 = vsel %vm1086, 20, %v1092
    %1095 = vrot.lane.b32.xlu0 %v914, 127
    %v1096 = vpop.permute.xlu0 %1095
    %1097 = vrot.lane.b32.xlu0 %v915, 127
    %v1098 = vpop.permute.xlu0 %1097
    %v1101 = vadd.f32 %v854, %v1096
    %v1102 = vadd.f32 %v855, %v1098
    %v1105 = vadd.f32 %v1101, %v920
    %v1106 = vadd.f32 %v1102, %v919
    %1107 = vrot.lane.b32.xlu0 %v909, 126
    %v1108 = vpop.permute.xlu0 %1107
    %1109 = vrot.lane.b32.xlu0 %v908, 126
    %v1110 = vpop.permute.xlu0 %1109
    %v1113 = vadd.f32 %v1105, %v1108
    %v1114 = vadd.f32 %v1106, %v1110
    %1115 = vrot.lane.b32.xlu0 %v1032, 127
    %v1116 = vpop.permute.xlu0 %1115
    %1117 = vrot.lane.b32.xlu0 %v1031, 127
    %v1118 = vpop.permute.xlu0 %1117
    %v1121 = vadd.f32 %v1113, %v1116
    %v1122 = vadd.f32 %v1114, %v1118
    %1123 = vrot.lane.b32.xlu0 %v1021, 126
    %v1124 = vpop.permute.xlu0 %1123
    %1125 = vrot.lane.b32.xlu0 %v1020, 126
    %v1126 = vpop.permute.xlu0 %1125
    %v1129 = vadd.f32 %v1121, %v1124
    %v1130 = vadd.f32 %v1122, %v1126
    %vm1131 = vcmp.gt.f32.partialorder %v1129, %v1087
    %vm1132 = vcmp.gt.f32.partialorder %v1130, %v1088
    %v1133 = vsel %vm1131, %v1129, %v1087
    %v1134 = vsel %vm1132, %v1130, %v1088
    %v1135 = vsel %vm1131, 21, %v1093
    %v1136 = vsel %vm1132, 21, %v1094
    %v1137 = vadd.f32 %v843, %v836
    %v1138 = vadd.f32 %v844, %v838
    %v1141 = vadd.f32 %v1137, %v971
    %v1142 = vadd.f32 %v1138, %v970
    %1143 = vrot.lane.b32.xlu0 %v964, 126
    %v1144 = vpop.permute.xlu0 %1143
    %1145 = vrot.lane.b32.xlu0 %v963, 126
    %v1146 = vpop.permute.xlu0 %1145
    %v1149 = vadd.f32 %v1141, %v1144
    %v1150 = vadd.f32 %v1142, %v1146
    %v1151 = vadd.f32 %v1149, %v849
    %v1152 = vadd.f32 %v1150, %v848
    %v1153 = vadd.f32 %v1151, %v1070
    %v1154 = vadd.f32 %v1152, %v1072
    %vm1155 = vcmp.gt.f32.partialorder %v1153, %v1133
    %vm1156 = vcmp.gt.f32.partialorder %v1154, %v1134
    %v1157 = vsel %vm1155, %v1153, %v1133
    %v1158 = vsel %vm1156, %v1154, %v1134
    %v1159 = vsel %vm1155, 22, %v1135
    %v1160 = vsel %vm1156, 22, %v1136
    %v1161 = vadd.f32 %v895, %v826
    %v1162 = vadd.f32 %v896, %v828
    %1163 = vrot.lane.b32.xlu0 %v920, 1
    %v1164 = vpop.permute.xlu0 %1163
    %1165 = vrot.lane.b32.xlu0 %v919, 1
    %v1166 = vpop.permute.xlu0 %1165
    %v1169 = vadd.f32 %v1161, %v1164
    %v1170 = vadd.f32 %v1162, %v1166
    %1171 = vrot.lane.b32.xlu0 %v909, 127
    %v1172 = vpop.permute.xlu0 %1171
    %1173 = vrot.lane.b32.xlu0 %v908, 127
    %v1174 = vpop.permute.xlu0 %1173
    %v1177 = vadd.f32 %v1169, %v1172
    %v1178 = vadd.f32 %v1170, %v1174
    %1179 = vrot.lane.b32.xlu0 %v860, 1
    %v1180 = vpop.permute.xlu0 %1179
    %1181 = vrot.lane.b32.xlu0 %v859, 1
    %v1182 = vpop.permute.xlu0 %1181
    %v1185 = vadd.f32 %v1177, %v1180
    %v1186 = vadd.f32 %v1178, %v1182
    %v1189 = vadd.f32 %v1185, %v931
    %v1190 = vadd.f32 %v1186, %v930
    %1193 = vrot.lane.b32.xlu0 %v1157, 1
    %v1194 = vpop.permute.xlu0 %1193
    %1195 = vrot.lane.b32.xlu0 %v1158, 1
    %v1196 = vpop.permute.xlu0 %1195
    %vm1199 = vcmp.gt.f32.partialorder %v1189, %v1194
    %vm1200 = vcmp.gt.f32.partialorder %v1190, %v1196
    %v1201 = vsel %vm1199, %v1189, %v1194
    %v1202 = vsel %vm1200, %v1190, %v1196
    %1203 = vrot.lane.b32.xlu0 %v1159, 1
    %v1204 = vpop.permute.xlu0 %1203
    %1205 = vrot.lane.b32.xlu0 %v1160, 1
    %v1206 = vpop.permute.xlu0 %1205
    %v1207 = vsel %vm1199, 23, %v1204
    %v1208 = vsel %vm1200, 23, %v1206
    %s1209 = scalar_lea.vmem [#allocation3], 48
    %v1210 = vld [vmem:[%s1209] sm:$0xff]
    %v1211 = vld [vmem:[%s1209 + $0x8] sm:$0xff]
    %v1212 = vmul.f32 %v1210, 0.125
    %v1213 = vmul.f32 %v1211, 0.125
    %v1214 = vmul.f32 %v1210, 0.25
    %v1215 = vmul.f32 %v1211, 0.25
    %1218 = vrot.lane.b32.xlu0 %v1214, 127
    %v1219 = vpop.permute.xlu0 %1218
    %1220 = vrot.lane.b32.xlu0 %v1215, 127
    %v1221 = vpop.permute.xlu0 %1220
    %v1224 = vadd.f32 %v1212, %v1219
    %v1225 = vadd.f32 %v1213, %v1221
    %1228 = vrot.lane.b32.xlu0 %v1212, 126
    %v1229 = vpop.permute.xlu0 %1228
    %1230 = vrot.lane.b32.xlu0 %v1213, 126
    %v1231 = vpop.permute.xlu0 %1230
    %v1234 = vadd.f32 %v1224, %v1229
    %v1235 = vadd.f32 %v1225, %v1231
    %v1236 = vmul.f32 %v1210, -0.125
    %v1237 = vmul.f32 %v1211, -0.125
    %v1240 = vrot.slane %v1236, 2
    %v1241 = vrot.slane %v1237, 2
    %v1242 = vsel %vm73, %v1240, %v1241
    %v1245 = vadd.f32 %v1234, %v1242
    %v1246 = vadd.f32 %v1235, %v1241
    %v1247 = vmul.f32 %v1210, -0.25
    %v1248 = vmul.f32 %v1211, -0.25
    %v1251 = vrot.slane %v1247, 2
    %v1252 = vrot.slane %v1248, 2
    %v1253 = vsel %vm73, %v1251, %v1252
    %1254 = vrot.lane.b32.xlu0 %v1253, 127
    %v1255 = vpop.permute.xlu0 %1254
    %1256 = vrot.lane.b32.xlu0 %v1252, 127
    %v1257 = vpop.permute.xlu0 %1256
    %v1260 = vadd.f32 %v1245, %v1255
    %v1261 = vadd.f32 %v1246, %v1257
    %1262 = vrot.lane.b32.xlu0 %v1242, 126
    %v1263 = vpop.permute.xlu0 %1262
    %1264 = vrot.lane.b32.xlu0 %v1241, 126
    %v1265 = vpop.permute.xlu0 %1264
    %v1268 = vadd.f32 %v1260, %v1263
    %v1269 = vadd.f32 %v1261, %v1265
    %1272 = vrot.lane.b32.xlu0 %v1201, 127
    %v1273 = vpop.permute.xlu0 %1272
    %1274 = vrot.lane.b32.xlu0 %v1202, 127
    %v1275 = vpop.permute.xlu0 %1274
    %vm1278 = vcmp.gt.f32.partialorder %v1268, %v1273
    %vm1279 = vcmp.gt.f32.partialorder %v1269, %v1275
    %v1280 = vsel %vm1278, %v1268, %v1273
    %v1281 = vsel %vm1279, %v1269, %v1275
    %1282 = vrot.lane.b32.xlu0 %v1207, 127
    %v1283 = vpop.permute.xlu0 %1282
    %1284 = vrot.lane.b32.xlu0 %v1208, 127
    %v1285 = vpop.permute.xlu0 %1284
    %v1286 = vsel %vm1278, 24, %v1283
    %v1287 = vsel %vm1279, 24, %v1285
    %v1288 = vmul.f32 %v1210, 0.11427669
    %v1289 = vmul.f32 %v1211, 0.11427669
    %1292 = vrot.lane.b32.xlu0 %v1288, 127
    %v1293 = vpop.permute.xlu0 %1292
    %1294 = vrot.lane.b32.xlu0 %v1289, 127
    %v1295 = vpop.permute.xlu0 %1294
    %v1298 = vadd.f32 %v1214, %v1293
    %v1299 = vadd.f32 %v1215, %v1295
    %v1300 = vrot.slane %v1288, 1
    %v1301 = vrot.slane %v1289, 1
    %v1302 = vsel %vm120, %v1300, %v1301
    %v1305 = vadd.f32 %v1298, %v1302
    %v1306 = vadd.f32 %v1299, %v1301
    %v1307 = vmul.f32 %v1210, -0.11427669
    %v1308 = vmul.f32 %v1211, -0.11427669
    %v1311 = vrot.slane %v1307, 1
    %v1312 = vrot.slane %v1308, 1
    %v1313 = vsel %vm120, %v1311, %v1312
    %1314 = vrot.lane.b32.xlu0 %v1313, 126
    %v1315 = vpop.permute.xlu0 %1314
    %1316 = vrot.lane.b32.xlu0 %v1312, 126
    %v1317 = vpop.permute.xlu0 %1316
    %v1320 = vadd.f32 %v1305, %v1315
    %v1321 = vadd.f32 %v1306, %v1317
    %v1322 = vrot.slane %v1307, 2
    %v1323 = vrot.slane %v1308, 2
    %v1324 = vsel %vm73, %v1322, %v1323
    %1325 = vrot.lane.b32.xlu0 %v1324, 127
    %v1326 = vpop.permute.xlu0 %1325
    %1327 = vrot.lane.b32.xlu0 %v1323, 127
    %v1328 = vpop.permute.xlu0 %1327
    %v1331 = vadd.f32 %v1320, %v1326
    %v1332 = vadd.f32 %v1321, %v1328
    %1333 = vrot.lane.b32.xlu0 %v1253, 126
    %v1334 = vpop.permute.xlu0 %1333
    %1335 = vrot.lane.b32.xlu0 %v1252, 126
    %v1336 = vpop.permute.xlu0 %1335
    %v1339 = vadd.f32 %v1331, %v1334
    %v1340 = vadd.f32 %v1332, %v1336
    %vm1341 = vcmp.gt.f32.partialorder %v1339, %v1280
    %vm1342 = vcmp.gt.f32.partialorder %v1340, %v1281
    %v1343 = vsel %vm1341, %v1339, %v1280
    %v1344 = vsel %vm1342, %v1340, %v1281
    %v1345 = vsel %vm1341, 25, %v1286
    %v1346 = vsel %vm1342, 25, %v1287
    %1347 = vrot.lane.b32.xlu0 %v1236, 126
    %v1348 = vpop.permute.xlu0 %1347
    %1349 = vrot.lane.b32.xlu0 %v1237, 126
    %v1350 = vpop.permute.xlu0 %1349
    %v1353 = vadd.f32 %v1212, %v1348
    %v1354 = vadd.f32 %v1213, %v1350
    %v1355 = vrot.slane %v1214, 1
    %v1356 = vrot.slane %v1215, 1
    %v1357 = vsel %vm120, %v1355, %v1356
    %v1360 = vadd.f32 %v1353, %v1357
    %v1361 = vadd.f32 %v1354, %v1356
    %v1362 = vrot.slane %v1247, 1
    %v1363 = vrot.slane %v1248, 1
    %v1364 = vsel %vm120, %v1362, %v1363
    %1365 = vrot.lane.b32.xlu0 %v1364, 126
    %v1366 = vpop.permute.xlu0 %1365
    %1367 = vrot.lane.b32.xlu0 %v1363, 126
    %v1368 = vpop.permute.xlu0 %1367
    %v1371 = vadd.f32 %v1360, %v1366
    %v1372 = vadd.f32 %v1361, %v1368
    %v1373 = vrot.slane %v1212, 2
    %v1374 = vrot.slane %v1213, 2
    %v1375 = vsel %vm73, %v1373, %v1374
    %v1378 = vadd.f32 %v1371, %v1375
    %v1379 = vadd.f32 %v1372, %v1374
    %v1380 = vadd.f32 %v1378, %v1263
    %v1381 = vadd.f32 %v1379, %v1265
    %vm1382 = vcmp.gt.f32.partialorder %v1380, %v1343
    %vm1383 = vcmp.gt.f32.partialorder %v1381, %v1344
    %v1384 = vsel %vm1382, %v1380, %v1343
    %v1385 = vsel %vm1383, %v1381, %v1344
    %v1386 = vsel %vm1382, 26, %v1345
    %v1387 = vsel %vm1383, 26, %v1346
    %1388 = vrot.lane.b32.xlu0 %v1247, 127
    %v1389 = vpop.permute.xlu0 %1388
    %1390 = vrot.lane.b32.xlu0 %v1248, 127
    %v1391 = vpop.permute.xlu0 %1390
    %v1394 = vadd.f32 %v1307, %v1389
    %v1395 = vadd.f32 %v1308, %v1391
    %1396 = vrot.lane.b32.xlu0 %v1302, 1
    %v1397 = vpop.permute.xlu0 %1396
    %1398 = vrot.lane.b32.xlu0 %v1301, 1
    %v1399 = vpop.permute.xlu0 %1398
    %v1402 = vadd.f32 %v1394, %v1397
    %v1403 = vadd.f32 %v1395, %v1399
    %1404 = vrot.lane.b32.xlu0 %v1313, 127
    %v1405 = vpop.permute.xlu0 %1404
    %1406 = vrot.lane.b32.xlu0 %v1312, 127
    %v1407 = vpop.permute.xlu0 %1406
    %v1410 = vadd.f32 %v1402, %v1405
    %v1411 = vadd.f32 %v1403, %v1407
    %v1412 = vrot.slane %v1214, 2
    %v1413 = vrot.slane %v1215, 2
    %v1414 = vsel %vm73, %v1412, %v1413
    %1415 = vrot.lane.b32.xlu0 %v1414, 1
    %v1416 = vpop.permute.xlu0 %1415
    %1417 = vrot.lane.b32.xlu0 %v1413, 1
    %v1418 = vpop.permute.xlu0 %1417
    %v1421 = vadd.f32 %v1410, %v1416
    %v1422 = vadd.f32 %v1411, %v1418
    %v1423 = vrot.slane %v1288, 2
    %v1424 = vrot.slane %v1289, 2
    %v1425 = vsel %vm73, %v1423, %v1424
    %v1428 = vadd.f32 %v1421, %v1425
    %v1429 = vadd.f32 %v1422, %v1424
    %1432 = vrot.lane.b32.xlu0 %v1384, 1
    %v1433 = vpop.permute.xlu0 %1432
    %1434 = vrot.lane.b32.xlu0 %v1385, 1
    %v1435 = vpop.permute.xlu0 %1434
    %vm1438 = vcmp.gt.f32.partialorder %v1428, %v1433
    %vm1439 = vcmp.gt.f32.partialorder %v1429, %v1435
    %v1440 = vsel %vm1438, %v1428, %v1433
    %v1441 = vsel %vm1439, %v1429, %v1435
    %1442 = vrot.lane.b32.xlu0 %v1386, 1
    %v1443 = vpop.permute.xlu0 %1442
    %1444 = vrot.lane.b32.xlu0 %v1387, 1
    %v1445 = vpop.permute.xlu0 %1444
    %v1446 = vsel %vm1438, 27, %v1443
    %v1447 = vsel %vm1439, 27, %v1445
    %v1448 = vadd.f32 %v1236, %v1389
    %v1449 = vadd.f32 %v1237, %v1391
    %v1450 = vadd.f32 %v1448, %v1348
    %v1451 = vadd.f32 %v1449, %v1350
    %v1452 = vadd.f32 %v1450, %v1375
    %v1453 = vadd.f32 %v1451, %v1374
    %1454 = vrot.lane.b32.xlu0 %v1414, 127
    %v1455 = vpop.permute.xlu0 %1454
    %1456 = vrot.lane.b32.xlu0 %v1413, 127
    %v1457 = vpop.permute.xlu0 %1456
    %v1460 = vadd.f32 %v1452, %v1455
    %v1461 = vadd.f32 %v1453, %v1457
    %1462 = vrot.lane.b32.xlu0 %v1375, 126
    %v1463 = vpop.permute.xlu0 %1462
    %1464 = vrot.lane.b32.xlu0 %v1374, 126
    %v1465 = vpop.permute.xlu0 %1464
    %v1468 = vadd.f32 %v1460, %v1463
    %v1469 = vadd.f32 %v1461, %v1465
    %1472 = vrot.lane.b32.xlu0 %v1440, 127
    %v1473 = vpop.permute.xlu0 %1472
    %1474 = vrot.lane.b32.xlu0 %v1441, 127
    %v1475 = vpop.permute.xlu0 %1474
    %vm1478 = vcmp.gt.f32.partialorder %v1468, %v1473
    %vm1479 = vcmp.gt.f32.partialorder %v1469, %v1475
    %v1480 = vsel %vm1478, %v1468, %v1473
    %v1481 = vsel %vm1479, %v1469, %v1475
    %1482 = vrot.lane.b32.xlu0 %v1446, 127
    %v1483 = vpop.permute.xlu0 %1482
    %1484 = vrot.lane.b32.xlu0 %v1447, 127
    %v1485 = vpop.permute.xlu0 %1484
    %v1486 = vsel %vm1478, 28, %v1483
    %v1487 = vsel %vm1479, 28, %v1485
    %1488 = vrot.lane.b32.xlu0 %v1307, 127
    %v1489 = vpop.permute.xlu0 %1488
    %1490 = vrot.lane.b32.xlu0 %v1308, 127
    %v1491 = vpop.permute.xlu0 %1490
    %v1494 = vadd.f32 %v1247, %v1489
    %v1495 = vadd.f32 %v1248, %v1491
    %v1498 = vadd.f32 %v1494, %v1313
    %v1499 = vadd.f32 %v1495, %v1312
    %1500 = vrot.lane.b32.xlu0 %v1302, 126
    %v1501 = vpop.permute.xlu0 %1500
    %1502 = vrot.lane.b32.xlu0 %v1301, 126
    %v1503 = vpop.permute.xlu0 %1502
    %v1506 = vadd.f32 %v1498, %v1501
    %v1507 = vadd.f32 %v1499, %v1503
    %1508 = vrot.lane.b32.xlu0 %v1425, 127
    %v1509 = vpop.permute.xlu0 %1508
    %1510 = vrot.lane.b32.xlu0 %v1424, 127
    %v1511 = vpop.permute.xlu0 %1510
    %v1514 = vadd.f32 %v1506, %v1509
    %v1515 = vadd.f32 %v1507, %v1511
    %1516 = vrot.lane.b32.xlu0 %v1414, 126
    %v1517 = vpop.permute.xlu0 %1516
    %1518 = vrot.lane.b32.xlu0 %v1413, 126
    %v1519 = vpop.permute.xlu0 %1518
    %v1522 = vadd.f32 %v1514, %v1517
    %v1523 = vadd.f32 %v1515, %v1519
    %vm1524 = vcmp.gt.f32.partialorder %v1522, %v1480
    %vm1525 = vcmp.gt.f32.partialorder %v1523, %v1481
    %v1526 = vsel %vm1524, %v1522, %v1480
    %v1527 = vsel %vm1525, %v1523, %v1481
    %v1528 = vsel %vm1524, 29, %v1486
    %v1529 = vsel %vm1525, 29, %v1487
    %v1530 = vadd.f32 %v1236, %v1229
    %v1531 = vadd.f32 %v1237, %v1231
    %v1534 = vadd.f32 %v1530, %v1364
    %v1535 = vadd.f32 %v1531, %v1363
    %1536 = vrot.lane.b32.xlu0 %v1357, 126
    %v1537 = vpop.permute.xlu0 %1536
    %1538 = vrot.lane.b32.xlu0 %v1356, 126
    %v1539 = vpop.permute.xlu0 %1538
    %v1542 = vadd.f32 %v1534, %v1537
    %v1543 = vadd.f32 %v1535, %v1539
    %v1544 = vadd.f32 %v1542, %v1242
    %v1545 = vadd.f32 %v1543, %v1241
    %v1546 = vadd.f32 %v1544, %v1463
    %v1547 = vadd.f32 %v1545, %v1465
    %vm1548 = vcmp.gt.f32.partialorder %v1546, %v1526
    %vm1549 = vcmp.gt.f32.partialorder %v1547, %v1527
    %v1550 = vsel %vm1548, %v1546, %v1526
    %v1551 = vsel %vm1549, %v1547, %v1527
    %v1552 = vsel %vm1548, 30, %v1528
    %v1553 = vsel %vm1549, 30, %v1529
    %v1554 = vadd.f32 %v1288, %v1219
    %v1555 = vadd.f32 %v1289, %v1221
    %1556 = vrot.lane.b32.xlu0 %v1313, 1
    %v1557 = vpop.permute.xlu0 %1556
    %1558 = vrot.lane.b32.xlu0 %v1312, 1
    %v1559 = vpop.permute.xlu0 %1558
    %v1562 = vadd.f32 %v1554, %v1557
    %v1563 = vadd.f32 %v1555, %v1559
    %1564 = vrot.lane.b32.xlu0 %v1302, 127
    %v1565 = vpop.permute.xlu0 %1564
    %1566 = vrot.lane.b32.xlu0 %v1301, 127
    %v1567 = vpop.permute.xlu0 %1566
    %v1570 = vadd.f32 %v1562, %v1565
    %v1571 = vadd.f32 %v1563, %v1567
    %1572 = vrot.lane.b32.xlu0 %v1253, 1
    %v1573 = vpop.permute.xlu0 %1572
    %1574 = vrot.lane.b32.xlu0 %v1252, 1
    %v1575 = vpop.permute.xlu0 %1574
    %v1578 = vadd.f32 %v1570, %v1573
    %v1579 = vadd.f32 %v1571, %v1575
    %v1582 = vadd.f32 %v1578, %v1324
    %v1583 = vadd.f32 %v1579, %v1323
    %1586 = vrot.lane.b32.xlu0 %v1550, 1
    %v1587 = vpop.permute.xlu0 %1586
    %1588 = vrot.lane.b32.xlu0 %v1551, 1
    %v1589 = vpop.permute.xlu0 %1588
    %vm1592 = vcmp.gt.f32.partialorder %v1582, %v1587
    %vm1593 = vcmp.gt.f32.partialorder %v1583, %v1589
    %v1594 = vsel %vm1592, %v1582, %v1587
    %v1595 = vsel %vm1593, %v1583, %v1589
    %1596 = vrot.lane.b32.xlu0 %v1552, 1
    %v1597 = vpop.permute.xlu0 %1596
    %1598 = vrot.lane.b32.xlu0 %v1553, 1
    %v1599 = vpop.permute.xlu0 %1598
    %v1600 = vsel %vm1592, 31, %v1597
    %v1601 = vsel %vm1593, 31, %v1599
    %vm1602 = vcmp.lt.f32.partialorder %v1594, 0.25
    %vm1603 = vcmp.lt.f32.partialorder %v1595, 0.25
    %v1604 = vsel %vm1602, 8, %v1600
    %v1605 = vsel %vm1603, 8, %v1601
    %1606 = vrot.lane.b32.xlu0 %v1604, 127
    %v1607 = vpop.permute.xlu0 %1606
    %1608 = vrot.lane.b32.xlu0 %v1605, 127
    %v1609 = vpop.permute.xlu0 %1608
    %vm1610 = vcmask 113664
    %v1611 = vsel %vm1610, %v1607, 4294967295
    %v1612 = vsel %vm1610, %v1609, 4294967295
    %vm1613 = vcmp.eq.s32.totalorder %v1611, 0
    %vm1614 = vcmp.eq.s32.totalorder %v1612, 0
    %v1615 = vsel %vm1613, 1, 0
    %v1616 = vsel %vm1614, 1, 0
    %v1617 = vcvt.s32.f32 %v1615
    %v1618 = vcvt.s32.f32 %v1616
    %v1619 = vpack.c.bf16 %v1618, %v1617
    %v1621 = vunpack.c.l.b16 %v1619
    %v1622 = vunpack.c.h.b16 %v1619
    %v1623 = vpack.c.b16 %v1621, %v1621
    %v1624 = vpack.c.b16 %v1622, %v1622
    %1627 = vst [vmem:[#allocation2] sm:$0xf] %v1623
    %1628 = vst [vmem:[#allocation2 + $0x24] sm:$0x7] %v1624
    %vm1629 = vcmp.eq.s32.totalorder %v1611, 1
    %vm1630 = vcmp.eq.s32.totalorder %v1612, 1
    %v1631 = vsel %vm1629, 1, 0
    %v1632 = vsel %vm1630, 1, 0
    %v1633 = vcvt.s32.f32 %v1631
    %v1634 = vcvt.s32.f32 %v1632
    %v1635 = vpack.c.bf16 %v1634, %v1633
    %v1637 = vunpack.c.l.b16 %v1635
    %v1638 = vunpack.c.h.b16 %v1635
    %v1639 = vpack.c.b16 %v1637, %v1637
    %v1640 = vpack.c.b16 %v1638, %v1638
    %1643 = vst [vmem:[#allocation2 + $0x4] sm:$0xf] %v1639
    %1644 = vst [vmem:[#allocation2 + $0x28] sm:$0x7] %v1640
    %vm1645 = vcmp.eq.s32.totalorder %v1611, 2
    %vm1646 = vcmp.eq.s32.totalorder %v1612, 2
    %v1647 = vsel %vm1645, 1, 0
    %v1648 = vsel %vm1646, 1, 0
    %v1649 = vcvt.s32.f32 %v1647
    %v1650 = vcvt.s32.f32 %v1648
    %v1651 = vpack.c.bf16 %v1650, %v1649
    %v1653 = vunpack.c.l.b16 %v1651
    %v1654 = vunpack.c.h.b16 %v1651
    %v1655 = vpack.c.b16 %v1653, %v1653
    %v1656 = vpack.c.b16 %v1654, %v1654
    %1659 = vst [vmem:[#allocation2 + $0x8] sm:$0xf] %v1655
    %1660 = vst [vmem:[#allocation2 + $0x2c] sm:$0x7] %v1656
    %vm1661 = vcmp.eq.s32.totalorder %v1611, 3
    %vm1662 = vcmp.eq.s32.totalorder %v1612, 3
    %v1663 = vsel %vm1661, 1, 0
    %v1664 = vsel %vm1662, 1, 0
    %v1665 = vcvt.s32.f32 %v1663
    %v1666 = vcvt.s32.f32 %v1664
    %v1667 = vpack.c.bf16 %v1666, %v1665
    %v1669 = vunpack.c.l.b16 %v1667
    %v1670 = vunpack.c.h.b16 %v1667
    %v1671 = vpack.c.b16 %v1669, %v1669
    %v1672 = vpack.c.b16 %v1670, %v1670
    %1675 = vst [vmem:[#allocation2 + $0xc] sm:$0xf] %v1671
    %1676 = vst [vmem:[#allocation2 + $0x30] sm:$0x7] %v1672
    %vm1677 = vcmp.eq.s32.totalorder %v1611, 4
    %vm1678 = vcmp.eq.s32.totalorder %v1612, 4
    %v1679 = vsel %vm1677, 1, 0
    %v1680 = vsel %vm1678, 1, 0
    %v1681 = vcvt.s32.f32 %v1679
    %v1682 = vcvt.s32.f32 %v1680
    %v1683 = vpack.c.bf16 %v1682, %v1681
    %v1685 = vunpack.c.l.b16 %v1683
    %v1686 = vunpack.c.h.b16 %v1683
    %v1687 = vpack.c.b16 %v1685, %v1685
    %v1688 = vpack.c.b16 %v1686, %v1686
    %1691 = vst [vmem:[#allocation2 + $0x10] sm:$0xf] %v1687
    %1692 = vst [vmem:[#allocation2 + $0x34] sm:$0x7] %v1688
    %vm1693 = vcmp.eq.s32.totalorder %v1611, 5
    %vm1694 = vcmp.eq.s32.totalorder %v1612, 5
    %v1695 = vsel %vm1693, 1, 0
    %v1696 = vsel %vm1694, 1, 0
    %v1697 = vcvt.s32.f32 %v1695
    %v1698 = vcvt.s32.f32 %v1696
    %v1699 = vpack.c.bf16 %v1698, %v1697
    %v1701 = vunpack.c.l.b16 %v1699
    %v1702 = vunpack.c.h.b16 %v1699
    %v1703 = vpack.c.b16 %v1701, %v1701
    %v1704 = vpack.c.b16 %v1702, %v1702
    %1707 = vst [vmem:[#allocation2 + $0x14] sm:$0xf] %v1703
    %1708 = vst [vmem:[#allocation2 + $0x38] sm:$0x7] %v1704
    %vm1709 = vcmp.eq.s32.totalorder %v1611, 6
    %vm1710 = vcmp.eq.s32.totalorder %v1612, 6
    %v1711 = vsel %vm1709, 1, 0
    %v1712 = vsel %vm1710, 1, 0
    %v1713 = vcvt.s32.f32 %v1711
    %v1714 = vcvt.s32.f32 %v1712
    %v1715 = vpack.c.bf16 %v1714, %v1713
    %v1717 = vunpack.c.l.b16 %v1715
    %v1718 = vunpack.c.h.b16 %v1715
    %v1719 = vpack.c.b16 %v1717, %v1717
    %v1720 = vpack.c.b16 %v1718, %v1718
    %1723 = vst [vmem:[#allocation2 + $0x18] sm:$0xf] %v1719
    %1724 = vst [vmem:[#allocation2 + $0x3c] sm:$0x7] %v1720
    %vm1725 = vcmp.eq.s32.totalorder %v1611, 7
    %vm1726 = vcmp.eq.s32.totalorder %v1612, 7
    %v1727 = vsel %vm1725, 1, 0
    %v1728 = vsel %vm1726, 1, 0
    %v1729 = vcvt.s32.f32 %v1727
    %v1730 = vcvt.s32.f32 %v1728
    %v1731 = vpack.c.bf16 %v1730, %v1729
    %v1733 = vunpack.c.l.b16 %v1731
    %v1734 = vunpack.c.h.b16 %v1731
    %v1735 = vpack.c.b16 %v1733, %v1733
    %v1736 = vpack.c.b16 %v1734, %v1734
    %1739 = vst [vmem:[#allocation2 + $0x1c] sm:$0xf] %v1735
    %1740 = vst [vmem:[#allocation2 + $0x40] sm:$0x7] %v1736
    %vm1741 = vcmp.eq.s32.totalorder %v1611, 8
    %vm1742 = vcmp.eq.s32.totalorder %v1612, 8
    %v1743 = vsel %vm1741, 1, 0
    %v1744 = vsel %vm1742, 1, 0
    %v1745 = vcvt.s32.f32 %v1743
    %v1746 = vcvt.s32.f32 %v1744
    %v1747 = vpack.c.bf16 %v1746, %v1745
    %v1749 = vunpack.c.l.b16 %v1747
    %v1750 = vunpack.c.h.b16 %v1747
    %v1751 = vpack.c.b16 %v1749, %v1749
    %v1752 = vpack.c.b16 %v1750, %v1750
    %1755 = vst [vmem:[#allocation2 + $0x20] sm:$0xf] %v1751
    %1756 = vst [vmem:[#allocation2 + $0x44] sm:$0x7] %v1752
    %s1757 = scalar_lea.vmem [#allocation3], 64
    %v1758 = vld [vmem:[%s1757] sm:$0xff]
    %v1759 = vld [vmem:[%s1757 + $0x8] sm:$0xff]
    %v1760 = vmul.f32 %v1758, 0.125
    %v1761 = vmul.f32 %v1759, 0.125
    %v1762 = vmul.f32 %v1758, 0.25
    %v1763 = vmul.f32 %v1759, 0.25
    %1766 = vrot.lane.b32.xlu0 %v1762, 127
    %v1767 = vpop.permute.xlu0 %1766
    %1768 = vrot.lane.b32.xlu0 %v1763, 127
    %v1769 = vpop.permute.xlu0 %1768
    %v1772 = vadd.f32 %v1760, %v1767
    %v1773 = vadd.f32 %v1761, %v1769
    %1776 = vrot.lane.b32.xlu0 %v1760, 126
    %v1777 = vpop.permute.xlu0 %1776
    %1778 = vrot.lane.b32.xlu0 %v1761, 126
    %v1779 = vpop.permute.xlu0 %1778
    %v1782 = vadd.f32 %v1772, %v1777
    %v1783 = vadd.f32 %v1773, %v1779
    %v1784 = vmul.f32 %v1758, -0.125
    %v1785 = vmul.f32 %v1759, -0.125
    %v1788 = vrot.slane %v1784, 2
    %v1789 = vrot.slane %v1785, 2
    %v1790 = vsel %vm73, %v1788, %v1789
    %v1793 = vadd.f32 %v1782, %v1790
    %v1794 = vadd.f32 %v1783, %v1789
    %v1795 = vmul.f32 %v1758, -0.25
    %v1796 = vmul.f32 %v1759, -0.25
    %v1799 = vrot.slane %v1795, 2
    %v1800 = vrot.slane %v1796, 2
    %v1801 = vsel %vm73, %v1799, %v1800
    %1802 = vrot.lane.b32.xlu0 %v1801, 127
    %v1803 = vpop.permute.xlu0 %1802
    %1804 = vrot.lane.b32.xlu0 %v1800, 127
    %v1805 = vpop.permute.xlu0 %1804
    %v1808 = vadd.f32 %v1793, %v1803
    %v1809 = vadd.f32 %v1794, %v1805
    %1810 = vrot.lane.b32.xlu0 %v1790, 126
    %v1811 = vpop.permute.xlu0 %1810
    %1812 = vrot.lane.b32.xlu0 %v1789, 126
    %v1813 = vpop.permute.xlu0 %1812
    %v1816 = vadd.f32 %v1808, %v1811
    %v1817 = vadd.f32 %v1809, %v1813
    %vm1818 = vcmp.gt.f32.partialorder %v1816, -inf
    %vm1819 = vcmp.gt.f32.partialorder %v1817, -inf
    %v1820 = vsel %vm1818, %v1816, -inf
    %v1821 = vsel %vm1819, %v1817, -inf
    %v1822 = vmul.f32 %v1758, 0.11427669
    %v1823 = vmul.f32 %v1759, 0.11427669
    %1826 = vrot.lane.b32.xlu0 %v1822, 127
    %v1827 = vpop.permute.xlu0 %1826
    %1828 = vrot.lane.b32.xlu0 %v1823, 127
    %v1829 = vpop.permute.xlu0 %1828
    %v1832 = vadd.f32 %v1762, %v1827
    %v1833 = vadd.f32 %v1763, %v1829
    %v1834 = vrot.slane %v1822, 1
    %v1835 = vrot.slane %v1823, 1
    %v1836 = vsel %vm120, %v1834, %v1835
    %v1839 = vadd.f32 %v1832, %v1836
    %v1840 = vadd.f32 %v1833, %v1835
    %v1841 = vmul.f32 %v1758, -0.11427669
    %v1842 = vmul.f32 %v1759, -0.11427669
    %v1845 = vrot.slane %v1841, 1
    %v1846 = vrot.slane %v1842, 1
    %v1847 = vsel %vm120, %v1845, %v1846
    %1848 = vrot.lane.b32.xlu0 %v1847, 126
    %v1849 = vpop.permute.xlu0 %1848
    %1850 = vrot.lane.b32.xlu0 %v1846, 126
    %v1851 = vpop.permute.xlu0 %1850
    %v1854 = vadd.f32 %v1839, %v1849
    %v1855 = vadd.f32 %v1840, %v1851
    %v1856 = vrot.slane %v1841, 2
    %v1857 = vrot.slane %v1842, 2
    %v1858 = vsel %vm73, %v1856, %v1857
    %1859 = vrot.lane.b32.xlu0 %v1858, 127
    %v1860 = vpop.permute.xlu0 %1859
    %1861 = vrot.lane.b32.xlu0 %v1857, 127
    %v1862 = vpop.permute.xlu0 %1861
    %v1865 = vadd.f32 %v1854, %v1860
    %v1866 = vadd.f32 %v1855, %v1862
    %1867 = vrot.lane.b32.xlu0 %v1801, 126
    %v1868 = vpop.permute.xlu0 %1867
    %1869 = vrot.lane.b32.xlu0 %v1800, 126
    %v1870 = vpop.permute.xlu0 %1869
    %v1873 = vadd.f32 %v1865, %v1868
    %v1874 = vadd.f32 %v1866, %v1870
    %vm1875 = vcmp.gt.f32.partialorder %v1873, %v1820
    %vm1876 = vcmp.gt.f32.partialorder %v1874, %v1821
    %v1877 = vsel %vm1875, %v1873, %v1820
    %v1878 = vsel %vm1876, %v1874, %v1821
    %v1879 = vsel %vm1875, 1, 0
    %v1880 = vsel %vm1876, 1, 0
    %1881 = vrot.lane.b32.xlu0 %v1784, 126
    %v1882 = vpop.permute.xlu0 %1881
    %1883 = vrot.lane.b32.xlu0 %v1785, 126
    %v1884 = vpop.permute.xlu0 %1883
    %v1887 = vadd.f32 %v1760, %v1882
    %v1888 = vadd.f32 %v1761, %v1884
    %v1889 = vrot.slane %v1762, 1
    %v1890 = vrot.slane %v1763, 1
    %v1891 = vsel %vm120, %v1889, %v1890
    %v1894 = vadd.f32 %v1887, %v1891
    %v1895 = vadd.f32 %v1888, %v1890
    %v1896 = vrot.slane %v1795, 1
    %v1897 = vrot.slane %v1796, 1
    %v1898 = vsel %vm120, %v1896, %v1897
    %1899 = vrot.lane.b32.xlu0 %v1898, 126
    %v1900 = vpop.permute.xlu0 %1899
    %1901 = vrot.lane.b32.xlu0 %v1897, 126
    %v1902 = vpop.permute.xlu0 %1901
    %v1905 = vadd.f32 %v1894, %v1900
    %v1906 = vadd.f32 %v1895, %v1902
    %v1907 = vrot.slane %v1760, 2
    %v1908 = vrot.slane %v1761, 2
    %v1909 = vsel %vm73, %v1907, %v1908
    %v1912 = vadd.f32 %v1905, %v1909
    %v1913 = vadd.f32 %v1906, %v1908
    %v1914 = vadd.f32 %v1912, %v1811
    %v1915 = vadd.f32 %v1913, %v1813
    %vm1916 = vcmp.gt.f32.partialorder %v1914, %v1877
    %vm1917 = vcmp.gt.f32.partialorder %v1915, %v1878
    %v1918 = vsel %vm1916, %v1914, %v1877
    %v1919 = vsel %vm1917, %v1915, %v1878
    %v1920 = vsel %vm1916, 2, %v1879
    %v1921 = vsel %vm1917, 2, %v1880
    %1922 = vrot.lane.b32.xlu0 %v1795, 127
    %v1923 = vpop.permute.xlu0 %1922
    %1924 = vrot.lane.b32.xlu0 %v1796, 127
    %v1925 = vpop.permute.xlu0 %1924
    %v1928 = vadd.f32 %v1841, %v1923
    %v1929 = vadd.f32 %v1842, %v1925
    %1930 = vrot.lane.b32.xlu0 %v1836, 1
    %v1931 = vpop.permute.xlu0 %1930
    %1932 = vrot.lane.b32.xlu0 %v1835, 1
    %v1933 = vpop.permute.xlu0 %1932
    %v1936 = vadd.f32 %v1928, %v1931
    %v1937 = vadd.f32 %v1929, %v1933
    %1938 = vrot.lane.b32.xlu0 %v1847, 127
    %v1939 = vpop.permute.xlu0 %1938
    %1940 = vrot.lane.b32.xlu0 %v1846, 127
    %v1941 = vpop.permute.xlu0 %1940
    %v1944 = vadd.f32 %v1936, %v1939
    %v1945 = vadd.f32 %v1937, %v1941
    %v1946 = vrot.slane %v1762, 2
    %v1947 = vrot.slane %v1763, 2
    %v1948 = vsel %vm73, %v1946, %v1947
    %1949 = vrot.lane.b32.xlu0 %v1948, 1
    %v1950 = vpop.permute.xlu0 %1949
    %1951 = vrot.lane.b32.xlu0 %v1947, 1
    %v1952 = vpop.permute.xlu0 %1951
    %v1955 = vadd.f32 %v1944, %v1950
    %v1956 = vadd.f32 %v1945, %v1952
    %v1957 = vrot.slane %v1822, 2
    %v1958 = vrot.slane %v1823, 2
    %v1959 = vsel %vm73, %v1957, %v1958
    %v1962 = vadd.f32 %v1955, %v1959
    %v1963 = vadd.f32 %v1956, %v1958
    %1966 = vrot.lane.b32.xlu0 %v1918, 1
    %v1967 = vpop.permute.xlu0 %1966
    %1968 = vrot.lane.b32.xlu0 %v1919, 1
    %v1969 = vpop.permute.xlu0 %1968
    %vm1972 = vcmp.gt.f32.partialorder %v1962, %v1967
    %vm1973 = vcmp.gt.f32.partialorder %v1963, %v1969
    %v1974 = vsel %vm1972, %v1962, %v1967
    %v1975 = vsel %vm1973, %v1963, %v1969
    %1976 = vrot.lane.b32.xlu0 %v1920, 1
    %v1977 = vpop.permute.xlu0 %1976
    %1978 = vrot.lane.b32.xlu0 %v1921, 1
    %v1979 = vpop.permute.xlu0 %1978
    %v1980 = vsel %vm1972, 3, %v1977
    %v1981 = vsel %vm1973, 3, %v1979
    %v1982 = vadd.f32 %v1784, %v1923
    %v1983 = vadd.f32 %v1785, %v1925
    %v1984 = vadd.f32 %v1982, %v1882
    %v1985 = vadd.f32 %v1983, %v1884
    %v1986 = vadd.f32 %v1984, %v1909
    %v1987 = vadd.f32 %v1985, %v1908
    %1988 = vrot.lane.b32.xlu0 %v1948, 127
    %v1989 = vpop.permute.xlu0 %1988
    %1990 = vrot.lane.b32.xlu0 %v1947, 127
    %v1991 = vpop.permute.xlu0 %1990
    %v1994 = vadd.f32 %v1986, %v1989
    %v1995 = vadd.f32 %v1987, %v1991
    %1996 = vrot.lane.b32.xlu0 %v1909, 126
    %v1997 = vpop.permute.xlu0 %1996
    %1998 = vrot.lane.b32.xlu0 %v1908, 126
    %v1999 = vpop.permute.xlu0 %1998
    %v2002 = vadd.f32 %v1994, %v1997
    %v2003 = vadd.f32 %v1995, %v1999
    %2006 = vrot.lane.b32.xlu0 %v1974, 127
    %v2007 = vpop.permute.xlu0 %2006
    %2008 = vrot.lane.b32.xlu0 %v1975, 127
    %v2009 = vpop.permute.xlu0 %2008
    %vm2012 = vcmp.gt.f32.partialorder %v2002, %v2007
    %vm2013 = vcmp.gt.f32.partialorder %v2003, %v2009
    %v2014 = vsel %vm2012, %v2002, %v2007
    %v2015 = vsel %vm2013, %v2003, %v2009
    %2016 = vrot.lane.b32.xlu0 %v1980, 127
    %v2017 = vpop.permute.xlu0 %2016
    %2018 = vrot.lane.b32.xlu0 %v1981, 127
    %v2019 = vpop.permute.xlu0 %2018
    %v2020 = vsel %vm2012, 4, %v2017
    %v2021 = vsel %vm2013, 4, %v2019
    %2022 = vrot.lane.b32.xlu0 %v1841, 127
    %v2023 = vpop.permute.xlu0 %2022
    %2024 = vrot.lane.b32.xlu0 %v1842, 127
    %v2025 = vpop.permute.xlu0 %2024
    %v2028 = vadd.f32 %v1795, %v2023
    %v2029 = vadd.f32 %v1796, %v2025
    %v2032 = vadd.f32 %v2028, %v1847
    %v2033 = vadd.f32 %v2029, %v1846
    %2034 = vrot.lane.b32.xlu0 %v1836, 126
    %v2035 = vpop.permute.xlu0 %2034
    %2036 = vrot.lane.b32.xlu0 %v1835, 126
    %v2037 = vpop.permute.xlu0 %2036
    %v2040 = vadd.f32 %v2032, %v2035
    %v2041 = vadd.f32 %v2033, %v2037
    %2042 = vrot.lane.b32.xlu0 %v1959, 127
    %v2043 = vpop.permute.xlu0 %2042
    %2044 = vrot.lane.b32.xlu0 %v1958, 127
    %v2045 = vpop.permute.xlu0 %2044
    %v2048 = vadd.f32 %v2040, %v2043
    %v2049 = vadd.f32 %v2041, %v2045
    %2050 = vrot.lane.b32.xlu0 %v1948, 126
    %v2051 = vpop.permute.xlu0 %2050
    %2052 = vrot.lane.b32.xlu0 %v1947, 126
    %v2053 = vpop.permute.xlu0 %2052
    %v2056 = vadd.f32 %v2048, %v2051
    %v2057 = vadd.f32 %v2049, %v2053
    %vm2058 = vcmp.gt.f32.partialorder %v2056, %v2014
    %vm2059 = vcmp.gt.f32.partialorder %v2057, %v2015
    %v2060 = vsel %vm2058, %v2056, %v2014
    %v2061 = vsel %vm2059, %v2057, %v2015
    %v2062 = vsel %vm2058, 5, %v2020
    %v2063 = vsel %vm2059, 5, %v2021
    %v2064 = vadd.f32 %v1784, %v1777
    %v2065 = vadd.f32 %v1785, %v1779
    %v2068 = vadd.f32 %v2064, %v1898
    %v2069 = vadd.f32 %v2065, %v1897
    %2070 = vrot.lane.b32.xlu0 %v1891, 126
    %v2071 = vpop.permute.xlu0 %2070
    %2072 = vrot.lane.b32.xlu0 %v1890, 126
    %v2073 = vpop.permute.xlu0 %2072
    %v2076 = vadd.f32 %v2068, %v2071
    %v2077 = vadd.f32 %v2069, %v2073
    %v2078 = vadd.f32 %v2076, %v1790
    %v2079 = vadd.f32 %v2077, %v1789
    %v2080 = vadd.f32 %v2078, %v1997
    %v2081 = vadd.f32 %v2079, %v1999
    %vm2082 = vcmp.gt.f32.partialorder %v2080, %v2060
    %vm2083 = vcmp.gt.f32.partialorder %v2081, %v2061
    %v2084 = vsel %vm2082, %v2080, %v2060
    %v2085 = vsel %vm2083, %v2081, %v2061
    %v2086 = vsel %vm2082, 6, %v2062
    %v2087 = vsel %vm2083, 6, %v2063
    %v2088 = vadd.f32 %v1822, %v1767
    %v2089 = vadd.f32 %v1823, %v1769
    %2090 = vrot.lane.b32.xlu0 %v1847, 1
    %v2091 = vpop.permute.xlu0 %2090
    %2092 = vrot.lane.b32.xlu0 %v1846, 1
    %v2093 = vpop.permute.xlu0 %2092
    %v2096 = vadd.f32 %v2088, %v2091
    %v2097 = vadd.f32 %v2089, %v2093
    %2098 = vrot.lane.b32.xlu0 %v1836, 127
    %v2099 = vpop.permute.xlu0 %2098
    %2100 = vrot.lane.b32.xlu0 %v1835, 127
    %v2101 = vpop.permute.xlu0 %2100
    %v2104 = vadd.f32 %v2096, %v2099
    %v2105 = vadd.f32 %v2097, %v2101
    %2106 = vrot.lane.b32.xlu0 %v1801, 1
    %v2107 = vpop.permute.xlu0 %2106
    %2108 = vrot.lane.b32.xlu0 %v1800, 1
    %v2109 = vpop.permute.xlu0 %2108
    %v2112 = vadd.f32 %v2104, %v2107
    %v2113 = vadd.f32 %v2105, %v2109
    %v2116 = vadd.f32 %v2112, %v1858
    %v2117 = vadd.f32 %v2113, %v1857
    %2120 = vrot.lane.b32.xlu0 %v2084, 1
    %v2121 = vpop.permute.xlu0 %2120
    %2122 = vrot.lane.b32.xlu0 %v2085, 1
    %v2123 = vpop.permute.xlu0 %2122
    %vm2126 = vcmp.gt.f32.partialorder %v2116, %v2121
    %vm2127 = vcmp.gt.f32.partialorder %v2117, %v2123
    %v2128 = vsel %vm2126, %v2116, %v2121
    %v2129 = vsel %vm2127, %v2117, %v2123
    %2130 = vrot.lane.b32.xlu0 %v2086, 1
    %v2131 = vpop.permute.xlu0 %2130
    %2132 = vrot.lane.b32.xlu0 %v2087, 1
    %v2133 = vpop.permute.xlu0 %2132
    %v2134 = vsel %vm2126, 7, %v2131
    %v2135 = vsel %vm2127, 7, %v2133
    %s2136 = scalar_lea.vmem [#allocation3], 80
    %v2137 = vld [vmem:[%s2136] sm:$0xff]
    %v2138 = vld [vmem:[%s2136 + $0x8] sm:$0xff]
    %v2139 = vmul.f32 %v2137, 0.125
    %v2140 = vmul.f32 %v2138, 0.125
    %v2141 = vmul.f32 %v2137, 0.25
    %v2142 = vmul.f32 %v2138, 0.25
    %2145 = vrot.lane.b32.xlu0 %v2141, 127
    %v2146 = vpop.permute.xlu0 %2145
    %2147 = vrot.lane.b32.xlu0 %v2142, 127
    %v2148 = vpop.permute.xlu0 %2147
    %v2151 = vadd.f32 %v2139, %v2146
    %v2152 = vadd.f32 %v2140, %v2148
    %2155 = vrot.lane.b32.xlu0 %v2139, 126
    %v2156 = vpop.permute.xlu0 %2155
    %2157 = vrot.lane.b32.xlu0 %v2140, 126
    %v2158 = vpop.permute.xlu0 %2157
    %v2161 = vadd.f32 %v2151, %v2156
    %v2162 = vadd.f32 %v2152, %v2158
    %v2163 = vmul.f32 %v2137, -0.125
    %v2164 = vmul.f32 %v2138, -0.125
    %v2167 = vrot.slane %v2163, 2
    %v2168 = vrot.slane %v2164, 2
    %v2169 = vsel %vm73, %v2167, %v2168
    %v2172 = vadd.f32 %v2161, %v2169
    %v2173 = vadd.f32 %v2162, %v2168
    %v2174 = vmul.f32 %v2137, -0.25
    %v2175 = vmul.f32 %v2138, -0.25
    %v2178 = vrot.slane %v2174, 2
    %v2179 = vrot.slane %v2175, 2
    %v2180 = vsel %vm73, %v2178, %v2179
    %2181 = vrot.lane.b32.xlu0 %v2180, 127
    %v2182 = vpop.permute.xlu0 %2181
    %2183 = vrot.lane.b32.xlu0 %v2179, 127
    %v2184 = vpop.permute.xlu0 %2183
    %v2187 = vadd.f32 %v2172, %v2182
    %v2188 = vadd.f32 %v2173, %v2184
    %2189 = vrot.lane.b32.xlu0 %v2169, 126
    %v2190 = vpop.permute.xlu0 %2189
    %2191 = vrot.lane.b32.xlu0 %v2168, 126
    %v2192 = vpop.permute.xlu0 %2191
    %v2195 = vadd.f32 %v2187, %v2190
    %v2196 = vadd.f32 %v2188, %v2192
    %2199 = vrot.lane.b32.xlu0 %v2128, 127
    %v2200 = vpop.permute.xlu0 %2199
    %2201 = vrot.lane.b32.xlu0 %v2129, 127
    %v2202 = vpop.permute.xlu0 %2201
    %vm2205 = vcmp.gt.f32.partialorder %v2195, %v2200
    %vm2206 = vcmp.gt.f32.partialorder %v2196, %v2202
    %v2207 = vsel %vm2205, %v2195, %v2200
    %v2208 = vsel %vm2206, %v2196, %v2202
    %2209 = vrot.lane.b32.xlu0 %v2134, 127
    %v2210 = vpop.permute.xlu0 %2209
    %2211 = vrot.lane.b32.xlu0 %v2135, 127
    %v2212 = vpop.permute.xlu0 %2211
    %v2213 = vsel %vm2205, 8, %v2210
    %v2214 = vsel %vm2206, 8, %v2212
    %v2215 = vmul.f32 %v2137, 0.11427669
    %v2216 = vmul.f32 %v2138, 0.11427669
    %2219 = vrot.lane.b32.xlu0 %v2215, 127
    %v2220 = vpop.permute.xlu0 %2219
    %2221 = vrot.lane.b32.xlu0 %v2216, 127
    %v2222 = vpop.permute.xlu0 %2221
    %v2225 = vadd.f32 %v2141, %v2220
    %v2226 = vadd.f32 %v2142, %v2222
    %v2227 = vrot.slane %v2215, 1
    %v2228 = vrot.slane %v2216, 1
    %v2229 = vsel %vm120, %v2227, %v2228
    %v2232 = vadd.f32 %v2225, %v2229
    %v2233 = vadd.f32 %v2226, %v2228
    %v2234 = vmul.f32 %v2137, -0.11427669
    %v2235 = vmul.f32 %v2138, -0.11427669
    %v2238 = vrot.slane %v2234, 1
    %v2239 = vrot.slane %v2235, 1
    %v2240 = vsel %vm120, %v2238, %v2239
    %2241 = vrot.lane.b32.xlu0 %v2240, 126
    %v2242 = vpop.permute.xlu0 %2241
    %2243 = vrot.lane.b32.xlu0 %v2239, 126
    %v2244 = vpop.permute.xlu0 %2243
    %v2247 = vadd.f32 %v2232, %v2242
    %v2248 = vadd.f32 %v2233, %v2244
    %v2249 = vrot.slane %v2234, 2
    %v2250 = vrot.slane %v2235, 2
    %v2251 = vsel %vm73, %v2249, %v2250
    %2252 = vrot.lane.b32.xlu0 %v2251, 127
    %v2253 = vpop.permute.xlu0 %2252
    %2254 = vrot.lane.b32.xlu0 %v2250, 127
    %v2255 = vpop.permute.xlu0 %2254
    %v2258 = vadd.f32 %v2247, %v2253
    %v2259 = vadd.f32 %v2248, %v2255
    %2260 = vrot.lane.b32.xlu0 %v2180, 126
    %v2261 = vpop.permute.xlu0 %2260
    %2262 = vrot.lane.b32.xlu0 %v2179, 126
    %v2263 = vpop.permute.xlu0 %2262
    %v2266 = vadd.f32 %v2258, %v2261
    %v2267 = vadd.f32 %v2259, %v2263
    %vm2268 = vcmp.gt.f32.partialorder %v2266, %v2207
    %vm2269 = vcmp.gt.f32.partialorder %v2267, %v2208
    %v2270 = vsel %vm2268, %v2266, %v2207
    %v2271 = vsel %vm2269, %v2267, %v2208
    %v2272 = vsel %vm2268, 9, %v2213
    %v2273 = vsel %vm2269, 9, %v2214
    %2274 = vrot.lane.b32.xlu0 %v2163, 126
    %v2275 = vpop.permute.xlu0 %2274
    %2276 = vrot.lane.b32.xlu0 %v2164, 126
    %v2277 = vpop.permute.xlu0 %2276
    %v2280 = vadd.f32 %v2139, %v2275
    %v2281 = vadd.f32 %v2140, %v2277
    %v2282 = vrot.slane %v2141, 1
    %v2283 = vrot.slane %v2142, 1
    %v2284 = vsel %vm120, %v2282, %v2283
    %v2287 = vadd.f32 %v2280, %v2284
    %v2288 = vadd.f32 %v2281, %v2283
    %v2289 = vrot.slane %v2174, 1
    %v2290 = vrot.slane %v2175, 1
    %v2291 = vsel %vm120, %v2289, %v2290
    %2292 = vrot.lane.b32.xlu0 %v2291, 126
    %v2293 = vpop.permute.xlu0 %2292
    %2294 = vrot.lane.b32.xlu0 %v2290, 126
    %v2295 = vpop.permute.xlu0 %2294
    %v2298 = vadd.f32 %v2287, %v2293
    %v2299 = vadd.f32 %v2288, %v2295
    %v2300 = vrot.slane %v2139, 2
    %v2301 = vrot.slane %v2140, 2
    %v2302 = vsel %vm73, %v2300, %v2301
    %v2305 = vadd.f32 %v2298, %v2302
    %v2306 = vadd.f32 %v2299, %v2301
    %v2307 = vadd.f32 %v2305, %v2190
    %v2308 = vadd.f32 %v2306, %v2192
    %vm2309 = vcmp.gt.f32.partialorder %v2307, %v2270
    %vm2310 = vcmp.gt.f32.partialorder %v2308, %v2271
    %v2311 = vsel %vm2309, %v2307, %v2270
    %v2312 = vsel %vm2310, %v2308, %v2271
    %v2313 = vsel %vm2309, 10, %v2272
    %v2314 = vsel %vm2310, 10, %v2273
    %2315 = vrot.lane.b32.xlu0 %v2174, 127
    %v2316 = vpop.permute.xlu0 %2315
    %2317 = vrot.lane.b32.xlu0 %v2175, 127
    %v2318 = vpop.permute.xlu0 %2317
    %v2321 = vadd.f32 %v2234, %v2316
    %v2322 = vadd.f32 %v2235, %v2318
    %2323 = vrot.lane.b32.xlu0 %v2229, 1
    %v2324 = vpop.permute.xlu0 %2323
    %2325 = vrot.lane.b32.xlu0 %v2228, 1
    %v2326 = vpop.permute.xlu0 %2325
    %v2329 = vadd.f32 %v2321, %v2324
    %v2330 = vadd.f32 %v2322, %v2326
    %2331 = vrot.lane.b32.xlu0 %v2240, 127
    %v2332 = vpop.permute.xlu0 %2331
    %2333 = vrot.lane.b32.xlu0 %v2239, 127
    %v2334 = vpop.permute.xlu0 %2333
    %v2337 = vadd.f32 %v2329, %v2332
    %v2338 = vadd.f32 %v2330, %v2334
    %v2339 = vrot.slane %v2141, 2
    %v2340 = vrot.slane %v2142, 2
    %v2341 = vsel %vm73, %v2339, %v2340
    %2342 = vrot.lane.b32.xlu0 %v2341, 1
    %v2343 = vpop.permute.xlu0 %2342
    %2344 = vrot.lane.b32.xlu0 %v2340, 1
    %v2345 = vpop.permute.xlu0 %2344
    %v2348 = vadd.f32 %v2337, %v2343
    %v2349 = vadd.f32 %v2338, %v2345
    %v2350 = vrot.slane %v2215, 2
    %v2351 = vrot.slane %v2216, 2
    %v2352 = vsel %vm73, %v2350, %v2351
    %v2355 = vadd.f32 %v2348, %v2352
    %v2356 = vadd.f32 %v2349, %v2351
    %2359 = vrot.lane.b32.xlu0 %v2311, 1
    %v2360 = vpop.permute.xlu0 %2359
    %2361 = vrot.lane.b32.xlu0 %v2312, 1
    %v2362 = vpop.permute.xlu0 %2361
    %vm2365 = vcmp.gt.f32.partialorder %v2355, %v2360
    %vm2366 = vcmp.gt.f32.partialorder %v2356, %v2362
    %v2367 = vsel %vm2365, %v2355, %v2360
    %v2368 = vsel %vm2366, %v2356, %v2362
    %2369 = vrot.lane.b32.xlu0 %v2313, 1
    %v2370 = vpop.permute.xlu0 %2369
    %2371 = vrot.lane.b32.xlu0 %v2314, 1
    %v2372 = vpop.permute.xlu0 %2371
    %v2373 = vsel %vm2365, 11, %v2370
    %v2374 = vsel %vm2366, 11, %v2372
    %v2375 = vadd.f32 %v2163, %v2316
    %v2376 = vadd.f32 %v2164, %v2318
    %v2377 = vadd.f32 %v2375, %v2275
    %v2378 = vadd.f32 %v2376, %v2277
    %v2379 = vadd.f32 %v2377, %v2302
    %v2380 = vadd.f32 %v2378, %v2301
    %2381 = vrot.lane.b32.xlu0 %v2341, 127
    %v2382 = vpop.permute.xlu0 %2381
    %2383 = vrot.lane.b32.xlu0 %v2340, 127
    %v2384 = vpop.permute.xlu0 %2383
    %v2387 = vadd.f32 %v2379, %v2382
    %v2388 = vadd.f32 %v2380, %v2384
    %2389 = vrot.lane.b32.xlu0 %v2302, 126
    %v2390 = vpop.permute.xlu0 %2389
    %2391 = vrot.lane.b32.xlu0 %v2301, 126
    %v2392 = vpop.permute.xlu0 %2391
    %v2395 = vadd.f32 %v2387, %v2390
    %v2396 = vadd.f32 %v2388, %v2392
    %2399 = vrot.lane.b32.xlu0 %v2367, 127
    %v2400 = vpop.permute.xlu0 %2399
    %2401 = vrot.lane.b32.xlu0 %v2368, 127
    %v2402 = vpop.permute.xlu0 %2401
    %vm2405 = vcmp.gt.f32.partialorder %v2395, %v2400
    %vm2406 = vcmp.gt.f32.partialorder %v2396, %v2402
    %v2407 = vsel %vm2405, %v2395, %v2400
    %v2408 = vsel %vm2406, %v2396, %v2402
    %2409 = vrot.lane.b32.xlu0 %v2373, 127
    %v2410 = vpop.permute.xlu0 %2409
    %2411 = vrot.lane.b32.xlu0 %v2374, 127
    %v2412 = vpop.permute.xlu0 %2411
    %v2413 = vsel %vm2405, 12, %v2410
    %v2414 = vsel %vm2406, 12, %v2412
    %2415 = vrot.lane.b32.xlu0 %v2234, 127
    %v2416 = vpop.permute.xlu0 %2415
    %2417 = vrot.lane.b32.xlu0 %v2235, 127
    %v2418 = vpop.permute.xlu0 %2417
    %v2421 = vadd.f32 %v2174, %v2416
    %v2422 = vadd.f32 %v2175, %v2418
    %v2425 = vadd.f32 %v2421, %v2240
    %v2426 = vadd.f32 %v2422, %v2239
    %2427 = vrot.lane.b32.xlu0 %v2229, 126
    %v2428 = vpop.permute.xlu0 %2427
    %2429 = vrot.lane.b32.xlu0 %v2228, 126
    %v2430 = vpop.permute.xlu0 %2429
    %v2433 = vadd.f32 %v2425, %v2428
    %v2434 = vadd.f32 %v2426, %v2430
    %2435 = vrot.lane.b32.xlu0 %v2352, 127
    %v2436 = vpop.permute.xlu0 %2435
    %2437 = vrot.lane.b32.xlu0 %v2351, 127
    %v2438 = vpop.permute.xlu0 %2437
    %v2441 = vadd.f32 %v2433, %v2436
    %v2442 = vadd.f32 %v2434, %v2438
    %2443 = vrot.lane.b32.xlu0 %v2341, 126
    %v2444 = vpop.permute.xlu0 %2443
    %2445 = vrot.lane.b32.xlu0 %v2340, 126
    %v2446 = vpop.permute.xlu0 %2445
    %v2449 = vadd.f32 %v2441, %v2444
    %v2450 = vadd.f32 %v2442, %v2446
    %vm2451 = vcmp.gt.f32.partialorder %v2449, %v2407
    %vm2452 = vcmp.gt.f32.partialorder %v2450, %v2408
    %v2453 = vsel %vm2451, %v2449, %v2407
    %v2454 = vsel %vm2452, %v2450, %v2408
    %v2455 = vsel %vm2451, 13, %v2413
    %v2456 = vsel %vm2452, 13, %v2414
    %v2457 = vadd.f32 %v2163, %v2156
    %v2458 = vadd.f32 %v2164, %v2158
    %v2461 = vadd.f32 %v2457, %v2291
    %v2462 = vadd.f32 %v2458, %v2290
    %2463 = vrot.lane.b32.xlu0 %v2284, 126
    %v2464 = vpop.permute.xlu0 %2463
    %2465 = vrot.lane.b32.xlu0 %v2283, 126
    %v2466 = vpop.permute.xlu0 %2465
    %v2469 = vadd.f32 %v2461, %v2464
    %v2470 = vadd.f32 %v2462, %v2466
    %v2471 = vadd.f32 %v2469, %v2169
    %v2472 = vadd.f32 %v2470, %v2168
    %v2473 = vadd.f32 %v2471, %v2390
    %v2474 = vadd.f32 %v2472, %v2392
    %vm2475 = vcmp.gt.f32.partialorder %v2473, %v2453
    %vm2476 = vcmp.gt.f32.partialorder %v2474, %v2454
    %v2477 = vsel %vm2475, %v2473, %v2453
    %v2478 = vsel %vm2476, %v2474, %v2454
    %v2479 = vsel %vm2475, 14, %v2455
    %v2480 = vsel %vm2476, 14, %v2456
    %v2481 = vadd.f32 %v2215, %v2146
    %v2482 = vadd.f32 %v2216, %v2148
    %2483 = vrot.lane.b32.xlu0 %v2240, 1
    %v2484 = vpop.permute.xlu0 %2483
    %2485 = vrot.lane.b32.xlu0 %v2239, 1
    %v2486 = vpop.permute.xlu0 %2485
    %v2489 = vadd.f32 %v2481, %v2484
    %v2490 = vadd.f32 %v2482, %v2486
    %2491 = vrot.lane.b32.xlu0 %v2229, 127
    %v2492 = vpop.permute.xlu0 %2491
    %2493 = vrot.lane.b32.xlu0 %v2228, 127
    %v2494 = vpop.permute.xlu0 %2493
    %v2497 = vadd.f32 %v2489, %v2492
    %v2498 = vadd.f32 %v2490, %v2494
    %2499 = vrot.lane.b32.xlu0 %v2180, 1
    %v2500 = vpop.permute.xlu0 %2499
    %2501 = vrot.lane.b32.xlu0 %v2179, 1
    %v2502 = vpop.permute.xlu0 %2501
    %v2505 = vadd.f32 %v2497, %v2500
    %v2506 = vadd.f32 %v2498, %v2502
    %v2509 = vadd.f32 %v2505, %v2251
    %v2510 = vadd.f32 %v2506, %v2250
    %2513 = vrot.lane.b32.xlu0 %v2477, 1
    %v2514 = vpop.permute.xlu0 %2513
    %2515 = vrot.lane.b32.xlu0 %v2478, 1
    %v2516 = vpop.permute.xlu0 %2515
    %vm2519 = vcmp.gt.f32.partialorder %v2509, %v2514
    %vm2520 = vcmp.gt.f32.partialorder %v2510, %v2516
    %v2521 = vsel %vm2519, %v2509, %v2514
    %v2522 = vsel %vm2520, %v2510, %v2516
    %2523 = vrot.lane.b32.xlu0 %v2479, 1
    %v2524 = vpop.permute.xlu0 %2523
    %2525 = vrot.lane.b32.xlu0 %v2480, 1
    %v2526 = vpop.permute.xlu0 %2525
    %v2527 = vsel %vm2519, 15, %v2524
    %v2528 = vsel %vm2520, 15, %v2526
    %s2529 = scalar_lea.vmem [#allocation3], 96
    %v2530 = vld [vmem:[%s2529] sm:$0xff]
    %v2531 = vld [vmem:[%s2529 + $0x8] sm:$0xff]
    %v2532 = vmul.f32 %v2530, 0.125
    %v2533 = vmul.f32 %v2531, 0.125
    %v2534 = vmul.f32 %v2530, 0.25
    %v2535 = vmul.f32 %v2531, 0.25
    %2538 = vrot.lane.b32.xlu0 %v2534, 127
    %v2539 = vpop.permute.xlu0 %2538
    %2540 = vrot.lane.b32.xlu0 %v2535, 127
    %v2541 = vpop.permute.xlu0 %2540
    %v2544 = vadd.f32 %v2532, %v2539
    %v2545 = vadd.f32 %v2533, %v2541
    %2548 = vrot.lane.b32.xlu0 %v2532, 126
    %v2549 = vpop.permute.xlu0 %2548
    %2550 = vrot.lane.b32.xlu0 %v2533, 126
    %v2551 = vpop.permute.xlu0 %2550
    %v2554 = vadd.f32 %v2544, %v2549
    %v2555 = vadd.f32 %v2545, %v2551
    %v2556 = vmul.f32 %v2530, -0.125
    %v2557 = vmul.f32 %v2531, -0.125
    %v2560 = vrot.slane %v2556, 2
    %v2561 = vrot.slane %v2557, 2
    %v2562 = vsel %vm73, %v2560, %v2561
    %v2565 = vadd.f32 %v2554, %v2562
    %v2566 = vadd.f32 %v2555, %v2561
    %v2567 = vmul.f32 %v2530, -0.25
    %v2568 = vmul.f32 %v2531, -0.25
    %v2571 = vrot.slane %v2567, 2
    %v2572 = vrot.slane %v2568, 2
    %v2573 = vsel %vm73, %v2571, %v2572
    %2574 = vrot.lane.b32.xlu0 %v2573, 127
    %v2575 = vpop.permute.xlu0 %2574
    %2576 = vrot.lane.b32.xlu0 %v2572, 127
    %v2577 = vpop.permute.xlu0 %2576
    %v2580 = vadd.f32 %v2565, %v2575
    %v2581 = vadd.f32 %v2566, %v2577
    %2582 = vrot.lane.b32.xlu0 %v2562, 126
    %v2583 = vpop.permute.xlu0 %2582
    %2584 = vrot.lane.b32.xlu0 %v2561, 126
    %v2585 = vpop.permute.xlu0 %2584
    %v2588 = vadd.f32 %v2580, %v2583
    %v2589 = vadd.f32 %v2581, %v2585
    %2592 = vrot.lane.b32.xlu0 %v2521, 127
    %v2593 = vpop.permute.xlu0 %2592
    %2594 = vrot.lane.b32.xlu0 %v2522, 127
    %v2595 = vpop.permute.xlu0 %2594
    %vm2598 = vcmp.gt.f32.partialorder %v2588, %v2593
    %vm2599 = vcmp.gt.f32.partialorder %v2589, %v2595
    %v2600 = vsel %vm2598, %v2588, %v2593
    %v2601 = vsel %vm2599, %v2589, %v2595
    %2602 = vrot.lane.b32.xlu0 %v2527, 127
    %v2603 = vpop.permute.xlu0 %2602
    %2604 = vrot.lane.b32.xlu0 %v2528, 127
    %v2605 = vpop.permute.xlu0 %2604
    %v2606 = vsel %vm2598, 16, %v2603
    %v2607 = vsel %vm2599, 16, %v2605
    %v2608 = vmul.f32 %v2530, 0.11427669
    %v2609 = vmul.f32 %v2531, 0.11427669
    %2612 = vrot.lane.b32.xlu0 %v2608, 127
    %v2613 = vpop.permute.xlu0 %2612
    %2614 = vrot.lane.b32.xlu0 %v2609, 127
    %v2615 = vpop.permute.xlu0 %2614
    %v2618 = vadd.f32 %v2534, %v2613
    %v2619 = vadd.f32 %v2535, %v2615
    %v2620 = vrot.slane %v2608, 1
    %v2621 = vrot.slane %v2609, 1
    %v2622 = vsel %vm120, %v2620, %v2621
    %v2625 = vadd.f32 %v2618, %v2622
    %v2626 = vadd.f32 %v2619, %v2621
    %v2627 = vmul.f32 %v2530, -0.11427669
    %v2628 = vmul.f32 %v2531, -0.11427669
    %v2631 = vrot.slane %v2627, 1
    %v2632 = vrot.slane %v2628, 1
    %v2633 = vsel %vm120, %v2631, %v2632
    %2634 = vrot.lane.b32.xlu0 %v2633, 126
    %v2635 = vpop.permute.xlu0 %2634
    %2636 = vrot.lane.b32.xlu0 %v2632, 126
    %v2637 = vpop.permute.xlu0 %2636
    %v2640 = vadd.f32 %v2625, %v2635
    %v2641 = vadd.f32 %v2626, %v2637
    %v2642 = vrot.slane %v2627, 2
    %v2643 = vrot.slane %v2628, 2
    %v2644 = vsel %vm73, %v2642, %v2643
    %2645 = vrot.lane.b32.xlu0 %v2644, 127
    %v2646 = vpop.permute.xlu0 %2645
    %2647 = vrot.lane.b32.xlu0 %v2643, 127
    %v2648 = vpop.permute.xlu0 %2647
    %v2651 = vadd.f32 %v2640, %v2646
    %v2652 = vadd.f32 %v2641, %v2648
    %2653 = vrot.lane.b32.xlu0 %v2573, 126
    %v2654 = vpop.permute.xlu0 %2653
    %2655 = vrot.lane.b32.xlu0 %v2572, 126
    %v2656 = vpop.permute.xlu0 %2655
    %v2659 = vadd.f32 %v2651, %v2654
    %v2660 = vadd.f32 %v2652, %v2656
    %vm2661 = vcmp.gt.f32.partialorder %v2659, %v2600
    %vm2662 = vcmp.gt.f32.partialorder %v2660, %v2601
    %v2663 = vsel %vm2661, %v2659, %v2600
    %v2664 = vsel %vm2662, %v2660, %v2601
    %v2665 = vsel %vm2661, 17, %v2606
    %v2666 = vsel %vm2662, 17, %v2607
    %2667 = vrot.lane.b32.xlu0 %v2556, 126
    %v2668 = vpop.permute.xlu0 %2667
    %2669 = vrot.lane.b32.xlu0 %v2557, 126
    %v2670 = vpop.permute.xlu0 %2669
    %v2673 = vadd.f32 %v2532, %v2668
    %v2674 = vadd.f32 %v2533, %v2670
    %v2675 = vrot.slane %v2534, 1
    %v2676 = vrot.slane %v2535, 1
    %v2677 = vsel %vm120, %v2675, %v2676
    %v2680 = vadd.f32 %v2673, %v2677
    %v2681 = vadd.f32 %v2674, %v2676
    %v2682 = vrot.slane %v2567, 1
    %v2683 = vrot.slane %v2568, 1
    %v2684 = vsel %vm120, %v2682, %v2683
    %2685 = vrot.lane.b32.xlu0 %v2684, 126
    %v2686 = vpop.permute.xlu0 %2685
    %2687 = vrot.lane.b32.xlu0 %v2683, 126
    %v2688 = vpop.permute.xlu0 %2687
    %v2691 = vadd.f32 %v2680, %v2686
    %v2692 = vadd.f32 %v2681, %v2688
    %v2693 = vrot.slane %v2532, 2
    %v2694 = vrot.slane %v2533, 2
    %v2695 = vsel %vm73, %v2693, %v2694
    %v2698 = vadd.f32 %v2691, %v2695
    %v2699 = vadd.f32 %v2692, %v2694
    %v2700 = vadd.f32 %v2698, %v2583
    %v2701 = vadd.f32 %v2699, %v2585
    %vm2702 = vcmp.gt.f32.partialorder %v2700, %v2663
    %vm2703 = vcmp.gt.f32.partialorder %v2701, %v2664
    %v2704 = vsel %vm2702, %v2700, %v2663
    %v2705 = vsel %vm2703, %v2701, %v2664
    %v2706 = vsel %vm2702, 18, %v2665
    %v2707 = vsel %vm2703, 18, %v2666
    %2708 = vrot.lane.b32.xlu0 %v2567, 127
    %v2709 = vpop.permute.xlu0 %2708
    %2710 = vrot.lane.b32.xlu0 %v2568, 127
    %v2711 = vpop.permute.xlu0 %2710
    %v2714 = vadd.f32 %v2627, %v2709
    %v2715 = vadd.f32 %v2628, %v2711
    %2716 = vrot.lane.b32.xlu0 %v2622, 1
    %v2717 = vpop.permute.xlu0 %2716
    %2718 = vrot.lane.b32.xlu0 %v2621, 1
    %v2719 = vpop.permute.xlu0 %2718
    %v2722 = vadd.f32 %v2714, %v2717
    %v2723 = vadd.f32 %v2715, %v2719
    %2724 = vrot.lane.b32.xlu0 %v2633, 127
    %v2725 = vpop.permute.xlu0 %2724
    %2726 = vrot.lane.b32.xlu0 %v2632, 127
    %v2727 = vpop.permute.xlu0 %2726
    %v2730 = vadd.f32 %v2722, %v2725
    %v2731 = vadd.f32 %v2723, %v2727
    %v2732 = vrot.slane %v2534, 2
    %v2733 = vrot.slane %v2535, 2
    %v2734 = vsel %vm73, %v2732, %v2733
    %2735 = vrot.lane.b32.xlu0 %v2734, 1
    %v2736 = vpop.permute.xlu0 %2735
    %2737 = vrot.lane.b32.xlu0 %v2733, 1
    %v2738 = vpop.permute.xlu0 %2737
    %v2741 = vadd.f32 %v2730, %v2736
    %v2742 = vadd.f32 %v2731, %v2738
    %v2743 = vrot.slane %v2608, 2
    %v2744 = vrot.slane %v2609, 2
    %v2745 = vsel %vm73, %v2743, %v2744
    %v2748 = vadd.f32 %v2741, %v2745
    %v2749 = vadd.f32 %v2742, %v2744
    %2752 = vrot.lane.b32.xlu0 %v2704, 1
    %v2753 = vpop.permute.xlu0 %2752
    %2754 = vrot.lane.b32.xlu0 %v2705, 1
    %v2755 = vpop.permute.xlu0 %2754
    %vm2758 = vcmp.gt.f32.partialorder %v2748, %v2753
    %vm2759 = vcmp.gt.f32.partialorder %v2749, %v2755
    %v2760 = vsel %vm2758, %v2748, %v2753
    %v2761 = vsel %vm2759, %v2749, %v2755
    %2762 = vrot.lane.b32.xlu0 %v2706, 1
    %v2763 = vpop.permute.xlu0 %2762
    %2764 = vrot.lane.b32.xlu0 %v2707, 1
    %v2765 = vpop.permute.xlu0 %2764
    %v2766 = vsel %vm2758, 19, %v2763
    %v2767 = vsel %vm2759, 19, %v2765
    %v2768 = vadd.f32 %v2556, %v2709
    %v2769 = vadd.f32 %v2557, %v2711
    %v2770 = vadd.f32 %v2768, %v2668
    %v2771 = vadd.f32 %v2769, %v2670
    %v2772 = vadd.f32 %v2770, %v2695
    %v2773 = vadd.f32 %v2771, %v2694
    %2774 = vrot.lane.b32.xlu0 %v2734, 127
    %v2775 = vpop.permute.xlu0 %2774
    %2776 = vrot.lane.b32.xlu0 %v2733, 127
    %v2777 = vpop.permute.xlu0 %2776
    %v2780 = vadd.f32 %v2772, %v2775
    %v2781 = vadd.f32 %v2773, %v2777
    %2782 = vrot.lane.b32.xlu0 %v2695, 126
    %v2783 = vpop.permute.xlu0 %2782
    %2784 = vrot.lane.b32.xlu0 %v2694, 126
    %v2785 = vpop.permute.xlu0 %2784
    %v2788 = vadd.f32 %v2780, %v2783
    %v2789 = vadd.f32 %v2781, %v2785
    %2792 = vrot.lane.b32.xlu0 %v2760, 127
    %v2793 = vpop.permute.xlu0 %2792
    %2794 = vrot.lane.b32.xlu0 %v2761, 127
    %v2795 = vpop.permute.xlu0 %2794
    %vm2798 = vcmp.gt.f32.partialorder %v2788, %v2793
    %vm2799 = vcmp.gt.f32.partialorder %v2789, %v2795
    %v2800 = vsel %vm2798, %v2788, %v2793
    %v2801 = vsel %vm2799, %v2789, %v2795
    %2802 = vrot.lane.b32.xlu0 %v2766, 127
    %v2803 = vpop.permute.xlu0 %2802
    %2804 = vrot.lane.b32.xlu0 %v2767, 127
    %v2805 = vpop.permute.xlu0 %2804
    %v2806 = vsel %vm2798, 20, %v2803
    %v2807 = vsel %vm2799, 20, %v2805
    %2808 = vrot.lane.b32.xlu0 %v2627, 127
    %v2809 = vpop.permute.xlu0 %2808
    %2810 = vrot.lane.b32.xlu0 %v2628, 127
    %v2811 = vpop.permute.xlu0 %2810
    %v2814 = vadd.f32 %v2567, %v2809
    %v2815 = vadd.f32 %v2568, %v2811
    %v2818 = vadd.f32 %v2814, %v2633
    %v2819 = vadd.f32 %v2815, %v2632
    %2820 = vrot.lane.b32.xlu0 %v2622, 126
    %v2821 = vpop.permute.xlu0 %2820
    %2822 = vrot.lane.b32.xlu0 %v2621, 126
    %v2823 = vpop.permute.xlu0 %2822
    %v2826 = vadd.f32 %v2818, %v2821
    %v2827 = vadd.f32 %v2819, %v2823
    %2828 = vrot.lane.b32.xlu0 %v2745, 127
    %v2829 = vpop.permute.xlu0 %2828
    %2830 = vrot.lane.b32.xlu0 %v2744, 127
    %v2831 = vpop.permute.xlu0 %2830
    %v2834 = vadd.f32 %v2826, %v2829
    %v2835 = vadd.f32 %v2827, %v2831
    %2836 = vrot.lane.b32.xlu0 %v2734, 126
    %v2837 = vpop.permute.xlu0 %2836
    %2838 = vrot.lane.b32.xlu0 %v2733, 126
    %v2839 = vpop.permute.xlu0 %2838
    %v2842 = vadd.f32 %v2834, %v2837
    %v2843 = vadd.f32 %v2835, %v2839
    %vm2844 = vcmp.gt.f32.partialorder %v2842, %v2800
    %vm2845 = vcmp.gt.f32.partialorder %v2843, %v2801
    %v2846 = vsel %vm2844, %v2842, %v2800
    %v2847 = vsel %vm2845, %v2843, %v2801
    %v2848 = vsel %vm2844, 21, %v2806
    %v2849 = vsel %vm2845, 21, %v2807
    %v2850 = vadd.f32 %v2556, %v2549
    %v2851 = vadd.f32 %v2557, %v2551
    %v2854 = vadd.f32 %v2850, %v2684
    %v2855 = vadd.f32 %v2851, %v2683
    %2856 = vrot.lane.b32.xlu0 %v2677, 126
    %v2857 = vpop.permute.xlu0 %2856
    %2858 = vrot.lane.b32.xlu0 %v2676, 126
    %v2859 = vpop.permute.xlu0 %2858
    %v2862 = vadd.f32 %v2854, %v2857
    %v2863 = vadd.f32 %v2855, %v2859
    %v2864 = vadd.f32 %v2862, %v2562
    %v2865 = vadd.f32 %v2863, %v2561
    %v2866 = vadd.f32 %v2864, %v2783
    %v2867 = vadd.f32 %v2865, %v2785
    %vm2868 = vcmp.gt.f32.partialorder %v2866, %v2846
    %vm2869 = vcmp.gt.f32.partialorder %v2867, %v2847
    %v2870 = vsel %vm2868, %v2866, %v2846
    %v2871 = vsel %vm2869, %v2867, %v2847
    %v2872 = vsel %vm2868, 22, %v2848
    %v2873 = vsel %vm2869, 22, %v2849
    %v2874 = vadd.f32 %v2608, %v2539
    %v2875 = vadd.f32 %v2609, %v2541
    %2876 = vrot.lane.b32.xlu0 %v2633, 1
    %v2877 = vpop.permute.xlu0 %2876
    %2878 = vrot.lane.b32.xlu0 %v2632, 1
    %v2879 = vpop.permute.xlu0 %2878
    %v2882 = vadd.f32 %v2874, %v2877
    %v2883 = vadd.f32 %v2875, %v2879
    %2884 = vrot.lane.b32.xlu0 %v2622, 127
    %v2885 = vpop.permute.xlu0 %2884
    %2886 = vrot.lane.b32.xlu0 %v2621, 127
    %v2887 = vpop.permute.xlu0 %2886
    %v2890 = vadd.f32 %v2882, %v2885
    %v2891 = vadd.f32 %v2883, %v2887
    %2892 = vrot.lane.b32.xlu0 %v2573, 1
    %v2893 = vpop.permute.xlu0 %2892
    %2894 = vrot.lane.b32.xlu0 %v2572, 1
    %v2895 = vpop.permute.xlu0 %2894
    %v2898 = vadd.f32 %v2890, %v2893
    %v2899 = vadd.f32 %v2891, %v2895
    %v2902 = vadd.f32 %v2898, %v2644
    %v2903 = vadd.f32 %v2899, %v2643
    %2906 = vrot.lane.b32.xlu0 %v2870, 1
    %v2907 = vpop.permute.xlu0 %2906
    %2908 = vrot.lane.b32.xlu0 %v2871, 1
    %v2909 = vpop.permute.xlu0 %2908
    %vm2912 = vcmp.gt.f32.partialorder %v2902, %v2907
    %vm2913 = vcmp.gt.f32.partialorder %v2903, %v2909
    %v2914 = vsel %vm2912, %v2902, %v2907
    %v2915 = vsel %vm2913, %v2903, %v2909
    %2916 = vrot.lane.b32.xlu0 %v2872, 1
    %v2917 = vpop.permute.xlu0 %2916
    %2918 = vrot.lane.b32.xlu0 %v2873, 1
    %v2919 = vpop.permute.xlu0 %2918
    %v2920 = vsel %vm2912, 23, %v2917
    %v2921 = vsel %vm2913, 23, %v2919
    %s2922 = scalar_lea.vmem [#allocation3], 112
    %v2923 = vld [vmem:[%s2922] sm:$0xff]
    %v2924 = vld [vmem:[%s2922 + $0x8] sm:$0xff]
    %v2925 = vmul.f32 %v2923, 0.125
    %v2926 = vmul.f32 %v2924, 0.125
    %v2927 = vmul.f32 %v2923, 0.25
    %v2928 = vmul.f32 %v2924, 0.25
    %2931 = vrot.lane.b32.xlu0 %v2927, 127
    %v2932 = vpop.permute.xlu0 %2931
    %2933 = vrot.lane.b32.xlu0 %v2928, 127
    %v2934 = vpop.permute.xlu0 %2933
    %v2937 = vadd.f32 %v2925, %v2932
    %v2938 = vadd.f32 %v2926, %v2934
    %2941 = vrot.lane.b32.xlu0 %v2925, 126
    %v2942 = vpop.permute.xlu0 %2941
    %2943 = vrot.lane.b32.xlu0 %v2926, 126
    %v2944 = vpop.permute.xlu0 %2943
    %v2947 = vadd.f32 %v2937, %v2942
    %v2948 = vadd.f32 %v2938, %v2944
    %v2949 = vmul.f32 %v2923, -0.125
    %v2950 = vmul.f32 %v2924, -0.125
    %v2953 = vrot.slane %v2949, 2
    %v2954 = vrot.slane %v2950, 2
    %v2955 = vsel %vm73, %v2953, %v2954
    %v2958 = vadd.f32 %v2947, %v2955
    %v2959 = vadd.f32 %v2948, %v2954
    %v2960 = vmul.f32 %v2923, -0.25
    %v2961 = vmul.f32 %v2924, -0.25
    %v2964 = vrot.slane %v2960, 2
    %v2965 = vrot.slane %v2961, 2
    %v2966 = vsel %vm73, %v2964, %v2965
    %2967 = vrot.lane.b32.xlu0 %v2966, 127
    %v2968 = vpop.permute.xlu0 %2967
    %2969 = vrot.lane.b32.xlu0 %v2965, 127
    %v2970 = vpop.permute.xlu0 %2969
    %v2973 = vadd.f32 %v2958, %v2968
    %v2974 = vadd.f32 %v2959, %v2970
    %2975 = vrot.lane.b32.xlu0 %v2955, 126
    %v2976 = vpop.permute.xlu0 %2975
    %2977 = vrot.lane.b32.xlu0 %v2954, 126
    %v2978 = vpop.permute.xlu0 %2977
    %v2981 = vadd.f32 %v2973, %v2976
    %v2982 = vadd.f32 %v2974, %v2978
    %2985 = vrot.lane.b32.xlu0 %v2914, 127
    %v2986 = vpop.permute.xlu0 %2985
    %2987 = vrot.lane.b32.xlu0 %v2915, 127
    %v2988 = vpop.permute.xlu0 %2987
    %vm2991 = vcmp.gt.f32.partialorder %v2981, %v2986
    %vm2992 = vcmp.gt.f32.partialorder %v2982, %v2988
    %v2993 = vsel %vm2991, %v2981, %v2986
    %v2994 = vsel %vm2992, %v2982, %v2988
    %2995 = vrot.lane.b32.xlu0 %v2920, 127
    %v2996 = vpop.permute.xlu0 %2995
    %2997 = vrot.lane.b32.xlu0 %v2921, 127
    %v2998 = vpop.permute.xlu0 %2997
    %v2999 = vsel %vm2991, 24, %v2996
    %v3000 = vsel %vm2992, 24, %v2998
    %v3001 = vmul.f32 %v2923, 0.11427669
    %v3002 = vmul.f32 %v2924, 0.11427669
    %3005 = vrot.lane.b32.xlu0 %v3001, 127
    %v3006 = vpop.permute.xlu0 %3005
    %3007 = vrot.lane.b32.xlu0 %v3002, 127
    %v3008 = vpop.permute.xlu0 %3007
    %v3011 = vadd.f32 %v2927, %v3006
    %v3012 = vadd.f32 %v2928, %v3008
    %v3013 = vrot.slane %v3001, 1
    %v3014 = vrot.slane %v3002, 1
    %v3015 = vsel %vm120, %v3013, %v3014
    %v3018 = vadd.f32 %v3011, %v3015
    %v3019 = vadd.f32 %v3012, %v3014
    %v3020 = vmul.f32 %v2923, -0.11427669
    %v3021 = vmul.f32 %v2924, -0.11427669
    %v3024 = vrot.slane %v3020, 1
    %v3025 = vrot.slane %v3021, 1
    %v3026 = vsel %vm120, %v3024, %v3025
    %3027 = vrot.lane.b32.xlu0 %v3026, 126
    %v3028 = vpop.permute.xlu0 %3027
    %3029 = vrot.lane.b32.xlu0 %v3025, 126
    %v3030 = vpop.permute.xlu0 %3029
    %v3033 = vadd.f32 %v3018, %v3028
    %v3034 = vadd.f32 %v3019, %v3030
    %v3035 = vrot.slane %v3020, 2
    %v3036 = vrot.slane %v3021, 2
    %v3037 = vsel %vm73, %v3035, %v3036
    %3038 = vrot.lane.b32.xlu0 %v3037, 127
    %v3039 = vpop.permute.xlu0 %3038
    %3040 = vrot.lane.b32.xlu0 %v3036, 127
    %v3041 = vpop.permute.xlu0 %3040
    %v3044 = vadd.f32 %v3033, %v3039
    %v3045 = vadd.f32 %v3034, %v3041
    %3046 = vrot.lane.b32.xlu0 %v2966, 126
    %v3047 = vpop.permute.xlu0 %3046
    %3048 = vrot.lane.b32.xlu0 %v2965, 126
    %v3049 = vpop.permute.xlu0 %3048
    %v3052 = vadd.f32 %v3044, %v3047
    %v3053 = vadd.f32 %v3045, %v3049
    %vm3054 = vcmp.gt.f32.partialorder %v3052, %v2993
    %vm3055 = vcmp.gt.f32.partialorder %v3053, %v2994
    %v3056 = vsel %vm3054, %v3052, %v2993
    %v3057 = vsel %vm3055, %v3053, %v2994
    %v3058 = vsel %vm3054, 25, %v2999
    %v3059 = vsel %vm3055, 25, %v3000
    %3060 = vrot.lane.b32.xlu0 %v2949, 126
    %v3061 = vpop.permute.xlu0 %3060
    %3062 = vrot.lane.b32.xlu0 %v2950, 126
    %v3063 = vpop.permute.xlu0 %3062
    %v3066 = vadd.f32 %v2925, %v3061
    %v3067 = vadd.f32 %v2926, %v3063
    %v3068 = vrot.slane %v2927, 1
    %v3069 = vrot.slane %v2928, 1
    %v3070 = vsel %vm120, %v3068, %v3069
    %v3073 = vadd.f32 %v3066, %v3070
    %v3074 = vadd.f32 %v3067, %v3069
    %v3075 = vrot.slane %v2960, 1
    %v3076 = vrot.slane %v2961, 1
    %v3077 = vsel %vm120, %v3075, %v3076
    %3078 = vrot.lane.b32.xlu0 %v3077, 126
    %v3079 = vpop.permute.xlu0 %3078
    %3080 = vrot.lane.b32.xlu0 %v3076, 126
    %v3081 = vpop.permute.xlu0 %3080
    %v3084 = vadd.f32 %v3073, %v3079
    %v3085 = vadd.f32 %v3074, %v3081
    %v3086 = vrot.slane %v2925, 2
    %v3087 = vrot.slane %v2926, 2
    %v3088 = vsel %vm73, %v3086, %v3087
    %v3091 = vadd.f32 %v3084, %v3088
    %v3092 = vadd.f32 %v3085, %v3087
    %v3093 = vadd.f32 %v3091, %v2976
    %v3094 = vadd.f32 %v3092, %v2978
    %vm3095 = vcmp.gt.f32.partialorder %v3093, %v3056
    %vm3096 = vcmp.gt.f32.partialorder %v3094, %v3057
    %v3097 = vsel %vm3095, %v3093, %v3056
    %v3098 = vsel %vm3096, %v3094, %v3057
    %v3099 = vsel %vm3095, 26, %v3058
    %v3100 = vsel %vm3096, 26, %v3059
    %3101 = vrot.lane.b32.xlu0 %v2960, 127
    %v3102 = vpop.permute.xlu0 %3101
    %3103 = vrot.lane.b32.xlu0 %v2961, 127
    %v3104 = vpop.permute.xlu0 %3103
    %v3107 = vadd.f32 %v3020, %v3102
    %v3108 = vadd.f32 %v3021, %v3104
    %3109 = vrot.lane.b32.xlu0 %v3015, 1
    %v3110 = vpop.permute.xlu0 %3109
    %3111 = vrot.lane.b32.xlu0 %v3014, 1
    %v3112 = vpop.permute.xlu0 %3111
    %v3115 = vadd.f32 %v3107, %v3110
    %v3116 = vadd.f32 %v3108, %v3112
    %3117 = vrot.lane.b32.xlu0 %v3026, 127
    %v3118 = vpop.permute.xlu0 %3117
    %3119 = vrot.lane.b32.xlu0 %v3025, 127
    %v3120 = vpop.permute.xlu0 %3119
    %v3123 = vadd.f32 %v3115, %v3118
    %v3124 = vadd.f32 %v3116, %v3120
    %v3125 = vrot.slane %v2927, 2
    %v3126 = vrot.slane %v2928, 2
    %v3127 = vsel %vm73, %v3125, %v3126
    %3128 = vrot.lane.b32.xlu0 %v3127, 1
    %v3129 = vpop.permute.xlu0 %3128
    %3130 = vrot.lane.b32.xlu0 %v3126, 1
    %v3131 = vpop.permute.xlu0 %3130
    %v3134 = vadd.f32 %v3123, %v3129
    %v3135 = vadd.f32 %v3124, %v3131
    %v3136 = vrot.slane %v3001, 2
    %v3137 = vrot.slane %v3002, 2
    %v3138 = vsel %vm73, %v3136, %v3137
    %v3141 = vadd.f32 %v3134, %v3138
    %v3142 = vadd.f32 %v3135, %v3137
    %3145 = vrot.lane.b32.xlu0 %v3097, 1
    %v3146 = vpop.permute.xlu0 %3145
    %3147 = vrot.lane.b32.xlu0 %v3098, 1
    %v3148 = vpop.permute.xlu0 %3147
    %vm3151 = vcmp.gt.f32.partialorder %v3141, %v3146
    %vm3152 = vcmp.gt.f32.partialorder %v3142, %v3148
    %v3153 = vsel %vm3151, %v3141, %v3146
    %v3154 = vsel %vm3152, %v3142, %v3148
    %3155 = vrot.lane.b32.xlu0 %v3099, 1
    %v3156 = vpop.permute.xlu0 %3155
    %3157 = vrot.lane.b32.xlu0 %v3100, 1
    %v3158 = vpop.permute.xlu0 %3157
    %v3159 = vsel %vm3151, 27, %v3156
    %v3160 = vsel %vm3152, 27, %v3158
    %v3161 = vadd.f32 %v2949, %v3102
    %v3162 = vadd.f32 %v2950, %v3104
    %v3163 = vadd.f32 %v3161, %v3061
    %v3164 = vadd.f32 %v3162, %v3063
    %v3165 = vadd.f32 %v3163, %v3088
    %v3166 = vadd.f32 %v3164, %v3087
    %3167 = vrot.lane.b32.xlu0 %v3127, 127
    %v3168 = vpop.permute.xlu0 %3167
    %3169 = vrot.lane.b32.xlu0 %v3126, 127
    %v3170 = vpop.permute.xlu0 %3169
    %v3173 = vadd.f32 %v3165, %v3168
    %v3174 = vadd.f32 %v3166, %v3170
    %3175 = vrot.lane.b32.xlu0 %v3088, 126
    %v3176 = vpop.permute.xlu0 %3175
    %3177 = vrot.lane.b32.xlu0 %v3087, 126
    %v3178 = vpop.permute.xlu0 %3177
    %v3181 = vadd.f32 %v3173, %v3176
    %v3182 = vadd.f32 %v3174, %v3178
    %3185 = vrot.lane.b32.xlu0 %v3153, 127
    %v3186 = vpop.permute.xlu0 %3185
    %3187 = vrot.lane.b32.xlu0 %v3154, 127
    %v3188 = vpop.permute.xlu0 %3187
    %vm3191 = vcmp.gt.f32.partialorder %v3181, %v3186
    %vm3192 = vcmp.gt.f32.partialorder %v3182, %v3188
    %v3193 = vsel %vm3191, %v3181, %v3186
    %v3194 = vsel %vm3192, %v3182, %v3188
    %3195 = vrot.lane.b32.xlu0 %v3159, 127
    %v3196 = vpop.permute.xlu0 %3195
    %3197 = vrot.lane.b32.xlu0 %v3160, 127
    %v3198 = vpop.permute.xlu0 %3197
    %v3199 = vsel %vm3191, 28, %v3196
    %v3200 = vsel %vm3192, 28, %v3198
    %3201 = vrot.lane.b32.xlu0 %v3020, 127
    %v3202 = vpop.permute.xlu0 %3201
    %3203 = vrot.lane.b32.xlu0 %v3021, 127
    %v3204 = vpop.permute.xlu0 %3203
    %v3207 = vadd.f32 %v2960, %v3202
    %v3208 = vadd.f32 %v2961, %v3204
    %v3211 = vadd.f32 %v3207, %v3026
    %v3212 = vadd.f32 %v3208, %v3025
    %3213 = vrot.lane.b32.xlu0 %v3015, 126
    %v3214 = vpop.permute.xlu0 %3213
    %3215 = vrot.lane.b32.xlu0 %v3014, 126
    %v3216 = vpop.permute.xlu0 %3215
    %v3219 = vadd.f32 %v3211, %v3214
    %v3220 = vadd.f32 %v3212, %v3216
    %3221 = vrot.lane.b32.xlu0 %v3138, 127
    %v3222 = vpop.permute.xlu0 %3221
    %3223 = vrot.lane.b32.xlu0 %v3137, 127
    %v3224 = vpop.permute.xlu0 %3223
    %v3227 = vadd.f32 %v3219, %v3222
    %v3228 = vadd.f32 %v3220, %v3224
    %3229 = vrot.lane.b32.xlu0 %v3127, 126
    %v3230 = vpop.permute.xlu0 %3229
    %3231 = vrot.lane.b32.xlu0 %v3126, 126
    %v3232 = vpop.permute.xlu0 %3231
    %v3235 = vadd.f32 %v3227, %v3230
    %v3236 = vadd.f32 %v3228, %v3232
    %vm3237 = vcmp.gt.f32.partialorder %v3235, %v3193
    %vm3238 = vcmp.gt.f32.partialorder %v3236, %v3194
    %v3239 = vsel %vm3237, %v3235, %v3193
    %v3240 = vsel %vm3238, %v3236, %v3194
    %v3241 = vsel %vm3237, 29, %v3199
    %v3242 = vsel %vm3238, 29, %v3200
    %v3243 = vadd.f32 %v2949, %v2942
    %v3244 = vadd.f32 %v2950, %v2944
    %v3247 = vadd.f32 %v3243, %v3077
    %v3248 = vadd.f32 %v3244, %v3076
    %3249 = vrot.lane.b32.xlu0 %v3070, 126
    %v3250 = vpop.permute.xlu0 %3249
    %3251 = vrot.lane.b32.xlu0 %v3069, 126
    %v3252 = vpop.permute.xlu0 %3251
    %v3255 = vadd.f32 %v3247, %v3250
    %v3256 = vadd.f32 %v3248, %v3252
    %v3257 = vadd.f32 %v3255, %v2955
    %v3258 = vadd.f32 %v3256, %v2954
    %v3259 = vadd.f32 %v3257, %v3176
    %v3260 = vadd.f32 %v3258, %v3178
    %vm3261 = vcmp.gt.f32.partialorder %v3259, %v3239
    %vm3262 = vcmp.gt.f32.partialorder %v3260, %v3240
    %v3263 = vsel %vm3261, %v3259, %v3239
    %v3264 = vsel %vm3262, %v3260, %v3240
    %v3265 = vsel %vm3261, 30, %v3241
    %v3266 = vsel %vm3262, 30, %v3242
    %v3267 = vadd.f32 %v3001, %v2932
    %v3268 = vadd.f32 %v3002, %v2934
    %3269 = vrot.lane.b32.xlu0 %v3026, 1
    %v3270 = vpop.permute.xlu0 %3269
    %3271 = vrot.lane.b32.xlu0 %v3025, 1
    %v3272 = vpop.permute.xlu0 %3271
    %v3275 = vadd.f32 %v3267, %v3270
    %v3276 = vadd.f32 %v3268, %v3272
    %3277 = vrot.lane.b32.xlu0 %v3015, 127
    %v3278 = vpop.permute.xlu0 %3277
    %3279 = vrot.lane.b32.xlu0 %v3014, 127
    %v3280 = vpop.permute.xlu0 %3279
    %v3283 = vadd.f32 %v3275, %v3278
    %v3284 = vadd.f32 %v3276, %v3280
    %3285 = vrot.lane.b32.xlu0 %v2966, 1
    %v3286 = vpop.permute.xlu0 %3285
    %3287 = vrot.lane.b32.xlu0 %v2965, 1
    %v3288 = vpop.permute.xlu0 %3287
    %v3291 = vadd.f32 %v3283, %v3286
    %v3292 = vadd.f32 %v3284, %v3288
    %v3295 = vadd.f32 %v3291, %v3037
    %v3296 = vadd.f32 %v3292, %v3036
    %3299 = vrot.lane.b32.xlu0 %v3263, 1
    %v3300 = vpop.permute.xlu0 %3299
    %3301 = vrot.lane.b32.xlu0 %v3264, 1
    %v3302 = vpop.permute.xlu0 %3301
    %vm3305 = vcmp.gt.f32.partialorder %v3295, %v3300
    %vm3306 = vcmp.gt.f32.partialorder %v3296, %v3302
    %v3307 = vsel %vm3305, %v3295, %v3300
    %v3308 = vsel %vm3306, %v3296, %v3302
    %3309 = vrot.lane.b32.xlu0 %v3265, 1
    %v3310 = vpop.permute.xlu0 %3309
    %3311 = vrot.lane.b32.xlu0 %v3266, 1
    %v3312 = vpop.permute.xlu0 %3311
    %v3313 = vsel %vm3305, 31, %v3310
    %v3314 = vsel %vm3306, 31, %v3312
    %vm3315 = vcmp.lt.f32.partialorder %v3307, 0.25
    %vm3316 = vcmp.lt.f32.partialorder %v3308, 0.25
    %v3317 = vsel %vm3315, 8, %v3313
    %v3318 = vsel %vm3316, 8, %v3314
    %3319 = vrot.lane.b32.xlu0 %v3317, 127
    %v3320 = vpop.permute.xlu0 %3319
    %3321 = vrot.lane.b32.xlu0 %v3318, 127
    %v3322 = vpop.permute.xlu0 %3321
    %v3323 = vsel %vm1610, %v3320, 4294967295
    %v3324 = vsel %vm1610, %v3322, 4294967295
    %vm3325 = vcmp.eq.s32.totalorder %v3323, 0
    %vm3326 = vcmp.eq.s32.totalorder %v3324, 0
    %v3327 = vsel %vm3325, 1, 0
    %v3328 = vsel %vm3326, 1, 0
    %v3329 = vcvt.s32.f32 %v3327
    %v3330 = vcvt.s32.f32 %v3328
    %v3331 = vpack.c.bf16 %v3330, %v3329
    %v3333 = vunpack.c.l.b16 %v3331
    %v3334 = vunpack.c.h.b16 %v3331
    %v3335 = vpack.c.b16 %v3333, %v3333
    %v3336 = vpack.c.b16 %v3334, %v3334
    %vm3337 = vcmask 1042432
    %vm3338 = vcmask 1046532
    %vm3339 = vmor %vm3337, %vm3338
    %v3340 = vrot.slane %v3335, 5
    %v3341 = vrot.slane %v3340, 4
    %v3342 = vrot.slane %v3336, 5
    %v3343 = vsel %vm3339, %v3341, %v3342
    %v3344 = vrot.slane %v3342, 4
    %3348 = vst [vmem:[#allocation2 + $0x24] sm:$0x8] %v3340
    %3349 = vst [vmem:[#allocation2 + $0x48] sm:$0xf] %v3343
    %3350 = vst [vmem:[#allocation2 + $0x6c] sm:$0x3] %v3344
    %vm3351 = vcmp.eq.s32.totalorder %v3323, 1
    %vm3352 = vcmp.eq.s32.totalorder %v3324, 1
    %v3353 = vsel %vm3351, 1, 0
    %v3354 = vsel %vm3352, 1, 0
    %v3355 = vcvt.s32.f32 %v3353
    %v3356 = vcvt.s32.f32 %v3354
    %v3357 = vpack.c.bf16 %v3356, %v3355
    %v3359 = vunpack.c.l.b16 %v3357
    %v3360 = vunpack.c.h.b16 %v3357
    %v3361 = vpack.c.b16 %v3359, %v3359
    %v3362 = vpack.c.b16 %v3360, %v3360
    %v3363 = vrot.slane %v3361, 5
    %v3364 = vrot.slane %v3363, 4
    %v3365 = vrot.slane %v3362, 5
    %v3366 = vsel %vm3339, %v3364, %v3365
    %v3367 = vrot.slane %v3365, 4
    %3371 = vst [vmem:[#allocation2 + $0x28] sm:$0x8] %v3363
    %3372 = vst [vmem:[#allocation2 + $0x4c] sm:$0xf] %v3366
    %3373 = vst [vmem:[#allocation2 + $0x70] sm:$0x3] %v3367
    %vm3374 = vcmp.eq.s32.totalorder %v3323, 2
    %vm3375 = vcmp.eq.s32.totalorder %v3324, 2
    %v3376 = vsel %vm3374, 1, 0
    %v3377 = vsel %vm3375, 1, 0
    %v3378 = vcvt.s32.f32 %v3376
    %v3379 = vcvt.s32.f32 %v3377
    %v3380 = vpack.c.bf16 %v3379, %v3378
    %v3382 = vunpack.c.l.b16 %v3380
    %v3383 = vunpack.c.h.b16 %v3380
    %v3384 = vpack.c.b16 %v3382, %v3382
    %v3385 = vpack.c.b16 %v3383, %v3383
    %v3386 = vrot.slane %v3384, 5
    %v3387 = vrot.slane %v3386, 4
    %v3388 = vrot.slane %v3385, 5
    %v3389 = vsel %vm3339, %v3387, %v3388
    %v3390 = vrot.slane %v3388, 4
    %3394 = vst [vmem:[#allocation2 + $0x2c] sm:$0x8] %v3386
    %3395 = vst [vmem:[#allocation2 + $0x50] sm:$0xf] %v3389
    %3396 = vst [vmem:[#allocation2 + $0x74] sm:$0x3] %v3390
    %vm3397 = vcmp.eq.s32.totalorder %v3323, 3
    %vm3398 = vcmp.eq.s32.totalorder %v3324, 3
    %v3399 = vsel %vm3397, 1, 0
    %v3400 = vsel %vm3398, 1, 0
    %v3401 = vcvt.s32.f32 %v3399
    %v3402 = vcvt.s32.f32 %v3400
    %v3403 = vpack.c.bf16 %v3402, %v3401
    %v3405 = vunpack.c.l.b16 %v3403
    %v3406 = vunpack.c.h.b16 %v3403
    %v3407 = vpack.c.b16 %v3405, %v3405
    %v3408 = vpack.c.b16 %v3406, %v3406
    %v3409 = vrot.slane %v3407, 5
    %v3410 = vrot.slane %v3409, 4
    %v3411 = vrot.slane %v3408, 5
    %v3412 = vsel %vm3339, %v3410, %v3411
    %v3413 = vrot.slane %v3411, 4
    %3417 = vst [vmem:[#allocation2 + $0x30] sm:$0x8] %v3409
    %3418 = vst [vmem:[#allocation2 + $0x54] sm:$0xf] %v3412
    %3419 = vst [vmem:[#allocation2 + $0x78] sm:$0x3] %v3413
    %vm3420 = vcmp.eq.s32.totalorder %v3323, 4
    %vm3421 = vcmp.eq.s32.totalorder %v3324, 4
    %v3422 = vsel %vm3420, 1, 0
    %v3423 = vsel %vm3421, 1, 0
    %v3424 = vcvt.s32.f32 %v3422
    %v3425 = vcvt.s32.f32 %v3423
    %v3426 = vpack.c.bf16 %v3425, %v3424
    %v3428 = vunpack.c.l.b16 %v3426
    %v3429 = vunpack.c.h.b16 %v3426
    %v3430 = vpack.c.b16 %v3428, %v3428
    %v3431 = vpack.c.b16 %v3429, %v3429
    %v3432 = vrot.slane %v3430, 5
    %v3433 = vrot.slane %v3432, 4
    %v3434 = vrot.slane %v3431, 5
    %v3435 = vsel %vm3339, %v3433, %v3434
    %v3436 = vrot.slane %v3434, 4
    %3440 = vst [vmem:[#allocation2 + $0x34] sm:$0x8] %v3432
    %3441 = vst [vmem:[#allocation2 + $0x58] sm:$0xf] %v3435
    %3442 = vst [vmem:[#allocation2 + $0x7c] sm:$0x3] %v3436
    %vm3443 = vcmp.eq.s32.totalorder %v3323, 5
    %vm3444 = vcmp.eq.s32.totalorder %v3324, 5
    %v3445 = vsel %vm3443, 1, 0
    %v3446 = vsel %vm3444, 1, 0
    %v3447 = vcvt.s32.f32 %v3445
    %v3448 = vcvt.s32.f32 %v3446
    %v3449 = vpack.c.bf16 %v3448, %v3447
    %v3451 = vunpack.c.l.b16 %v3449
    %v3452 = vunpack.c.h.b16 %v3449
    %v3453 = vpack.c.b16 %v3451, %v3451
    %v3454 = vpack.c.b16 %v3452, %v3452
    %v3455 = vrot.slane %v3453, 5
    %v3456 = vrot.slane %v3455, 4
    %v3457 = vrot.slane %v3454, 5
    %v3458 = vsel %vm3339, %v3456, %v3457
    %v3459 = vrot.slane %v3457, 4
    %3463 = vst [vmem:[#allocation2 + $0x38] sm:$0x8] %v3455
    %3464 = vst [vmem:[#allocation2 + $0x5c] sm:$0xf] %v3458
    %3465 = vst [vmem:[#allocation2 + $0x80] sm:$0x3] %v3459
    %vm3466 = vcmp.eq.s32.totalorder %v3323, 6
    %vm3467 = vcmp.eq.s32.totalorder %v3324, 6
    %v3468 = vsel %vm3466, 1, 0
    %v3469 = vsel %vm3467, 1, 0
    %v3470 = vcvt.s32.f32 %v3468
    %v3471 = vcvt.s32.f32 %v3469
    %v3472 = vpack.c.bf16 %v3471, %v3470
    %v3474 = vunpack.c.l.b16 %v3472
    %v3475 = vunpack.c.h.b16 %v3472
    %v3476 = vpack.c.b16 %v3474, %v3474
    %v3477 = vpack.c.b16 %v3475, %v3475
    %v3478 = vrot.slane %v3476, 5
    %v3479 = vrot.slane %v3478, 4
    %v3480 = vrot.slane %v3477, 5
    %v3481 = vsel %vm3339, %v3479, %v3480
    %v3482 = vrot.slane %v3480, 4
    %3486 = vst [vmem:[#allocation2 + $0x3c] sm:$0x8] %v3478
    %3487 = vst [vmem:[#allocation2 + $0x60] sm:$0xf] %v3481
    %3488 = vst [vmem:[#allocation2 + $0x84] sm:$0x3] %v3482
    %vm3489 = vcmp.eq.s32.totalorder %v3323, 7
    %vm3490 = vcmp.eq.s32.totalorder %v3324, 7
    %v3491 = vsel %vm3489, 1, 0
    %v3492 = vsel %vm3490, 1, 0
    %v3493 = vcvt.s32.f32 %v3491
    %v3494 = vcvt.s32.f32 %v3492
    %v3495 = vpack.c.bf16 %v3494, %v3493
    %v3497 = vunpack.c.l.b16 %v3495
    %v3498 = vunpack.c.h.b16 %v3495
    %v3499 = vpack.c.b16 %v3497, %v3497
    %v3500 = vpack.c.b16 %v3498, %v3498
    %v3501 = vrot.slane %v3499, 5
    %v3502 = vrot.slane %v3501, 4
    %v3503 = vrot.slane %v3500, 5
    %v3504 = vsel %vm3339, %v3502, %v3503
    %v3505 = vrot.slane %v3503, 4
    %3509 = vst [vmem:[#allocation2 + $0x40] sm:$0x8] %v3501
    %3510 = vst [vmem:[#allocation2 + $0x64] sm:$0xf] %v3504
    %3511 = vst [vmem:[#allocation2 + $0x88] sm:$0x3] %v3505
    %vm3512 = vcmp.eq.s32.totalorder %v3323, 8
    %vm3513 = vcmp.eq.s32.totalorder %v3324, 8
    %v3514 = vsel %vm3512, 1, 0
    %v3515 = vsel %vm3513, 1, 0
    %v3516 = vcvt.s32.f32 %v3514
    %v3517 = vcvt.s32.f32 %v3515
    %v3518 = vpack.c.bf16 %v3517, %v3516
    %v3520 = vunpack.c.l.b16 %v3518
    %v3521 = vunpack.c.h.b16 %v3518
    %v3522 = vpack.c.b16 %v3520, %v3520
    %v3523 = vpack.c.b16 %v3521, %v3521
    %v3524 = vrot.slane %v3522, 5
    %v3525 = vrot.slane %v3524, 4
    %v3526 = vrot.slane %v3523, 5
    %v3527 = vsel %vm3339, %v3525, %v3526
    %v3528 = vrot.slane %v3526, 4
    %3532 = vst [vmem:[#allocation2 + $0x44] sm:$0x8] %v3524
    %3533 = vst [vmem:[#allocation2 + $0x68] sm:$0xf] %v3527
    %3534 = vst [vmem:[#allocation2 + $0x8c] sm:$0x3] %v3528
    %v3535 = vld [vmem:[#allocation2] sm:$0xff]
    %v3536 = vld [vmem:[#allocation2 + $0x8] sm:$0xff]
    %v3537 = vld [vmem:[#allocation2 + $0x10] sm:$0xff]
    %v3538 = vld [vmem:[#allocation2 + $0x18] sm:$0xff]
    %v3539 = vld [vmem:[#allocation2 + $0x20] sm:$0xf]
    %v3540 = vld [vmem:[#allocation2 + $0x24] sm:$0xff]
    %v3541 = vld [vmem:[#allocation2 + $0x2c] sm:$0xff]
    %v3542 = vld [vmem:[#allocation2 + $0x34] sm:$0xff]
    %v3543 = vld [vmem:[#allocation2 + $0x3c] sm:$0xff]
    %v3544 = vld [vmem:[#allocation2 + $0x44] sm:$0xf]
    %v3545 = vld [vmem:[#allocation2 + $0x48] sm:$0xff]
    %v3546 = vld [vmem:[#allocation2 + $0x50] sm:$0xff]
    %v3547 = vld [vmem:[#allocation2 + $0x58] sm:$0xff]
    %v3548 = vld [vmem:[#allocation2 + $0x60] sm:$0xff]
    %v3549 = vld [vmem:[#allocation2 + $0x68] sm:$0xf]
    %v3550 = vld [vmem:[#allocation2 + $0x6c] sm:$0x33]
    %v3551 = vld [vmem:[#allocation2 + $0x74] sm:$0x33]
    %v3552 = vld [vmem:[#allocation2 + $0x7c] sm:$0x33]
    %v3553 = vld [vmem:[#allocation2 + $0x84] sm:$0x33]
    %v3554 = vld [vmem:[#allocation2 + $0x8c] sm:$0x3]
    %v3555 = vld [vmem:[%s1] sm:$0xf]
    %v3556 = vld [vmem:[%s1 + $0x4] sm:$0x3]
    %v3559 = vunpack.c.l.b16 %v3555
    %v3560 = vunpack.c.l.b16 %v3556
    %v3561 = vpack.c.b16 %v3560, %v3559
    %v3582 = vunpack.c.l.b16 %v3535
    %v3583 = vunpack.c.h.b16 %v3535
    %v3584 = vunpack.c.l.b16 %v3536
    %v3585 = vunpack.c.h.b16 %v3536
    %v3586 = vunpack.c.l.b16 %v3537
    %v3587 = vunpack.c.h.b16 %v3537
    %v3588 = vunpack.c.l.b16 %v3538
    %v3589 = vunpack.c.h.b16 %v3538
    %v3590 = vunpack.c.l.b16 %v3539
    %v3591 = vunpack.c.l.b16 %v3540
    %v3592 = vunpack.c.h.b16 %v3540
    %v3593 = vunpack.c.l.b16 %v3541
    %v3594 = vunpack.c.h.b16 %v3541
    %v3595 = vunpack.c.l.b16 %v3542
    %v3596 = vunpack.c.h.b16 %v3542
    %v3597 = vunpack.c.l.b16 %v3543
    %v3598 = vunpack.c.h.b16 %v3543
    %v3599 = vunpack.c.l.b16 %v3544
    %v3600 = vunpack.c.l.b16 %v3545
    %v3601 = vunpack.c.h.b16 %v3545
    %v3602 = vunpack.c.l.b16 %v3546
    %v3603 = vunpack.c.h.b16 %v3546
    %v3604 = vunpack.c.l.b16 %v3547
    %v3605 = vunpack.c.h.b16 %v3547
    %v3606 = vunpack.c.l.b16 %v3548
    %v3607 = vunpack.c.h.b16 %v3548
    %v3608 = vunpack.c.l.b16 %v3549
    %v3609 = vunpack.c.l.b16 %v3550
    %v3610 = vunpack.c.h.b16 %v3550
    %v3611 = vunpack.c.l.b16 %v3551
    %v3612 = vunpack.c.h.b16 %v3551
    %v3613 = vunpack.c.l.b16 %v3552
    %v3614 = vunpack.c.h.b16 %v3552
    %v3615 = vunpack.c.l.b16 %v3553
    %v3616 = vunpack.c.h.b16 %v3553
    %v3617 = vunpack.c.l.b16 %v3554
    %v3618 = vpack.c.b16 %v3591, %v3582
    %v3619 = vpack.c.b16 %v3592, %v3583
    %v3620 = vpack.c.b16 %v3593, %v3584
    %v3621 = vpack.c.b16 %v3594, %v3585
    %v3622 = vpack.c.b16 %v3595, %v3586
    %v3623 = vpack.c.b16 %v3596, %v3587
    %v3624 = vpack.c.b16 %v3597, %v3588
    %v3625 = vpack.c.b16 %v3598, %v3589
    %v3626 = vpack.c.b16 %v3599, %v3590
    %v3627 = vpack.c.b16 %v3609, %v3600
    %v3628 = vpack.c.b16 %v3610, %v3601
    %v3629 = vpack.c.b16 %v3611, %v3602
    %v3630 = vpack.c.b16 %v3612, %v3603
    %v3631 = vpack.c.b16 %v3613, %v3604
    %v3632 = vpack.c.b16 %v3614, %v3605
    %v3633 = vpack.c.b16 %v3615, %v3606
    %v3634 = vpack.c.b16 %v3616, %v3607
    %v3635 = vpack.c.b16 %v3617, %v3608
    %vm3645 = vcmask 228352
    %v3647 = vsel %vm3645, %v3561, 0
    %v3650 = vsel %vm73, %v3627, 0
    %v3653 = vsel %vm73, %v3628, 0
    %v3656 = vsel %vm73, %v3629, 0
    %v3659 = vsel %vm73, %v3630, 0
    %v3662 = vsel %vm73, %v3631, 0
    %v3665 = vsel %vm73, %v3632, 0
    %v3668 = vsel %vm73, %v3633, 0
    %v3671 = vsel %vm73, %v3634, 0
    %v3674 = vsel %vm73, %v3635, 0
    %3676 = vmatprep.subr.bf16.mxu0 %v3619
    %3677 = vmatpush1.bf16.msra.mxu0 %v3618
    %3678 = vmatprep.subr.bf16.mxu0 %v3653
    %3679 = vmatpush1.bf16.msra.mxu0 %v3650
    %3680 = vmatprep.subr.bf16.mxu0 0
    %3681 = vmatpush1.bf16.msra.mxu0 0
    %3682 = vmatprep.subr.bf16.mxu0 0
    %3683 = vmatpush1.bf16.msra.mxu0 0
    %3684 = vmatprep.subr.bf16.mxu0 0
    %3685 = vmatpush1.bf16.msra.mxu0 0
    %3686 = vmatprep.subr.bf16.mxu0 0
    %3687 = vmatpush1.bf16.msra.mxu0 0
    %3688 = vmatprep.subr.bf16.mxu0 0
    %3689 = vmatpush1.bf16.msra.mxu0 0
    %3690 = vmatprep.subr.bf16.mxu0 0
    %3691 = vmatpush1.bf16.msra.mxu0 0
    %3692 = vmatprep.subr.bf16.mxu0 0
    %3693 = vmatpush1.bf16.msra.mxu0 0
    %3694 = vmatprep.subr.bf16.mxu0 0
    %3695 = vmatpush1.bf16.msra.mxu0 0
    %3696 = vmatprep.subr.bf16.mxu0 0
    %3697 = vmatpush1.bf16.msra.mxu0 0
    %3698 = vmatprep.subr.bf16.mxu0 0
    %3699 = vmatpush1.bf16.msra.mxu0 0
    %3700 = vmatprep.subr.bf16.mxu0 0
    %3701 = vmatpush1.bf16.msra.mxu0 0
    %3702 = vmatprep.subr.bf16.mxu0 0
    %3703 = vmatpush1.bf16.msra.mxu0 0
    %3704 = vmatprep.subr.bf16.mxu0 0
    %3705 = vmatpush1.bf16.msra.mxu0 0
    %3706 = vmatprep.subr.bf16.mxu0 0
    %3707 = vmatpush1.bf16.msra.mxu0 0
    %3708 = vmatprep.mubr.bf16.mxu0 0
    %3709 = vmatmul.mubr.bf16.gmra.mrb[0].mxu0 %v3647
    %v3710 = vpop.f32.mrb[0].mxu0
    %v3711 = vadd.f32 0.0, %v3710
    %v3712 = vpop.f32.mrb[0].mxu0
    %v3713 = vadd.f32 0.0, %v3712
    %v3714 = vpop.f32.mrb[0].mxu0
    %v3715 = vadd.f32 0.0, %v3714
    %v3716 = vpop.f32.mrb[0].mxu0
    %v3717 = vadd.f32 0.0, %v3716
    %3718 = vdwg.mxu0
    %3719 = vmatprep.subr.bf16.mxu0 %v3621
    %3720 = vmatpush1.bf16.msra.mxu0 %v3620
    %3721 = vmatprep.subr.bf16.mxu0 %v3659
    %3722 = vmatpush1.bf16.msra.mxu0 %v3656
    %3723 = vmatprep.subr.bf16.mxu0 0
    %3724 = vmatpush1.bf16.msra.mxu0 0
    %3725 = vmatprep.subr.bf16.mxu0 0
    %3726 = vmatpush1.bf16.msra.mxu0 0
    %3727 = vmatprep.subr.bf16.mxu0 0
    %3728 = vmatpush1.bf16.msra.mxu0 0
    %3729 = vmatprep.subr.bf16.mxu0 0
    %3730 = vmatpush1.bf16.msra.mxu0 0
    %3731 = vmatprep.subr.bf16.mxu0 0
    %3732 = vmatpush1.bf16.msra.mxu0 0
    %3733 = vmatprep.subr.bf16.mxu0 0
    %3734 = vmatpush1.bf16.msra.mxu0 0
    %3735 = vmatprep.subr.bf16.mxu0 0
    %3736 = vmatpush1.bf16.msra.mxu0 0
    %3737 = vmatprep.subr.bf16.mxu0 0
    %3738 = vmatpush1.bf16.msra.mxu0 0
    %3739 = vmatprep.subr.bf16.mxu0 0
    %3740 = vmatpush1.bf16.msra.mxu0 0
    %3741 = vmatprep.subr.bf16.mxu0 0
    %3742 = vmatpush1.bf16.msra.mxu0 0
    %3743 = vmatprep.subr.bf16.mxu0 0
    %3744 = vmatpush1.bf16.msra.mxu0 0
    %3745 = vmatprep.subr.bf16.mxu0 0
    %3746 = vmatpush1.bf16.msra.mxu0 0
    %3747 = vmatprep.subr.bf16.mxu0 0
    %3748 = vmatpush1.bf16.msra.mxu0 0
    %3749 = vmatprep.subr.bf16.mxu0 0
    %3750 = vmatpush1.bf16.msra.mxu0 0
    %3751 = vmatprep.mubr.bf16.mxu0 0
    %3752 = vmatmul.mubr.bf16.gmra.mrb[0].mxu0 %v3647
    %v3753 = vpop.f32.mrb[0].mxu0
    %v3754 = vadd.f32 0.0, %v3753
    %v3755 = vpop.f32.mrb[0].mxu0
    %v3756 = vadd.f32 0.0, %v3755
    %v3757 = vpop.f32.mrb[0].mxu0
    %v3758 = vadd.f32 0.0, %v3757
    %v3759 = vpop.f32.mrb[0].mxu0
    %v3760 = vadd.f32 0.0, %v3759
    %3761 = vdwg.mxu0
    %3762 = vmatprep.subr.bf16.mxu0 %v3623
    %3763 = vmatpush1.bf16.msra.mxu0 %v3622
    %3764 = vmatprep.subr.bf16.mxu0 %v3665
    %3765 = vmatpush1.bf16.msra.mxu0 %v3662
    %3766 = vmatprep.subr.bf16.mxu0 0
    %3767 = vmatpush1.bf16.msra.mxu0 0
    %3768 = vmatprep.subr.bf16.mxu0 0
    %3769 = vmatpush1.bf16.msra.mxu0 0
    %3770 = vmatprep.subr.bf16.mxu0 0
    %3771 = vmatpush1.bf16.msra.mxu0 0
    %3772 = vmatprep.subr.bf16.mxu0 0
    %3773 = vmatpush1.bf16.msra.mxu0 0
    %3774 = vmatprep.subr.bf16.mxu0 0
    %3775 = vmatpush1.bf16.msra.mxu0 0
    %3776 = vmatprep.subr.bf16.mxu0 0
    %3777 = vmatpush1.bf16.msra.mxu0 0
    %3778 = vmatprep.subr.bf16.mxu0 0
    %3779 = vmatpush1.bf16.msra.mxu0 0
    %3780 = vmatprep.subr.bf16.mxu0 0
    %3781 = vmatpush1.bf16.msra.mxu0 0
    %3782 = vmatprep.subr.bf16.mxu0 0
    %3783 = vmatpush1.bf16.msra.mxu0 0
    %3784 = vmatprep.subr.bf16.mxu0 0
    %3785 = vmatpush1.bf16.msra.mxu0 0
    %3786 = vmatprep.subr.bf16.mxu0 0
    %3787 = vmatpush1.bf16.msra.mxu0 0
    %3788 = vmatprep.subr.bf16.mxu0 0
    %3789 = vmatpush1.bf16.msra.mxu0 0
    %3790 = vmatprep.subr.bf16.mxu0 0
    %3791 = vmatpush1.bf16.msra.mxu0 0
    %3792 = vmatprep.subr.bf16.mxu0 0
    %3793 = vmatpush1.bf16.msra.mxu0 0
    %3794 = vmatprep.mubr.bf16.mxu0 0
    %3795 = vmatmul.mubr.bf16.gmra.mrb[0].mxu0 %v3647
    %v3796 = vpop.f32.mrb[0].mxu0
    %v3797 = vadd.f32 0.0, %v3796
    %v3798 = vpop.f32.mrb[0].mxu0
    %v3799 = vadd.f32 0.0, %v3798
    %v3800 = vpop.f32.mrb[0].mxu0
    %v3801 = vadd.f32 0.0, %v3800
    %v3802 = vpop.f32.mrb[0].mxu0
    %v3803 = vadd.f32 0.0, %v3802
    %3804 = vdwg.mxu0
    %3805 = vmatprep.subr.bf16.mxu0 %v3625
    %3806 = vmatpush1.bf16.msra.mxu0 %v3624
    %3807 = vmatprep.subr.bf16.mxu0 %v3671
    %3808 = vmatpush1.bf16.msra.mxu0 %v3668
    %3809 = vmatprep.subr.bf16.mxu0 0
    %3810 = vmatpush1.bf16.msra.mxu0 0
    %3811 = vmatprep.subr.bf16.mxu0 0
    %3812 = vmatpush1.bf16.msra.mxu0 0
    %3813 = vmatprep.subr.bf16.mxu0 0
    %3814 = vmatpush1.bf16.msra.mxu0 0
    %3815 = vmatprep.subr.bf16.mxu0 0
    %3816 = vmatpush1.bf16.msra.mxu0 0
    %3817 = vmatprep.subr.bf16.mxu0 0
    %3818 = vmatpush1.bf16.msra.mxu0 0
    %3819 = vmatprep.subr.bf16.mxu0 0
    %3820 = vmatpush1.bf16.msra.mxu0 0
    %3821 = vmatprep.subr.bf16.mxu0 0
    %3822 = vmatpush1.bf16.msra.mxu0 0
    %3823 = vmatprep.subr.bf16.mxu0 0
    %3824 = vmatpush1.bf16.msra.mxu0 0
    %3825 = vmatprep.subr.bf16.mxu0 0
    %3826 = vmatpush1.bf16.msra.mxu0 0
    %3827 = vmatprep.subr.bf16.mxu0 0
    %3828 = vmatpush1.bf16.msra.mxu0 0
    %3829 = vmatprep.subr.bf16.mxu0 0
    %3830 = vmatpush1.bf16.msra.mxu0 0
    %3831 = vmatprep.subr.bf16.mxu0 0
    %3832 = vmatpush1.bf16.msra.mxu0 0
    %3833 = vmatprep.subr.bf16.mxu0 0
    %3834 = vmatpush1.bf16.msra.mxu0 0
    %3835 = vmatprep.subr.bf16.mxu0 0
    %3836 = vmatpush1.bf16.msra.mxu0 0
    %3837 = vmatprep.mubr.bf16.mxu0 0
    %3838 = vmatmul.mubr.bf16.gmra.mrb[0].mxu0 %v3647
    %v3839 = vpop.f32.mrb[0].mxu0
    %v3840 = vadd.f32 0.0, %v3839
    %v3841 = vpop.f32.mrb[0].mxu0
    %v3842 = vadd.f32 0.0, %v3841
    %v3843 = vpop.f32.mrb[0].mxu0
    %v3844 = vadd.f32 0.0, %v3843
    %v3845 = vpop.f32.mrb[0].mxu0
    %v3846 = vadd.f32 0.0, %v3845
    %3847 = vdwg.mxu0
    %3848 = vmatprep.subr.bf16.mxu0 0
    %3849 = vmatpush1.bf16.msra.mxu0 %v3626
    %3850 = vmatprep.subr.bf16.mxu0 0
    %3851 = vmatpush1.bf16.msra.mxu0 %v3674
    %3852 = vmatprep.subr.bf16.mxu0 0
    %3853 = vmatpush1.bf16.msra.mxu0 0
    %3854 = vmatprep.subr.bf16.mxu0 0
    %3855 = vmatpush1.bf16.msra.mxu0 0
    %3856 = vmatprep.subr.bf16.mxu0 0
    %3857 = vmatpush1.bf16.msra.mxu0 0
    %3858 = vmatprep.subr.bf16.mxu0 0
    %3859 = vmatpush1.bf16.msra.mxu0 0
    %3860 = vmatprep.subr.bf16.mxu0 0
    %3861 = vmatpush1.bf16.msra.mxu0 0
    %3862 = vmatprep.subr.bf16.mxu0 0
    %3863 = vmatpush1.bf16.msra.mxu0 0
    %3864 = vmatprep.subr.bf16.mxu0 0
    %3865 = vmatpush1.bf16.msra.mxu0 0
    %3866 = vmatprep.subr.bf16.mxu0 0
    %3867 = vmatpush1.bf16.msra.mxu0 0
    %3868 = vmatprep.subr.bf16.mxu0 0
    %3869 = vmatpush1.bf16.msra.mxu0 0
    %3870 = vmatprep.subr.bf16.mxu0 0
    %3871 = vmatpush1.bf16.msra.mxu0 0
    %3872 = vmatprep.subr.bf16.mxu0 0
    %3873 = vmatpush1.bf16.msra.mxu0 0
    %3874 = vmatprep.subr.bf16.mxu0 0
    %3875 = vmatpush1.bf16.msra.mxu0 0
    %3876 = vmatprep.subr.bf16.mxu0 0
    %3877 = vmatpush1.bf16.msra.mxu0 0
    %3878 = vmatprep.subr.bf16.mxu0 0
    %3879 = vmatpush1.bf16.msra.mxu0 0
    %3880 = vmatprep.mubr.bf16.mxu0 0
    %3881 = vmatmul.mubr.bf16.gmra.mrb[0].mxu0 %v3647
    %v3882 = vpop.f32.mrb[0].mxu0
    %v3883 = vadd.f32 0.0, %v3882
    %v3884 = vpop.f32.mrb[0].mxu0
    %v3885 = vpop.f32.mrb[0].mxu0
    %v3886 = vadd.f32 0.0, %v3885
    %v3887 = vpop.f32.mrb[0].mxu0
    %3888 = vdwg.mxu0
    %v3889 = vpack.c.bf16 %v3715, %v3711
    %v3890 = vpack.c.bf16 %v3717, %v3713
    %v3891 = vpack.c.bf16 %v3758, %v3754
    %v3892 = vpack.c.bf16 %v3760, %v3756
    %v3893 = vpack.c.bf16 %v3801, %v3797
    %v3894 = vpack.c.bf16 %v3803, %v3799
    %v3895 = vpack.c.bf16 %v3844, %v3840
    %v3896 = vpack.c.bf16 %v3846, %v3842
    %v3897 = vpack.c.bf16 %v3886, %v3883
    %v3898 = vld [vmem:[#allocation5] sm:$0xf]
    %v3899 = vld [vmem:[#allocation5 + $0x4] sm:$0xf]
    %v3900 = vld [vmem:[#allocation5 + $0x8] sm:$0xf]
    %v3901 = vld [vmem:[#allocation5 + $0xc] sm:$0xf]
    %v3902 = vld [vmem:[#allocation5 + $0x10] sm:$0xf]
    %v3903 = vld [vmem:[#allocation5 + $0x14] sm:$0xf]
    %v3904 = vld [vmem:[#allocation5 + $0x18] sm:$0xf]
    %v3905 = vld [vmem:[#allocation5 + $0x1c] sm:$0xf]
    %v3906 = vld [vmem:[#allocation5 + $0x20] sm:$0xf]
    %v3907 = vld [vmem:[#allocation5 + $0x24] sm:$0xf]
    %v3908 = vld [vmem:[#allocation5 + $0x28] sm:$0xf]
    %v3909 = vld [vmem:[#allocation5 + $0x2c] sm:$0xf]
    %v3910 = vld [vmem:[#allocation5 + $0x30] sm:$0xf]
    %v3911 = vld [vmem:[#allocation5 + $0x34] sm:$0xf]
    %v3912 = vld [vmem:[#allocation5 + $0x38] sm:$0xf]
    %v3913 = vld [vmem:[#allocation5 + $0x3c] sm:$0xf]
    %v3914 = vld [vmem:[#allocation5 + $0x40] sm:$0xf]
    %v3915 = vld [vmem:[#allocation5 + $0x44] sm:$0xf]
    %v3916 = vld [vmem:[#allocation5 + $0x48] sm:$0xf]
    %v3917 = vld [vmem:[#allocation5 + $0x4c] sm:$0xf]
    %v3918 = vld [vmem:[#allocation5 + $0x50] sm:$0xf]
    %v3919 = vld [vmem:[#allocation5 + $0x54] sm:$0xf]
    %v3920 = vld [vmem:[#allocation5 + $0x58] sm:$0xf]
    %v3921 = vld [vmem:[#allocation5 + $0x5c] sm:$0xf]
    %v3922 = vld [vmem:[#allocation5 + $0x60] sm:$0xf]
    %v3923 = vld [vmem:[#allocation5 + $0x64] sm:$0xf]
    %v3924 = vld [vmem:[#allocation5 + $0x68] sm:$0xf]
    %v3925 = vld [vmem:[#allocation5 + $0x6c] sm:$0xf]
    %v3926 = vld [vmem:[#allocation5 + $0x70] sm:$0xf]
    %v3927 = vld [vmem:[#allocation5 + $0x74] sm:$0xf]
    %v3928 = vld [vmem:[#allocation5 + $0x78] sm:$0xf]
    %v3929 = vld [vmem:[#allocation5 + $0x7c] sm:$0xf]
    %v3930 = vld [vmem:[#allocation5 + $0x80] sm:$0xf]
    %v3931 = vld [vmem:[#allocation5 + $0x84] sm:$0xf]
    %v3932 = vld [vmem:[#allocation5 + $0x88] sm:$0xf]
    %v3933 = vld [vmem:[#allocation5 + $0x8c] sm:$0xf]
    %v3934 = vld [vmem:[#allocation5 + $0x90] sm:$0xf]
    %v3935 = vld [vmem:[#allocation5 + $0x94] sm:$0xf]
    %v3936 = vld [vmem:[#allocation5 + $0x98] sm:$0xf]
    %v3937 = vld [vmem:[#allocation5 + $0x9c] sm:$0xf]
    %v3938 = vld [vmem:[#allocation5 + $0xa0] sm:$0xf]
    %v3939 = vld [vmem:[#allocation5 + $0xa4] sm:$0xf]
    %v3940 = vld [vmem:[#allocation5 + $0xa8] sm:$0xf]
    %v3941 = vld [vmem:[#allocation5 + $0xac] sm:$0xf]
    %v3942 = vld [vmem:[#allocation5 + $0xb0] sm:$0xf]
    %v3943 = vld [vmem:[#allocation5 + $0xb4] sm:$0xf]
    %v3944 = vld [vmem:[#allocation5 + $0xb8] sm:$0xf]
    %v3945 = vld [vmem:[#allocation5 + $0xbc] sm:$0xf]
    %v3946 = vld [vmem:[#allocation5 + $0xc0] sm:$0xf]
    %v3947 = vld [vmem:[#allocation5 + $0xc4] sm:$0xf]
    %v3948 = vld [vmem:[#allocation5 + $0xc8] sm:$0xf]
    %v3949 = vld [vmem:[#allocation5 + $0xcc] sm:$0xf]
    %v3950 = vld [vmem:[#allocation5 + $0xd0] sm:$0xf]
    %v3951 = vld [vmem:[#allocation5 + $0xd4] sm:$0xf]
    %v3952 = vld [vmem:[#allocation5 + $0xd8] sm:$0xf]
    %v3953 = vld [vmem:[#allocation5 + $0xdc] sm:$0xf]
    %v3954 = vld [vmem:[#allocation5 + $0xe0] sm:$0xf]
    %v3955 = vld [vmem:[#allocation5 + $0xe4] sm:$0xf]
    %v3956 = vld [vmem:[#allocation5 + $0xe8] sm:$0xf]
    %v3957 = vld [vmem:[#allocation5 + $0xec] sm:$0xf]
    %v3958 = vld [vmem:[#allocation5 + $0xf0] sm:$0xf]
    %v3959 = vld [vmem:[#allocation5 + $0xf4] sm:$0xf]
    %v3960 = vld [vmem:[#allocation5 + $0xf8] sm:$0xf]
    %v3961 = vld [vmem:[#allocation5 + $0xfc] sm:$0xf]
    %v3962 = vld [vmem:[#allocation5 + $0x100] sm:$0xf]
    %v3963 = vld [vmem:[#allocation5 + $0x104] sm:$0xf]
    %v3964 = vld [vmem:[#allocation5 + $0x108] sm:$0xf]
    %v3965 = vld [vmem:[#allocation5 + $0x10c] sm:$0xf]
    %v3966 = vld [vmem:[#allocation5 + $0x110] sm:$0xf]
    %v3967 = vld [vmem:[#allocation5 + $0x114] sm:$0xf]
    %v3968 = vld [vmem:[#allocation5 + $0x118] sm:$0xf]
    %v3969 = vld [vmem:[#allocation5 + $0x11c] sm:$0xf]
    %v3970 = vld [vmem:[#allocation5 + $0x120] sm:$0xf]
    %v3971 = vld [vmem:[#allocation5 + $0x124] sm:$0xf]
    %v3972 = vld [vmem:[#allocation5 + $0x128] sm:$0xf]
    %v3973 = vld [vmem:[#allocation5 + $0x12c] sm:$0xf]
    %v3974 = vld [vmem:[#allocation5 + $0x130] sm:$0xf]
    %v3975 = vld [vmem:[#allocation5 + $0x134] sm:$0xf]
    %v3976 = vld [vmem:[#allocation5 + $0x138] sm:$0xf]
    %v3977 = vld [vmem:[#allocation5 + $0x13c] sm:$0xf]
    %v3978 = vld [vmem:[#allocation5 + $0x140] sm:$0xf]
    %v3979 = vld [vmem:[#allocation5 + $0x144] sm:$0xf]
    %v3980 = vld [vmem:[#allocation5 + $0x148] sm:$0xf]
    %v3981 = vld [vmem:[#allocation5 + $0x14c] sm:$0xf]
    %v3982 = vld [vmem:[#allocation5 + $0x150] sm:$0xf]
    %v3983 = vld [vmem:[#allocation5 + $0x154] sm:$0xf]
    %v3984 = vld [vmem:[#allocation5 + $0x158] sm:$0xf]
    %v3985 = vld [vmem:[#allocation5 + $0x15c] sm:$0xf]
    %v3986 = vld [vmem:[#allocation5 + $0x160] sm:$0xf]
    %v3987 = vld [vmem:[#allocation5 + $0x164] sm:$0xf]
    %v3988 = vld [vmem:[#allocation5 + $0x168] sm:$0xf]
    %v3989 = vld [vmem:[#allocation5 + $0x16c] sm:$0xf]
    %v3990 = vld [vmem:[#allocation5 + $0x170] sm:$0xf]
    %v3991 = vld [vmem:[#allocation5 + $0x174] sm:$0xf]
    %v3992 = vld [vmem:[#allocation5 + $0x178] sm:$0xf]
    %v3993 = vld [vmem:[#allocation5 + $0x17c] sm:$0xf]
    %v3994 = vld [vmem:[#allocation5 + $0x180] sm:$0xf]
    %v3995 = vld [vmem:[#allocation5 + $0x184] sm:$0xf]
    %v3996 = vld [vmem:[#allocation5 + $0x188] sm:$0xf]
    %v3997 = vld [vmem:[#allocation5 + $0x18c] sm:$0xf]
    %v3998 = vld [vmem:[#allocation5 + $0x190] sm:$0xf]
    %v3999 = vld [vmem:[#allocation5 + $0x194] sm:$0xf]
    %v4000 = vld [vmem:[#allocation5 + $0x198] sm:$0xf]
    %v4001 = vld [vmem:[#allocation5 + $0x19c] sm:$0xf]
    %v4002 = vld [vmem:[#allocation5 + $0x1a0] sm:$0xf]
    %v4003 = vld [vmem:[#allocation5 + $0x1a4] sm:$0xf]
    %v4004 = vld [vmem:[#allocation5 + $0x1a8] sm:$0xf]
    %v4005 = vld [vmem:[#allocation5 + $0x1ac] sm:$0xf]
    %v4006 = vld [vmem:[#allocation5 + $0x1b0] sm:$0xf]
    %v4007 = vld [vmem:[#allocation5 + $0x1b4] sm:$0xf]
    %v4008 = vld [vmem:[#allocation5 + $0x1b8] sm:$0xf]
    %v4009 = vld [vmem:[#allocation5 + $0x1bc] sm:$0xf]
    %v4010 = vld [vmem:[#allocation5 + $0x1c0] sm:$0xf]
    %v4011 = vld [vmem:[#allocation5 + $0x1c4] sm:$0xf]
    %v4012 = vld [vmem:[#allocation5 + $0x1c8] sm:$0xf]
    %v4013 = vld [vmem:[#allocation5 + $0x1cc] sm:$0xf]
    %v4014 = vld [vmem:[#allocation5 + $0x1d0] sm:$0xf]
    %v4015 = vld [vmem:[#allocation5 + $0x1d4] sm:$0xf]
    %v4016 = vld [vmem:[#allocation5 + $0x1d8] sm:$0xf]
    %v4017 = vld [vmem:[#allocation5 + $0x1dc] sm:$0xf]
    %v4018 = vld [vmem:[#allocation5 + $0x1e0] sm:$0xf]
    %v4019 = vld [vmem:[#allocation5 + $0x1e4] sm:$0xf]
    %v4020 = vld [vmem:[#allocation5 + $0x1e8] sm:$0xf]
    %v4021 = vld [vmem:[#allocation5 + $0x1ec] sm:$0xf]
    %v4022 = vld [vmem:[#allocation5 + $0x1f0] sm:$0xf]
    %v4023 = vld [vmem:[#allocation5 + $0x1f4] sm:$0xf]
    %v4024 = vld [vmem:[#allocation5 + $0x1f8] sm:$0xf]
    %v4025 = vld [vmem:[#allocation5 + $0x1fc] sm:$0xf]
    %v4026 = vld [vmem:[#allocation5 + $0x200] sm:$0xf]
    %v4027 = vld [vmem:[#allocation5 + $0x204] sm:$0xf]
    %v4028 = vld [vmem:[#allocation5 + $0x208] sm:$0xf]
    %v4029 = vld [vmem:[#allocation5 + $0x20c] sm:$0xf]
    %v4030 = vld [vmem:[#allocation5 + $0x210] sm:$0xf]
    %v4031 = vld [vmem:[#allocation5 + $0x214] sm:$0xf]
    %v4032 = vld [vmem:[#allocation5 + $0x218] sm:$0xf]
    %v4033 = vld [vmem:[#allocation5 + $0x21c] sm:$0xf]
    %v4034 = vld [vmem:[#allocation5 + $0x220] sm:$0xf]
    %v4035 = vld [vmem:[#allocation5 + $0x224] sm:$0xf]
    %v4036 = vld [vmem:[#allocation5 + $0x228] sm:$0xf]
    %v4037 = vld [vmem:[#allocation5 + $0x22c] sm:$0xf]
    %v4038 = vld [vmem:[#allocation5 + $0x230] sm:$0xf]
    %v4039 = vld [vmem:[#allocation5 + $0x234] sm:$0xf]
    %v4040 = vld [vmem:[#allocation5 + $0x238] sm:$0xf]
    %v4041 = vld [vmem:[#allocation5 + $0x23c] sm:$0xf]
    %v4186 = vunpack.c.l.b16 %v3898
    %v4187 = vunpack.c.l.b16 %v3899
    %v4188 = vunpack.c.l.b16 %v3900
    %v4189 = vunpack.c.l.b16 %v3901
    %v4190 = vunpack.c.l.b16 %v3902
    %v4191 = vunpack.c.l.b16 %v3903
    %v4192 = vunpack.c.l.b16 %v3904
    %v4193 = vunpack.c.l.b16 %v3905
    %v4194 = vunpack.c.l.b16 %v3906
    %v4195 = vunpack.c.l.b16 %v3907
    %v4196 = vunpack.c.l.b16 %v3908
    %v4197 = vunpack.c.l.b16 %v3909
    %v4198 = vunpack.c.l.b16 %v3910
    %v4199 = vunpack.c.l.b16 %v3911
    %v4200 = vunpack.c.l.b16 %v3912
    %v4201 = vunpack.c.l.b16 %v3913
    %v4202 = vunpack.c.l.b16 %v3914
    %v4203 = vunpack.c.l.b16 %v3915
    %v4204 = vunpack.c.l.b16 %v3916
    %v4205 = vunpack.c.l.b16 %v3917
    %v4206 = vunpack.c.l.b16 %v3918
    %v4207 = vunpack.c.l.b16 %v3919
    %v4208 = vunpack.c.l.b16 %v3920
    %v4209 = vunpack.c.l.b16 %v3921
    %v4210 = vunpack.c.l.b16 %v3922
    %v4211 = vunpack.c.l.b16 %v3923
    %v4212 = vunpack.c.l.b16 %v3924
    %v4213 = vunpack.c.l.b16 %v3925
    %v4214 = vunpack.c.l.b16 %v3926
    %v4215 = vunpack.c.l.b16 %v3927
    %v4216 = vunpack.c.l.b16 %v3928
    %v4217 = vunpack.c.l.b16 %v3929
    %v4218 = vunpack.c.l.b16 %v3930
    %v4219 = vunpack.c.l.b16 %v3931
    %v4220 = vunpack.c.l.b16 %v3932
    %v4221 = vunpack.c.l.b16 %v3933
    %v4222 = vunpack.c.l.b16 %v3934
    %v4223 = vunpack.c.l.b16 %v3935
    %v4224 = vunpack.c.l.b16 %v3936
    %v4225 = vunpack.c.l.b16 %v3937
    %v4226 = vunpack.c.l.b16 %v3938
    %v4227 = vunpack.c.l.b16 %v3939
    %v4228 = vunpack.c.l.b16 %v3940
    %v4229 = vunpack.c.l.b16 %v3941
    %v4230 = vunpack.c.l.b16 %v3942
    %v4231 = vunpack.c.l.b16 %v3943
    %v4232 = vunpack.c.l.b16 %v3944
    %v4233 = vunpack.c.l.b16 %v3945
    %v4234 = vunpack.c.l.b16 %v3946
    %v4235 = vunpack.c.l.b16 %v3947
    %v4236 = vunpack.c.l.b16 %v3948
    %v4237 = vunpack.c.l.b16 %v3949
    %v4238 = vunpack.c.l.b16 %v3950
    %v4239 = vunpack.c.l.b16 %v3951
    %v4240 = vunpack.c.l.b16 %v3952
    %v4241 = vunpack.c.l.b16 %v3953
    %v4242 = vunpack.c.l.b16 %v3954
    %v4243 = vunpack.c.l.b16 %v3955
    %v4244 = vunpack.c.l.b16 %v3956
    %v4245 = vunpack.c.l.b16 %v3957
    %v4246 = vunpack.c.l.b16 %v3958
    %v4247 = vunpack.c.l.b16 %v3959
    %v4248 = vunpack.c.l.b16 %v3960
    %v4249 = vunpack.c.l.b16 %v3961
    %v4250 = vunpack.c.l.b16 %v3962
    %v4251 = vunpack.c.l.b16 %v3963
    %v4252 = vunpack.c.l.b16 %v3964
    %v4253 = vunpack.c.l.b16 %v3965
    %v4254 = vunpack.c.l.b16 %v3966
    %v4255 = vunpack.c.l.b16 %v3967
    %v4256 = vunpack.c.l.b16 %v3968
    %v4257 = vunpack.c.l.b16 %v3969
    %v4258 = vunpack.c.l.b16 %v3970
    %v4259 = vunpack.c.l.b16 %v3971
    %v4260 = vunpack.c.l.b16 %v3972
    %v4261 = vunpack.c.l.b16 %v3973
    %v4262 = vunpack.c.l.b16 %v3974
    %v4263 = vunpack.c.l.b16 %v3975
    %v4264 = vunpack.c.l.b16 %v3976
    %v4265 = vunpack.c.l.b16 %v3977
    %v4266 = vunpack.c.l.b16 %v3978
    %v4267 = vunpack.c.l.b16 %v3979
    %v4268 = vunpack.c.l.b16 %v3980
    %v4269 = vunpack.c.l.b16 %v3981
    %v4270 = vunpack.c.l.b16 %v3982
    %v4271 = vunpack.c.l.b16 %v3983
    %v4272 = vunpack.c.l.b16 %v3984
    %v4273 = vunpack.c.l.b16 %v3985
    %v4274 = vunpack.c.l.b16 %v3986
    %v4275 = vunpack.c.l.b16 %v3987
    %v4276 = vunpack.c.l.b16 %v3988
    %v4277 = vunpack.c.l.b16 %v3989
    %v4278 = vunpack.c.l.b16 %v3990
    %v4279 = vunpack.c.l.b16 %v3991
    %v4280 = vunpack.c.l.b16 %v3992
    %v4281 = vunpack.c.l.b16 %v3993
    %v4282 = vunpack.c.l.b16 %v3994
    %v4283 = vunpack.c.l.b16 %v3995
    %v4284 = vunpack.c.l.b16 %v3996
    %v4285 = vunpack.c.l.b16 %v3997
    %v4286 = vunpack.c.l.b16 %v3998
    %v4287 = vunpack.c.l.b16 %v3999
    %v4288 = vunpack.c.l.b16 %v4000
    %v4289 = vunpack.c.l.b16 %v4001
    %v4290 = vunpack.c.l.b16 %v4002
    %v4291 = vunpack.c.l.b16 %v4003
    %v4292 = vunpack.c.l.b16 %v4004
    %v4293 = vunpack.c.l.b16 %v4005
    %v4294 = vunpack.c.l.b16 %v4006
    %v4295 = vunpack.c.l.b16 %v4007
    %v4296 = vunpack.c.l.b16 %v4008
    %v4297 = vunpack.c.l.b16 %v4009
    %v4298 = vunpack.c.l.b16 %v4010
    %v4299 = vunpack.c.l.b16 %v4011
    %v4300 = vunpack.c.l.b16 %v4012
    %v4301 = vunpack.c.l.b16 %v4013
    %v4302 = vunpack.c.l.b16 %v4014
    %v4303 = vunpack.c.l.b16 %v4015
    %v4304 = vunpack.c.l.b16 %v4016
    %v4305 = vunpack.c.l.b16 %v4017
    %v4306 = vunpack.c.l.b16 %v4018
    %v4307 = vunpack.c.l.b16 %v4019
    %v4308 = vunpack.c.l.b16 %v4020
    %v4309 = vunpack.c.l.b16 %v4021
    %v4310 = vunpack.c.l.b16 %v4022
    %v4311 = vunpack.c.l.b16 %v4023
    %v4312 = vunpack.c.l.b16 %v4024
    %v4313 = vunpack.c.l.b16 %v4025
    %v4314 = vunpack.c.l.b16 %v4026
    %v4315 = vunpack.c.l.b16 %v4027
    %v4316 = vunpack.c.l.b16 %v4028
    %v4317 = vunpack.c.l.b16 %v4029
    %v4318 = vunpack.c.l.b16 %v4030
    %v4319 = vunpack.c.l.b16 %v4031
    %v4320 = vunpack.c.l.b16 %v4032
    %v4321 = vunpack.c.l.b16 %v4033
    %v4322 = vunpack.c.l.b16 %v4034
    %v4323 = vunpack.c.l.b16 %v4035
    %v4324 = vunpack.c.l.b16 %v4036
    %v4325 = vunpack.c.l.b16 %v4037
    %v4326 = vunpack.c.l.b16 %v4038
    %v4327 = vunpack.c.l.b16 %v4039
    %v4328 = vunpack.c.l.b16 %v4040
    %v4329 = vunpack.c.l.b16 %v4041
    %v4330 = vpack.c.b16 %v4187, %v4186
    %v4331 = vpack.c.b16 %v4189, %v4188
    %v4332 = vpack.c.b16 %v4191, %v4190
    %v4333 = vpack.c.b16 %v4193, %v4192
    %v4334 = vpack.c.b16 %v4195, %v4194
    %v4335 = vpack.c.b16 %v4197, %v4196
    %v4336 = vpack.c.b16 %v4199, %v4198
    %v4337 = vpack.c.b16 %v4201, %v4200
    %v4338 = vpack.c.b16 %v4203, %v4202
    %v4339 = vpack.c.b16 %v4205, %v4204
    %v4340 = vpack.c.b16 %v4207, %v4206
    %v4341 = vpack.c.b16 %v4209, %v4208
    %v4342 = vpack.c.b16 %v4211, %v4210
    %v4343 = vpack.c.b16 %v4213, %v4212
    %v4344 = vpack.c.b16 %v4215, %v4214
    %v4345 = vpack.c.b16 %v4217, %v4216
    %v4346 = vpack.c.b16 %v4219, %v4218
    %v4347 = vpack.c.b16 %v4221, %v4220
    %v4348 = vpack.c.b16 %v4223, %v4222
    %v4349 = vpack.c.b16 %v4225, %v4224
    %v4350 = vpack.c.b16 %v4227, %v4226
    %v4351 = vpack.c.b16 %v4229, %v4228
    %v4352 = vpack.c.b16 %v4231, %v4230
    %v4353 = vpack.c.b16 %v4233, %v4232
    %v4354 = vpack.c.b16 %v4235, %v4234
    %v4355 = vpack.c.b16 %v4237, %v4236
    %v4356 = vpack.c.b16 %v4239, %v4238
    %v4357 = vpack.c.b16 %v4241, %v4240
    %v4358 = vpack.c.b16 %v4243, %v4242
    %v4359 = vpack.c.b16 %v4245, %v4244
    %v4360 = vpack.c.b16 %v4247, %v4246
    %v4361 = vpack.c.b16 %v4249, %v4248
    %v4362 = vpack.c.b16 %v4251, %v4250
    %v4363 = vpack.c.b16 %v4253, %v4252
    %v4364 = vpack.c.b16 %v4255, %v4254
    %v4365 = vpack.c.b16 %v4257, %v4256
    %v4366 = vpack.c.b16 %v4259, %v4258
    %v4367 = vpack.c.b16 %v4261, %v4260
    %v4368 = vpack.c.b16 %v4263, %v4262
    %v4369 = vpack.c.b16 %v4265, %v4264
    %v4370 = vpack.c.b16 %v4267, %v4266
    %v4371 = vpack.c.b16 %v4269, %v4268
    %v4372 = vpack.c.b16 %v4271, %v4270
    %v4373 = vpack.c.b16 %v4273, %v4272
    %v4374 = vpack.c.b16 %v4275, %v4274
    %v4375 = vpack.c.b16 %v4277, %v4276
    %v4376 = vpack.c.b16 %v4279, %v4278
    %v4377 = vpack.c.b16 %v4281, %v4280
    %v4378 = vpack.c.b16 %v4283, %v4282
    %v4379 = vpack.c.b16 %v4285, %v4284
    %v4380 = vpack.c.b16 %v4287, %v4286
    %v4381 = vpack.c.b16 %v4289, %v4288
    %v4382 = vpack.c.b16 %v4291, %v4290
    %v4383 = vpack.c.b16 %v4293, %v4292
    %v4384 = vpack.c.b16 %v4295, %v4294
    %v4385 = vpack.c.b16 %v4297, %v4296
    %v4386 = vpack.c.b16 %v4299, %v4298
    %v4387 = vpack.c.b16 %v4301, %v4300
    %v4388 = vpack.c.b16 %v4303, %v4302
    %v4389 = vpack.c.b16 %v4305, %v4304
    %v4390 = vpack.c.b16 %v4307, %v4306
    %v4391 = vpack.c.b16 %v4309, %v4308
    %v4392 = vpack.c.b16 %v4311, %v4310
    %v4393 = vpack.c.b16 %v4313, %v4312
    %v4394 = vpack.c.b16 %v4315, %v4314
    %v4395 = vpack.c.b16 %v4317, %v4316
    %v4396 = vpack.c.b16 %v4319, %v4318
    %v4397 = vpack.c.b16 %v4321, %v4320
    %v4398 = vpack.c.b16 %v4323, %v4322
    %v4399 = vpack.c.b16 %v4325, %v4324
    %v4400 = vpack.c.b16 %v4327, %v4326
    %v4401 = vpack.c.b16 %v4329, %v4328
    %4474 = vmatprep.subr.bf16.mxu0 0
    %4475 = vmatpush1.bf16.msra.mxu0 %v4330
    %4476 = vmatprep.subr.bf16.mxu0 0
    %4477 = vmatpush1.bf16.msra.mxu0 %v4331
    %4478 = vmatprep.subr.bf16.mxu0 0
    %4479 = vmatpush1.bf16.msra.mxu0 %v4332
    %4480 = vmatprep.subr.bf16.mxu0 0
    %4481 = vmatpush1.bf16.msra.mxu0 %v4333
    %4482 = vmatprep.subr.bf16.mxu0 0
    %4483 = vmatpush1.bf16.msra.mxu0 %v4334
    %4484 = vmatprep.subr.bf16.mxu0 0
    %4485 = vmatpush1.bf16.msra.mxu0 %v4335
    %4486 = vmatprep.subr.bf16.mxu0 0
    %4487 = vmatpush1.bf16.msra.mxu0 %v4336
    %4488 = vmatprep.subr.bf16.mxu0 0
    %4489 = vmatpush1.bf16.msra.mxu0 %v4337
    %4490 = vmatprep.subr.bf16.mxu0 0
    %4491 = vmatpush1.bf16.msra.mxu0 %v4338
    %4492 = vmatprep.subr.bf16.mxu0 0
    %4493 = vmatpush1.bf16.msra.mxu0 %v4339
    %4494 = vmatprep.subr.bf16.mxu0 0
    %4495 = vmatpush1.bf16.msra.mxu0 %v4340
    %4496 = vmatprep.subr.bf16.mxu0 0
    %4497 = vmatpush1.bf16.msra.mxu0 %v4341
    %4498 = vmatprep.subr.bf16.mxu0 0
    %4499 = vmatpush1.bf16.msra.mxu0 %v4342
    %4500 = vmatprep.subr.bf16.mxu0 0
    %4501 = vmatpush1.bf16.msra.mxu0 %v4343
    %4502 = vmatprep.subr.bf16.mxu0 0
    %4503 = vmatpush1.bf16.msra.mxu0 %v4344
    %4504 = vmatprep.subr.bf16.mxu0 0
    %4505 = vmatpush1.bf16.msra.mxu0 %v4345
    %4506 = vmatprep.mubr.bf16.mxu0 %v3890
    %4507 = vmatmul.mubr.bf16.gmra.mrb[0].mxu0 %v3889
    %v4508 = vpop.f32.mrb[0].mxu0
    %v4509 = vadd.f32 0.0, %v4508
    %v4510 = vpop.f32.mrb[0].mxu0
    %v4511 = vpop.f32.mrb[0].mxu0
    %v4512 = vadd.f32 0.0, %v4511
    %v4513 = vpop.f32.mrb[0].mxu0
    %4514 = vdwg.mxu0
    %4515 = vmatprep.subr.bf16.mxu0 0
    %4516 = vmatpush1.bf16.msra.mxu0 %v4346
    %4517 = vmatprep.subr.bf16.mxu0 0
    %4518 = vmatpush1.bf16.msra.mxu0 %v4347
    %4519 = vmatprep.subr.bf16.mxu0 0
    %4520 = vmatpush1.bf16.msra.mxu0 %v4348
    %4521 = vmatprep.subr.bf16.mxu0 0
    %4522 = vmatpush1.bf16.msra.mxu0 %v4349
    %4523 = vmatprep.subr.bf16.mxu0 0
    %4524 = vmatpush1.bf16.msra.mxu0 %v4350
    %4525 = vmatprep.subr.bf16.mxu0 0
    %4526 = vmatpush1.bf16.msra.mxu0 %v4351
    %4527 = vmatprep.subr.bf16.mxu0 0
    %4528 = vmatpush1.bf16.msra.mxu0 %v4352
    %4529 = vmatprep.subr.bf16.mxu0 0
    %4530 = vmatpush1.bf16.msra.mxu0 %v4353
    %4531 = vmatprep.subr.bf16.mxu0 0
    %4532 = vmatpush1.bf16.msra.mxu0 %v4354
    %4533 = vmatprep.subr.bf16.mxu0 0
    %4534 = vmatpush1.bf16.msra.mxu0 %v4355
    %4535 = vmatprep.subr.bf16.mxu0 0
    %4536 = vmatpush1.bf16.msra.mxu0 %v4356
    %4537 = vmatprep.subr.bf16.mxu0 0
    %4538 = vmatpush1.bf16.msra.mxu0 %v4357
    %4539 = vmatprep.subr.bf16.mxu0 0
    %4540 = vmatpush1.bf16.msra.mxu0 %v4358
    %4541 = vmatprep.subr.bf16.mxu0 0
    %4542 = vmatpush1.bf16.msra.mxu0 %v4359
    %4543 = vmatprep.subr.bf16.mxu0 0
    %4544 = vmatpush1.bf16.msra.mxu0 %v4360
    %4545 = vmatprep.subr.bf16.mxu0 0
    %4546 = vmatpush1.bf16.msra.mxu0 %v4361
    %4547 = vmatprep.mubr.bf16.mxu0 %v3892
    %4548 = vmatmul.mubr.bf16.gmra.mrb[0].mxu0 %v3891
    %v4549 = vpop.f32.mrb[0].mxu0
    %v4550 = vadd.f32 %v4509, %v4549
    %v4551 = vpop.f32.mrb[0].mxu0
    %v4552 = vpop.f32.mrb[0].mxu0
    %v4553 = vadd.f32 %v4512, %v4552
    %v4554 = vpop.f32.mrb[0].mxu0
    %4555 = vdwg.mxu0
    %4556 = vmatprep.subr.bf16.mxu0 0
    %4557 = vmatpush1.bf16.msra.mxu0 %v4362
    %4558 = vmatprep.subr.bf16.mxu0 0
    %4559 = vmatpush1.bf16.msra.mxu0 %v4363
    %4560 = vmatprep.subr.bf16.mxu0 0
    %4561 = vmatpush1.bf16.msra.mxu0 %v4364
    %4562 = vmatprep.subr.bf16.mxu0 0
    %4563 = vmatpush1.bf16.msra.mxu0 %v4365
    %4564 = vmatprep.subr.bf16.mxu0 0
    %4565 = vmatpush1.bf16.msra.mxu0 %v4366
    %4566 = vmatprep.subr.bf16.mxu0 0
    %4567 = vmatpush1.bf16.msra.mxu0 %v4367
    %4568 = vmatprep.subr.bf16.mxu0 0
    %4569 = vmatpush1.bf16.msra.mxu0 %v4368
    %4570 = vmatprep.subr.bf16.mxu0 0
    %4571 = vmatpush1.bf16.msra.mxu0 %v4369
    %4572 = vmatprep.subr.bf16.mxu0 0
    %4573 = vmatpush1.bf16.msra.mxu0 %v4370
    %4574 = vmatprep.subr.bf16.mxu0 0
    %4575 = vmatpush1.bf16.msra.mxu0 %v4371
    %4576 = vmatprep.subr.bf16.mxu0 0
    %4577 = vmatpush1.bf16.msra.mxu0 %v4372
    %4578 = vmatprep.subr.bf16.mxu0 0
    %4579 = vmatpush1.bf16.msra.mxu0 %v4373
    %4580 = vmatprep.subr.bf16.mxu0 0
    %4581 = vmatpush1.bf16.msra.mxu0 %v4374
    %4582 = vmatprep.subr.bf16.mxu0 0
    %4583 = vmatpush1.bf16.msra.mxu0 %v4375
    %4584 = vmatprep.subr.bf16.mxu0 0
    %4585 = vmatpush1.bf16.msra.mxu0 %v4376
    %4586 = vmatprep.subr.bf16.mxu0 0
    %4587 = vmatpush1.bf16.msra.mxu0 %v4377
    %4588 = vmatprep.mubr.bf16.mxu0 %v3894
    %4589 = vmatmul.mubr.bf16.gmra.mrb[0].mxu0 %v3893
    %v4590 = vpop.f32.mrb[0].mxu0
    %v4591 = vadd.f32 %v4550, %v4590
    %v4592 = vpop.f32.mrb[0].mxu0
    %v4593 = vpop.f32.mrb[0].mxu0
    %v4594 = vadd.f32 %v4553, %v4593
    %v4595 = vpop.f32.mrb[0].mxu0
    %4596 = vdwg.mxu0
    %4597 = vmatprep.subr.bf16.mxu0 0
    %4598 = vmatpush1.bf16.msra.mxu0 %v4378
    %4599 = vmatprep.subr.bf16.mxu0 0
    %4600 = vmatpush1.bf16.msra.mxu0 %v4379
    %4601 = vmatprep.subr.bf16.mxu0 0
    %4602 = vmatpush1.bf16.msra.mxu0 %v4380
    %4603 = vmatprep.subr.bf16.mxu0 0
    %4604 = vmatpush1.bf16.msra.mxu0 %v4381
    %4605 = vmatprep.subr.bf16.mxu0 0
    %4606 = vmatpush1.bf16.msra.mxu0 %v4382
    %4607 = vmatprep.subr.bf16.mxu0 0
    %4608 = vmatpush1.bf16.msra.mxu0 %v4383
    %4609 = vmatprep.subr.bf16.mxu0 0
    %4610 = vmatpush1.bf16.msra.mxu0 %v4384
    %4611 = vmatprep.subr.bf16.mxu0 0
    %4612 = vmatpush1.bf16.msra.mxu0 %v4385
    %4613 = vmatprep.subr.bf16.mxu0 0
    %4614 = vmatpush1.bf16.msra.mxu0 %v4386
    %4615 = vmatprep.subr.bf16.mxu0 0
    %4616 = vmatpush1.bf16.msra.mxu0 %v4387
    %4617 = vmatprep.subr.bf16.mxu0 0
    %4618 = vmatpush1.bf16.msra.mxu0 %v4388
    %4619 = vmatprep.subr.bf16.mxu0 0
    %4620 = vmatpush1.bf16.msra.mxu0 %v4389
    %4621 = vmatprep.subr.bf16.mxu0 0
    %4622 = vmatpush1.bf16.msra.mxu0 %v4390
    %4623 = vmatprep.subr.bf16.mxu0 0
    %4624 = vmatpush1.bf16.msra.mxu0 %v4391
    %4625 = vmatprep.subr.bf16.mxu0 0
    %4626 = vmatpush1.bf16.msra.mxu0 %v4392
    %4627 = vmatprep.subr.bf16.mxu0 0
    %4628 = vmatpush1.bf16.msra.mxu0 %v4393
    %4629 = vmatprep.mubr.bf16.mxu0 %v3896
    %4630 = vmatmul.mubr.bf16.gmra.mrb[0].mxu0 %v3895
    %v4631 = vpop.f32.mrb[0].mxu0
    %v4632 = vadd.f32 %v4591, %v4631
    %v4633 = vpop.f32.mrb[0].mxu0
    %v4634 = vpop.f32.mrb[0].mxu0
    %v4635 = vadd.f32 %v4594, %v4634
    %v4636 = vpop.f32.mrb[0].mxu0
    %4637 = vdwg.mxu0
    %4638 = vmatprep.subr.bf16.mxu0 0
    %4639 = vmatpush1.bf16.msra.mxu0 %v4394
    %4640 = vmatprep.subr.bf16.mxu0 0
    %4641 = vmatpush1.bf16.msra.mxu0 %v4395
    %4642 = vmatprep.subr.bf16.mxu0 0
    %4643 = vmatpush1.bf16.msra.mxu0 %v4396
    %4644 = vmatprep.subr.bf16.mxu0 0
    %4645 = vmatpush1.bf16.msra.mxu0 %v4397
    %4646 = vmatprep.subr.bf16.mxu0 0
    %4647 = vmatpush1.bf16.msra.mxu0 %v4398
    %4648 = vmatprep.subr.bf16.mxu0 0
    %4649 = vmatpush1.bf16.msra.mxu0 %v4399
    %4650 = vmatprep.subr.bf16.mxu0 0
    %4651 = vmatpush1.bf16.msra.mxu0 %v4400
    %4652 = vmatprep.subr.bf16.mxu0 0
    %4653 = vmatpush1.bf16.msra.mxu0 %v4401
    %4654 = vmatprep.subr.bf16.mxu0 0
    %4655 = vmatpush1.bf16.msra.mxu0 0
    %4656 = vmatprep.subr.bf16.mxu0 0
    %4657 = vmatpush1.bf16.msra.mxu0 0
    %4658 = vmatprep.subr.bf16.mxu0 0
    %4659 = vmatpush1.bf16.msra.mxu0 0
    %4660 = vmatprep.subr.bf16.mxu0 0
    %4661 = vmatpush1.bf16.msra.mxu0 0
    %4662 = vmatprep.subr.bf16.mxu0 0
    %4663 = vmatpush1.bf16.msra.mxu0 0
    %4664 = vmatprep.subr.bf16.mxu0 0
    %4665 = vmatpush1.bf16.msra.mxu0 0
    %4666 = vmatprep.subr.bf16.mxu0 0
    %4667 = vmatpush1.bf16.msra.mxu0 0
    %4668 = vmatprep.subr.bf16.mxu0 0
    %4669 = vmatpush1.bf16.msra.mxu0 0
    %4670 = vmatprep.mubr.bf16.mxu0 0
    %4671 = vmatmul.mubr.bf16.gmra.mrb[0].mxu0 %v3897
    %v4672 = vpop.f32.mrb[0].mxu0
    %v4673 = vadd.f32 %v4632, %v4672
    %v4674 = vpop.f32.mrb[0].mxu0
    %v4675 = vpop.f32.mrb[0].mxu0
    %v4676 = vadd.f32 %v4635, %v4675
    %v4677 = vpop.f32.mrb[0].mxu0
    %4678 = vdwg.mxu0
    %4679 = vst [vmem:[%s3] sm:$0xff] %v4673
    %4680 = vst [vmem:[%s3 + $0x8] sm:$0xf] %v4676
    // Predicated region
    $region22: #{forward.1} parent=1 // pred_check
      _
    $region23: #{forward.1} parent=1 // pred_check_branch
      %4682 = sbr.rel (0) target = $region25
    $region24: #{forward.1} parent=1 // pred_region
      _
    $region25: #{forward.1} parent=1 // pred_fallthru
      _
    // Predicated region
    $region26: #{forward.1} parent=1 // pred_check
      _
    $region27: #{forward.1} parent=1 // pred_check_branch
      %4684 = sbr.rel (0) target = $region29
    $region28: #{forward.1} parent=1 // pred_region
      _
    $region29: #{forward.1} parent=1 // pred_fallthru
      _
    %4685 = vsyncpa [#allocation4], 1
    %4686 = vsyncpa [#allocation6], 1

</llo_original>
